<compile_context>
chip_gen: v7x
topology: tpu7x:2x2x1
jax: 0.10.0
libtpu: 0.0.40
codegen_flags: <defaults>
</compile_context>

<pallas_src>
import functools

import jax
import jax.numpy as jnp
import numpy as np
from jax import lax
from jax.experimental import pallas as pl
from jax.experimental.pallas import tpu as pltpu


def _round_up(x, m):
    return (x + m - 1) // m * m


# ----------------------------------------------------------------------------
# Kernel
# ----------------------------------------------------------------------------
def mlp_kernel(x_ref, w1_ref, b1_ref, wp_ref, out_ref, *, num_packed, f32_exact):
    """Fused Net3 forward for one (TB, n_in) batch tile.

    x_ref  : (TB, n_in)            batch-major input tile (pipelined).
    w1_ref : (Wa, n_in)            layer-1 weight, rows zero-padded to Wa.
    b1_ref : (Wa, 1)  f32          layer-1 bias; b1_ref[ONE_ROW] == 1.0 seeds
                                   the constant-one row for bias augmentation.
    wp_ref : (num_packed, Wa, Wa)  layers 2..9; bias folded into column
                                   ONE_ROW, row ONE_ROW == e_ONE_ROW.
    out_ref: (1, TB)  f32          lane-dense sigmoid output row.
    """
    precision = lax.Precision.HIGHEST if f32_exact else None
    cdt = x_ref.dtype

    # Layer 1: (Wa, n_in) . (TB, n_in)^T -> (Wa, TB)  (A.B^T, MXU-native).
    z = lax.dot_general(
        w1_ref[...], x_ref[...],
        dimension_numbers=(((1,), (1,)), ((), ())),
        preferred_element_type=jnp.float32,
        precision=precision)
    # Single fused bias + ReLU + cast pass; ONE_ROW: 0 + 1 -> ReLU -> 1.
    h = jnp.maximum(z + b1_ref[...], 0.0).astype(cdt)            # (Wa, TB)

    # Hidden layers 2..8: bias lives inside the matmul (augmentation), so the
    # elementwise stage is just the fused ReLU + cast (no extra pass over z).
    for i in range(num_packed - 1):                               # unrolled
        z = jnp.dot(wp_ref[i], h, preferred_element_type=jnp.float32,
                    precision=precision)                          # (Wa, TB)
        h = jnp.maximum(z, 0.0).astype(cdt)

    # Layer 9: only row 0 of the last slab is live -> (1, TB), lane-dense.
    z = jnp.dot(wp_ref[num_packed - 1][0:1, :], h,
                preferred_element_type=jnp.float32, precision=precision)
    out_ref[...] = jax.nn.sigmoid(z)          # exp + reciprocal on the EUP


# ----------------------------------------------------------------------------
# Parameter packing (host side, once per parameter set)
# ----------------------------------------------------------------------------
def pack_net3_params(weights, biases, *, use_bf16=False):
    """weights[i]: (out_i, in_i) PyTorch layout; biases[i]: (out_i,).

    Returns (w1_p, b1_p, wp) with layers 2..L affine-augmented:
      wp[j][:o, :n]      = W_(j+2)
      wp[j][:o, ONE_ROW] = b_(j+2)
      wp[j][ONE_ROW, ONE_ROW] = 1      (propagates the constant-one row)
    """
    L = len(weights)
    align = 16 if use_bf16 else 8       # bf16 packs 16 sublanes per vreg
    max_feat = max([w.shape[0] for w in weights] +
                   [w.shape[1] for w in weights[1:]])
    Wa = _round_up(max_feat + 1, align)
    one_row = Wa - 1
    n_in = weights[0].shape[1]

    w1_p = np.zeros((Wa, n_in), np.float32)
    b1_p = np.zeros((Wa, 1), np.float32)
    o0 = weights[0].shape[0]
    w1_p[:o0, :] = np.asarray(weights[0])
    b1_p[:o0, 0] = np.asarray(biases[0])
    b1_p[one_row, 0] = 1.0              # seeds the constant-one activation row

    wp = np.zeros((L - 1, Wa, Wa), np.float32)
    for j in range(1, L):
        w, b = np.asarray(weights[j]), np.asarray(biases[j])
        o, n = w.shape
        wp[j - 1, :o, :n] = w
        wp[j - 1, :o, one_row] = b
        wp[j - 1, one_row, one_row] = 1.0
    cdt = jnp.bfloat16 if use_bf16 else jnp.float32
    return (jnp.asarray(w1_p, cdt), jnp.asarray(b1_p, jnp.float32),
            jnp.asarray(wp, cdt))


# ----------------------------------------------------------------------------
# Tiling policy + jitted forward
# ----------------------------------------------------------------------------
def _choose_tiling(B, batch_tile, max_single_tile):
    Bq = _round_up(B, 8)
    if Bq <= max_single_tile:
        tb = _round_up(Bq, 128)         # one big lane-dense tile, grid = (1,)
        return tb, tb, 1
    tb = batch_tile
    bp = _round_up(B, tb)
    n_tiles = bp // tb
    if n_tiles % 2:                     # even split so v7x's 2 TCs both work
        n_tiles += 1
        bp = n_tiles * tb
    return bp, tb, n_tiles


@functools.partial(jax.jit, static_argnames=("batch_tile", "max_single_tile"))
def net3_apply(x, w1_p, b1_p, wp, *, batch_tile=512, max_single_tile=1024):
    """x: (B, n1) f32 -> (B, 1) f32."""
    B, n_in = x.shape
    cdt = w1_p.dtype
    f32_exact = cdt == jnp.float32
    Wa = w1_p.shape[0]
    num_packed = wp.shape[0]
    Bp, TB, n_tiles = _choose_tiling(B, batch_tile, max_single_tile)

    # Batch-major row pad only (no transpose); fused under this jit.
    xp = jnp.zeros((Bp, n_in), cdt).at[:B, :].set(x.astype(cdt))

    if n_tiles == 1:
        dim_sems = ("arbitrary",)
    else:
        # Explicit 2-TensorCore split on v7x; harmless on v5e/v6e (1 TC).
        dim_sems = (pltpu.CORE_PARALLEL,)

    resident = pl.Buffered(1)           # params constant across grid steps

    out = pl.pallas_call(
        functools.partial(mlp_kernel, num_packed=num_packed,
                          f32_exact=f32_exact),
        out_shape=jax.ShapeDtypeStruct((1, Bp), jnp.float32),
        grid=(n_tiles,),
        in_specs=[
            pl.BlockSpec((TB, n_in), lambda i: (i, 0)),               # x tile
            pl.BlockSpec((Wa, n_in), lambda i: (0, 0),
                         pipeline_mode=resident),                     # w1
            pl.BlockSpec((Wa, 1), lambda i: (0, 0),
                         pipeline_mode=resident),                     # b1 (+1)
            pl.BlockSpec((num_packed, Wa, Wa), lambda i: (0, 0, 0),
                         pipeline_mode=resident),                     # layers 2..9
        ],
        out_specs=pl.BlockSpec((1, TB), lambda i: (0, i)),            # lane-dense
        compiler_params=pltpu.CompilerParams(dimension_semantics=dim_sems),
    )(xp, w1_p, b1_p, wp)

    return out[0, :B].reshape(B, 1)


def net3_forward(x, weights, biases, *, use_bf16=False, batch_tile=512,
                 max_single_tile=1024):
    # use_bf16 is a v6e/v7x knob; keep f32 on v5e / for exact PyTorch numerics.
    w1_p, b1_p, wp = pack_net3_params(weights, biases, use_bf16=use_bf16)
    return net3_apply(x, w1_p, b1_p, wp, batch_tile=batch_tile,
                      max_single_tile=max_single_tile)


# ----------------------------------------------------------------------------
# Reference / init (mirrors the PyTorch module)
# ----------------------------------------------------------------------------
def xavier_normal(key, out_f, in_f):
    std = (2.0 / (in_f + out_f)) ** 0.5  # torch.nn.init.xavier_normal_, gain=1
    return jax.random.normal(key, (out_f, in_f), dtype=jnp.float32) * std


def make_params(key, dims):
    """dims = [n1, ..., n9, 1]; returns PyTorch-layout (weights, biases)."""
    weights, biases = [], []
    for i in range(len(dims) - 1):
        key, kw, kb = jax.random.split(key, 3)
        in_f, out_f = dims[i], dims[i + 1]
        weights.append(xavier_normal(kw, out_f, in_f))
        bound = 1.0 / (in_f ** 0.5)      # PyTorch Linear default bias init
        biases.append(jax.random.uniform(kb, (out_f,), dtype=jnp.float32,
                                         minval=-bound, maxval=bound))
    return weights, biases


def reference_forward(x, weights, biases):
    p = lax.Precision.HIGHEST
    h = x
    for w, b in zip(weights[:-1], biases[:-1]):
        h = jnp.maximum(jnp.dot(h, w.T, precision=p) + b, 0.0)
    return jax.nn.sigmoid(jnp.dot(h, weights[-1].T, precision=p) + biases[-1])


if __name__ == "__main__":
    key = jax.random.PRNGKey(0)
    # Net3(n1..n9) hidden widths (mixed, exercises zero-padding); output dim 1.
    dims = [32, 48, 40, 32, 24, 32, 16, 32, 32, 1]

    key, kp = jax.random.split(key)
    weights, biases = make_params(kp, dims)

    # --- Case 1: small batch -> single grid step (TB = 256 for B = 200) ------
    B = 200
    key, kx = jax.random.split(key)
    x = jax.random.normal(kx, (B, dims[0]), dtype=jnp.float32)
    ref = reference_forward(x, weights, biases)

    out = jax.block_until_ready(net3_forward(x, weights, biases))
    assert out.shape == (B, 1), out.shape
    err = float(jnp.max(jnp.abs(out - ref)))
    assert jnp.allclose(out, ref, atol=1e-5, rtol=1e-5), f"f32 max err {err}"

    # bf16 matmul-operand path (f32 accumulation) -- v6e/v7x knob.
    out_bf16 = jax.block_until_ready(net3_forward(x, weights, biases,
                                                  use_bf16=True))
    assert out_bf16.shape == (B, 1), out_bf16.shape
    err_bf16 = float(jnp.max(jnp.abs(out_bf16 - ref)))
    assert bool(jnp.all(jnp.isfinite(out_bf16))) and err_bf16 < 0.1, (
        f"bf16 max err {err_bf16}")

    # --- Case 2: larger batch -> 2 x 512-wide tiles, CORE_PARALLEL split -----
    B2 = 1000
    key, kx2 = jax.random.split(key)
    x2 = jax.random.normal(kx2, (B2, dims[0]), dtype=jnp.float32)
    ref2 = reference_forward(x2, weights, biases)
    out2 = jax.block_until_ready(net3_forward(x2, weights, biases,
                                              batch_tile=512,
                                              max_single_tile=256))
    assert out2.shape == (B2, 1), out2.shape
    err2 = float(jnp.max(jnp.abs(out2 - ref2)))
    assert jnp.allclose(out2, ref2, atol=1e-5, rtol=1e-5), f"f32 max err {err2}"

    print("KERNEL_OK")
</pallas_src>

<mosaic_0001>
module attributes {stable_mosaic.version = 11 : i64} {
  func.func @mlp_kernel(%arg0: i32, %arg1: memref<256x32xf32, #tpu.memory_space<vmem>>, %arg2: memref<56x32xf32, #tpu.memory_space<vmem>>, %arg3: memref<56x1xf32, #tpu.memory_space<vmem>>, %arg4: memref<8x56x56xf32, #tpu.memory_space<vmem>>, %arg5: memref<1x256xf32, #tpu.memory_space<vmem>>) attributes {dimension_semantics = [#tpu.dimension_semantics<arbitrary>], iteration_bounds = array<i64: 1>, scalar_prefetch = 0 : i64, scratch_operands = 0 : i64, tpu.core_type = #tpu.core_type<tc>, window_params = [{transform_indices = @transform_0, window_bounds = array<i64: 256, 32>}, {pipeline_mode = #tpu.pipeline_mode<synchronous>, transform_indices = @transform_1, window_bounds = array<i64: 56, 32>}, {pipeline_mode = #tpu.pipeline_mode<synchronous>, transform_indices = @transform_2, window_bounds = array<i64: 56, 1>}, {pipeline_mode = #tpu.pipeline_mode<synchronous>, transform_indices = @transform_3, window_bounds = array<i64: 8, 56, 56>}, {transform_indices = @transform_4, window_bounds = array<i64: 1, 256>}]} {
    %c0 = arith.constant 0 : index
    %c0_0 = arith.constant 0 : index
    %0 = vector.load %arg2[%c0, %c0_0] : memref<56x32xf32, #tpu.memory_space<vmem>>, vector<56x32xf32>
    %c0_1 = arith.constant 0 : index
    %c0_2 = arith.constant 0 : index
    %1 = vector.load %arg1[%c0_1, %c0_2] : memref<256x32xf32, #tpu.memory_space<vmem>>, vector<256x32xf32>
    %cst = arith.constant dense<0.000000e+00> : vector<56x256xf32>
    %2 = tpu.matmul %0, %1, %cst {dimension_numbers = #tpu.dot_dimension_numbers<[1], [1], [0], [0], [0, 0, 1, 0], [], []>, precision = #tpu.contract_precision<fp32>} : vector<56x32xf32>, vector<256x32xf32>, vector<56x256xf32> -> vector<56x256xf32>
    %c0_3 = arith.constant 0 : index
    %c0_4 = arith.constant 0 : index
    %3 = vector.load %arg3[%c0_3, %c0_4] : memref<56x1xf32, #tpu.memory_space<vmem>>, vector<56x1xf32>
    %4 = vector.broadcast %3 : vector<56x1xf32> to vector<56x256xf32>
    %5 = arith.addf %2, %4 : vector<56x256xf32>
    %cst_5 = arith.constant 0.000000e+00 : f32
    %6 = vector.broadcast %cst_5 : f32 to vector<56x256xf32>
    %7 = arith.maximumf %5, %6 : vector<56x256xf32>
    %c0_6 = arith.constant 0 : index
    %c0_7 = arith.constant 0 : index
    %c0_8 = arith.constant 0 : index
    %8 = vector.load %arg4[%c0_6, %c0_7, %c0_8] : memref<8x56x56xf32, #tpu.memory_space<vmem>>, vector<1x56x56xf32>
    %9 = vector.shape_cast %8 : vector<1x56x56xf32> to vector<56x56xf32>
    %cst_9 = arith.constant dense<0.000000e+00> : vector<56x256xf32>
    %10 = tpu.matmul %9, %7, %cst_9 {dimension_numbers = #tpu.dot_dimension_numbers<[1], [0], [0], [1], [0, 0, 1, 1], [], []>, precision = #tpu.contract_precision<fp32>} : vector<56x56xf32>, vector<56x256xf32>, vector<56x256xf32> -> vector<56x256xf32>
    %cst_10 = arith.constant 0.000000e+00 : f32
    %11 = vector.broadcast %cst_10 : f32 to vector<56x256xf32>
    %12 = arith.maximumf %10, %11 : vector<56x256xf32>
    %c1 = arith.constant 1 : index
    %c0_11 = arith.constant 0 : index
    %c0_12 = arith.constant 0 : index
    %13 = vector.load %arg4[%c1, %c0_11, %c0_12] : memref<8x56x56xf32, #tpu.memory_space<vmem>>, vector<1x56x56xf32>
    %14 = vector.shape_cast %13 : vector<1x56x56xf32> to vector<56x56xf32>
    %cst_13 = arith.constant dense<0.000000e+00> : vector<56x256xf32>
    %15 = tpu.matmul %14, %12, %cst_13 {dimension_numbers = #tpu.dot_dimension_numbers<[1], [0], [0], [1], [0, 0, 1, 1], [], []>, precision = #tpu.contract_precision<fp32>} : vector<56x56xf32>, vector<56x256xf32>, vector<56x256xf32> -> vector<56x256xf32>
    %cst_14 = arith.constant 0.000000e+00 : f32
    %16 = vector.broadcast %cst_14 : f32 to vector<56x256xf32>
    %17 = arith.maximumf %15, %16 : vector<56x256xf32>
    %c2 = arith.constant 2 : index
    %c0_15 = arith.constant 0 : index
    %c0_16 = arith.constant 0 : index
    %18 = vector.load %arg4[%c2, %c0_15, %c0_16] : memref<8x56x56xf32, #tpu.memory_space<vmem>>, vector<1x56x56xf32>
    %19 = vector.shape_cast %18 : vector<1x56x56xf32> to vector<56x56xf32>
    %cst_17 = arith.constant dense<0.000000e+00> : vector<56x256xf32>
    %20 = tpu.matmul %19, %17, %cst_17 {dimension_numbers = #tpu.dot_dimension_numbers<[1], [0], [0], [1], [0, 0, 1, 1], [], []>, precision = #tpu.contract_precision<fp32>} : vector<56x56xf32>, vector<56x256xf32>, vector<56x256xf32> -> vector<56x256xf32>
    %cst_18 = arith.constant 0.000000e+00 : f32
    %21 = vector.broadcast %cst_18 : f32 to vector<56x256xf32>
    %22 = arith.maximumf %20, %21 : vector<56x256xf32>
    %c3 = arith.constant 3 : index
    %c0_19 = arith.constant 0 : index
    %c0_20 = arith.constant 0 : index
    %23 = vector.load %arg4[%c3, %c0_19, %c0_20] : memref<8x56x56xf32, #tpu.memory_space<vmem>>, vector<1x56x56xf32>
    %24 = vector.shape_cast %23 : vector<1x56x56xf32> to vector<56x56xf32>
    %cst_21 = arith.constant dense<0.000000e+00> : vector<56x256xf32>
    %25 = tpu.matmul %24, %22, %cst_21 {dimension_numbers = #tpu.dot_dimension_numbers<[1], [0], [0], [1], [0, 0, 1, 1], [], []>, precision = #tpu.contract_precision<fp32>} : vector<56x56xf32>, vector<56x256xf32>, vector<56x256xf32> -> vector<56x256xf32>
    %cst_22 = arith.constant 0.000000e+00 : f32
    %26 = vector.broadcast %cst_22 : f32 to vector<56x256xf32>
    %27 = arith.maximumf %25, %26 : vector<56x256xf32>
    %c4 = arith.constant 4 : index
    %c0_23 = arith.constant 0 : index
    %c0_24 = arith.constant 0 : index
    %28 = vector.load %arg4[%c4, %c0_23, %c0_24] : memref<8x56x56xf32, #tpu.memory_space<vmem>>, vector<1x56x56xf32>
    %29 = vector.shape_cast %28 : vector<1x56x56xf32> to vector<56x56xf32>
    %cst_25 = arith.constant dense<0.000000e+00> : vector<56x256xf32>
    %30 = tpu.matmul %29, %27, %cst_25 {dimension_numbers = #tpu.dot_dimension_numbers<[1], [0], [0], [1], [0, 0, 1, 1], [], []>, precision = #tpu.contract_precision<fp32>} : vector<56x56xf32>, vector<56x256xf32>, vector<56x256xf32> -> vector<56x256xf32>
    %cst_26 = arith.constant 0.000000e+00 : f32
    %31 = vector.broadcast %cst_26 : f32 to vector<56x256xf32>
    %32 = arith.maximumf %30, %31 : vector<56x256xf32>
    %c5 = arith.constant 5 : index
    %c0_27 = arith.constant 0 : index
    %c0_28 = arith.constant 0 : index
    %33 = vector.load %arg4[%c5, %c0_27, %c0_28] : memref<8x56x56xf32, #tpu.memory_space<vmem>>, vector<1x56x56xf32>
    %34 = vector.shape_cast %33 : vector<1x56x56xf32> to vector<56x56xf32>
    %cst_29 = arith.constant dense<0.000000e+00> : vector<56x256xf32>
    %35 = tpu.matmul %34, %32, %cst_29 {dimension_numbers = #tpu.dot_dimension_numbers<[1], [0], [0], [1], [0, 0, 1, 1], [], []>, precision = #tpu.contract_precision<fp32>} : vector<56x56xf32>, vector<56x256xf32>, vector<56x256xf32> -> vector<56x256xf32>
    %cst_30 = arith.constant 0.000000e+00 : f32
    %36 = vector.broadcast %cst_30 : f32 to vector<56x256xf32>
    %37 = arith.maximumf %35, %36 : vector<56x256xf32>
    %c6 = arith.constant 6 : index
    %c0_31 = arith.constant 0 : index
    %c0_32 = arith.constant 0 : index
    %38 = vector.load %arg4[%c6, %c0_31, %c0_32] : memref<8x56x56xf32, #tpu.memory_space<vmem>>, vector<1x56x56xf32>
    %39 = vector.shape_cast %38 : vector<1x56x56xf32> to vector<56x56xf32>
    %cst_33 = arith.constant dense<0.000000e+00> : vector<56x256xf32>
    %40 = tpu.matmul %39, %37, %cst_33 {dimension_numbers = #tpu.dot_dimension_numbers<[1], [0], [0], [1], [0, 0, 1, 1], [], []>, precision = #tpu.contract_precision<fp32>} : vector<56x56xf32>, vector<56x256xf32>, vector<56x256xf32> -> vector<56x256xf32>
    %cst_34 = arith.constant 0.000000e+00 : f32
    %41 = vector.broadcast %cst_34 : f32 to vector<56x256xf32>
    %42 = arith.maximumf %40, %41 : vector<56x256xf32>
    %c7 = arith.constant 7 : index
    %c0_35 = arith.constant 0 : index
    %c0_36 = arith.constant 0 : index
    %43 = vector.load %arg4[%c7, %c0_35, %c0_36] : memref<8x56x56xf32, #tpu.memory_space<vmem>>, vector<1x56x56xf32>
    %44 = vector.shape_cast %43 : vector<1x56x56xf32> to vector<56x56xf32>
    %45 = vector.extract_strided_slice %44 {offsets = [0, 0], sizes = [1, 56], strides = [1, 1]} : vector<56x56xf32> to vector<1x56xf32>
    %cst_37 = arith.constant dense<0.000000e+00> : vector<1x256xf32>
    %46 = tpu.matmul %45, %42, %cst_37 {dimension_numbers = #tpu.dot_dimension_numbers<[1], [0], [0], [1], [0, 0, 1, 1], [], []>, precision = #tpu.contract_precision<fp32>} : vector<1x56xf32>, vector<56x256xf32>, vector<1x256xf32> -> vector<1x256xf32>
    %47 = arith.negf %46 : vector<1x256xf32>
    %48 = math.exp %47 : vector<1x256xf32>
    %cst_38 = arith.constant 1.000000e+00 : f32
    %49 = vector.broadcast %cst_38 : f32 to vector<1x256xf32>
    %50 = arith.addf %49, %48 : vector<1x256xf32>
    %51 = arith.divf %49, %50 : vector<1x256xf32>
    %c0_39 = arith.constant 0 : index
    %c0_40 = arith.constant 0 : index
    %52 = vector.load %arg5[%c0_39, %c0_40] : memref<1x256xf32, #tpu.memory_space<vmem>>, vector<1x256xf32>
    tpu.vector_store %arg5[%c0_39, %c0_40], %51 {strides = array<i32>} : memref<1x256xf32, #tpu.memory_space<vmem>>, vector<1x256xf32>,
    return
  }
  func.func @transform_0(%arg0: i32) -> (i32, i32) {
    %c0_i32 = arith.constant 0 : i32
    %c0_i32_0 = arith.constant 0 : i32
    return %arg0, %c0_i32 : i32, i32
  }
  func.func @transform_1(%arg0: i32) -> (i32, i32) {
    %c0_i32 = arith.constant 0 : i32
    %c0_i32_0 = arith.constant 0 : i32
    %c0_i32_1 = arith.constant 0 : i32
    return %c0_i32, %c0_i32_0 : i32, i32
  }
  func.func @transform_2(%arg0: i32) -> (i32, i32) {
    %c0_i32 = arith.constant 0 : i32
    %c0_i32_0 = arith.constant 0 : i32
    %c0_i32_1 = arith.constant 0 : i32
    return %c0_i32, %c0_i32_0 : i32, i32
  }
  func.func @transform_3(%arg0: i32) -> (i32, i32, i32) {
    %c0_i32 = arith.constant 0 : i32
    %c0_i32_0 = arith.constant 0 : i32
    %c0_i32_1 = arith.constant 0 : i32
    %c0_i32_2 = arith.constant 0 : i32
    return %c0_i32, %c0_i32_0, %c0_i32_1 : i32, i32, i32
  }
  func.func @transform_4(%arg0: i32) -> (i32, i32) {
    %c0_i32 = arith.constant 0 : i32
    %c0_i32_0 = arith.constant 0 : i32
    return %c0_i32, %arg0 : i32, i32
  }
}

</mosaic_0001>

<llo_original>
// kernel: net3_apply.1
$region0: #{net3_apply.1}
  #allocation0 [shape = 'u32[]', space=smem, size = 0x4, offset = 0x4, fixed_abs, tag = 'smem constant byte address 0x4 - core index']
  #allocation1 [shape = 'u32[144,128]{1,0:T(1,128)}', space=vmem, size = 0x12000, scoped, tag = 'internal scratch']
  %s0 = inlined_call_operand.vmem [shape: f32[256,32], index: 0, kind: input, shape index: {}]
  %s1 = inlined_call_operand.vmem [shape: f32[56,32], index: 1, kind: input, shape index: {}]
  %s2 = inlined_call_operand.vmem [shape: f32[56,1], index: 2, kind: input, shape index: {}]
  %s3 = inlined_call_operand.vmem [shape: f32[8,56,56], index: 3, kind: input, shape index: {}]
  %s4 = inlined_call_operand.vmem [shape: f32[1,256], index: 4, kind: output, shape index: {}]
  %s5 = sld [smem:[#allocation0]]
  $region26: #{net3_apply.1} parent=0
    _
  %s7 = ssub.s32 1, %s5
  %s8 = scalar_select 0, %s7, %s5
  // Predicated region
  $region2: #{net3_apply.1} parent=0 // pred_check
    _
  $region3: #{net3_apply.1} parent=0 // pred_check_branch
    %10 = sbr.rel (0) target = $region5
  $region4: #{net3_apply.1} parent=0 // pred_region
    _
  $region5: #{net3_apply.1} parent=0 // pred_fallthru
    _
  // Predicated region
  $region6: #{net3_apply.1} parent=0 // pred_check
    _
  $region7: #{net3_apply.1} parent=0 // pred_check_branch
    %12 = sbr.rel (0) target = $region9
  $region8: #{net3_apply.1} parent=0 // pred_region
    _
  $region9: #{net3_apply.1} parent=0 // pred_fallthru
    _
  // Predicated region
  $region10: #{net3_apply.1} parent=0 // pred_check
    _
  $region11: #{net3_apply.1} parent=0 // pred_check_branch
    %14 = sbr.rel (0) target = $region13
  $region12: #{net3_apply.1} parent=0 // pred_region
    _
  $region13: #{net3_apply.1} parent=0 // pred_fallthru
    _
  // Predicated region
  $region14: #{net3_apply.1} parent=0 // pred_check
    _
  $region15: #{net3_apply.1} parent=0 // pred_check_branch
    %16 = sbr.rel (0) target = $region17
  $region16: #{net3_apply.1} parent=0 // pred_region
    _
  $region17: #{net3_apply.1} parent=0 // pred_fallthru
    _
  %v17 = vld [vmem:[%s1] sm:$0xff]
  %v18 = vld [vmem:[%s1 + $0x8] sm:$0xff]
  %v19 = vld [vmem:[%s1 + $0x10] sm:$0xff]
  %v20 = vld [vmem:[%s1 + $0x18] sm:$0xff]
  %v21 = vld [vmem:[%s1 + $0x20] sm:$0xff]
  %v22 = vld [vmem:[%s1 + $0x28] sm:$0xff]
  %v23 = vld [vmem:[%s1 + $0x30] sm:$0xff]
  %v24 = vld [vmem:[%s0] sm:$0xff]
  %v25 = vld [vmem:[%s0 + $0x8] sm:$0xff]
  %v26 = vld [vmem:[%s0 + $0x10] sm:$0xff]
  %v27 = vld [vmem:[%s0 + $0x18] sm:$0xff]
  %v28 = vld [vmem:[%s0 + $0x20] sm:$0xff]
  %v29 = vld [vmem:[%s0 + $0x28] sm:$0xff]
  %v30 = vld [vmem:[%s0 + $0x30] sm:$0xff]
  %v31 = vld [vmem:[%s0 + $0x38] sm:$0xff]
  %v32 = vld [vmem:[%s0 + $0x40] sm:$0xff]
  %v33 = vld [vmem:[%s0 + $0x48] sm:$0xff]
  %v34 = vld [vmem:[%s0 + $0x50] sm:$0xff]
  %v35 = vld [vmem:[%s0 + $0x58] sm:$0xff]
  %v36 = vld [vmem:[%s0 + $0x60] sm:$0xff]
  %v37 = vld [vmem:[%s0 + $0x68] sm:$0xff]
  %v38 = vld [vmem:[%s0 + $0x70] sm:$0xff]
  %v39 = vld [vmem:[%s0 + $0x78] sm:$0xff]
  %v40 = vld [vmem:[%s0 + $0x80] sm:$0xff]
  %v41 = vld [vmem:[%s0 + $0x88] sm:$0xff]
  %v42 = vld [vmem:[%s0 + $0x90] sm:$0xff]
  %v43 = vld [vmem:[%s0 + $0x98] sm:$0xff]
  %v44 = vld [vmem:[%s0 + $0xa0] sm:$0xff]
  %v45 = vld [vmem:[%s0 + $0xa8] sm:$0xff]
  %v46 = vld [vmem:[%s0 + $0xb0] sm:$0xff]
  %v47 = vld [vmem:[%s0 + $0xb8] sm:$0xff]
  %v48 = vld [vmem:[%s0 + $0xc0] sm:$0xff]
  %v49 = vld [vmem:[%s0 + $0xc8] sm:$0xff]
  %v50 = vld [vmem:[%s0 + $0xd0] sm:$0xff]
  %v51 = vld [vmem:[%s0 + $0xd8] sm:$0xff]
  %v52 = vld [vmem:[%s0 + $0xe0] sm:$0xff]
  %v53 = vld [vmem:[%s0 + $0xe8] sm:$0xff]
  %v54 = vld [vmem:[%s0 + $0xf0] sm:$0xff]
  %v55 = vld [vmem:[%s0 + $0xf8] sm:$0xff]
  %v56 = vld [vmem:[%s2] sm:$0xff]
  %v57 = vld [vmem:[%s2 + $0x8] sm:$0xff]
  %v58 = vld [vmem:[%s2 + $0x10] sm:$0xff]
  %v59 = vld [vmem:[%s2 + $0x18] sm:$0xff]
  %v60 = vld [vmem:[%s2 + $0x20] sm:$0xff]
  %v61 = vld [vmem:[%s2 + $0x28] sm:$0xff]
  %v62 = vld [vmem:[%s2 + $0x30] sm:$0xff]
  %64 = vset.pattern.permute.xlu0 0
  %65 = vperm.xlu0 %64, %v56
  %v66 = vpop.permute.xlu0 %65
  %69 = vset.pattern.permute.xlu0 0
  %70 = vperm.xlu0 %69, %v57
  %v71 = vpop.permute.xlu0 %70
  %74 = vset.pattern.permute.xlu0 0
  %75 = vperm.xlu0 %74, %v58
  %v76 = vpop.permute.xlu0 %75
  %79 = vset.pattern.permute.xlu0 0
  %80 = vperm.xlu0 %79, %v59
  %v81 = vpop.permute.xlu0 %80
  %84 = vset.pattern.permute.xlu0 0
  %85 = vperm.xlu0 %84, %v60
  %v86 = vpop.permute.xlu0 %85
  %89 = vset.pattern.permute.xlu0 0
  %90 = vperm.xlu0 %89, %v61
  %v91 = vpop.permute.xlu0 %90
  %94 = vset.pattern.permute.xlu0 0
  %95 = vperm.xlu0 %94, %v62
  %v96 = vpop.permute.xlu0 %95
  %vm98 = vcmask 261120
  %v100 = vsel %vm98, %v17, 0
  %v103 = vsel %vm98, %v18, 0
  %v106 = vsel %vm98, %v19, 0
  %v109 = vsel %vm98, %v20, 0
  %v112 = vsel %vm98, %v21, 0
  %v115 = vsel %vm98, %v22, 0
  %v118 = vsel %vm98, %v23, 0
  %v121 = vsel %vm98, %v24, 0
  %v124 = vsel %vm98, %v25, 0
  %v127 = vsel %vm98, %v26, 0
  %v130 = vsel %vm98, %v27, 0
  %v133 = vsel %vm98, %v28, 0
  %v136 = vsel %vm98, %v29, 0
  %v139 = vsel %vm98, %v30, 0
  %v142 = vsel %vm98, %v31, 0
  %v145 = vsel %vm98, %v32, 0
  %v148 = vsel %vm98, %v33, 0
  %v151 = vsel %vm98, %v34, 0
  %v154 = vsel %vm98, %v35, 0
  %v157 = vsel %vm98, %v36, 0
  %v160 = vsel %vm98, %v37, 0
  %v163 = vsel %vm98, %v38, 0
  %v166 = vsel %vm98, %v39, 0
  %v169 = vsel %vm98, %v40, 0
  %v172 = vsel %vm98, %v41, 0
  %v175 = vsel %vm98, %v42, 0
  %v178 = vsel %vm98, %v43, 0
  %v181 = vsel %vm98, %v44, 0
  %v184 = vsel %vm98, %v45, 0
  %v187 = vsel %vm98, %v46, 0
  %v190 = vsel %vm98, %v47, 0
  %v193 = vsel %vm98, %v48, 0
  %v196 = vsel %vm98, %v49, 0
  %v199 = vsel %vm98, %v50, 0
  %v202 = vsel %vm98, %v51, 0
  %v205 = vsel %vm98, %v52, 0
  %v208 = vsel %vm98, %v53, 0
  %v211 = vsel %vm98, %v54, 0
  %v214 = vsel %vm98, %v55, 0
  %216 = vmatprep.subr.mxu0 0.0
  %v217 = vand.u32 %v121, 4294901760
  %218 = vmatpush1.xpose.msra.mxu0 %v217
  %219 = vmatprep.subr.mxu0 0.0
  %v220 = vand.u32 %v124, 4294901760
  %221 = vmatpush1.xpose.msra.mxu0 %v220
  %222 = vmatprep.subr.mxu0 0.0
  %v223 = vand.u32 %v127, 4294901760
  %224 = vmatpush1.xpose.msra.mxu0 %v223
  %225 = vmatprep.subr.mxu0 0.0
  %v226 = vand.u32 %v130, 4294901760
  %227 = vmatpush1.xpose.msra.mxu0 %v226
  %228 = vmatprep.subr.mxu0 0.0
  %v229 = vand.u32 %v133, 4294901760
  %230 = vmatpush1.xpose.msra.mxu0 %v229
  %231 = vmatprep.subr.mxu0 0.0
  %v232 = vand.u32 %v136, 4294901760
  %233 = vmatpush1.xpose.msra.mxu0 %v232
  %234 = vmatprep.subr.mxu0 0.0
  %v235 = vand.u32 %v139, 4294901760
  %236 = vmatpush1.xpose.msra.mxu0 %v235
  %237 = vmatprep.subr.mxu0 0.0
  %v238 = vand.u32 %v142, 4294901760
  %239 = vmatpush1.xpose.msra.mxu0 %v238
  %240 = vmatprep.subr.mxu0 0.0
  %v241 = vand.u32 %v145, 4294901760
  %242 = vmatpush1.xpose.msra.mxu0 %v241
  %243 = vmatprep.subr.mxu0 0.0
  %v244 = vand.u32 %v148, 4294901760
  %245 = vmatpush1.xpose.msra.mxu0 %v244
  %246 = vmatprep.subr.mxu0 0.0
  %v247 = vand.u32 %v151, 4294901760
  %248 = vmatpush1.xpose.msra.mxu0 %v247
  %249 = vmatprep.subr.mxu0 0.0
  %v250 = vand.u32 %v154, 4294901760
  %251 = vmatpush1.xpose.msra.mxu0 %v250
  %252 = vmatprep.subr.mxu0 0.0
  %v253 = vand.u32 %v157, 4294901760
  %254 = vmatpush1.xpose.msra.mxu0 %v253
  %255 = vmatprep.subr.mxu0 0.0
  %v256 = vand.u32 %v160, 4294901760
  %257 = vmatpush1.xpose.msra.mxu0 %v256
  %258 = vmatprep.subr.mxu0 0.0
  %v259 = vand.u32 %v163, 4294901760
  %260 = vmatpush1.xpose.msra.mxu0 %v259
  %261 = vmatprep.subr.mxu0 0.0
  %v262 = vand.u32 %v166, 4294901760
  %263 = vmatpush1.xpose.msra.mxu0 %v262
  %264 = vmatprep.subr.mxu0 0.0
  %v265 = vand.u32 %v169, 4294901760
  %266 = vmatpush1.xpose.msra.mxu0 %v265
  %267 = vmatprep.subr.mxu0 0.0
  %v268 = vand.u32 %v172, 4294901760
  %269 = vmatpush1.xpose.msra.mxu0 %v268
  %270 = vmatprep.subr.mxu0 0.0
  %v271 = vand.u32 %v175, 4294901760
  %272 = vmatpush1.xpose.msra.mxu0 %v271
  %273 = vmatprep.subr.mxu0 0.0
  %v274 = vand.u32 %v178, 4294901760
  %275 = vmatpush1.xpose.msra.mxu0 %v274
  %276 = vmatprep.subr.mxu0 0.0
  %v277 = vand.u32 %v181, 4294901760
  %278 = vmatpush1.xpose.msra.mxu0 %v277
  %279 = vmatprep.subr.mxu0 0.0
  %v280 = vand.u32 %v184, 4294901760
  %281 = vmatpush1.xpose.msra.mxu0 %v280
  %282 = vmatprep.subr.mxu0 0.0
  %v283 = vand.u32 %v187, 4294901760
  %284 = vmatpush1.xpose.msra.mxu0 %v283
  %285 = vmatprep.subr.mxu0 0.0
  %v286 = vand.u32 %v190, 4294901760
  %287 = vmatpush1.xpose.msra.mxu0 %v286
  %288 = vmatprep.subr.mxu0 0.0
  %v289 = vand.u32 %v193, 4294901760
  %290 = vmatpush1.xpose.msra.mxu0 %v289
  %291 = vmatprep.subr.mxu0 0.0
  %v292 = vand.u32 %v196, 4294901760
  %293 = vmatpush1.xpose.msra.mxu0 %v292
  %294 = vmatprep.subr.mxu0 0.0
  %v295 = vand.u32 %v199, 4294901760
  %296 = vmatpush1.xpose.msra.mxu0 %v295
  %297 = vmatprep.subr.mxu0 0.0
  %v298 = vand.u32 %v202, 4294901760
  %299 = vmatpush1.xpose.msra.mxu0 %v298
  %300 = vmatprep.subr.mxu0 0.0
  %v301 = vand.u32 %v205, 4294901760
  %302 = vmatpush1.xpose.msra.mxu0 %v301
  %303 = vmatprep.subr.mxu0 0.0
  %v304 = vand.u32 %v208, 4294901760
  %305 = vmatpush1.xpose.msra.mxu0 %v304
  %306 = vmatprep.subr.mxu0 0.0
  %v307 = vand.u32 %v211, 4294901760
  %308 = vmatpush1.xpose.msra.mxu0 %v307
  %309 = vmatprep.subr.mxu0 0.0
  %v310 = vand.u32 %v214, 4294901760
  %311 = vmatpush1.xpose.msra.mxu0 %v310
  %312 = vmatprep.mubr.f32.mxu0 0.0
  %v313 = vand.u32 %v100, 4294901760
  %v314 = vsub.f32 %v100, %v313
  %v315 = vand.u32 %v314, 4294901760
  %v316 = vsub.f32 %v314, %v315
  %v317 = vand.u32 %v316, 4294901760
  %318 = vmatmul.mubr.f32.gmra.mrb[0].mxu0 %v317
  %v319 = vpop.f32.mrb[0].mxu0
  %v320 = vadd.f32 %v66, %v319
  %v321 = vpop.f32.mrb[0].mxu0
  %v322 = vadd.f32 %v66, %v321
  %323 = vmatprep.mubr.f32.mxu0 0.0
  %v324 = vand.u32 %v103, 4294901760
  %v325 = vsub.f32 %v103, %v324
  %v326 = vand.u32 %v325, 4294901760
  %v327 = vsub.f32 %v325, %v326
  %v328 = vand.u32 %v327, 4294901760
  %329 = vmatmul.mubr.f32.gmra.mrb[0].mxu0 %v328
  %v330 = vpop.f32.mrb[0].mxu0
  %v331 = vadd.f32 %v71, %v330
  %v332 = vpop.f32.mrb[0].mxu0
  %v333 = vadd.f32 %v71, %v332
  %334 = vmatprep.mubr.f32.mxu0 0.0
  %v335 = vand.u32 %v106, 4294901760
  %v336 = vsub.f32 %v106, %v335
  %v337 = vand.u32 %v336, 4294901760
  %v338 = vsub.f32 %v336, %v337
  %v339 = vand.u32 %v338, 4294901760
  %340 = vmatmul.mubr.f32.gmra.mrb[0].mxu0 %v339
  %v341 = vpop.f32.mrb[0].mxu0
  %v342 = vadd.f32 %v76, %v341
  %v343 = vpop.f32.mrb[0].mxu0
  %v344 = vadd.f32 %v76, %v343
  %345 = vmatprep.mubr.f32.mxu0 0.0
  %v346 = vand.u32 %v109, 4294901760
  %v347 = vsub.f32 %v109, %v346
  %v348 = vand.u32 %v347, 4294901760
  %v349 = vsub.f32 %v347, %v348
  %v350 = vand.u32 %v349, 4294901760
  %351 = vmatmul.mubr.f32.gmra.mrb[0].mxu0 %v350
  %v352 = vpop.f32.mrb[0].mxu0
  %v353 = vadd.f32 %v81, %v352
  %v354 = vpop.f32.mrb[0].mxu0
  %v355 = vadd.f32 %v81, %v354
  %356 = vmatprep.mubr.f32.mxu0 0.0
  %v357 = vand.u32 %v112, 4294901760
  %v358 = vsub.f32 %v112, %v357
  %v359 = vand.u32 %v358, 4294901760
  %v360 = vsub.f32 %v358, %v359
  %v361 = vand.u32 %v360, 4294901760
  %362 = vmatmul.mubr.f32.gmra.mrb[0].mxu0 %v361
  %v363 = vpop.f32.mrb[0].mxu0
  %v364 = vadd.f32 %v86, %v363
  %v365 = vpop.f32.mrb[0].mxu0
  %v366 = vadd.f32 %v86, %v365
  %367 = vmatprep.mubr.f32.mxu0 0.0
  %v368 = vand.u32 %v115, 4294901760
  %v369 = vsub.f32 %v115, %v368
  %v370 = vand.u32 %v369, 4294901760
  %v371 = vsub.f32 %v369, %v370
  %v372 = vand.u32 %v371, 4294901760
  %373 = vmatmul.mubr.f32.gmra.mrb[0].mxu0 %v372
  %v374 = vpop.f32.mrb[0].mxu0
  %v375 = vadd.f32 %v91, %v374
  %v376 = vpop.f32.mrb[0].mxu0
  %v377 = vadd.f32 %v91, %v376
  %378 = vmatprep.mubr.f32.mxu0 0.0
  %v379 = vand.u32 %v118, 4294901760
  %v380 = vsub.f32 %v118, %v379
  %v381 = vand.u32 %v380, 4294901760
  %v382 = vsub.f32 %v380, %v381
  %v383 = vand.u32 %v382, 4294901760
  %384 = vmatmul.mubr.f32.gmra.mrb[0].mxu0 %v383
  %v385 = vpop.f32.mrb[0].mxu0
  %v386 = vadd.f32 %v96, %v385
  %v387 = vpop.f32.mrb[0].mxu0
  %v388 = vadd.f32 %v96, %v387
  %389 = vdwg.mxu0
  %390 = vmatprep.subr.mxu0 0.0
  %v391 = vand.u32 %v121, 4294901760
  %v392 = vsub.f32 %v121, %v391
  %v393 = vand.u32 %v392, 4294901760
  %v394 = vsub.f32 %v392, %v393
  %v395 = vand.u32 %v394, 4294901760
  %396 = vmatpush1.xpose.msra.mxu0 %v395
  %397 = vmatprep.subr.mxu0 0.0
  %v398 = vand.u32 %v124, 4294901760
  %v399 = vsub.f32 %v124, %v398
  %v400 = vand.u32 %v399, 4294901760
  %v401 = vsub.f32 %v399, %v400
  %v402 = vand.u32 %v401, 4294901760
  %403 = vmatpush1.xpose.msra.mxu0 %v402
  %404 = vmatprep.subr.mxu0 0.0
  %v405 = vand.u32 %v127, 4294901760
  %v406 = vsub.f32 %v127, %v405
  %v407 = vand.u32 %v406, 4294901760
  %v408 = vsub.f32 %v406, %v407
  %v409 = vand.u32 %v408, 4294901760
  %410 = vmatpush1.xpose.msra.mxu0 %v409
  %411 = vmatprep.subr.mxu0 0.0
  %v412 = vand.u32 %v130, 4294901760
  %v413 = vsub.f32 %v130, %v412
  %v414 = vand.u32 %v413, 4294901760
  %v415 = vsub.f32 %v413, %v414
  %v416 = vand.u32 %v415, 4294901760
  %417 = vmatpush1.xpose.msra.mxu0 %v416
  %418 = vmatprep.subr.mxu0 0.0
  %v419 = vand.u32 %v133, 4294901760
  %v420 = vsub.f32 %v133, %v419
  %v421 = vand.u32 %v420, 4294901760
  %v422 = vsub.f32 %v420, %v421
  %v423 = vand.u32 %v422, 4294901760
  %424 = vmatpush1.xpose.msra.mxu0 %v423
  %425 = vmatprep.subr.mxu0 0.0
  %v426 = vand.u32 %v136, 4294901760
  %v427 = vsub.f32 %v136, %v426
  %v428 = vand.u32 %v427, 4294901760
  %v429 = vsub.f32 %v427, %v428
  %v430 = vand.u32 %v429, 4294901760
  %431 = vmatpush1.xpose.msra.mxu0 %v430
  %432 = vmatprep.subr.mxu0 0.0
  %v433 = vand.u32 %v139, 4294901760
  %v434 = vsub.f32 %v139, %v433
  %v435 = vand.u32 %v434, 4294901760
  %v436 = vsub.f32 %v434, %v435
  %v437 = vand.u32 %v436, 4294901760
  %438 = vmatpush1.xpose.msra.mxu0 %v437
  %439 = vmatprep.subr.mxu0 0.0
  %v440 = vand.u32 %v142, 4294901760
  %v441 = vsub.f32 %v142, %v440
  %v442 = vand.u32 %v441, 4294901760
  %v443 = vsub.f32 %v441, %v442
  %v444 = vand.u32 %v443, 4294901760
  %445 = vmatpush1.xpose.msra.mxu0 %v444
  %446 = vmatprep.subr.mxu0 0.0
  %v447 = vand.u32 %v145, 4294901760
  %v448 = vsub.f32 %v145, %v447
  %v449 = vand.u32 %v448, 4294901760
  %v450 = vsub.f32 %v448, %v449
  %v451 = vand.u32 %v450, 4294901760
  %452 = vmatpush1.xpose.msra.mxu0 %v451
  %453 = vmatprep.subr.mxu0 0.0
  %v454 = vand.u32 %v148, 4294901760
  %v455 = vsub.f32 %v148, %v454
  %v456 = vand.u32 %v455, 4294901760
  %v457 = vsub.f32 %v455, %v456
  %v458 = vand.u32 %v457, 4294901760
  %459 = vmatpush1.xpose.msra.mxu0 %v458
  %460 = vmatprep.subr.mxu0 0.0
  %v461 = vand.u32 %v151, 4294901760
  %v462 = vsub.f32 %v151, %v461
  %v463 = vand.u32 %v462, 4294901760
  %v464 = vsub.f32 %v462, %v463
  %v465 = vand.u32 %v464, 4294901760
  %466 = vmatpush1.xpose.msra.mxu0 %v465
  %467 = vmatprep.subr.mxu0 0.0
  %v468 = vand.u32 %v154, 4294901760
  %v469 = vsub.f32 %v154, %v468
  %v470 = vand.u32 %v469, 4294901760
  %v471 = vsub.f32 %v469, %v470
  %v472 = vand.u32 %v471, 4294901760
  %473 = vmatpush1.xpose.msra.mxu0 %v472
  %474 = vmatprep.subr.mxu0 0.0
  %v475 = vand.u32 %v157, 4294901760
  %v476 = vsub.f32 %v157, %v475
  %v477 = vand.u32 %v476, 4294901760
  %v478 = vsub.f32 %v476, %v477
  %v479 = vand.u32 %v478, 4294901760
  %480 = vmatpush1.xpose.msra.mxu0 %v479
  %481 = vmatprep.subr.mxu0 0.0
  %v482 = vand.u32 %v160, 4294901760
  %v483 = vsub.f32 %v160, %v482
  %v484 = vand.u32 %v483, 4294901760
  %v485 = vsub.f32 %v483, %v484
  %v486 = vand.u32 %v485, 4294901760
  %487 = vmatpush1.xpose.msra.mxu0 %v486
  %488 = vmatprep.subr.mxu0 0.0
  %v489 = vand.u32 %v163, 4294901760
  %v490 = vsub.f32 %v163, %v489
  %v491 = vand.u32 %v490, 4294901760
  %v492 = vsub.f32 %v490, %v491
  %v493 = vand.u32 %v492, 4294901760
  %494 = vmatpush1.xpose.msra.mxu0 %v493
  %495 = vmatprep.subr.mxu0 0.0
  %v496 = vand.u32 %v166, 4294901760
  %v497 = vsub.f32 %v166, %v496
  %v498 = vand.u32 %v497, 4294901760
  %v499 = vsub.f32 %v497, %v498
  %v500 = vand.u32 %v499, 4294901760
  %501 = vmatpush1.xpose.msra.mxu0 %v500
  %502 = vmatprep.subr.mxu0 0.0
  %v503 = vand.u32 %v169, 4294901760
  %v504 = vsub.f32 %v169, %v503
  %v505 = vand.u32 %v504, 4294901760
  %v506 = vsub.f32 %v504, %v505
  %v507 = vand.u32 %v506, 4294901760
  %508 = vmatpush1.xpose.msra.mxu0 %v507
  %509 = vmatprep.subr.mxu0 0.0
  %v510 = vand.u32 %v172, 4294901760
  %v511 = vsub.f32 %v172, %v510
  %v512 = vand.u32 %v511, 4294901760
  %v513 = vsub.f32 %v511, %v512
  %v514 = vand.u32 %v513, 4294901760
  %515 = vmatpush1.xpose.msra.mxu0 %v514
  %516 = vmatprep.subr.mxu0 0.0
  %v517 = vand.u32 %v175, 4294901760
  %v518 = vsub.f32 %v175, %v517
  %v519 = vand.u32 %v518, 4294901760
  %v520 = vsub.f32 %v518, %v519
  %v521 = vand.u32 %v520, 4294901760
  %522 = vmatpush1.xpose.msra.mxu0 %v521
  %523 = vmatprep.subr.mxu0 0.0
  %v524 = vand.u32 %v178, 4294901760
  %v525 = vsub.f32 %v178, %v524
  %v526 = vand.u32 %v525, 4294901760
  %v527 = vsub.f32 %v525, %v526
  %v528 = vand.u32 %v527, 4294901760
  %529 = vmatpush1.xpose.msra.mxu0 %v528
  %530 = vmatprep.subr.mxu0 0.0
  %v531 = vand.u32 %v181, 4294901760
  %v532 = vsub.f32 %v181, %v531
  %v533 = vand.u32 %v532, 4294901760
  %v534 = vsub.f32 %v532, %v533
  %v535 = vand.u32 %v534, 4294901760
  %536 = vmatpush1.xpose.msra.mxu0 %v535
  %537 = vmatprep.subr.mxu0 0.0
  %v538 = vand.u32 %v184, 4294901760
  %v539 = vsub.f32 %v184, %v538
  %v540 = vand.u32 %v539, 4294901760
  %v541 = vsub.f32 %v539, %v540
  %v542 = vand.u32 %v541, 4294901760
  %543 = vmatpush1.xpose.msra.mxu0 %v542
  %544 = vmatprep.subr.mxu0 0.0
  %v545 = vand.u32 %v187, 4294901760
  %v546 = vsub.f32 %v187, %v545
  %v547 = vand.u32 %v546, 4294901760
  %v548 = vsub.f32 %v546, %v547
  %v549 = vand.u32 %v548, 4294901760
  %550 = vmatpush1.xpose.msra.mxu0 %v549
  %551 = vmatprep.subr.mxu0 0.0
  %v552 = vand.u32 %v190, 4294901760
  %v553 = vsub.f32 %v190, %v552
  %v554 = vand.u32 %v553, 4294901760
  %v555 = vsub.f32 %v553, %v554
  %v556 = vand.u32 %v555, 4294901760
  %557 = vmatpush1.xpose.msra.mxu0 %v556
  %558 = vmatprep.subr.mxu0 0.0
  %v559 = vand.u32 %v193, 4294901760
  %v560 = vsub.f32 %v193, %v559
  %v561 = vand.u32 %v560, 4294901760
  %v562 = vsub.f32 %v560, %v561
  %v563 = vand.u32 %v562, 4294901760
  %564 = vmatpush1.xpose.msra.mxu0 %v563
  %565 = vmatprep.subr.mxu0 0.0
  %v566 = vand.u32 %v196, 4294901760
  %v567 = vsub.f32 %v196, %v566
  %v568 = vand.u32 %v567, 4294901760
  %v569 = vsub.f32 %v567, %v568
  %v570 = vand.u32 %v569, 4294901760
  %571 = vmatpush1.xpose.msra.mxu0 %v570
  %572 = vmatprep.subr.mxu0 0.0
  %v573 = vand.u32 %v199, 4294901760
  %v574 = vsub.f32 %v199, %v573
  %v575 = vand.u32 %v574, 4294901760
  %v576 = vsub.f32 %v574, %v575
  %v577 = vand.u32 %v576, 4294901760
  %578 = vmatpush1.xpose.msra.mxu0 %v577
  %579 = vmatprep.subr.mxu0 0.0
  %v580 = vand.u32 %v202, 4294901760
  %v581 = vsub.f32 %v202, %v580
  %v582 = vand.u32 %v581, 4294901760
  %v583 = vsub.f32 %v581, %v582
  %v584 = vand.u32 %v583, 4294901760
  %585 = vmatpush1.xpose.msra.mxu0 %v584
  %586 = vmatprep.subr.mxu0 0.0
  %v587 = vand.u32 %v205, 4294901760
  %v588 = vsub.f32 %v205, %v587
  %v589 = vand.u32 %v588, 4294901760
  %v590 = vsub.f32 %v588, %v589
  %v591 = vand.u32 %v590, 4294901760
  %592 = vmatpush1.xpose.msra.mxu0 %v591
  %593 = vmatprep.subr.mxu0 0.0
  %v594 = vand.u32 %v208, 4294901760
  %v595 = vsub.f32 %v208, %v594
  %v596 = vand.u32 %v595, 4294901760
  %v597 = vsub.f32 %v595, %v596
  %v598 = vand.u32 %v597, 4294901760
  %599 = vmatpush1.xpose.msra.mxu0 %v598
  %600 = vmatprep.subr.mxu0 0.0
  %v601 = vand.u32 %v211, 4294901760
  %v602 = vsub.f32 %v211, %v601
  %v603 = vand.u32 %v602, 4294901760
  %v604 = vsub.f32 %v602, %v603
  %v605 = vand.u32 %v604, 4294901760
  %606 = vmatpush1.xpose.msra.mxu0 %v605
  %607 = vmatprep.subr.mxu0 0.0
  %v608 = vand.u32 %v214, 4294901760
  %v609 = vsub.f32 %v214, %v608
  %v610 = vand.u32 %v609, 4294901760
  %v611 = vsub.f32 %v609, %v610
  %v612 = vand.u32 %v611, 4294901760
  %613 = vmatpush1.xpose.msra.mxu0 %v612
  %614 = vmatprep.mubr.f32.mxu0 0.0
  %v615 = vand.u32 %v100, 4294901760
  %616 = vmatmul.mubr.f32.gmra.mrb[0].mxu0 %v615
  %v617 = vpop.f32.mrb[0].mxu0
  %v618 = vadd.f32 %v320, %v617
  %v619 = vpop.f32.mrb[0].mxu0
  %v620 = vadd.f32 %v322, %v619
  %621 = vmatprep.mubr.f32.mxu0 0.0
  %v622 = vand.u32 %v103, 4294901760
  %623 = vmatmul.mubr.f32.gmra.mrb[0].mxu0 %v622
  %v624 = vpop.f32.mrb[0].mxu0
  %v625 = vadd.f32 %v331, %v624
  %v626 = vpop.f32.mrb[0].mxu0
  %v627 = vadd.f32 %v333, %v626
  %628 = vmatprep.mubr.f32.mxu0 0.0
  %v629 = vand.u32 %v106, 4294901760
  %630 = vmatmul.mubr.f32.gmra.mrb[0].mxu0 %v629
  %v631 = vpop.f32.mrb[0].mxu0
  %v632 = vadd.f32 %v342, %v631
  %v633 = vpop.f32.mrb[0].mxu0
  %v634 = vadd.f32 %v344, %v633
  %635 = vmatprep.mubr.f32.mxu0 0.0
  %v636 = vand.u32 %v109, 4294901760
  %637 = vmatmul.mubr.f32.gmra.mrb[0].mxu0 %v636
  %v638 = vpop.f32.mrb[0].mxu0
  %v639 = vadd.f32 %v353, %v638
  %v640 = vpop.f32.mrb[0].mxu0
  %v641 = vadd.f32 %v355, %v640
  %642 = vmatprep.mubr.f32.mxu0 0.0
  %v643 = vand.u32 %v112, 4294901760
  %644 = vmatmul.mubr.f32.gmra.mrb[0].mxu0 %v643
  %v645 = vpop.f32.mrb[0].mxu0
  %v646 = vadd.f32 %v364, %v645
  %v647 = vpop.f32.mrb[0].mxu0
  %v648 = vadd.f32 %v366, %v647
  %649 = vmatprep.mubr.f32.mxu0 0.0
  %v650 = vand.u32 %v115, 4294901760
  %651 = vmatmul.mubr.f32.gmra.mrb[0].mxu0 %v650
  %v652 = vpop.f32.mrb[0].mxu0
  %v653 = vadd.f32 %v375, %v652
  %v654 = vpop.f32.mrb[0].mxu0
  %v655 = vadd.f32 %v377, %v654
  %656 = vmatprep.mubr.f32.mxu0 0.0
  %v657 = vand.u32 %v118, 4294901760
  %658 = vmatmul.mubr.f32.gmra.mrb[0].mxu0 %v657
  %v659 = vpop.f32.mrb[0].mxu0
  %v660 = vadd.f32 %v386, %v659
  %v661 = vpop.f32.mrb[0].mxu0
  %v662 = vadd.f32 %v388, %v661
  %663 = vdwg.mxu0
  %664 = vmatprep.subr.mxu0 0.0
  %v665 = vand.u32 %v121, 4294901760
  %v666 = vsub.f32 %v121, %v665
  %667 = vmatpush1.xpose.msra.mxu0 %v666
  %668 = vmatprep.subr.mxu0 0.0
  %v669 = vand.u32 %v124, 4294901760
  %v670 = vsub.f32 %v124, %v669
  %671 = vmatpush1.xpose.msra.mxu0 %v670
  %672 = vmatprep.subr.mxu0 0.0
  %v673 = vand.u32 %v127, 4294901760
  %v674 = vsub.f32 %v127, %v673
  %675 = vmatpush1.xpose.msra.mxu0 %v674
  %676 = vmatprep.subr.mxu0 0.0
  %v677 = vand.u32 %v130, 4294901760
  %v678 = vsub.f32 %v130, %v677
  %679 = vmatpush1.xpose.msra.mxu0 %v678
  %680 = vmatprep.subr.mxu0 0.0
  %v681 = vand.u32 %v133, 4294901760
  %v682 = vsub.f32 %v133, %v681
  %683 = vmatpush1.xpose.msra.mxu0 %v682
  %684 = vmatprep.subr.mxu0 0.0
  %v685 = vand.u32 %v136, 4294901760
  %v686 = vsub.f32 %v136, %v685
  %687 = vmatpush1.xpose.msra.mxu0 %v686
  %688 = vmatprep.subr.mxu0 0.0
  %v689 = vand.u32 %v139, 4294901760
  %v690 = vsub.f32 %v139, %v689
  %691 = vmatpush1.xpose.msra.mxu0 %v690
  %692 = vmatprep.subr.mxu0 0.0
  %v693 = vand.u32 %v142, 4294901760
  %v694 = vsub.f32 %v142, %v693
  %695 = vmatpush1.xpose.msra.mxu0 %v694
  %696 = vmatprep.subr.mxu0 0.0
  %v697 = vand.u32 %v145, 4294901760
  %v698 = vsub.f32 %v145, %v697
  %699 = vmatpush1.xpose.msra.mxu0 %v698
  %700 = vmatprep.subr.mxu0 0.0
  %v701 = vand.u32 %v148, 4294901760
  %v702 = vsub.f32 %v148, %v701
  %703 = vmatpush1.xpose.msra.mxu0 %v702
  %704 = vmatprep.subr.mxu0 0.0
  %v705 = vand.u32 %v151, 4294901760
  %v706 = vsub.f32 %v151, %v705
  %707 = vmatpush1.xpose.msra.mxu0 %v706
  %708 = vmatprep.subr.mxu0 0.0
  %v709 = vand.u32 %v154, 4294901760
  %v710 = vsub.f32 %v154, %v709
  %711 = vmatpush1.xpose.msra.mxu0 %v710
  %712 = vmatprep.subr.mxu0 0.0
  %v713 = vand.u32 %v157, 4294901760
  %v714 = vsub.f32 %v157, %v713
  %715 = vmatpush1.xpose.msra.mxu0 %v714
  %716 = vmatprep.subr.mxu0 0.0
  %v717 = vand.u32 %v160, 4294901760
  %v718 = vsub.f32 %v160, %v717
  %719 = vmatpush1.xpose.msra.mxu0 %v718
  %720 = vmatprep.subr.mxu0 0.0
  %v721 = vand.u32 %v163, 4294901760
  %v722 = vsub.f32 %v163, %v721
  %723 = vmatpush1.xpose.msra.mxu0 %v722
  %724 = vmatprep.subr.mxu0 0.0
  %v725 = vand.u32 %v166, 4294901760
  %v726 = vsub.f32 %v166, %v725
  %727 = vmatpush1.xpose.msra.mxu0 %v726
  %728 = vmatprep.subr.mxu0 0.0
  %v729 = vand.u32 %v169, 4294901760
  %v730 = vsub.f32 %v169, %v729
  %731 = vmatpush1.xpose.msra.mxu0 %v730
  %732 = vmatprep.subr.mxu0 0.0
  %v733 = vand.u32 %v172, 4294901760
  %v734 = vsub.f32 %v172, %v733
  %735 = vmatpush1.xpose.msra.mxu0 %v734
  %736 = vmatprep.subr.mxu0 0.0
  %v737 = vand.u32 %v175, 4294901760
  %v738 = vsub.f32 %v175, %v737
  %739 = vmatpush1.xpose.msra.mxu0 %v738
  %740 = vmatprep.subr.mxu0 0.0
  %v741 = vand.u32 %v178, 4294901760
  %v742 = vsub.f32 %v178, %v741
  %743 = vmatpush1.xpose.msra.mxu0 %v742
  %744 = vmatprep.subr.mxu0 0.0
  %v745 = vand.u32 %v181, 4294901760
  %v746 = vsub.f32 %v181, %v745
  %747 = vmatpush1.xpose.msra.mxu0 %v746
  %748 = vmatprep.subr.mxu0 0.0
  %v749 = vand.u32 %v184, 4294901760
  %v750 = vsub.f32 %v184, %v749
  %751 = vmatpush1.xpose.msra.mxu0 %v750
  %752 = vmatprep.subr.mxu0 0.0
  %v753 = vand.u32 %v187, 4294901760
  %v754 = vsub.f32 %v187, %v753
  %755 = vmatpush1.xpose.msra.mxu0 %v754
  %756 = vmatprep.subr.mxu0 0.0
  %v757 = vand.u32 %v190, 4294901760
  %v758 = vsub.f32 %v190, %v757
  %759 = vmatpush1.xpose.msra.mxu0 %v758
  %760 = vmatprep.subr.mxu0 0.0
  %v761 = vand.u32 %v193, 4294901760
  %v762 = vsub.f32 %v193, %v761
  %763 = vmatpush1.xpose.msra.mxu0 %v762
  %764 = vmatprep.subr.mxu0 0.0
  %v765 = vand.u32 %v196, 4294901760
  %v766 = vsub.f32 %v196, %v765
  %767 = vmatpush1.xpose.msra.mxu0 %v766
  %768 = vmatprep.subr.mxu0 0.0
  %v769 = vand.u32 %v199, 4294901760
  %v770 = vsub.f32 %v199, %v769
  %771 = vmatpush1.xpose.msra.mxu0 %v770
  %772 = vmatprep.subr.mxu0 0.0
  %v773 = vand.u32 %v202, 4294901760
  %v774 = vsub.f32 %v202, %v773
  %775 = vmatpush1.xpose.msra.mxu0 %v774
  %776 = vmatprep.subr.mxu0 0.0
  %v777 = vand.u32 %v205, 4294901760
  %v778 = vsub.f32 %v205, %v777
  %779 = vmatpush1.xpose.msra.mxu0 %v778
  %780 = vmatprep.subr.mxu0 0.0
  %v781 = vand.u32 %v208, 4294901760
  %v782 = vsub.f32 %v208, %v781
  %783 = vmatpush1.xpose.msra.mxu0 %v782
  %784 = vmatprep.subr.mxu0 0.0
  %v785 = vand.u32 %v211, 4294901760
  %v786 = vsub.f32 %v211, %v785
  %787 = vmatpush1.xpose.msra.mxu0 %v786
  %788 = vmatprep.subr.mxu0 0.0
  %v789 = vand.u32 %v214, 4294901760
  %v790 = vsub.f32 %v214, %v789
  %791 = vmatpush1.xpose.msra.mxu0 %v790
  %792 = vmatprep.mubr.f32.mxu0 0.0
  %v793 = vand.u32 %v100, 4294901760
  %v794 = vsub.f32 %v100, %v793
  %795 = vmatmul.mubr.f32.gmra.mrb[0].mxu0 %v794
  %v796 = vpop.f32.mrb[0].mxu0
  %v797 = vadd.f32 %v618, %v796
  %v798 = vpop.f32.mrb[0].mxu0
  %v799 = vadd.f32 %v620, %v798
  %800 = vmatprep.mubr.f32.mxu0 0.0
  %v801 = vand.u32 %v103, 4294901760
  %v802 = vsub.f32 %v103, %v801
  %803 = vmatmul.mubr.f32.gmra.mrb[0].mxu0 %v802
  %v804 = vpop.f32.mrb[0].mxu0
  %v805 = vadd.f32 %v625, %v804
  %v806 = vpop.f32.mrb[0].mxu0
  %v807 = vadd.f32 %v627, %v806
  %808 = vmatprep.mubr.f32.mxu0 0.0
  %v809 = vand.u32 %v106, 4294901760
  %v810 = vsub.f32 %v106, %v809
  %811 = vmatmul.mubr.f32.gmra.mrb[0].mxu0 %v810
  %v812 = vpop.f32.mrb[0].mxu0
  %v813 = vadd.f32 %v632, %v812
  %v814 = vpop.f32.mrb[0].mxu0
  %v815 = vadd.f32 %v634, %v814
  %816 = vmatprep.mubr.f32.mxu0 0.0
  %v817 = vand.u32 %v109, 4294901760
  %v818 = vsub.f32 %v109, %v817
  %819 = vmatmul.mubr.f32.gmra.mrb[0].mxu0 %v818
  %v820 = vpop.f32.mrb[0].mxu0
  %v821 = vadd.f32 %v639, %v820
  %v822 = vpop.f32.mrb[0].mxu0
  %v823 = vadd.f32 %v641, %v822
  %824 = vmatprep.mubr.f32.mxu0 0.0
  %v825 = vand.u32 %v112, 4294901760
  %v826 = vsub.f32 %v112, %v825
  %827 = vmatmul.mubr.f32.gmra.mrb[0].mxu0 %v826
  %v828 = vpop.f32.mrb[0].mxu0
  %v829 = vadd.f32 %v646, %v828
  %v830 = vpop.f32.mrb[0].mxu0
  %v831 = vadd.f32 %v648, %v830
  %832 = vmatprep.mubr.f32.mxu0 0.0
  %v833 = vand.u32 %v115, 4294901760
  %v834 = vsub.f32 %v115, %v833
  %835 = vmatmul.mubr.f32.gmra.mrb[0].mxu0 %v834
  %v836 = vpop.f32.mrb[0].mxu0
  %v837 = vadd.f32 %v653, %v836
  %v838 = vpop.f32.mrb[0].mxu0
  %v839 = vadd.f32 %v655, %v838
  %840 = vmatprep.mubr.f32.mxu0 0.0
  %v841 = vand.u32 %v118, 4294901760
  %v842 = vsub.f32 %v118, %v841
  %843 = vmatmul.mubr.f32.gmra.mrb[0].mxu0 %v842
  %v844 = vpop.f32.mrb[0].mxu0
  %v845 = vadd.f32 %v660, %v844
  %v846 = vpop.f32.mrb[0].mxu0
  %v847 = vadd.f32 %v662, %v846
  %848 = vdwg.mxu0
  %849 = vmatprep.subr.mxu0 0.0
  %v850 = vand.u32 %v121, 4294901760
  %851 = vmatpush1.xpose.msra.mxu0 %v850
  %852 = vmatprep.subr.mxu0 0.0
  %v853 = vand.u32 %v124, 4294901760
  %854 = vmatpush1.xpose.msra.mxu0 %v853
  %855 = vmatprep.subr.mxu0 0.0
  %v856 = vand.u32 %v127, 4294901760
  %857 = vmatpush1.xpose.msra.mxu0 %v856
  %858 = vmatprep.subr.mxu0 0.0
  %v859 = vand.u32 %v130, 4294901760
  %860 = vmatpush1.xpose.msra.mxu0 %v859
  %861 = vmatprep.subr.mxu0 0.0
  %v862 = vand.u32 %v133, 4294901760
  %863 = vmatpush1.xpose.msra.mxu0 %v862
  %864 = vmatprep.subr.mxu0 0.0
  %v865 = vand.u32 %v136, 4294901760
  %866 = vmatpush1.xpose.msra.mxu0 %v865
  %867 = vmatprep.subr.mxu0 0.0
  %v868 = vand.u32 %v139, 4294901760
  %869 = vmatpush1.xpose.msra.mxu0 %v868
  %870 = vmatprep.subr.mxu0 0.0
  %v871 = vand.u32 %v142, 4294901760
  %872 = vmatpush1.xpose.msra.mxu0 %v871
  %873 = vmatprep.subr.mxu0 0.0
  %v874 = vand.u32 %v145, 4294901760
  %875 = vmatpush1.xpose.msra.mxu0 %v874
  %876 = vmatprep.subr.mxu0 0.0
  %v877 = vand.u32 %v148, 4294901760
  %878 = vmatpush1.xpose.msra.mxu0 %v877
  %879 = vmatprep.subr.mxu0 0.0
  %v880 = vand.u32 %v151, 4294901760
  %881 = vmatpush1.xpose.msra.mxu0 %v880
  %882 = vmatprep.subr.mxu0 0.0
  %v883 = vand.u32 %v154, 4294901760
  %884 = vmatpush1.xpose.msra.mxu0 %v883
  %885 = vmatprep.subr.mxu0 0.0
  %v886 = vand.u32 %v157, 4294901760
  %887 = vmatpush1.xpose.msra.mxu0 %v886
  %888 = vmatprep.subr.mxu0 0.0
  %v889 = vand.u32 %v160, 4294901760
  %890 = vmatpush1.xpose.msra.mxu0 %v889
  %891 = vmatprep.subr.mxu0 0.0
  %v892 = vand.u32 %v163, 4294901760
  %893 = vmatpush1.xpose.msra.mxu0 %v892
  %894 = vmatprep.subr.mxu0 0.0
  %v895 = vand.u32 %v166, 4294901760
  %896 = vmatpush1.xpose.msra.mxu0 %v895
  %897 = vmatprep.subr.mxu0 0.0
  %v898 = vand.u32 %v169, 4294901760
  %899 = vmatpush1.xpose.msra.mxu0 %v898
  %900 = vmatprep.subr.mxu0 0.0
  %v901 = vand.u32 %v172, 4294901760
  %902 = vmatpush1.xpose.msra.mxu0 %v901
  %903 = vmatprep.subr.mxu0 0.0
  %v904 = vand.u32 %v175, 4294901760
  %905 = vmatpush1.xpose.msra.mxu0 %v904
  %906 = vmatprep.subr.mxu0 0.0
  %v907 = vand.u32 %v178, 4294901760
  %908 = vmatpush1.xpose.msra.mxu0 %v907
  %909 = vmatprep.subr.mxu0 0.0
  %v910 = vand.u32 %v181, 4294901760
  %911 = vmatpush1.xpose.msra.mxu0 %v910
  %912 = vmatprep.subr.mxu0 0.0
  %v913 = vand.u32 %v184, 4294901760
  %914 = vmatpush1.xpose.msra.mxu0 %v913
  %915 = vmatprep.subr.mxu0 0.0
  %v916 = vand.u32 %v187, 4294901760
  %917 = vmatpush1.xpose.msra.mxu0 %v916
  %918 = vmatprep.subr.mxu0 0.0
  %v919 = vand.u32 %v190, 4294901760
  %920 = vmatpush1.xpose.msra.mxu0 %v919
  %921 = vmatprep.subr.mxu0 0.0
  %v922 = vand.u32 %v193, 4294901760
  %923 = vmatpush1.xpose.msra.mxu0 %v922
  %924 = vmatprep.subr.mxu0 0.0
  %v925 = vand.u32 %v196, 4294901760
  %926 = vmatpush1.xpose.msra.mxu0 %v925
  %927 = vmatprep.subr.mxu0 0.0
  %v928 = vand.u32 %v199, 4294901760
  %929 = vmatpush1.xpose.msra.mxu0 %v928
  %930 = vmatprep.subr.mxu0 0.0
  %v931 = vand.u32 %v202, 4294901760
  %932 = vmatpush1.xpose.msra.mxu0 %v931
  %933 = vmatprep.subr.mxu0 0.0
  %v934 = vand.u32 %v205, 4294901760
  %935 = vmatpush1.xpose.msra.mxu0 %v934
  %936 = vmatprep.subr.mxu0 0.0
  %v937 = vand.u32 %v208, 4294901760
  %938 = vmatpush1.xpose.msra.mxu0 %v937
  %939 = vmatprep.subr.mxu0 0.0
  %v940 = vand.u32 %v211, 4294901760
  %941 = vmatpush1.xpose.msra.mxu0 %v940
  %942 = vmatprep.subr.mxu0 0.0
  %v943 = vand.u32 %v214, 4294901760
  %944 = vmatpush1.xpose.msra.mxu0 %v943
  %945 = vmatprep.mubr.f32.mxu0 0.0
  %v946 = vand.u32 %v100, 4294901760
  %v947 = vsub.f32 %v100, %v946
  %v948 = vand.u32 %v947, 4294901760
  %949 = vmatmul.mubr.f32.gmra.mrb[0].mxu0 %v948
  %v950 = vpop.f32.mrb[0].mxu0
  %v951 = vadd.f32 %v797, %v950
  %v952 = vpop.f32.mrb[0].mxu0
  %v953 = vadd.f32 %v799, %v952
  %954 = vmatprep.mubr.f32.mxu0 0.0
  %v955 = vand.u32 %v103, 4294901760
  %v956 = vsub.f32 %v103, %v955
  %v957 = vand.u32 %v956, 4294901760
  %958 = vmatmul.mubr.f32.gmra.mrb[0].mxu0 %v957
  %v959 = vpop.f32.mrb[0].mxu0
  %v960 = vadd.f32 %v805, %v959
  %v961 = vpop.f32.mrb[0].mxu0
  %v962 = vadd.f32 %v807, %v961
  %963 = vmatprep.mubr.f32.mxu0 0.0
  %v964 = vand.u32 %v106, 4294901760
  %v965 = vsub.f32 %v106, %v964
  %v966 = vand.u32 %v965, 4294901760
  %967 = vmatmul.mubr.f32.gmra.mrb[0].mxu0 %v966
  %v968 = vpop.f32.mrb[0].mxu0
  %v969 = vadd.f32 %v813, %v968
  %v970 = vpop.f32.mrb[0].mxu0
  %v971 = vadd.f32 %v815, %v970
  %972 = vmatprep.mubr.f32.mxu0 0.0
  %v973 = vand.u32 %v109, 4294901760
  %v974 = vsub.f32 %v109, %v973
  %v975 = vand.u32 %v974, 4294901760
  %976 = vmatmul.mubr.f32.gmra.mrb[0].mxu0 %v975
  %v977 = vpop.f32.mrb[0].mxu0
  %v978 = vadd.f32 %v821, %v977
  %v979 = vpop.f32.mrb[0].mxu0
  %v980 = vadd.f32 %v823, %v979
  %981 = vmatprep.mubr.f32.mxu0 0.0
  %v982 = vand.u32 %v112, 4294901760
  %v983 = vsub.f32 %v112, %v982
  %v984 = vand.u32 %v983, 4294901760
  %985 = vmatmul.mubr.f32.gmra.mrb[0].mxu0 %v984
  %v986 = vpop.f32.mrb[0].mxu0
  %v987 = vadd.f32 %v829, %v986
  %v988 = vpop.f32.mrb[0].mxu0
  %v989 = vadd.f32 %v831, %v988
  %990 = vmatprep.mubr.f32.mxu0 0.0
  %v991 = vand.u32 %v115, 4294901760
  %v992 = vsub.f32 %v115, %v991
  %v993 = vand.u32 %v992, 4294901760
  %994 = vmatmul.mubr.f32.gmra.mrb[0].mxu0 %v993
  %v995 = vpop.f32.mrb[0].mxu0
  %v996 = vadd.f32 %v837, %v995
  %v997 = vpop.f32.mrb[0].mxu0
  %v998 = vadd.f32 %v839, %v997
  %999 = vmatprep.mubr.f32.mxu0 0.0
  %v1000 = vand.u32 %v118, 4294901760
  %v1001 = vsub.f32 %v118, %v1000
  %v1002 = vand.u32 %v1001, 4294901760
  %1003 = vmatmul.mubr.f32.gmra.mrb[0].mxu0 %v1002
  %v1004 = vpop.f32.mrb[0].mxu0
  %v1005 = vadd.f32 %v845, %v1004
  %v1006 = vpop.f32.mrb[0].mxu0
  %v1007 = vadd.f32 %v847, %v1006
  %1008 = vdwg.mxu0
  %1009 = vmatprep.subr.mxu0 0.0
  %v1010 = vand.u32 %v121, 4294901760
  %v1011 = vsub.f32 %v121, %v1010
  %v1012 = vand.u32 %v1011, 4294901760
  %1013 = vmatpush1.xpose.msra.mxu0 %v1012
  %1014 = vmatprep.subr.mxu0 0.0
  %v1015 = vand.u32 %v124, 4294901760
  %v1016 = vsub.f32 %v124, %v1015
  %v1017 = vand.u32 %v1016, 4294901760
  %1018 = vmatpush1.xpose.msra.mxu0 %v1017
  %1019 = vmatprep.subr.mxu0 0.0
  %v1020 = vand.u32 %v127, 4294901760
  %v1021 = vsub.f32 %v127, %v1020
  %v1022 = vand.u32 %v1021, 4294901760
  %1023 = vmatpush1.xpose.msra.mxu0 %v1022
  %1024 = vmatprep.subr.mxu0 0.0
  %v1025 = vand.u32 %v130, 4294901760
  %v1026 = vsub.f32 %v130, %v1025
  %v1027 = vand.u32 %v1026, 4294901760
  %1028 = vmatpush1.xpose.msra.mxu0 %v1027
  %1029 = vmatprep.subr.mxu0 0.0
  %v1030 = vand.u32 %v133, 4294901760
  %v1031 = vsub.f32 %v133, %v1030
  %v1032 = vand.u32 %v1031, 4294901760
  %1033 = vmatpush1.xpose.msra.mxu0 %v1032
  %1034 = vmatprep.subr.mxu0 0.0
  %v1035 = vand.u32 %v136, 4294901760
  %v1036 = vsub.f32 %v136, %v1035
  %v1037 = vand.u32 %v1036, 4294901760
  %1038 = vmatpush1.xpose.msra.mxu0 %v1037
  %1039 = vmatprep.subr.mxu0 0.0
  %v1040 = vand.u32 %v139, 4294901760
  %v1041 = vsub.f32 %v139, %v1040
  %v1042 = vand.u32 %v1041, 4294901760
  %1043 = vmatpush1.xpose.msra.mxu0 %v1042
  %1044 = vmatprep.subr.mxu0 0.0
  %v1045 = vand.u32 %v142, 4294901760
  %v1046 = vsub.f32 %v142, %v1045
  %v1047 = vand.u32 %v1046, 4294901760
  %1048 = vmatpush1.xpose.msra.mxu0 %v1047
  %1049 = vmatprep.subr.mxu0 0.0
  %v1050 = vand.u32 %v145, 4294901760
  %v1051 = vsub.f32 %v145, %v1050
  %v1052 = vand.u32 %v1051, 4294901760
  %1053 = vmatpush1.xpose.msra.mxu0 %v1052
  %1054 = vmatprep.subr.mxu0 0.0
  %v1055 = vand.u32 %v148, 4294901760
  %v1056 = vsub.f32 %v148, %v1055
  %v1057 = vand.u32 %v1056, 4294901760
  %1058 = vmatpush1.xpose.msra.mxu0 %v1057
  %1059 = vmatprep.subr.mxu0 0.0
  %v1060 = vand.u32 %v151, 4294901760
  %v1061 = vsub.f32 %v151, %v1060
  %v1062 = vand.u32 %v1061, 4294901760
  %1063 = vmatpush1.xpose.msra.mxu0 %v1062
  %1064 = vmatprep.subr.mxu0 0.0
  %v1065 = vand.u32 %v154, 4294901760
  %v1066 = vsub.f32 %v154, %v1065
  %v1067 = vand.u32 %v1066, 4294901760
  %1068 = vmatpush1.xpose.msra.mxu0 %v1067
  %1069 = vmatprep.subr.mxu0 0.0
  %v1070 = vand.u32 %v157, 4294901760
  %v1071 = vsub.f32 %v157, %v1070
  %v1072 = vand.u32 %v1071, 4294901760
  %1073 = vmatpush1.xpose.msra.mxu0 %v1072
  %1074 = vmatprep.subr.mxu0 0.0
  %v1075 = vand.u32 %v160, 4294901760
  %v1076 = vsub.f32 %v160, %v1075
  %v1077 = vand.u32 %v1076, 4294901760
  %1078 = vmatpush1.xpose.msra.mxu0 %v1077
  %1079 = vmatprep.subr.mxu0 0.0
  %v1080 = vand.u32 %v163, 4294901760
  %v1081 = vsub.f32 %v163, %v1080
  %v1082 = vand.u32 %v1081, 4294901760
  %1083 = vmatpush1.xpose.msra.mxu0 %v1082
  %1084 = vmatprep.subr.mxu0 0.0
  %v1085 = vand.u32 %v166, 4294901760
  %v1086 = vsub.f32 %v166, %v1085
  %v1087 = vand.u32 %v1086, 4294901760
  %1088 = vmatpush1.xpose.msra.mxu0 %v1087
  %1089 = vmatprep.subr.mxu0 0.0
  %v1090 = vand.u32 %v169, 4294901760
  %v1091 = vsub.f32 %v169, %v1090
  %v1092 = vand.u32 %v1091, 4294901760
  %1093 = vmatpush1.xpose.msra.mxu0 %v1092
  %1094 = vmatprep.subr.mxu0 0.0
  %v1095 = vand.u32 %v172, 4294901760
  %v1096 = vsub.f32 %v172, %v1095
  %v1097 = vand.u32 %v1096, 4294901760
  %1098 = vmatpush1.xpose.msra.mxu0 %v1097
  %1099 = vmatprep.subr.mxu0 0.0
  %v1100 = vand.u32 %v175, 4294901760
  %v1101 = vsub.f32 %v175, %v1100
  %v1102 = vand.u32 %v1101, 4294901760
  %1103 = vmatpush1.xpose.msra.mxu0 %v1102
  %1104 = vmatprep.subr.mxu0 0.0
  %v1105 = vand.u32 %v178, 4294901760
  %v1106 = vsub.f32 %v178, %v1105
  %v1107 = vand.u32 %v1106, 4294901760
  %1108 = vmatpush1.xpose.msra.mxu0 %v1107
  %1109 = vmatprep.subr.mxu0 0.0
  %v1110 = vand.u32 %v181, 4294901760
  %v1111 = vsub.f32 %v181, %v1110
  %v1112 = vand.u32 %v1111, 4294901760
  %1113 = vmatpush1.xpose.msra.mxu0 %v1112
  %1114 = vmatprep.subr.mxu0 0.0
  %v1115 = vand.u32 %v184, 4294901760
  %v1116 = vsub.f32 %v184, %v1115
  %v1117 = vand.u32 %v1116, 4294901760
  %1118 = vmatpush1.xpose.msra.mxu0 %v1117
  %1119 = vmatprep.subr.mxu0 0.0
  %v1120 = vand.u32 %v187, 4294901760
  %v1121 = vsub.f32 %v187, %v1120
  %v1122 = vand.u32 %v1121, 4294901760
  %1123 = vmatpush1.xpose.msra.mxu0 %v1122
  %1124 = vmatprep.subr.mxu0 0.0
  %v1125 = vand.u32 %v190, 4294901760
  %v1126 = vsub.f32 %v190, %v1125
  %v1127 = vand.u32 %v1126, 4294901760
  %1128 = vmatpush1.xpose.msra.mxu0 %v1127
  %1129 = vmatprep.subr.mxu0 0.0
  %v1130 = vand.u32 %v193, 4294901760
  %v1131 = vsub.f32 %v193, %v1130
  %v1132 = vand.u32 %v1131, 4294901760
  %1133 = vmatpush1.xpose.msra.mxu0 %v1132
  %1134 = vmatprep.subr.mxu0 0.0
  %v1135 = vand.u32 %v196, 4294901760
  %v1136 = vsub.f32 %v196, %v1135
  %v1137 = vand.u32 %v1136, 4294901760
  %1138 = vmatpush1.xpose.msra.mxu0 %v1137
  %1139 = vmatprep.subr.mxu0 0.0
  %v1140 = vand.u32 %v199, 4294901760
  %v1141 = vsub.f32 %v199, %v1140
  %v1142 = vand.u32 %v1141, 4294901760
  %1143 = vmatpush1.xpose.msra.mxu0 %v1142
  %1144 = vmatprep.subr.mxu0 0.0
  %v1145 = vand.u32 %v202, 4294901760
  %v1146 = vsub.f32 %v202, %v1145
  %v1147 = vand.u32 %v1146, 4294901760
  %1148 = vmatpush1.xpose.msra.mxu0 %v1147
  %1149 = vmatprep.subr.mxu0 0.0
  %v1150 = vand.u32 %v205, 4294901760
  %v1151 = vsub.f32 %v205, %v1150
  %v1152 = vand.u32 %v1151, 4294901760
  %1153 = vmatpush1.xpose.msra.mxu0 %v1152
  %1154 = vmatprep.subr.mxu0 0.0
  %v1155 = vand.u32 %v208, 4294901760
  %v1156 = vsub.f32 %v208, %v1155
  %v1157 = vand.u32 %v1156, 4294901760
  %1158 = vmatpush1.xpose.msra.mxu0 %v1157
  %1159 = vmatprep.subr.mxu0 0.0
  %v1160 = vand.u32 %v211, 4294901760
  %v1161 = vsub.f32 %v211, %v1160
  %v1162 = vand.u32 %v1161, 4294901760
  %1163 = vmatpush1.xpose.msra.mxu0 %v1162
  %1164 = vmatprep.subr.mxu0 0.0
  %v1165 = vand.u32 %v214, 4294901760
  %v1166 = vsub.f32 %v214, %v1165
  %v1167 = vand.u32 %v1166, 4294901760
  %1168 = vmatpush1.xpose.msra.mxu0 %v1167
  %1169 = vmatprep.mubr.f32.mxu0 0.0
  %v1170 = vand.u32 %v100, 4294901760
  %1171 = vmatmul.mubr.f32.gmra.mrb[0].mxu0 %v1170
  %v1172 = vpop.f32.mrb[0].mxu0
  %v1173 = vadd.f32 %v951, %v1172
  %v1174 = vpop.f32.mrb[0].mxu0
  %v1175 = vadd.f32 %v953, %v1174
  %1176 = vmatprep.mubr.f32.mxu0 0.0
  %v1177 = vand.u32 %v103, 4294901760
  %1178 = vmatmul.mubr.f32.gmra.mrb[0].mxu0 %v1177
  %v1179 = vpop.f32.mrb[0].mxu0
  %v1180 = vadd.f32 %v960, %v1179
  %v1181 = vpop.f32.mrb[0].mxu0
  %v1182 = vadd.f32 %v962, %v1181
  %1183 = vmatprep.mubr.f32.mxu0 0.0
  %v1184 = vand.u32 %v106, 4294901760
  %1185 = vmatmul.mubr.f32.gmra.mrb[0].mxu0 %v1184
  %v1186 = vpop.f32.mrb[0].mxu0
  %v1187 = vadd.f32 %v969, %v1186
  %v1188 = vpop.f32.mrb[0].mxu0
  %v1189 = vadd.f32 %v971, %v1188
  %1190 = vmatprep.mubr.f32.mxu0 0.0
  %v1191 = vand.u32 %v109, 4294901760
  %1192 = vmatmul.mubr.f32.gmra.mrb[0].mxu0 %v1191
  %v1193 = vpop.f32.mrb[0].mxu0
  %v1194 = vadd.f32 %v978, %v1193
  %v1195 = vpop.f32.mrb[0].mxu0
  %v1196 = vadd.f32 %v980, %v1195
  %1197 = vmatprep.mubr.f32.mxu0 0.0
  %v1198 = vand.u32 %v112, 4294901760
  %1199 = vmatmul.mubr.f32.gmra.mrb[0].mxu0 %v1198
  %v1200 = vpop.f32.mrb[0].mxu0
  %v1201 = vadd.f32 %v987, %v1200
  %v1202 = vpop.f32.mrb[0].mxu0
  %v1203 = vadd.f32 %v989, %v1202
  %1204 = vmatprep.mubr.f32.mxu0 0.0
  %v1205 = vand.u32 %v115, 4294901760
  %1206 = vmatmul.mubr.f32.gmra.mrb[0].mxu0 %v1205
  %v1207 = vpop.f32.mrb[0].mxu0
  %v1208 = vadd.f32 %v996, %v1207
  %v1209 = vpop.f32.mrb[0].mxu0
  %v1210 = vadd.f32 %v998, %v1209
  %1211 = vmatprep.mubr.f32.mxu0 0.0
  %v1212 = vand.u32 %v118, 4294901760
  %1213 = vmatmul.mubr.f32.gmra.mrb[0].mxu0 %v1212
  %v1214 = vpop.f32.mrb[0].mxu0
  %v1215 = vadd.f32 %v1005, %v1214
  %v1216 = vpop.f32.mrb[0].mxu0
  %v1217 = vadd.f32 %v1007, %v1216
  %1218 = vdwg.mxu0
  %1219 = vmatprep.subr.mxu0 0.0
  %v1220 = vand.u32 %v121, 4294901760
  %1221 = vmatpush1.xpose.msra.mxu0 %v1220
  %1222 = vmatprep.subr.mxu0 0.0
  %v1223 = vand.u32 %v124, 4294901760
  %1224 = vmatpush1.xpose.msra.mxu0 %v1223
  %1225 = vmatprep.subr.mxu0 0.0
  %v1226 = vand.u32 %v127, 4294901760
  %1227 = vmatpush1.xpose.msra.mxu0 %v1226
  %1228 = vmatprep.subr.mxu0 0.0
  %v1229 = vand.u32 %v130, 4294901760
  %1230 = vmatpush1.xpose.msra.mxu0 %v1229
  %1231 = vmatprep.subr.mxu0 0.0
  %v1232 = vand.u32 %v133, 4294901760
  %1233 = vmatpush1.xpose.msra.mxu0 %v1232
  %1234 = vmatprep.subr.mxu0 0.0
  %v1235 = vand.u32 %v136, 4294901760
  %1236 = vmatpush1.xpose.msra.mxu0 %v1235
  %1237 = vmatprep.subr.mxu0 0.0
  %v1238 = vand.u32 %v139, 4294901760
  %1239 = vmatpush1.xpose.msra.mxu0 %v1238
  %1240 = vmatprep.subr.mxu0 0.0
  %v1241 = vand.u32 %v142, 4294901760
  %1242 = vmatpush1.xpose.msra.mxu0 %v1241
  %1243 = vmatprep.subr.mxu0 0.0
  %v1244 = vand.u32 %v145, 4294901760
  %1245 = vmatpush1.xpose.msra.mxu0 %v1244
  %1246 = vmatprep.subr.mxu0 0.0
  %v1247 = vand.u32 %v148, 4294901760
  %1248 = vmatpush1.xpose.msra.mxu0 %v1247
  %1249 = vmatprep.subr.mxu0 0.0
  %v1250 = vand.u32 %v151, 4294901760
  %1251 = vmatpush1.xpose.msra.mxu0 %v1250
  %1252 = vmatprep.subr.mxu0 0.0
  %v1253 = vand.u32 %v154, 4294901760
  %1254 = vmatpush1.xpose.msra.mxu0 %v1253
  %1255 = vmatprep.subr.mxu0 0.0
  %v1256 = vand.u32 %v157, 4294901760
  %1257 = vmatpush1.xpose.msra.mxu0 %v1256
  %1258 = vmatprep.subr.mxu0 0.0
  %v1259 = vand.u32 %v160, 4294901760
  %1260 = vmatpush1.xpose.msra.mxu0 %v1259
  %1261 = vmatprep.subr.mxu0 0.0
  %v1262 = vand.u32 %v163, 4294901760
  %1263 = vmatpush1.xpose.msra.mxu0 %v1262
  %1264 = vmatprep.subr.mxu0 0.0
  %v1265 = vand.u32 %v166, 4294901760
  %1266 = vmatpush1.xpose.msra.mxu0 %v1265
  %1267 = vmatprep.subr.mxu0 0.0
  %v1268 = vand.u32 %v169, 4294901760
  %1269 = vmatpush1.xpose.msra.mxu0 %v1268
  %1270 = vmatprep.subr.mxu0 0.0
  %v1271 = vand.u32 %v172, 4294901760
  %1272 = vmatpush1.xpose.msra.mxu0 %v1271
  %1273 = vmatprep.subr.mxu0 0.0
  %v1274 = vand.u32 %v175, 4294901760
  %1275 = vmatpush1.xpose.msra.mxu0 %v1274
  %1276 = vmatprep.subr.mxu0 0.0
  %v1277 = vand.u32 %v178, 4294901760
  %1278 = vmatpush1.xpose.msra.mxu0 %v1277
  %1279 = vmatprep.subr.mxu0 0.0
  %v1280 = vand.u32 %v181, 4294901760
  %1281 = vmatpush1.xpose.msra.mxu0 %v1280
  %1282 = vmatprep.subr.mxu0 0.0
  %v1283 = vand.u32 %v184, 4294901760
  %1284 = vmatpush1.xpose.msra.mxu0 %v1283
  %1285 = vmatprep.subr.mxu0 0.0
  %v1286 = vand.u32 %v187, 4294901760
  %1287 = vmatpush1.xpose.msra.mxu0 %v1286
  %1288 = vmatprep.subr.mxu0 0.0
  %v1289 = vand.u32 %v190, 4294901760
  %1290 = vmatpush1.xpose.msra.mxu0 %v1289
  %1291 = vmatprep.subr.mxu0 0.0
  %v1292 = vand.u32 %v193, 4294901760
  %1293 = vmatpush1.xpose.msra.mxu0 %v1292
  %1294 = vmatprep.subr.mxu0 0.0
  %v1295 = vand.u32 %v196, 4294901760
  %1296 = vmatpush1.xpose.msra.mxu0 %v1295
  %1297 = vmatprep.subr.mxu0 0.0
  %v1298 = vand.u32 %v199, 4294901760
  %1299 = vmatpush1.xpose.msra.mxu0 %v1298
  %1300 = vmatprep.subr.mxu0 0.0
  %v1301 = vand.u32 %v202, 4294901760
  %1302 = vmatpush1.xpose.msra.mxu0 %v1301
  %1303 = vmatprep.subr.mxu0 0.0
  %v1304 = vand.u32 %v205, 4294901760
  %1305 = vmatpush1.xpose.msra.mxu0 %v1304
  %1306 = vmatprep.subr.mxu0 0.0
  %v1307 = vand.u32 %v208, 4294901760
  %1308 = vmatpush1.xpose.msra.mxu0 %v1307
  %1309 = vmatprep.subr.mxu0 0.0
  %v1310 = vand.u32 %v211, 4294901760
  %1311 = vmatpush1.xpose.msra.mxu0 %v1310
  %1312 = vmatprep.subr.mxu0 0.0
  %v1313 = vand.u32 %v214, 4294901760
  %1314 = vmatpush1.xpose.msra.mxu0 %v1313
  %1315 = vmatprep.mubr.f32.mxu0 0.0
  %v1316 = vand.u32 %v100, 4294901760
  %1317 = vmatmul.mubr.f32.gmra.mrb[0].mxu0 %v1316
  %v1318 = vpop.f32.mrb[0].mxu0
  %v1319 = vadd.f32 %v1173, %v1318
  %v1320 = vpop.f32.mrb[0].mxu0
  %v1321 = vadd.f32 %v1175, %v1320
  %1322 = vmatprep.mubr.f32.mxu0 0.0
  %v1323 = vand.u32 %v103, 4294901760
  %1324 = vmatmul.mubr.f32.gmra.mrb[0].mxu0 %v1323
  %v1325 = vpop.f32.mrb[0].mxu0
  %v1326 = vadd.f32 %v1180, %v1325
  %v1327 = vpop.f32.mrb[0].mxu0
  %v1328 = vadd.f32 %v1182, %v1327
  %1329 = vmatprep.mubr.f32.mxu0 0.0
  %v1330 = vand.u32 %v106, 4294901760
  %1331 = vmatmul.mubr.f32.gmra.mrb[0].mxu0 %v1330
  %v1332 = vpop.f32.mrb[0].mxu0
  %v1333 = vadd.f32 %v1187, %v1332
  %v1334 = vpop.f32.mrb[0].mxu0
  %v1335 = vadd.f32 %v1189, %v1334
  %1336 = vmatprep.mubr.f32.mxu0 0.0
  %v1337 = vand.u32 %v109, 4294901760
  %1338 = vmatmul.mubr.f32.gmra.mrb[0].mxu0 %v1337
  %v1339 = vpop.f32.mrb[0].mxu0
  %v1340 = vadd.f32 %v1194, %v1339
  %v1341 = vpop.f32.mrb[0].mxu0
  %v1342 = vadd.f32 %v1196, %v1341
  %1343 = vmatprep.mubr.f32.mxu0 0.0
  %v1344 = vand.u32 %v112, 4294901760
  %1345 = vmatmul.mubr.f32.gmra.mrb[0].mxu0 %v1344
  %v1346 = vpop.f32.mrb[0].mxu0
  %v1347 = vadd.f32 %v1201, %v1346
  %v1348 = vpop.f32.mrb[0].mxu0
  %v1349 = vadd.f32 %v1203, %v1348
  %1350 = vmatprep.mubr.f32.mxu0 0.0
  %v1351 = vand.u32 %v115, 4294901760
  %1352 = vmatmul.mubr.f32.gmra.mrb[0].mxu0 %v1351
  %v1353 = vpop.f32.mrb[0].mxu0
  %v1354 = vadd.f32 %v1208, %v1353
  %v1355 = vpop.f32.mrb[0].mxu0
  %v1356 = vadd.f32 %v1210, %v1355
  %1357 = vmatprep.mubr.f32.mxu0 0.0
  %v1358 = vand.u32 %v118, 4294901760
  %1359 = vmatmul.mubr.f32.gmra.mrb[0].mxu0 %v1358
  %v1360 = vpop.f32.mrb[0].mxu0
  %v1361 = vadd.f32 %v1215, %v1360
  %v1362 = vpop.f32.mrb[0].mxu0
  %v1363 = vadd.f32 %v1217, %v1362
  %1364 = vdwg.mxu0
  %v1365 = vmax.f32 %v1319, 0.0
  %v1366 = vmax.f32 %v1321, 0.0
  %v1367 = vmax.f32 %v1326, 0.0
  %v1368 = vmax.f32 %v1328, 0.0
  %v1369 = vmax.f32 %v1333, 0.0
  %v1370 = vmax.f32 %v1335, 0.0
  %v1371 = vmax.f32 %v1340, 0.0
  %v1372 = vmax.f32 %v1342, 0.0
  %v1373 = vmax.f32 %v1347, 0.0
  %v1374 = vmax.f32 %v1349, 0.0
  %v1375 = vmax.f32 %v1354, 0.0
  %v1376 = vmax.f32 %v1356, 0.0
  %v1377 = vmax.f32 %v1361, 0.0
  %v1378 = vmax.f32 %v1363, 0.0
  %v1379 = vld [vmem:[%s3] sm:$0xff]
  %v1380 = vld [vmem:[%s3 + $0x8] sm:$0xff]
  %v1381 = vld [vmem:[%s3 + $0x10] sm:$0xff]
  %v1382 = vld [vmem:[%s3 + $0x18] sm:$0xff]
  %v1383 = vld [vmem:[%s3 + $0x20] sm:$0xff]
  %v1384 = vld [vmem:[%s3 + $0x28] sm:$0xff]
  %v1385 = vld [vmem:[%s3 + $0x30] sm:$0xff]
  %vm1386 = vcmask 457728
  %v1388 = vsel %vm1386, %v1379, 0
  %v1391 = vsel %vm1386, %v1380, 0
  %v1394 = vsel %vm1386, %v1381, 0
  %v1397 = vsel %vm1386, %v1382, 0
  %v1400 = vsel %vm1386, %v1383, 0
  %v1403 = vsel %vm1386, %v1384, 0
  %v1406 = vsel %vm1386, %v1385, 0
  %v1408 = vand.u32 %v1366, 4294901760
  %1409 = vmatprep.subr.mxu0 %v1408
  %v1410 = vand.u32 %v1365, 4294901760
  %1411 = vmatpush1.msra.mxu0 %v1410
  %v1412 = vand.u32 %v1368, 4294901760
  %1413 = vmatprep.subr.mxu0 %v1412
  %v1414 = vand.u32 %v1367, 4294901760
  %1415 = vmatpush1.msra.mxu0 %v1414
  %v1416 = vand.u32 %v1370, 4294901760
  %1417 = vmatprep.subr.mxu0 %v1416
  %v1418 = vand.u32 %v1369, 4294901760
  %1419 = vmatpush1.msra.mxu0 %v1418
  %v1420 = vand.u32 %v1372, 4294901760
  %1421 = vmatprep.subr.mxu0 %v1420
  %v1422 = vand.u32 %v1371, 4294901760
  %1423 = vmatpush1.msra.mxu0 %v1422
  %v1424 = vand.u32 %v1374, 4294901760
  %1425 = vmatprep.subr.mxu0 %v1424
  %v1426 = vand.u32 %v1373, 4294901760
  %1427 = vmatpush1.msra.mxu0 %v1426
  %v1428 = vand.u32 %v1376, 4294901760
  %1429 = vmatprep.subr.mxu0 %v1428
  %v1430 = vand.u32 %v1375, 4294901760
  %1431 = vmatpush1.msra.mxu0 %v1430
  %v1432 = vand.u32 %v1378, 4294901760
  %1433 = vmatprep.subr.mxu0 %v1432
  %v1434 = vand.u32 %v1377, 4294901760
  %1435 = vmatpush1.msra.mxu0 %v1434
  %1436 = vmatprep.subr.mxu0 0.0
  %1437 = vmatpush1.msra.mxu0 0.0
  %1438 = vmatprep.subr.mxu0 0.0
  %1439 = vmatpush1.msra.mxu0 0.0
  %1440 = vmatprep.subr.mxu0 0.0
  %1441 = vmatpush1.msra.mxu0 0.0
  %1442 = vmatprep.subr.mxu0 0.0
  %1443 = vmatpush1.msra.mxu0 0.0
  %1444 = vmatprep.subr.mxu0 0.0
  %1445 = vmatpush1.msra.mxu0 0.0
  %1446 = vmatprep.subr.mxu0 0.0
  %1447 = vmatpush1.msra.mxu0 0.0
  %1448 = vmatprep.subr.mxu0 0.0
  %1449 = vmatpush1.msra.mxu0 0.0
  %1450 = vmatprep.subr.mxu0 0.0
  %1451 = vmatpush1.msra.mxu0 0.0
  %1452 = vmatprep.subr.mxu0 0.0
  %1453 = vmatpush1.msra.mxu0 0.0
  %1454 = vmatprep.subr.mxu0 0.0
  %1455 = vmatpush1.msra.mxu0 0.0
  %1456 = vmatprep.subr.mxu0 0.0
  %1457 = vmatpush1.msra.mxu0 0.0
  %1458 = vmatprep.subr.mxu0 0.0
  %1459 = vmatpush1.msra.mxu0 0.0
  %1460 = vmatprep.subr.mxu0 0.0
  %1461 = vmatpush1.msra.mxu0 0.0
  %1462 = vmatprep.subr.mxu0 0.0
  %1463 = vmatpush1.msra.mxu0 0.0
  %1464 = vmatprep.subr.mxu0 0.0
  %1465 = vmatpush1.msra.mxu0 0.0
  %1466 = vmatprep.subr.mxu0 0.0
  %1467 = vmatpush1.msra.mxu0 0.0
  %1468 = vmatprep.subr.mxu0 0.0
  %1469 = vmatpush1.msra.mxu0 0.0
  %1470 = vmatprep.subr.mxu0 0.0
  %1471 = vmatpush1.msra.mxu0 0.0
  %1472 = vmatprep.subr.mxu0 0.0
  %1473 = vmatpush1.msra.mxu0 0.0
  %1474 = vmatprep.subr.mxu0 0.0
  %1475 = vmatpush1.msra.mxu0 0.0
  %1476 = vmatprep.subr.mxu0 0.0
  %1477 = vmatpush1.msra.mxu0 0.0
  %1478 = vmatprep.subr.mxu0 0.0
  %1479 = vmatpush1.msra.mxu0 0.0
  %1480 = vmatprep.subr.mxu0 0.0
  %1481 = vmatpush1.msra.mxu0 0.0
  %1482 = vmatprep.subr.mxu0 0.0
  %1483 = vmatpush1.msra.mxu0 0.0
  %1484 = vmatprep.subr.mxu0 0.0
  %1485 = vmatpush1.msra.mxu0 0.0
  %1486 = vmatprep.mubr.f32.mxu0 0.0
  %v1487 = vand.u32 %v1388, 4294901760
  %v1488 = vsub.f32 %v1388, %v1487
  %v1489 = vand.u32 %v1488, 4294901760
  %v1490 = vsub.f32 %v1488, %v1489
  %v1491 = vand.u32 %v1490, 4294901760
  %1492 = vmatmul.mubr.f32.gmra.mrb[0].mxu0 %v1491
  %v1493 = vpop.f32.mrb[0].mxu0
  %v1494 = vadd.f32 0.0, %v1493
  %v1495 = vpop.f32.mrb[0].mxu0
  %v1496 = vadd.f32 0.0, %v1495
  %1497 = vmatprep.mubr.f32.mxu0 0.0
  %v1498 = vand.u32 %v1391, 4294901760
  %v1499 = vsub.f32 %v1391, %v1498
  %v1500 = vand.u32 %v1499, 4294901760
  %v1501 = vsub.f32 %v1499, %v1500
  %v1502 = vand.u32 %v1501, 4294901760
  %1503 = vmatmul.mubr.f32.gmra.mrb[0].mxu0 %v1502
  %v1504 = vpop.f32.mrb[0].mxu0
  %v1505 = vadd.f32 0.0, %v1504
  %v1506 = vpop.f32.mrb[0].mxu0
  %v1507 = vadd.f32 0.0, %v1506
  %1508 = vmatprep.mubr.f32.mxu0 0.0
  %v1509 = vand.u32 %v1394, 4294901760
  %v1510 = vsub.f32 %v1394, %v1509
  %v1511 = vand.u32 %v1510, 4294901760
  %v1512 = vsub.f32 %v1510, %v1511
  %v1513 = vand.u32 %v1512, 4294901760
  %1514 = vmatmul.mubr.f32.gmra.mrb[0].mxu0 %v1513
  %v1515 = vpop.f32.mrb[0].mxu0
  %v1516 = vadd.f32 0.0, %v1515
  %v1517 = vpop.f32.mrb[0].mxu0
  %v1518 = vadd.f32 0.0, %v1517
  %1519 = vmatprep.mubr.f32.mxu0 0.0
  %v1520 = vand.u32 %v1397, 4294901760
  %v1521 = vsub.f32 %v1397, %v1520
  %v1522 = vand.u32 %v1521, 4294901760
  %v1523 = vsub.f32 %v1521, %v1522
  %v1524 = vand.u32 %v1523, 4294901760
  %1525 = vmatmul.mubr.f32.gmra.mrb[0].mxu0 %v1524
  %v1526 = vpop.f32.mrb[0].mxu0
  %v1527 = vadd.f32 0.0, %v1526
  %v1528 = vpop.f32.mrb[0].mxu0
  %v1529 = vadd.f32 0.0, %v1528
  %1530 = vmatprep.mubr.f32.mxu0 0.0
  %v1531 = vand.u32 %v1400, 4294901760
  %v1532 = vsub.f32 %v1400, %v1531
  %v1533 = vand.u32 %v1532, 4294901760
  %v1534 = vsub.f32 %v1532, %v1533
  %v1535 = vand.u32 %v1534, 4294901760
  %1536 = vmatmul.mubr.f32.gmra.mrb[0].mxu0 %v1535
  %v1537 = vpop.f32.mrb[0].mxu0
  %v1538 = vadd.f32 0.0, %v1537
  %v1539 = vpop.f32.mrb[0].mxu0
  %v1540 = vadd.f32 0.0, %v1539
  %1541 = vmatprep.mubr.f32.mxu0 0.0
  %v1542 = vand.u32 %v1403, 4294901760
  %v1543 = vsub.f32 %v1403, %v1542
  %v1544 = vand.u32 %v1543, 4294901760
  %v1545 = vsub.f32 %v1543, %v1544
  %v1546 = vand.u32 %v1545, 4294901760
  %1547 = vmatmul.mubr.f32.gmra.mrb[0].mxu0 %v1546
  %v1548 = vpop.f32.mrb[0].mxu0
  %v1549 = vadd.f32 0.0, %v1548
  %v1550 = vpop.f32.mrb[0].mxu0
  %v1551 = vadd.f32 0.0, %v1550
  %1552 = vmatprep.mubr.f32.mxu0 0.0
  %v1553 = vand.u32 %v1406, 4294901760
  %v1554 = vsub.f32 %v1406, %v1553
  %v1555 = vand.u32 %v1554, 4294901760
  %v1556 = vsub.f32 %v1554, %v1555
  %v1557 = vand.u32 %v1556, 4294901760
  %1558 = vmatmul.mubr.f32.gmra.mrb[0].mxu0 %v1557
  %v1559 = vpop.f32.mrb[0].mxu0
  %v1560 = vadd.f32 0.0, %v1559
  %v1561 = vpop.f32.mrb[0].mxu0
  %v1562 = vadd.f32 0.0, %v1561
  %1563 = vdwg.mxu0
  %v1564 = vand.u32 %v1366, 4294901760
  %v1565 = vsub.f32 %v1366, %v1564
  %v1566 = vand.u32 %v1565, 4294901760
  %v1567 = vsub.f32 %v1565, %v1566
  %v1568 = vand.u32 %v1567, 4294901760
  %1569 = vmatprep.subr.mxu0 %v1568
  %v1570 = vand.u32 %v1365, 4294901760
  %v1571 = vsub.f32 %v1365, %v1570
  %v1572 = vand.u32 %v1571, 4294901760
  %v1573 = vsub.f32 %v1571, %v1572
  %v1574 = vand.u32 %v1573, 4294901760
  %1575 = vmatpush1.msra.mxu0 %v1574
  %v1576 = vand.u32 %v1368, 4294901760
  %v1577 = vsub.f32 %v1368, %v1576
  %v1578 = vand.u32 %v1577, 4294901760
  %v1579 = vsub.f32 %v1577, %v1578
  %v1580 = vand.u32 %v1579, 4294901760
  %1581 = vmatprep.subr.mxu0 %v1580
  %v1582 = vand.u32 %v1367, 4294901760
  %v1583 = vsub.f32 %v1367, %v1582
  %v1584 = vand.u32 %v1583, 4294901760
  %v1585 = vsub.f32 %v1583, %v1584
  %v1586 = vand.u32 %v1585, 4294901760
  %1587 = vmatpush1.msra.mxu0 %v1586
  %v1588 = vand.u32 %v1370, 4294901760
  %v1589 = vsub.f32 %v1370, %v1588
  %v1590 = vand.u32 %v1589, 4294901760
  %v1591 = vsub.f32 %v1589, %v1590
  %v1592 = vand.u32 %v1591, 4294901760
  %1593 = vmatprep.subr.mxu0 %v1592
  %v1594 = vand.u32 %v1369, 4294901760
  %v1595 = vsub.f32 %v1369, %v1594
  %v1596 = vand.u32 %v1595, 4294901760
  %v1597 = vsub.f32 %v1595, %v1596
  %v1598 = vand.u32 %v1597, 4294901760
  %1599 = vmatpush1.msra.mxu0 %v1598
  %v1600 = vand.u32 %v1372, 4294901760
  %v1601 = vsub.f32 %v1372, %v1600
  %v1602 = vand.u32 %v1601, 4294901760
  %v1603 = vsub.f32 %v1601, %v1602
  %v1604 = vand.u32 %v1603, 4294901760
  %1605 = vmatprep.subr.mxu0 %v1604
  %v1606 = vand.u32 %v1371, 4294901760
  %v1607 = vsub.f32 %v1371, %v1606
  %v1608 = vand.u32 %v1607, 4294901760
  %v1609 = vsub.f32 %v1607, %v1608
  %v1610 = vand.u32 %v1609, 4294901760
  %1611 = vmatpush1.msra.mxu0 %v1610
  %v1612 = vand.u32 %v1374, 4294901760
  %v1613 = vsub.f32 %v1374, %v1612
  %v1614 = vand.u32 %v1613, 4294901760
  %v1615 = vsub.f32 %v1613, %v1614
  %v1616 = vand.u32 %v1615, 4294901760
  %1617 = vmatprep.subr.mxu0 %v1616
  %v1618 = vand.u32 %v1373, 4294901760
  %v1619 = vsub.f32 %v1373, %v1618
  %v1620 = vand.u32 %v1619, 4294901760
  %v1621 = vsub.f32 %v1619, %v1620
  %v1622 = vand.u32 %v1621, 4294901760
  %1623 = vmatpush1.msra.mxu0 %v1622
  %v1624 = vand.u32 %v1376, 4294901760
  %v1625 = vsub.f32 %v1376, %v1624
  %v1626 = vand.u32 %v1625, 4294901760
  %v1627 = vsub.f32 %v1625, %v1626
  %v1628 = vand.u32 %v1627, 4294901760
  %1629 = vmatprep.subr.mxu0 %v1628
  %v1630 = vand.u32 %v1375, 4294901760
  %v1631 = vsub.f32 %v1375, %v1630
  %v1632 = vand.u32 %v1631, 4294901760
  %v1633 = vsub.f32 %v1631, %v1632
  %v1634 = vand.u32 %v1633, 4294901760
  %1635 = vmatpush1.msra.mxu0 %v1634
  %v1636 = vand.u32 %v1378, 4294901760
  %v1637 = vsub.f32 %v1378, %v1636
  %v1638 = vand.u32 %v1637, 4294901760
  %v1639 = vsub.f32 %v1637, %v1638
  %v1640 = vand.u32 %v1639, 4294901760
  %1641 = vmatprep.subr.mxu0 %v1640
  %v1642 = vand.u32 %v1377, 4294901760
  %v1643 = vsub.f32 %v1377, %v1642
  %v1644 = vand.u32 %v1643, 4294901760
  %v1645 = vsub.f32 %v1643, %v1644
  %v1646 = vand.u32 %v1645, 4294901760
  %1647 = vmatpush1.msra.mxu0 %v1646
  %1648 = vmatprep.subr.mxu0 0.0
  %1649 = vmatpush1.msra.mxu0 0.0
  %1650 = vmatprep.subr.mxu0 0.0
  %1651 = vmatpush1.msra.mxu0 0.0
  %1652 = vmatprep.subr.mxu0 0.0
  %1653 = vmatpush1.msra.mxu0 0.0
  %1654 = vmatprep.subr.mxu0 0.0
  %1655 = vmatpush1.msra.mxu0 0.0
  %1656 = vmatprep.subr.mxu0 0.0
  %1657 = vmatpush1.msra.mxu0 0.0
  %1658 = vmatprep.subr.mxu0 0.0
  %1659 = vmatpush1.msra.mxu0 0.0
  %1660 = vmatprep.subr.mxu0 0.0
  %1661 = vmatpush1.msra.mxu0 0.0
  %1662 = vmatprep.subr.mxu0 0.0
  %1663 = vmatpush1.msra.mxu0 0.0
  %1664 = vmatprep.subr.mxu0 0.0
  %1665 = vmatpush1.msra.mxu0 0.0
  %1666 = vmatprep.subr.mxu0 0.0
  %1667 = vmatpush1.msra.mxu0 0.0
  %1668 = vmatprep.subr.mxu0 0.0
  %1669 = vmatpush1.msra.mxu0 0.0
  %1670 = vmatprep.subr.mxu0 0.0
  %1671 = vmatpush1.msra.mxu0 0.0
  %1672 = vmatprep.subr.mxu0 0.0
  %1673 = vmatpush1.msra.mxu0 0.0
  %1674 = vmatprep.subr.mxu0 0.0
  %1675 = vmatpush1.msra.mxu0 0.0
  %1676 = vmatprep.subr.mxu0 0.0
  %1677 = vmatpush1.msra.mxu0 0.0
  %1678 = vmatprep.subr.mxu0 0.0
  %1679 = vmatpush1.msra.mxu0 0.0
  %1680 = vmatprep.subr.mxu0 0.0
  %1681 = vmatpush1.msra.mxu0 0.0
  %1682 = vmatprep.subr.mxu0 0.0
  %1683 = vmatpush1.msra.mxu0 0.0
  %1684 = vmatprep.subr.mxu0 0.0
  %1685 = vmatpush1.msra.mxu0 0.0
  %1686 = vmatprep.subr.mxu0 0.0
  %1687 = vmatpush1.msra.mxu0 0.0
  %1688 = vmatprep.subr.mxu0 0.0
  %1689 = vmatpush1.msra.mxu0 0.0
  %1690 = vmatprep.subr.mxu0 0.0
  %1691 = vmatpush1.msra.mxu0 0.0
  %1692 = vmatprep.subr.mxu0 0.0
  %1693 = vmatpush1.msra.mxu0 0.0
  %1694 = vmatprep.subr.mxu0 0.0
  %1695 = vmatpush1.msra.mxu0 0.0
  %1696 = vmatprep.subr.mxu0 0.0
  %1697 = vmatpush1.msra.mxu0 0.0
  %1698 = vmatprep.mubr.f32.mxu0 0.0
  %v1699 = vand.u32 %v1388, 4294901760
  %1700 = vmatmul.mubr.f32.gmra.mrb[0].mxu0 %v1699
  %v1701 = vpop.f32.mrb[0].mxu0
  %v1702 = vadd.f32 %v1494, %v1701
  %v1703 = vpop.f32.mrb[0].mxu0
  %v1704 = vadd.f32 %v1496, %v1703
  %1705 = vmatprep.mubr.f32.mxu0 0.0
  %v1706 = vand.u32 %v1391, 4294901760
  %1707 = vmatmul.mubr.f32.gmra.mrb[0].mxu0 %v1706
  %v1708 = vpop.f32.mrb[0].mxu0
  %v1709 = vadd.f32 %v1505, %v1708
  %v1710 = vpop.f32.mrb[0].mxu0
  %v1711 = vadd.f32 %v1507, %v1710
  %1712 = vmatprep.mubr.f32.mxu0 0.0
  %v1713 = vand.u32 %v1394, 4294901760
  %1714 = vmatmul.mubr.f32.gmra.mrb[0].mxu0 %v1713
  %v1715 = vpop.f32.mrb[0].mxu0
  %v1716 = vadd.f32 %v1516, %v1715
  %v1717 = vpop.f32.mrb[0].mxu0
  %v1718 = vadd.f32 %v1518, %v1717
  %1719 = vmatprep.mubr.f32.mxu0 0.0
  %v1720 = vand.u32 %v1397, 4294901760
  %1721 = vmatmul.mubr.f32.gmra.mrb[0].mxu0 %v1720
  %v1722 = vpop.f32.mrb[0].mxu0
  %v1723 = vadd.f32 %v1527, %v1722
  %v1724 = vpop.f32.mrb[0].mxu0
  %v1725 = vadd.f32 %v1529, %v1724
  %1726 = vmatprep.mubr.f32.mxu0 0.0
  %v1727 = vand.u32 %v1400, 4294901760
  %1728 = vmatmul.mubr.f32.gmra.mrb[0].mxu0 %v1727
  %v1729 = vpop.f32.mrb[0].mxu0
  %v1730 = vadd.f32 %v1538, %v1729
  %v1731 = vpop.f32.mrb[0].mxu0
  %v1732 = vadd.f32 %v1540, %v1731
  %1733 = vmatprep.mubr.f32.mxu0 0.0
  %v1734 = vand.u32 %v1403, 4294901760
  %1735 = vmatmul.mubr.f32.gmra.mrb[0].mxu0 %v1734
  %v1736 = vpop.f32.mrb[0].mxu0
  %v1737 = vadd.f32 %v1549, %v1736
  %v1738 = vpop.f32.mrb[0].mxu0
  %v1739 = vadd.f32 %v1551, %v1738
  %1740 = vmatprep.mubr.f32.mxu0 0.0
  %v1741 = vand.u32 %v1406, 4294901760
  %1742 = vmatmul.mubr.f32.gmra.mrb[0].mxu0 %v1741
  %v1743 = vpop.f32.mrb[0].mxu0
  %v1744 = vadd.f32 %v1560, %v1743
  %v1745 = vpop.f32.mrb[0].mxu0
  %v1746 = vadd.f32 %v1562, %v1745
  %1747 = vdwg.mxu0
  %v1748 = vand.u32 %v1366, 4294901760
  %v1749 = vsub.f32 %v1366, %v1748
  %1750 = vmatprep.subr.mxu0 %v1749
  %v1751 = vand.u32 %v1365, 4294901760
  %v1752 = vsub.f32 %v1365, %v1751
  %1753 = vmatpush1.msra.mxu0 %v1752
  %v1754 = vand.u32 %v1368, 4294901760
  %v1755 = vsub.f32 %v1368, %v1754
  %1756 = vmatprep.subr.mxu0 %v1755
  %v1757 = vand.u32 %v1367, 4294901760
  %v1758 = vsub.f32 %v1367, %v1757
  %1759 = vmatpush1.msra.mxu0 %v1758
  %v1760 = vand.u32 %v1370, 4294901760
  %v1761 = vsub.f32 %v1370, %v1760
  %1762 = vmatprep.subr.mxu0 %v1761
  %v1763 = vand.u32 %v1369, 4294901760
  %v1764 = vsub.f32 %v1369, %v1763
  %1765 = vmatpush1.msra.mxu0 %v1764
  %v1766 = vand.u32 %v1372, 4294901760
  %v1767 = vsub.f32 %v1372, %v1766
  %1768 = vmatprep.subr.mxu0 %v1767
  %v1769 = vand.u32 %v1371, 4294901760
  %v1770 = vsub.f32 %v1371, %v1769
  %1771 = vmatpush1.msra.mxu0 %v1770
  %v1772 = vand.u32 %v1374, 4294901760
  %v1773 = vsub.f32 %v1374, %v1772
  %1774 = vmatprep.subr.mxu0 %v1773
  %v1775 = vand.u32 %v1373, 4294901760
  %v1776 = vsub.f32 %v1373, %v1775
  %1777 = vmatpush1.msra.mxu0 %v1776
  %v1778 = vand.u32 %v1376, 4294901760
  %v1779 = vsub.f32 %v1376, %v1778
  %1780 = vmatprep.subr.mxu0 %v1779
  %v1781 = vand.u32 %v1375, 4294901760
  %v1782 = vsub.f32 %v1375, %v1781
  %1783 = vmatpush1.msra.mxu0 %v1782
  %v1784 = vand.u32 %v1378, 4294901760
  %v1785 = vsub.f32 %v1378, %v1784
  %1786 = vmatprep.subr.mxu0 %v1785
  %v1787 = vand.u32 %v1377, 4294901760
  %v1788 = vsub.f32 %v1377, %v1787
  %1789 = vmatpush1.msra.mxu0 %v1788
  %1790 = vmatprep.subr.mxu0 0.0
  %1791 = vmatpush1.msra.mxu0 0.0
  %1792 = vmatprep.subr.mxu0 0.0
  %1793 = vmatpush1.msra.mxu0 0.0
  %1794 = vmatprep.subr.mxu0 0.0
  %1795 = vmatpush1.msra.mxu0 0.0
  %1796 = vmatprep.subr.mxu0 0.0
  %1797 = vmatpush1.msra.mxu0 0.0
  %1798 = vmatprep.subr.mxu0 0.0
  %1799 = vmatpush1.msra.mxu0 0.0
  %1800 = vmatprep.subr.mxu0 0.0
  %1801 = vmatpush1.msra.mxu0 0.0
  %1802 = vmatprep.subr.mxu0 0.0
  %1803 = vmatpush1.msra.mxu0 0.0
  %1804 = vmatprep.subr.mxu0 0.0
  %1805 = vmatpush1.msra.mxu0 0.0
  %1806 = vmatprep.subr.mxu0 0.0
  %1807 = vmatpush1.msra.mxu0 0.0
  %1808 = vmatprep.subr.mxu0 0.0
  %1809 = vmatpush1.msra.mxu0 0.0
  %1810 = vmatprep.subr.mxu0 0.0
  %1811 = vmatpush1.msra.mxu0 0.0
  %1812 = vmatprep.subr.mxu0 0.0
  %1813 = vmatpush1.msra.mxu0 0.0
  %1814 = vmatprep.subr.mxu0 0.0
  %1815 = vmatpush1.msra.mxu0 0.0
  %1816 = vmatprep.subr.mxu0 0.0
  %1817 = vmatpush1.msra.mxu0 0.0
  %1818 = vmatprep.subr.mxu0 0.0
  %1819 = vmatpush1.msra.mxu0 0.0
  %1820 = vmatprep.subr.mxu0 0.0
  %1821 = vmatpush1.msra.mxu0 0.0
  %1822 = vmatprep.subr.mxu0 0.0
  %1823 = vmatpush1.msra.mxu0 0.0
  %1824 = vmatprep.subr.mxu0 0.0
  %1825 = vmatpush1.msra.mxu0 0.0
  %1826 = vmatprep.subr.mxu0 0.0
  %1827 = vmatpush1.msra.mxu0 0.0
  %1828 = vmatprep.subr.mxu0 0.0
  %1829 = vmatpush1.msra.mxu0 0.0
  %1830 = vmatprep.subr.mxu0 0.0
  %1831 = vmatpush1.msra.mxu0 0.0
  %1832 = vmatprep.subr.mxu0 0.0
  %1833 = vmatpush1.msra.mxu0 0.0
  %1834 = vmatprep.subr.mxu0 0.0
  %1835 = vmatpush1.msra.mxu0 0.0
  %1836 = vmatprep.subr.mxu0 0.0
  %1837 = vmatpush1.msra.mxu0 0.0
  %1838 = vmatprep.subr.mxu0 0.0
  %1839 = vmatpush1.msra.mxu0 0.0
  %1840 = vmatprep.mubr.f32.mxu0 0.0
  %v1841 = vand.u32 %v1388, 4294901760
  %v1842 = vsub.f32 %v1388, %v1841
  %1843 = vmatmul.mubr.f32.gmra.mrb[0].mxu0 %v1842
  %v1844 = vpop.f32.mrb[0].mxu0
  %v1845 = vadd.f32 %v1702, %v1844
  %v1846 = vpop.f32.mrb[0].mxu0
  %v1847 = vadd.f32 %v1704, %v1846
  %1848 = vmatprep.mubr.f32.mxu0 0.0
  %v1849 = vand.u32 %v1391, 4294901760
  %v1850 = vsub.f32 %v1391, %v1849
  %1851 = vmatmul.mubr.f32.gmra.mrb[0].mxu0 %v1850
  %v1852 = vpop.f32.mrb[0].mxu0
  %v1853 = vadd.f32 %v1709, %v1852
  %v1854 = vpop.f32.mrb[0].mxu0
  %v1855 = vadd.f32 %v1711, %v1854
  %1856 = vmatprep.mubr.f32.mxu0 0.0
  %v1857 = vand.u32 %v1394, 4294901760
  %v1858 = vsub.f32 %v1394, %v1857
  %1859 = vmatmul.mubr.f32.gmra.mrb[0].mxu0 %v1858
  %v1860 = vpop.f32.mrb[0].mxu0
  %v1861 = vadd.f32 %v1716, %v1860
  %v1862 = vpop.f32.mrb[0].mxu0
  %v1863 = vadd.f32 %v1718, %v1862
  %1864 = vmatprep.mubr.f32.mxu0 0.0
  %v1865 = vand.u32 %v1397, 4294901760
  %v1866 = vsub.f32 %v1397, %v1865
  %1867 = vmatmul.mubr.f32.gmra.mrb[0].mxu0 %v1866
  %v1868 = vpop.f32.mrb[0].mxu0
  %v1869 = vadd.f32 %v1723, %v1868
  %v1870 = vpop.f32.mrb[0].mxu0
  %v1871 = vadd.f32 %v1725, %v1870
  %1872 = vmatprep.mubr.f32.mxu0 0.0
  %v1873 = vand.u32 %v1400, 4294901760
  %v1874 = vsub.f32 %v1400, %v1873
  %1875 = vmatmul.mubr.f32.gmra.mrb[0].mxu0 %v1874
  %v1876 = vpop.f32.mrb[0].mxu0
  %v1877 = vadd.f32 %v1730, %v1876
  %v1878 = vpop.f32.mrb[0].mxu0
  %v1879 = vadd.f32 %v1732, %v1878
  %1880 = vmatprep.mubr.f32.mxu0 0.0
  %v1881 = vand.u32 %v1403, 4294901760
  %v1882 = vsub.f32 %v1403, %v1881
  %1883 = vmatmul.mubr.f32.gmra.mrb[0].mxu0 %v1882
  %v1884 = vpop.f32.mrb[0].mxu0
  %v1885 = vadd.f32 %v1737, %v1884
  %v1886 = vpop.f32.mrb[0].mxu0
  %v1887 = vadd.f32 %v1739, %v1886
  %1888 = vmatprep.mubr.f32.mxu0 0.0
  %v1889 = vand.u32 %v1406, 4294901760
  %v1890 = vsub.f32 %v1406, %v1889
  %1891 = vmatmul.mubr.f32.gmra.mrb[0].mxu0 %v1890
  %v1892 = vpop.f32.mrb[0].mxu0
  %v1893 = vadd.f32 %v1744, %v1892
  %v1894 = vpop.f32.mrb[0].mxu0
  %v1895 = vadd.f32 %v1746, %v1894
  %1896 = vdwg.mxu0
  %v1897 = vand.u32 %v1366, 4294901760
  %1898 = vmatprep.subr.mxu0 %v1897
  %v1899 = vand.u32 %v1365, 4294901760
  %1900 = vmatpush1.msra.mxu0 %v1899
  %v1901 = vand.u32 %v1368, 4294901760
  %1902 = vmatprep.subr.mxu0 %v1901
  %v1903 = vand.u32 %v1367, 4294901760
  %1904 = vmatpush1.msra.mxu0 %v1903
  %v1905 = vand.u32 %v1370, 4294901760
  %1906 = vmatprep.subr.mxu0 %v1905
  %v1907 = vand.u32 %v1369, 4294901760
  %1908 = vmatpush1.msra.mxu0 %v1907
  %v1909 = vand.u32 %v1372, 4294901760
  %1910 = vmatprep.subr.mxu0 %v1909
  %v1911 = vand.u32 %v1371, 4294901760
  %1912 = vmatpush1.msra.mxu0 %v1911
  %v1913 = vand.u32 %v1374, 4294901760
  %1914 = vmatprep.subr.mxu0 %v1913
  %v1915 = vand.u32 %v1373, 4294901760
  %1916 = vmatpush1.msra.mxu0 %v1915
  %v1917 = vand.u32 %v1376, 4294901760
  %1918 = vmatprep.subr.mxu0 %v1917
  %v1919 = vand.u32 %v1375, 4294901760
  %1920 = vmatpush1.msra.mxu0 %v1919
  %v1921 = vand.u32 %v1378, 4294901760
  %1922 = vmatprep.subr.mxu0 %v1921
  %v1923 = vand.u32 %v1377, 4294901760
  %1924 = vmatpush1.msra.mxu0 %v1923
  %1925 = vmatprep.subr.mxu0 0.0
  %1926 = vmatpush1.msra.mxu0 0.0
  %1927 = vmatprep.subr.mxu0 0.0
  %1928 = vmatpush1.msra.mxu0 0.0
  %1929 = vmatprep.subr.mxu0 0.0
  %1930 = vmatpush1.msra.mxu0 0.0
  %1931 = vmatprep.subr.mxu0 0.0
  %1932 = vmatpush1.msra.mxu0 0.0
  %1933 = vmatprep.subr.mxu0 0.0
  %1934 = vmatpush1.msra.mxu0 0.0
  %1935 = vmatprep.subr.mxu0 0.0
  %1936 = vmatpush1.msra.mxu0 0.0
  %1937 = vmatprep.subr.mxu0 0.0
  %1938 = vmatpush1.msra.mxu0 0.0
  %1939 = vmatprep.subr.mxu0 0.0
  %1940 = vmatpush1.msra.mxu0 0.0
  %1941 = vmatprep.subr.mxu0 0.0
  %1942 = vmatpush1.msra.mxu0 0.0
  %1943 = vmatprep.subr.mxu0 0.0
  %1944 = vmatpush1.msra.mxu0 0.0
  %1945 = vmatprep.subr.mxu0 0.0
  %1946 = vmatpush1.msra.mxu0 0.0
  %1947 = vmatprep.subr.mxu0 0.0
  %1948 = vmatpush1.msra.mxu0 0.0
  %1949 = vmatprep.subr.mxu0 0.0
  %1950 = vmatpush1.msra.mxu0 0.0
  %1951 = vmatprep.subr.mxu0 0.0
  %1952 = vmatpush1.msra.mxu0 0.0
  %1953 = vmatprep.subr.mxu0 0.0
  %1954 = vmatpush1.msra.mxu0 0.0
  %1955 = vmatprep.subr.mxu0 0.0
  %1956 = vmatpush1.msra.mxu0 0.0
  %1957 = vmatprep.subr.mxu0 0.0
  %1958 = vmatpush1.msra.mxu0 0.0
  %1959 = vmatprep.subr.mxu0 0.0
  %1960 = vmatpush1.msra.mxu0 0.0
  %1961 = vmatprep.subr.mxu0 0.0
  %1962 = vmatpush1.msra.mxu0 0.0
  %1963 = vmatprep.subr.mxu0 0.0
  %1964 = vmatpush1.msra.mxu0 0.0
  %1965 = vmatprep.subr.mxu0 0.0
  %1966 = vmatpush1.msra.mxu0 0.0
  %1967 = vmatprep.subr.mxu0 0.0
  %1968 = vmatpush1.msra.mxu0 0.0
  %1969 = vmatprep.subr.mxu0 0.0
  %1970 = vmatpush1.msra.mxu0 0.0
  %1971 = vmatprep.subr.mxu0 0.0
  %1972 = vmatpush1.msra.mxu0 0.0
  %1973 = vmatprep.subr.mxu0 0.0
  %1974 = vmatpush1.msra.mxu0 0.0
  %1975 = vmatprep.mubr.f32.mxu0 0.0
  %v1976 = vand.u32 %v1388, 4294901760
  %v1977 = vsub.f32 %v1388, %v1976
  %v1978 = vand.u32 %v1977, 4294901760
  %1979 = vmatmul.mubr.f32.gmra.mrb[0].mxu0 %v1978
  %v1980 = vpop.f32.mrb[0].mxu0
  %v1981 = vadd.f32 %v1845, %v1980
  %v1982 = vpop.f32.mrb[0].mxu0
  %v1983 = vadd.f32 %v1847, %v1982
  %1984 = vmatprep.mubr.f32.mxu0 0.0
  %v1985 = vand.u32 %v1391, 4294901760
  %v1986 = vsub.f32 %v1391, %v1985
  %v1987 = vand.u32 %v1986, 4294901760
  %1988 = vmatmul.mubr.f32.gmra.mrb[0].mxu0 %v1987
  %v1989 = vpop.f32.mrb[0].mxu0
  %v1990 = vadd.f32 %v1853, %v1989
  %v1991 = vpop.f32.mrb[0].mxu0
  %v1992 = vadd.f32 %v1855, %v1991
  %1993 = vmatprep.mubr.f32.mxu0 0.0
  %v1994 = vand.u32 %v1394, 4294901760
  %v1995 = vsub.f32 %v1394, %v1994
  %v1996 = vand.u32 %v1995, 4294901760
  %1997 = vmatmul.mubr.f32.gmra.mrb[0].mxu0 %v1996
  %v1998 = vpop.f32.mrb[0].mxu0
  %v1999 = vadd.f32 %v1861, %v1998
  %v2000 = vpop.f32.mrb[0].mxu0
  %v2001 = vadd.f32 %v1863, %v2000
  %2002 = vmatprep.mubr.f32.mxu0 0.0
  %v2003 = vand.u32 %v1397, 4294901760
  %v2004 = vsub.f32 %v1397, %v2003
  %v2005 = vand.u32 %v2004, 4294901760
  %2006 = vmatmul.mubr.f32.gmra.mrb[0].mxu0 %v2005
  %v2007 = vpop.f32.mrb[0].mxu0
  %v2008 = vadd.f32 %v1869, %v2007
  %v2009 = vpop.f32.mrb[0].mxu0
  %v2010 = vadd.f32 %v1871, %v2009
  %2011 = vmatprep.mubr.f32.mxu0 0.0
  %v2012 = vand.u32 %v1400, 4294901760
  %v2013 = vsub.f32 %v1400, %v2012
  %v2014 = vand.u32 %v2013, 4294901760
  %2015 = vmatmul.mubr.f32.gmra.mrb[0].mxu0 %v2014
  %v2016 = vpop.f32.mrb[0].mxu0
  %v2017 = vadd.f32 %v1877, %v2016
  %v2018 = vpop.f32.mrb[0].mxu0
  %v2019 = vadd.f32 %v1879, %v2018
  %2020 = vmatprep.mubr.f32.mxu0 0.0
  %v2021 = vand.u32 %v1403, 4294901760
  %v2022 = vsub.f32 %v1403, %v2021
  %v2023 = vand.u32 %v2022, 4294901760
  %2024 = vmatmul.mubr.f32.gmra.mrb[0].mxu0 %v2023
  %v2025 = vpop.f32.mrb[0].mxu0
  %v2026 = vadd.f32 %v1885, %v2025
  %v2027 = vpop.f32.mrb[0].mxu0
  %v2028 = vadd.f32 %v1887, %v2027
  %2029 = vmatprep.mubr.f32.mxu0 0.0
  %v2030 = vand.u32 %v1406, 4294901760
  %v2031 = vsub.f32 %v1406, %v2030
  %v2032 = vand.u32 %v2031, 4294901760
  %2033 = vmatmul.mubr.f32.gmra.mrb[0].mxu0 %v2032
  %v2034 = vpop.f32.mrb[0].mxu0
  %v2035 = vadd.f32 %v1893, %v2034
  %v2036 = vpop.f32.mrb[0].mxu0
  %v2037 = vadd.f32 %v1895, %v2036
  %2038 = vdwg.mxu0
  %v2039 = vand.u32 %v1366, 4294901760
  %v2040 = vsub.f32 %v1366, %v2039
  %v2041 = vand.u32 %v2040, 4294901760
  %2042 = vmatprep.subr.mxu0 %v2041
  %v2043 = vand.u32 %v1365, 4294901760
  %v2044 = vsub.f32 %v1365, %v2043
  %v2045 = vand.u32 %v2044, 4294901760
  %2046 = vmatpush1.msra.mxu0 %v2045
  %v2047 = vand.u32 %v1368, 4294901760
  %v2048 = vsub.f32 %v1368, %v2047
  %v2049 = vand.u32 %v2048, 4294901760
  %2050 = vmatprep.subr.mxu0 %v2049
  %v2051 = vand.u32 %v1367, 4294901760
  %v2052 = vsub.f32 %v1367, %v2051
  %v2053 = vand.u32 %v2052, 4294901760
  %2054 = vmatpush1.msra.mxu0 %v2053
  %v2055 = vand.u32 %v1370, 4294901760
  %v2056 = vsub.f32 %v1370, %v2055
  %v2057 = vand.u32 %v2056, 4294901760
  %2058 = vmatprep.subr.mxu0 %v2057
  %v2059 = vand.u32 %v1369, 4294901760
  %v2060 = vsub.f32 %v1369, %v2059
  %v2061 = vand.u32 %v2060, 4294901760
  %2062 = vmatpush1.msra.mxu0 %v2061
  %v2063 = vand.u32 %v1372, 4294901760
  %v2064 = vsub.f32 %v1372, %v2063
  %v2065 = vand.u32 %v2064, 4294901760
  %2066 = vmatprep.subr.mxu0 %v2065
  %v2067 = vand.u32 %v1371, 4294901760
  %v2068 = vsub.f32 %v1371, %v2067
  %v2069 = vand.u32 %v2068, 4294901760
  %2070 = vmatpush1.msra.mxu0 %v2069
  %v2071 = vand.u32 %v1374, 4294901760
  %v2072 = vsub.f32 %v1374, %v2071
  %v2073 = vand.u32 %v2072, 4294901760
  %2074 = vmatprep.subr.mxu0 %v2073
  %v2075 = vand.u32 %v1373, 4294901760
  %v2076 = vsub.f32 %v1373, %v2075
  %v2077 = vand.u32 %v2076, 4294901760
  %2078 = vmatpush1.msra.mxu0 %v2077
  %v2079 = vand.u32 %v1376, 4294901760
  %v2080 = vsub.f32 %v1376, %v2079
  %v2081 = vand.u32 %v2080, 4294901760
  %2082 = vmatprep.subr.mxu0 %v2081
  %v2083 = vand.u32 %v1375, 4294901760
  %v2084 = vsub.f32 %v1375, %v2083
  %v2085 = vand.u32 %v2084, 4294901760
  %2086 = vmatpush1.msra.mxu0 %v2085
  %v2087 = vand.u32 %v1378, 4294901760
  %v2088 = vsub.f32 %v1378, %v2087
  %v2089 = vand.u32 %v2088, 4294901760
  %2090 = vmatprep.subr.mxu0 %v2089
  %v2091 = vand.u32 %v1377, 4294901760
  %v2092 = vsub.f32 %v1377, %v2091
  %v2093 = vand.u32 %v2092, 4294901760
  %2094 = vmatpush1.msra.mxu0 %v2093
  %2095 = vmatprep.subr.mxu0 0.0
  %2096 = vmatpush1.msra.mxu0 0.0
  %2097 = vmatprep.subr.mxu0 0.0
  %2098 = vmatpush1.msra.mxu0 0.0
  %2099 = vmatprep.subr.mxu0 0.0
  %2100 = vmatpush1.msra.mxu0 0.0
  %2101 = vmatprep.subr.mxu0 0.0
  %2102 = vmatpush1.msra.mxu0 0.0
  %2103 = vmatprep.subr.mxu0 0.0
  %2104 = vmatpush1.msra.mxu0 0.0
  %2105 = vmatprep.subr.mxu0 0.0
  %2106 = vmatpush1.msra.mxu0 0.0
  %2107 = vmatprep.subr.mxu0 0.0
  %2108 = vmatpush1.msra.mxu0 0.0
  %2109 = vmatprep.subr.mxu0 0.0
  %2110 = vmatpush1.msra.mxu0 0.0
  %2111 = vmatprep.subr.mxu0 0.0
  %2112 = vmatpush1.msra.mxu0 0.0
  %2113 = vmatprep.subr.mxu0 0.0
  %2114 = vmatpush1.msra.mxu0 0.0
  %2115 = vmatprep.subr.mxu0 0.0
  %2116 = vmatpush1.msra.mxu0 0.0
  %2117 = vmatprep.subr.mxu0 0.0
  %2118 = vmatpush1.msra.mxu0 0.0
  %2119 = vmatprep.subr.mxu0 0.0
  %2120 = vmatpush1.msra.mxu0 0.0
  %2121 = vmatprep.subr.mxu0 0.0
  %2122 = vmatpush1.msra.mxu0 0.0
  %2123 = vmatprep.subr.mxu0 0.0
  %2124 = vmatpush1.msra.mxu0 0.0
  %2125 = vmatprep.subr.mxu0 0.0
  %2126 = vmatpush1.msra.mxu0 0.0
  %2127 = vmatprep.subr.mxu0 0.0
  %2128 = vmatpush1.msra.mxu0 0.0
  %2129 = vmatprep.subr.mxu0 0.0
  %2130 = vmatpush1.msra.mxu0 0.0
  %2131 = vmatprep.subr.mxu0 0.0
  %2132 = vmatpush1.msra.mxu0 0.0
  %2133 = vmatprep.subr.mxu0 0.0
  %2134 = vmatpush1.msra.mxu0 0.0
  %2135 = vmatprep.subr.mxu0 0.0
  %2136 = vmatpush1.msra.mxu0 0.0
  %2137 = vmatprep.subr.mxu0 0.0
  %2138 = vmatpush1.msra.mxu0 0.0
  %2139 = vmatprep.subr.mxu0 0.0
  %2140 = vmatpush1.msra.mxu0 0.0
  %2141 = vmatprep.subr.mxu0 0.0
  %2142 = vmatpush1.msra.mxu0 0.0
  %2143 = vmatprep.subr.mxu0 0.0
  %2144 = vmatpush1.msra.mxu0 0.0
  %2145 = vmatprep.mubr.f32.mxu0 0.0
  %v2146 = vand.u32 %v1388, 4294901760
  %2147 = vmatmul.mubr.f32.gmra.mrb[0].mxu0 %v2146
  %v2148 = vpop.f32.mrb[0].mxu0
  %v2149 = vadd.f32 %v1981, %v2148
  %v2150 = vpop.f32.mrb[0].mxu0
  %v2151 = vadd.f32 %v1983, %v2150
  %2152 = vmatprep.mubr.f32.mxu0 0.0
  %v2153 = vand.u32 %v1391, 4294901760
  %2154 = vmatmul.mubr.f32.gmra.mrb[0].mxu0 %v2153
  %v2155 = vpop.f32.mrb[0].mxu0
  %v2156 = vadd.f32 %v1990, %v2155
  %v2157 = vpop.f32.mrb[0].mxu0
  %v2158 = vadd.f32 %v1992, %v2157
  %2159 = vmatprep.mubr.f32.mxu0 0.0
  %v2160 = vand.u32 %v1394, 4294901760
  %2161 = vmatmul.mubr.f32.gmra.mrb[0].mxu0 %v2160
  %v2162 = vpop.f32.mrb[0].mxu0
  %v2163 = vadd.f32 %v1999, %v2162
  %v2164 = vpop.f32.mrb[0].mxu0
  %v2165 = vadd.f32 %v2001, %v2164
  %2166 = vmatprep.mubr.f32.mxu0 0.0
  %v2167 = vand.u32 %v1397, 4294901760
  %2168 = vmatmul.mubr.f32.gmra.mrb[0].mxu0 %v2167
  %v2169 = vpop.f32.mrb[0].mxu0
  %v2170 = vadd.f32 %v2008, %v2169
  %v2171 = vpop.f32.mrb[0].mxu0
  %v2172 = vadd.f32 %v2010, %v2171
  %2173 = vmatprep.mubr.f32.mxu0 0.0
  %v2174 = vand.u32 %v1400, 4294901760
  %2175 = vmatmul.mubr.f32.gmra.mrb[0].mxu0 %v2174
  %v2176 = vpop.f32.mrb[0].mxu0
  %v2177 = vadd.f32 %v2017, %v2176
  %v2178 = vpop.f32.mrb[0].mxu0
  %v2179 = vadd.f32 %v2019, %v2178
  %2180 = vmatprep.mubr.f32.mxu0 0.0
  %v2181 = vand.u32 %v1403, 4294901760
  %2182 = vmatmul.mubr.f32.gmra.mrb[0].mxu0 %v2181
  %v2183 = vpop.f32.mrb[0].mxu0
  %v2184 = vadd.f32 %v2026, %v2183
  %v2185 = vpop.f32.mrb[0].mxu0
  %v2186 = vadd.f32 %v2028, %v2185
  %2187 = vmatprep.mubr.f32.mxu0 0.0
  %v2188 = vand.u32 %v1406, 4294901760
  %2189 = vmatmul.mubr.f32.gmra.mrb[0].mxu0 %v2188
  %v2190 = vpop.f32.mrb[0].mxu0
  %v2191 = vadd.f32 %v2035, %v2190
  %v2192 = vpop.f32.mrb[0].mxu0
  %v2193 = vadd.f32 %v2037, %v2192
  %2194 = vdwg.mxu0
  %v2195 = vand.u32 %v1366, 4294901760
  %2196 = vmatprep.subr.mxu0 %v2195
  %v2197 = vand.u32 %v1365, 4294901760
  %2198 = vmatpush1.msra.mxu0 %v2197
  %v2199 = vand.u32 %v1368, 4294901760
  %2200 = vmatprep.subr.mxu0 %v2199
  %v2201 = vand.u32 %v1367, 4294901760
  %2202 = vmatpush1.msra.mxu0 %v2201
  %v2203 = vand.u32 %v1370, 4294901760
  %2204 = vmatprep.subr.mxu0 %v2203
  %v2205 = vand.u32 %v1369, 4294901760
  %2206 = vmatpush1.msra.mxu0 %v2205
  %v2207 = vand.u32 %v1372, 4294901760
  %2208 = vmatprep.subr.mxu0 %v2207
  %v2209 = vand.u32 %v1371, 4294901760
  %2210 = vmatpush1.msra.mxu0 %v2209
  %v2211 = vand.u32 %v1374, 4294901760
  %2212 = vmatprep.subr.mxu0 %v2211
  %v2213 = vand.u32 %v1373, 4294901760
  %2214 = vmatpush1.msra.mxu0 %v2213
  %v2215 = vand.u32 %v1376, 4294901760
  %2216 = vmatprep.subr.mxu0 %v2215
  %v2217 = vand.u32 %v1375, 4294901760
  %2218 = vmatpush1.msra.mxu0 %v2217
  %v2219 = vand.u32 %v1378, 4294901760
  %2220 = vmatprep.subr.mxu0 %v2219
  %v2221 = vand.u32 %v1377, 4294901760
  %2222 = vmatpush1.msra.mxu0 %v2221
  %2223 = vmatprep.subr.mxu0 0.0
  %2224 = vmatpush1.msra.mxu0 0.0
  %2225 = vmatprep.subr.mxu0 0.0
  %2226 = vmatpush1.msra.mxu0 0.0
  %2227 = vmatprep.subr.mxu0 0.0
  %2228 = vmatpush1.msra.mxu0 0.0
  %2229 = vmatprep.subr.mxu0 0.0
  %2230 = vmatpush1.msra.mxu0 0.0
  %2231 = vmatprep.subr.mxu0 0.0
  %2232 = vmatpush1.msra.mxu0 0.0
  %2233 = vmatprep.subr.mxu0 0.0
  %2234 = vmatpush1.msra.mxu0 0.0
  %2235 = vmatprep.subr.mxu0 0.0
  %2236 = vmatpush1.msra.mxu0 0.0
  %2237 = vmatprep.subr.mxu0 0.0
  %2238 = vmatpush1.msra.mxu0 0.0
  %2239 = vmatprep.subr.mxu0 0.0
  %2240 = vmatpush1.msra.mxu0 0.0
  %2241 = vmatprep.subr.mxu0 0.0
  %2242 = vmatpush1.msra.mxu0 0.0
  %2243 = vmatprep.subr.mxu0 0.0
  %2244 = vmatpush1.msra.mxu0 0.0
  %2245 = vmatprep.subr.mxu0 0.0
  %2246 = vmatpush1.msra.mxu0 0.0
  %2247 = vmatprep.subr.mxu0 0.0
  %2248 = vmatpush1.msra.mxu0 0.0
  %2249 = vmatprep.subr.mxu0 0.0
  %2250 = vmatpush1.msra.mxu0 0.0
  %2251 = vmatprep.subr.mxu0 0.0
  %2252 = vmatpush1.msra.mxu0 0.0
  %2253 = vmatprep.subr.mxu0 0.0
  %2254 = vmatpush1.msra.mxu0 0.0
  %2255 = vmatprep.subr.mxu0 0.0
  %2256 = vmatpush1.msra.mxu0 0.0
  %2257 = vmatprep.subr.mxu0 0.0
  %2258 = vmatpush1.msra.mxu0 0.0
  %2259 = vmatprep.subr.mxu0 0.0
  %2260 = vmatpush1.msra.mxu0 0.0
  %2261 = vmatprep.subr.mxu0 0.0
  %2262 = vmatpush1.msra.mxu0 0.0
  %2263 = vmatprep.subr.mxu0 0.0
  %2264 = vmatpush1.msra.mxu0 0.0
  %2265 = vmatprep.subr.mxu0 0.0
  %2266 = vmatpush1.msra.mxu0 0.0
  %2267 = vmatprep.subr.mxu0 0.0
  %2268 = vmatpush1.msra.mxu0 0.0
  %2269 = vmatprep.subr.mxu0 0.0
  %2270 = vmatpush1.msra.mxu0 0.0
  %2271 = vmatprep.subr.mxu0 0.0
  %2272 = vmatpush1.msra.mxu0 0.0
  %2273 = vmatprep.mubr.f32.mxu0 0.0
  %v2274 = vand.u32 %v1388, 4294901760
  %2275 = vmatmul.mubr.f32.gmra.mrb[0].mxu0 %v2274
  %v2276 = vpop.f32.mrb[0].mxu0
  %v2277 = vadd.f32 %v2149, %v2276
  %v2278 = vpop.f32.mrb[0].mxu0
  %v2279 = vadd.f32 %v2151, %v2278
  %2280 = vmatprep.mubr.f32.mxu0 0.0
  %v2281 = vand.u32 %v1391, 4294901760
  %2282 = vmatmul.mubr.f32.gmra.mrb[0].mxu0 %v2281
  %v2283 = vpop.f32.mrb[0].mxu0
  %v2284 = vadd.f32 %v2156, %v2283
  %v2285 = vpop.f32.mrb[0].mxu0
  %v2286 = vadd.f32 %v2158, %v2285
  %2287 = vmatprep.mubr.f32.mxu0 0.0
  %v2288 = vand.u32 %v1394, 4294901760
  %2289 = vmatmul.mubr.f32.gmra.mrb[0].mxu0 %v2288
  %v2290 = vpop.f32.mrb[0].mxu0
  %v2291 = vadd.f32 %v2163, %v2290
  %v2292 = vpop.f32.mrb[0].mxu0
  %v2293 = vadd.f32 %v2165, %v2292
  %2294 = vmatprep.mubr.f32.mxu0 0.0
  %v2295 = vand.u32 %v1397, 4294901760
  %2296 = vmatmul.mubr.f32.gmra.mrb[0].mxu0 %v2295
  %v2297 = vpop.f32.mrb[0].mxu0
  %v2298 = vadd.f32 %v2170, %v2297
  %v2299 = vpop.f32.mrb[0].mxu0
  %v2300 = vadd.f32 %v2172, %v2299
  %2301 = vmatprep.mubr.f32.mxu0 0.0
  %v2302 = vand.u32 %v1400, 4294901760
  %2303 = vmatmul.mubr.f32.gmra.mrb[0].mxu0 %v2302
  %v2304 = vpop.f32.mrb[0].mxu0
  %v2305 = vadd.f32 %v2177, %v2304
  %v2306 = vpop.f32.mrb[0].mxu0
  %v2307 = vadd.f32 %v2179, %v2306
  %2308 = vmatprep.mubr.f32.mxu0 0.0
  %v2309 = vand.u32 %v1403, 4294901760
  %2310 = vmatmul.mubr.f32.gmra.mrb[0].mxu0 %v2309
  %v2311 = vpop.f32.mrb[0].mxu0
  %v2312 = vadd.f32 %v2184, %v2311
  %v2313 = vpop.f32.mrb[0].mxu0
  %v2314 = vadd.f32 %v2186, %v2313
  %2315 = vmatprep.mubr.f32.mxu0 0.0
  %v2316 = vand.u32 %v1406, 4294901760
  %2317 = vmatmul.mubr.f32.gmra.mrb[0].mxu0 %v2316
  %v2318 = vpop.f32.mrb[0].mxu0
  %v2319 = vadd.f32 %v2191, %v2318
  %v2320 = vpop.f32.mrb[0].mxu0
  %v2321 = vadd.f32 %v2193, %v2320
  %2322 = vdwg.mxu0
  %v2323 = vmax.f32 %v2277, 0.0
  %v2324 = vmax.f32 %v2279, 0.0
  %v2325 = vmax.f32 %v2284, 0.0
  %v2326 = vmax.f32 %v2286, 0.0
  %v2327 = vmax.f32 %v2291, 0.0
  %v2328 = vmax.f32 %v2293, 0.0
  %v2329 = vmax.f32 %v2298, 0.0
  %v2330 = vmax.f32 %v2300, 0.0
  %v2331 = vmax.f32 %v2305, 0.0
  %v2332 = vmax.f32 %v2307, 0.0
  %v2333 = vmax.f32 %v2312, 0.0
  %v2334 = vmax.f32 %v2314, 0.0
  %v2335 = vmax.f32 %v2319, 0.0
  %v2336 = vmax.f32 %v2321, 0.0
  %s2337 = scalar_lea.vmem %s3, 56
  %v2338 = vld [vmem:[%s2337] sm:$0xff]
  %v2339 = vld [vmem:[%s2337 + $0x8] sm:$0xff]
  %v2340 = vld [vmem:[%s2337 + $0x10] sm:$0xff]
  %v2341 = vld [vmem:[%s2337 + $0x18] sm:$0xff]
  %v2342 = vld [vmem:[%s2337 + $0x20] sm:$0xff]
  %v2343 = vld [vmem:[%s2337 + $0x28] sm:$0xff]
  %v2344 = vld [vmem:[%s2337 + $0x30] sm:$0xff]
  %v2346 = vsel %vm1386, %v2338, 0
  %v2349 = vsel %vm1386, %v2339, 0
  %v2352 = vsel %vm1386, %v2340, 0
  %v2355 = vsel %vm1386, %v2341, 0
  %v2358 = vsel %vm1386, %v2342, 0
  %v2361 = vsel %vm1386, %v2343, 0
  %v2364 = vsel %vm1386, %v2344, 0
  %v2366 = vand.u32 %v2324, 4294901760
  %2367 = vmatprep.subr.mxu0 %v2366
  %v2368 = vand.u32 %v2323, 4294901760
  %2369 = vmatpush1.msra.mxu0 %v2368
  %v2370 = vand.u32 %v2326, 4294901760
  %2371 = vmatprep.subr.mxu0 %v2370
  %v2372 = vand.u32 %v2325, 4294901760
  %2373 = vmatpush1.msra.mxu0 %v2372
  %v2374 = vand.u32 %v2328, 4294901760
  %2375 = vmatprep.subr.mxu0 %v2374
  %v2376 = vand.u32 %v2327, 4294901760
  %2377 = vmatpush1.msra.mxu0 %v2376
  %v2378 = vand.u32 %v2330, 4294901760
  %2379 = vmatprep.subr.mxu0 %v2378
  %v2380 = vand.u32 %v2329, 4294901760
  %2381 = vmatpush1.msra.mxu0 %v2380
  %v2382 = vand.u32 %v2332, 4294901760
  %2383 = vmatprep.subr.mxu0 %v2382
  %v2384 = vand.u32 %v2331, 4294901760
  %2385 = vmatpush1.msra.mxu0 %v2384
  %v2386 = vand.u32 %v2334, 4294901760
  %2387 = vmatprep.subr.mxu0 %v2386
  %v2388 = vand.u32 %v2333, 4294901760
  %2389 = vmatpush1.msra.mxu0 %v2388
  %v2390 = vand.u32 %v2336, 4294901760
  %2391 = vmatprep.subr.mxu0 %v2390
  %v2392 = vand.u32 %v2335, 4294901760
  %2393 = vmatpush1.msra.mxu0 %v2392
  %2394 = vmatprep.subr.mxu0 0.0
  %2395 = vmatpush1.msra.mxu0 0.0
  %2396 = vmatprep.subr.mxu0 0.0
  %2397 = vmatpush1.msra.mxu0 0.0
  %2398 = vmatprep.subr.mxu0 0.0
  %2399 = vmatpush1.msra.mxu0 0.0
  %2400 = vmatprep.subr.mxu0 0.0
  %2401 = vmatpush1.msra.mxu0 0.0
  %2402 = vmatprep.subr.mxu0 0.0
  %2403 = vmatpush1.msra.mxu0 0.0
  %2404 = vmatprep.subr.mxu0 0.0
  %2405 = vmatpush1.msra.mxu0 0.0
  %2406 = vmatprep.subr.mxu0 0.0
  %2407 = vmatpush1.msra.mxu0 0.0
  %2408 = vmatprep.subr.mxu0 0.0
  %2409 = vmatpush1.msra.mxu0 0.0
  %2410 = vmatprep.subr.mxu0 0.0
  %2411 = vmatpush1.msra.mxu0 0.0
  %2412 = vmatprep.subr.mxu0 0.0
  %2413 = vmatpush1.msra.mxu0 0.0
  %2414 = vmatprep.subr.mxu0 0.0
  %2415 = vmatpush1.msra.mxu0 0.0
  %2416 = vmatprep.subr.mxu0 0.0
  %2417 = vmatpush1.msra.mxu0 0.0
  %2418 = vmatprep.subr.mxu0 0.0
  %2419 = vmatpush1.msra.mxu0 0.0
  %2420 = vmatprep.subr.mxu0 0.0
  %2421 = vmatpush1.msra.mxu0 0.0
  %2422 = vmatprep.subr.mxu0 0.0
  %2423 = vmatpush1.msra.mxu0 0.0
  %2424 = vmatprep.subr.mxu0 0.0
  %2425 = vmatpush1.msra.mxu0 0.0
  %2426 = vmatprep.subr.mxu0 0.0
  %2427 = vmatpush1.msra.mxu0 0.0
  %2428 = vmatprep.subr.mxu0 0.0
  %2429 = vmatpush1.msra.mxu0 0.0
  %2430 = vmatprep.subr.mxu0 0.0
  %2431 = vmatpush1.msra.mxu0 0.0
  %2432 = vmatprep.subr.mxu0 0.0
  %2433 = vmatpush1.msra.mxu0 0.0
  %2434 = vmatprep.subr.mxu0 0.0
  %2435 = vmatpush1.msra.mxu0 0.0
  %2436 = vmatprep.subr.mxu0 0.0
  %2437 = vmatpush1.msra.mxu0 0.0
  %2438 = vmatprep.subr.mxu0 0.0
  %2439 = vmatpush1.msra.mxu0 0.0
  %2440 = vmatprep.subr.mxu0 0.0
  %2441 = vmatpush1.msra.mxu0 0.0
  %2442 = vmatprep.subr.mxu0 0.0
  %2443 = vmatpush1.msra.mxu0 0.0
  %2444 = vmatprep.mubr.f32.mxu0 0.0
  %v2445 = vand.u32 %v2346, 4294901760
  %v2446 = vsub.f32 %v2346, %v2445
  %v2447 = vand.u32 %v2446, 4294901760
  %v2448 = vsub.f32 %v2446, %v2447
  %v2449 = vand.u32 %v2448, 4294901760
  %2450 = vmatmul.mubr.f32.gmra.mrb[0].mxu0 %v2449
  %v2451 = vpop.f32.mrb[0].mxu0
  %v2452 = vadd.f32 0.0, %v2451
  %v2453 = vpop.f32.mrb[0].mxu0
  %v2454 = vadd.f32 0.0, %v2453
  %2455 = vmatprep.mubr.f32.mxu0 0.0
  %v2456 = vand.u32 %v2349, 4294901760
  %v2457 = vsub.f32 %v2349, %v2456
  %v2458 = vand.u32 %v2457, 4294901760
  %v2459 = vsub.f32 %v2457, %v2458
  %v2460 = vand.u32 %v2459, 4294901760
  %2461 = vmatmul.mubr.f32.gmra.mrb[0].mxu0 %v2460
  %v2462 = vpop.f32.mrb[0].mxu0
  %v2463 = vadd.f32 0.0, %v2462
  %v2464 = vpop.f32.mrb[0].mxu0
  %v2465 = vadd.f32 0.0, %v2464
  %2466 = vmatprep.mubr.f32.mxu0 0.0
  %v2467 = vand.u32 %v2352, 4294901760
  %v2468 = vsub.f32 %v2352, %v2467
  %v2469 = vand.u32 %v2468, 4294901760
  %v2470 = vsub.f32 %v2468, %v2469
  %v2471 = vand.u32 %v2470, 4294901760
  %2472 = vmatmul.mubr.f32.gmra.mrb[0].mxu0 %v2471
  %v2473 = vpop.f32.mrb[0].mxu0
  %v2474 = vadd.f32 0.0, %v2473
  %v2475 = vpop.f32.mrb[0].mxu0
  %v2476 = vadd.f32 0.0, %v2475
  %2477 = vmatprep.mubr.f32.mxu0 0.0
  %v2478 = vand.u32 %v2355, 4294901760
  %v2479 = vsub.f32 %v2355, %v2478
  %v2480 = vand.u32 %v2479, 4294901760
  %v2481 = vsub.f32 %v2479, %v2480
  %v2482 = vand.u32 %v2481, 4294901760
  %2483 = vmatmul.mubr.f32.gmra.mrb[0].mxu0 %v2482
  %v2484 = vpop.f32.mrb[0].mxu0
  %v2485 = vadd.f32 0.0, %v2484
  %v2486 = vpop.f32.mrb[0].mxu0
  %v2487 = vadd.f32 0.0, %v2486
  %2488 = vmatprep.mubr.f32.mxu0 0.0
  %v2489 = vand.u32 %v2358, 4294901760
  %v2490 = vsub.f32 %v2358, %v2489
  %v2491 = vand.u32 %v2490, 4294901760
  %v2492 = vsub.f32 %v2490, %v2491
  %v2493 = vand.u32 %v2492, 4294901760
  %2494 = vmatmul.mubr.f32.gmra.mrb[0].mxu0 %v2493
  %v2495 = vpop.f32.mrb[0].mxu0
  %v2496 = vadd.f32 0.0, %v2495
  %v2497 = vpop.f32.mrb[0].mxu0
  %v2498 = vadd.f32 0.0, %v2497
  %2499 = vmatprep.mubr.f32.mxu0 0.0
  %v2500 = vand.u32 %v2361, 4294901760
  %v2501 = vsub.f32 %v2361, %v2500
  %v2502 = vand.u32 %v2501, 4294901760
  %v2503 = vsub.f32 %v2501, %v2502
  %v2504 = vand.u32 %v2503, 4294901760
  %2505 = vmatmul.mubr.f32.gmra.mrb[0].mxu0 %v2504
  %v2506 = vpop.f32.mrb[0].mxu0
  %v2507 = vadd.f32 0.0, %v2506
  %v2508 = vpop.f32.mrb[0].mxu0
  %v2509 = vadd.f32 0.0, %v2508
  %2510 = vmatprep.mubr.f32.mxu0 0.0
  %v2511 = vand.u32 %v2364, 4294901760
  %v2512 = vsub.f32 %v2364, %v2511
  %v2513 = vand.u32 %v2512, 4294901760
  %v2514 = vsub.f32 %v2512, %v2513
  %v2515 = vand.u32 %v2514, 4294901760
  %2516 = vmatmul.mubr.f32.gmra.mrb[0].mxu0 %v2515
  %v2517 = vpop.f32.mrb[0].mxu0
  %v2518 = vadd.f32 0.0, %v2517
  %v2519 = vpop.f32.mrb[0].mxu0
  %v2520 = vadd.f32 0.0, %v2519
  %2521 = vdwg.mxu0
  %v2522 = vand.u32 %v2324, 4294901760
  %v2523 = vsub.f32 %v2324, %v2522
  %v2524 = vand.u32 %v2523, 4294901760
  %v2525 = vsub.f32 %v2523, %v2524
  %v2526 = vand.u32 %v2525, 4294901760
  %2527 = vmatprep.subr.mxu0 %v2526
  %v2528 = vand.u32 %v2323, 4294901760
  %v2529 = vsub.f32 %v2323, %v2528
  %v2530 = vand.u32 %v2529, 4294901760
  %v2531 = vsub.f32 %v2529, %v2530
  %v2532 = vand.u32 %v2531, 4294901760
  %2533 = vmatpush1.msra.mxu0 %v2532
  %v2534 = vand.u32 %v2326, 4294901760
  %v2535 = vsub.f32 %v2326, %v2534
  %v2536 = vand.u32 %v2535, 4294901760
  %v2537 = vsub.f32 %v2535, %v2536
  %v2538 = vand.u32 %v2537, 4294901760
  %2539 = vmatprep.subr.mxu0 %v2538
  %v2540 = vand.u32 %v2325, 4294901760
  %v2541 = vsub.f32 %v2325, %v2540
  %v2542 = vand.u32 %v2541, 4294901760
  %v2543 = vsub.f32 %v2541, %v2542
  %v2544 = vand.u32 %v2543, 4294901760
  %2545 = vmatpush1.msra.mxu0 %v2544
  %v2546 = vand.u32 %v2328, 4294901760
  %v2547 = vsub.f32 %v2328, %v2546
  %v2548 = vand.u32 %v2547, 4294901760
  %v2549 = vsub.f32 %v2547, %v2548
  %v2550 = vand.u32 %v2549, 4294901760
  %2551 = vmatprep.subr.mxu0 %v2550
  %v2552 = vand.u32 %v2327, 4294901760
  %v2553 = vsub.f32 %v2327, %v2552
  %v2554 = vand.u32 %v2553, 4294901760
  %v2555 = vsub.f32 %v2553, %v2554
  %v2556 = vand.u32 %v2555, 4294901760
  %2557 = vmatpush1.msra.mxu0 %v2556
  %v2558 = vand.u32 %v2330, 4294901760
  %v2559 = vsub.f32 %v2330, %v2558
  %v2560 = vand.u32 %v2559, 4294901760
  %v2561 = vsub.f32 %v2559, %v2560
  %v2562 = vand.u32 %v2561, 4294901760
  %2563 = vmatprep.subr.mxu0 %v2562
  %v2564 = vand.u32 %v2329, 4294901760
  %v2565 = vsub.f32 %v2329, %v2564
  %v2566 = vand.u32 %v2565, 4294901760
  %v2567 = vsub.f32 %v2565, %v2566
  %v2568 = vand.u32 %v2567, 4294901760
  %2569 = vmatpush1.msra.mxu0 %v2568
  %v2570 = vand.u32 %v2332, 4294901760
  %v2571 = vsub.f32 %v2332, %v2570
  %v2572 = vand.u32 %v2571, 4294901760
  %v2573 = vsub.f32 %v2571, %v2572
  %v2574 = vand.u32 %v2573, 4294901760
  %2575 = vmatprep.subr.mxu0 %v2574
  %v2576 = vand.u32 %v2331, 4294901760
  %v2577 = vsub.f32 %v2331, %v2576
  %v2578 = vand.u32 %v2577, 4294901760
  %v2579 = vsub.f32 %v2577, %v2578
  %v2580 = vand.u32 %v2579, 4294901760
  %2581 = vmatpush1.msra.mxu0 %v2580
  %v2582 = vand.u32 %v2334, 4294901760
  %v2583 = vsub.f32 %v2334, %v2582
  %v2584 = vand.u32 %v2583, 4294901760
  %v2585 = vsub.f32 %v2583, %v2584
  %v2586 = vand.u32 %v2585, 4294901760
  %2587 = vmatprep.subr.mxu0 %v2586
  %v2588 = vand.u32 %v2333, 4294901760
  %v2589 = vsub.f32 %v2333, %v2588
  %v2590 = vand.u32 %v2589, 4294901760
  %v2591 = vsub.f32 %v2589, %v2590
  %v2592 = vand.u32 %v2591, 4294901760
  %2593 = vmatpush1.msra.mxu0 %v2592
  %v2594 = vand.u32 %v2336, 4294901760
  %v2595 = vsub.f32 %v2336, %v2594
  %v2596 = vand.u32 %v2595, 4294901760
  %v2597 = vsub.f32 %v2595, %v2596
  %v2598 = vand.u32 %v2597, 4294901760
  %2599 = vmatprep.subr.mxu0 %v2598
  %v2600 = vand.u32 %v2335, 4294901760
  %v2601 = vsub.f32 %v2335, %v2600
  %v2602 = vand.u32 %v2601, 4294901760
  %v2603 = vsub.f32 %v2601, %v2602
  %v2604 = vand.u32 %v2603, 4294901760
  %2605 = vmatpush1.msra.mxu0 %v2604
  %2606 = vmatprep.subr.mxu0 0.0
  %2607 = vmatpush1.msra.mxu0 0.0
  %2608 = vmatprep.subr.mxu0 0.0
  %2609 = vmatpush1.msra.mxu0 0.0
  %2610 = vmatprep.subr.mxu0 0.0
  %2611 = vmatpush1.msra.mxu0 0.0
  %2612 = vmatprep.subr.mxu0 0.0
  %2613 = vmatpush1.msra.mxu0 0.0
  %2614 = vmatprep.subr.mxu0 0.0
  %2615 = vmatpush1.msra.mxu0 0.0
  %2616 = vmatprep.subr.mxu0 0.0
  %2617 = vmatpush1.msra.mxu0 0.0
  %2618 = vmatprep.subr.mxu0 0.0
  %2619 = vmatpush1.msra.mxu0 0.0
  %2620 = vmatprep.subr.mxu0 0.0
  %2621 = vmatpush1.msra.mxu0 0.0
  %2622 = vmatprep.subr.mxu0 0.0
  %2623 = vmatpush1.msra.mxu0 0.0
  %2624 = vmatprep.subr.mxu0 0.0
  %2625 = vmatpush1.msra.mxu0 0.0
  %2626 = vmatprep.subr.mxu0 0.0
  %2627 = vmatpush1.msra.mxu0 0.0
  %2628 = vmatprep.subr.mxu0 0.0
  %2629 = vmatpush1.msra.mxu0 0.0
  %2630 = vmatprep.subr.mxu0 0.0
  %2631 = vmatpush1.msra.mxu0 0.0
  %2632 = vmatprep.subr.mxu0 0.0
  %2633 = vmatpush1.msra.mxu0 0.0
  %2634 = vmatprep.subr.mxu0 0.0
  %2635 = vmatpush1.msra.mxu0 0.0
  %2636 = vmatprep.subr.mxu0 0.0
  %2637 = vmatpush1.msra.mxu0 0.0
  %2638 = vmatprep.subr.mxu0 0.0
  %2639 = vmatpush1.msra.mxu0 0.0
  %2640 = vmatprep.subr.mxu0 0.0
  %2641 = vmatpush1.msra.mxu0 0.0
  %2642 = vmatprep.subr.mxu0 0.0
  %2643 = vmatpush1.msra.mxu0 0.0
  %2644 = vmatprep.subr.mxu0 0.0
  %2645 = vmatpush1.msra.mxu0 0.0
  %2646 = vmatprep.subr.mxu0 0.0
  %2647 = vmatpush1.msra.mxu0 0.0
  %2648 = vmatprep.subr.mxu0 0.0
  %2649 = vmatpush1.msra.mxu0 0.0
  %2650 = vmatprep.subr.mxu0 0.0
  %2651 = vmatpush1.msra.mxu0 0.0
  %2652 = vmatprep.subr.mxu0 0.0
  %2653 = vmatpush1.msra.mxu0 0.0
  %2654 = vmatprep.subr.mxu0 0.0
  %2655 = vmatpush1.msra.mxu0 0.0
  %2656 = vmatprep.mubr.f32.mxu0 0.0
  %v2657 = vand.u32 %v2346, 4294901760
  %2658 = vmatmul.mubr.f32.gmra.mrb[0].mxu0 %v2657
  %v2659 = vpop.f32.mrb[0].mxu0
  %v2660 = vadd.f32 %v2452, %v2659
  %v2661 = vpop.f32.mrb[0].mxu0
  %v2662 = vadd.f32 %v2454, %v2661
  %2663 = vmatprep.mubr.f32.mxu0 0.0
  %v2664 = vand.u32 %v2349, 4294901760
  %2665 = vmatmul.mubr.f32.gmra.mrb[0].mxu0 %v2664
  %v2666 = vpop.f32.mrb[0].mxu0
  %v2667 = vadd.f32 %v2463, %v2666
  %v2668 = vpop.f32.mrb[0].mxu0
  %v2669 = vadd.f32 %v2465, %v2668
  %2670 = vmatprep.mubr.f32.mxu0 0.0
  %v2671 = vand.u32 %v2352, 4294901760
  %2672 = vmatmul.mubr.f32.gmra.mrb[0].mxu0 %v2671
  %v2673 = vpop.f32.mrb[0].mxu0
  %v2674 = vadd.f32 %v2474, %v2673
  %v2675 = vpop.f32.mrb[0].mxu0
  %v2676 = vadd.f32 %v2476, %v2675
  %2677 = vmatprep.mubr.f32.mxu0 0.0
  %v2678 = vand.u32 %v2355, 4294901760
  %2679 = vmatmul.mubr.f32.gmra.mrb[0].mxu0 %v2678
  %v2680 = vpop.f32.mrb[0].mxu0
  %v2681 = vadd.f32 %v2485, %v2680
  %v2682 = vpop.f32.mrb[0].mxu0
  %v2683 = vadd.f32 %v2487, %v2682
  %2684 = vmatprep.mubr.f32.mxu0 0.0
  %v2685 = vand.u32 %v2358, 4294901760
  %2686 = vmatmul.mubr.f32.gmra.mrb[0].mxu0 %v2685
  %v2687 = vpop.f32.mrb[0].mxu0
  %v2688 = vadd.f32 %v2496, %v2687
  %v2689 = vpop.f32.mrb[0].mxu0
  %v2690 = vadd.f32 %v2498, %v2689
  %2691 = vmatprep.mubr.f32.mxu0 0.0
  %v2692 = vand.u32 %v2361, 4294901760
  %2693 = vmatmul.mubr.f32.gmra.mrb[0].mxu0 %v2692
  %v2694 = vpop.f32.mrb[0].mxu0
  %v2695 = vadd.f32 %v2507, %v2694
  %v2696 = vpop.f32.mrb[0].mxu0
  %v2697 = vadd.f32 %v2509, %v2696
  %2698 = vmatprep.mubr.f32.mxu0 0.0
  %v2699 = vand.u32 %v2364, 4294901760
  %2700 = vmatmul.mubr.f32.gmra.mrb[0].mxu0 %v2699
  %v2701 = vpop.f32.mrb[0].mxu0
  %v2702 = vadd.f32 %v2518, %v2701
  %v2703 = vpop.f32.mrb[0].mxu0
  %v2704 = vadd.f32 %v2520, %v2703
  %2705 = vdwg.mxu0
  %v2706 = vand.u32 %v2324, 4294901760
  %v2707 = vsub.f32 %v2324, %v2706
  %2708 = vmatprep.subr.mxu0 %v2707
  %v2709 = vand.u32 %v2323, 4294901760
  %v2710 = vsub.f32 %v2323, %v2709
  %2711 = vmatpush1.msra.mxu0 %v2710
  %v2712 = vand.u32 %v2326, 4294901760
  %v2713 = vsub.f32 %v2326, %v2712
  %2714 = vmatprep.subr.mxu0 %v2713
  %v2715 = vand.u32 %v2325, 4294901760
  %v2716 = vsub.f32 %v2325, %v2715
  %2717 = vmatpush1.msra.mxu0 %v2716
  %v2718 = vand.u32 %v2328, 4294901760
  %v2719 = vsub.f32 %v2328, %v2718
  %2720 = vmatprep.subr.mxu0 %v2719
  %v2721 = vand.u32 %v2327, 4294901760
  %v2722 = vsub.f32 %v2327, %v2721
  %2723 = vmatpush1.msra.mxu0 %v2722
  %v2724 = vand.u32 %v2330, 4294901760
  %v2725 = vsub.f32 %v2330, %v2724
  %2726 = vmatprep.subr.mxu0 %v2725
  %v2727 = vand.u32 %v2329, 4294901760
  %v2728 = vsub.f32 %v2329, %v2727
  %2729 = vmatpush1.msra.mxu0 %v2728
  %v2730 = vand.u32 %v2332, 4294901760
  %v2731 = vsub.f32 %v2332, %v2730
  %2732 = vmatprep.subr.mxu0 %v2731
  %v2733 = vand.u32 %v2331, 4294901760
  %v2734 = vsub.f32 %v2331, %v2733
  %2735 = vmatpush1.msra.mxu0 %v2734
  %v2736 = vand.u32 %v2334, 4294901760
  %v2737 = vsub.f32 %v2334, %v2736
  %2738 = vmatprep.subr.mxu0 %v2737
  %v2739 = vand.u32 %v2333, 4294901760
  %v2740 = vsub.f32 %v2333, %v2739
  %2741 = vmatpush1.msra.mxu0 %v2740
  %v2742 = vand.u32 %v2336, 4294901760
  %v2743 = vsub.f32 %v2336, %v2742
  %2744 = vmatprep.subr.mxu0 %v2743
  %v2745 = vand.u32 %v2335, 4294901760
  %v2746 = vsub.f32 %v2335, %v2745
  %2747 = vmatpush1.msra.mxu0 %v2746
  %2748 = vmatprep.subr.mxu0 0.0
  %2749 = vmatpush1.msra.mxu0 0.0
  %2750 = vmatprep.subr.mxu0 0.0
  %2751 = vmatpush1.msra.mxu0 0.0
  %2752 = vmatprep.subr.mxu0 0.0
  %2753 = vmatpush1.msra.mxu0 0.0
  %2754 = vmatprep.subr.mxu0 0.0
  %2755 = vmatpush1.msra.mxu0 0.0
  %2756 = vmatprep.subr.mxu0 0.0
  %2757 = vmatpush1.msra.mxu0 0.0
  %2758 = vmatprep.subr.mxu0 0.0
  %2759 = vmatpush1.msra.mxu0 0.0
  %2760 = vmatprep.subr.mxu0 0.0
  %2761 = vmatpush1.msra.mxu0 0.0
  %2762 = vmatprep.subr.mxu0 0.0
  %2763 = vmatpush1.msra.mxu0 0.0
  %2764 = vmatprep.subr.mxu0 0.0
  %2765 = vmatpush1.msra.mxu0 0.0
  %2766 = vmatprep.subr.mxu0 0.0
  %2767 = vmatpush1.msra.mxu0 0.0
  %2768 = vmatprep.subr.mxu0 0.0
  %2769 = vmatpush1.msra.mxu0 0.0
  %2770 = vmatprep.subr.mxu0 0.0
  %2771 = vmatpush1.msra.mxu0 0.0
  %2772 = vmatprep.subr.mxu0 0.0
  %2773 = vmatpush1.msra.mxu0 0.0
  %2774 = vmatprep.subr.mxu0 0.0
  %2775 = vmatpush1.msra.mxu0 0.0
  %2776 = vmatprep.subr.mxu0 0.0
  %2777 = vmatpush1.msra.mxu0 0.0
  %2778 = vmatprep.subr.mxu0 0.0
  %2779 = vmatpush1.msra.mxu0 0.0
  %2780 = vmatprep.subr.mxu0 0.0
  %2781 = vmatpush1.msra.mxu0 0.0
  %2782 = vmatprep.subr.mxu0 0.0
  %2783 = vmatpush1.msra.mxu0 0.0
  %2784 = vmatprep.subr.mxu0 0.0
  %2785 = vmatpush1.msra.mxu0 0.0
  %2786 = vmatprep.subr.mxu0 0.0
  %2787 = vmatpush1.msra.mxu0 0.0
  %2788 = vmatprep.subr.mxu0 0.0
  %2789 = vmatpush1.msra.mxu0 0.0
  %2790 = vmatprep.subr.mxu0 0.0
  %2791 = vmatpush1.msra.mxu0 0.0
  %2792 = vmatprep.subr.mxu0 0.0
  %2793 = vmatpush1.msra.mxu0 0.0
  %2794 = vmatprep.subr.mxu0 0.0
  %2795 = vmatpush1.msra.mxu0 0.0
  %2796 = vmatprep.subr.mxu0 0.0
  %2797 = vmatpush1.msra.mxu0 0.0
  %2798 = vmatprep.mubr.f32.mxu0 0.0
  %v2799 = vand.u32 %v2346, 4294901760
  %v2800 = vsub.f32 %v2346, %v2799
  %2801 = vmatmul.mubr.f32.gmra.mrb[0].mxu0 %v2800
  %v2802 = vpop.f32.mrb[0].mxu0
  %v2803 = vadd.f32 %v2660, %v2802
  %v2804 = vpop.f32.mrb[0].mxu0
  %v2805 = vadd.f32 %v2662, %v2804
  %2806 = vmatprep.mubr.f32.mxu0 0.0
  %v2807 = vand.u32 %v2349, 4294901760
  %v2808 = vsub.f32 %v2349, %v2807
  %2809 = vmatmul.mubr.f32.gmra.mrb[0].mxu0 %v2808
  %v2810 = vpop.f32.mrb[0].mxu0
  %v2811 = vadd.f32 %v2667, %v2810
  %v2812 = vpop.f32.mrb[0].mxu0
  %v2813 = vadd.f32 %v2669, %v2812
  %2814 = vmatprep.mubr.f32.mxu0 0.0
  %v2815 = vand.u32 %v2352, 4294901760
  %v2816 = vsub.f32 %v2352, %v2815
  %2817 = vmatmul.mubr.f32.gmra.mrb[0].mxu0 %v2816
  %v2818 = vpop.f32.mrb[0].mxu0
  %v2819 = vadd.f32 %v2674, %v2818
  %v2820 = vpop.f32.mrb[0].mxu0
  %v2821 = vadd.f32 %v2676, %v2820
  %2822 = vmatprep.mubr.f32.mxu0 0.0
  %v2823 = vand.u32 %v2355, 4294901760
  %v2824 = vsub.f32 %v2355, %v2823
  %2825 = vmatmul.mubr.f32.gmra.mrb[0].mxu0 %v2824
  %v2826 = vpop.f32.mrb[0].mxu0
  %v2827 = vadd.f32 %v2681, %v2826
  %v2828 = vpop.f32.mrb[0].mxu0
  %v2829 = vadd.f32 %v2683, %v2828
  %2830 = vmatprep.mubr.f32.mxu0 0.0
  %v2831 = vand.u32 %v2358, 4294901760
  %v2832 = vsub.f32 %v2358, %v2831
  %2833 = vmatmul.mubr.f32.gmra.mrb[0].mxu0 %v2832
  %v2834 = vpop.f32.mrb[0].mxu0
  %v2835 = vadd.f32 %v2688, %v2834
  %v2836 = vpop.f32.mrb[0].mxu0
  %v2837 = vadd.f32 %v2690, %v2836
  %2838 = vmatprep.mubr.f32.mxu0 0.0
  %v2839 = vand.u32 %v2361, 4294901760
  %v2840 = vsub.f32 %v2361, %v2839
  %2841 = vmatmul.mubr.f32.gmra.mrb[0].mxu0 %v2840
  %v2842 = vpop.f32.mrb[0].mxu0
  %v2843 = vadd.f32 %v2695, %v2842
  %v2844 = vpop.f32.mrb[0].mxu0
  %v2845 = vadd.f32 %v2697, %v2844
  %2846 = vmatprep.mubr.f32.mxu0 0.0
  %v2847 = vand.u32 %v2364, 4294901760
  %v2848 = vsub.f32 %v2364, %v2847
  %2849 = vmatmul.mubr.f32.gmra.mrb[0].mxu0 %v2848
  %v2850 = vpop.f32.mrb[0].mxu0
  %v2851 = vadd.f32 %v2702, %v2850
  %v2852 = vpop.f32.mrb[0].mxu0
  %v2853 = vadd.f32 %v2704, %v2852
  %2854 = vdwg.mxu0
  %v2855 = vand.u32 %v2324, 4294901760
  %2856 = vmatprep.subr.mxu0 %v2855
  %v2857 = vand.u32 %v2323, 4294901760
  %2858 = vmatpush1.msra.mxu0 %v2857
  %v2859 = vand.u32 %v2326, 4294901760
  %2860 = vmatprep.subr.mxu0 %v2859
  %v2861 = vand.u32 %v2325, 4294901760
  %2862 = vmatpush1.msra.mxu0 %v2861
  %v2863 = vand.u32 %v2328, 4294901760
  %2864 = vmatprep.subr.mxu0 %v2863
  %v2865 = vand.u32 %v2327, 4294901760
  %2866 = vmatpush1.msra.mxu0 %v2865
  %v2867 = vand.u32 %v2330, 4294901760
  %2868 = vmatprep.subr.mxu0 %v2867
  %v2869 = vand.u32 %v2329, 4294901760
  %2870 = vmatpush1.msra.mxu0 %v2869
  %v2871 = vand.u32 %v2332, 4294901760
  %2872 = vmatprep.subr.mxu0 %v2871
  %v2873 = vand.u32 %v2331, 4294901760
  %2874 = vmatpush1.msra.mxu0 %v2873
  %v2875 = vand.u32 %v2334, 4294901760
  %2876 = vmatprep.subr.mxu0 %v2875
  %v2877 = vand.u32 %v2333, 4294901760
  %2878 = vmatpush1.msra.mxu0 %v2877
  %v2879 = vand.u32 %v2336, 4294901760
  %2880 = vmatprep.subr.mxu0 %v2879
  %v2881 = vand.u32 %v2335, 4294901760
  %2882 = vmatpush1.msra.mxu0 %v2881
  %2883 = vmatprep.subr.mxu0 0.0
  %2884 = vmatpush1.msra.mxu0 0.0
  %2885 = vmatprep.subr.mxu0 0.0
  %2886 = vmatpush1.msra.mxu0 0.0
  %2887 = vmatprep.subr.mxu0 0.0
  %2888 = vmatpush1.msra.mxu0 0.0
  %2889 = vmatprep.subr.mxu0 0.0
  %2890 = vmatpush1.msra.mxu0 0.0
  %2891 = vmatprep.subr.mxu0 0.0
  %2892 = vmatpush1.msra.mxu0 0.0
  %2893 = vmatprep.subr.mxu0 0.0
  %2894 = vmatpush1.msra.mxu0 0.0
  %2895 = vmatprep.subr.mxu0 0.0
  %2896 = vmatpush1.msra.mxu0 0.0
  %2897 = vmatprep.subr.mxu0 0.0
  %2898 = vmatpush1.msra.mxu0 0.0
  %2899 = vmatprep.subr.mxu0 0.0
  %2900 = vmatpush1.msra.mxu0 0.0
  %2901 = vmatprep.subr.mxu0 0.0
  %2902 = vmatpush1.msra.mxu0 0.0
  %2903 = vmatprep.subr.mxu0 0.0
  %2904 = vmatpush1.msra.mxu0 0.0
  %2905 = vmatprep.subr.mxu0 0.0
  %2906 = vmatpush1.msra.mxu0 0.0
  %2907 = vmatprep.subr.mxu0 0.0
  %2908 = vmatpush1.msra.mxu0 0.0
  %2909 = vmatprep.subr.mxu0 0.0
  %2910 = vmatpush1.msra.mxu0 0.0
  %2911 = vmatprep.subr.mxu0 0.0
  %2912 = vmatpush1.msra.mxu0 0.0
  %2913 = vmatprep.subr.mxu0 0.0
  %2914 = vmatpush1.msra.mxu0 0.0
  %2915 = vmatprep.subr.mxu0 0.0
  %2916 = vmatpush1.msra.mxu0 0.0
  %2917 = vmatprep.subr.mxu0 0.0
  %2918 = vmatpush1.msra.mxu0 0.0
  %2919 = vmatprep.subr.mxu0 0.0
  %2920 = vmatpush1.msra.mxu0 0.0
  %2921 = vmatprep.subr.mxu0 0.0
  %2922 = vmatpush1.msra.mxu0 0.0
  %2923 = vmatprep.subr.mxu0 0.0
  %2924 = vmatpush1.msra.mxu0 0.0
  %2925 = vmatprep.subr.mxu0 0.0
  %2926 = vmatpush1.msra.mxu0 0.0
  %2927 = vmatprep.subr.mxu0 0.0
  %2928 = vmatpush1.msra.mxu0 0.0
  %2929 = vmatprep.subr.mxu0 0.0
  %2930 = vmatpush1.msra.mxu0 0.0
  %2931 = vmatprep.subr.mxu0 0.0
  %2932 = vmatpush1.msra.mxu0 0.0
  %2933 = vmatprep.mubr.f32.mxu0 0.0
  %v2934 = vand.u32 %v2346, 4294901760
  %v2935 = vsub.f32 %v2346, %v2934
  %v2936 = vand.u32 %v2935, 4294901760
  %2937 = vmatmul.mubr.f32.gmra.mrb[0].mxu0 %v2936
  %v2938 = vpop.f32.mrb[0].mxu0
  %v2939 = vadd.f32 %v2803, %v2938
  %v2940 = vpop.f32.mrb[0].mxu0
  %v2941 = vadd.f32 %v2805, %v2940
  %2942 = vmatprep.mubr.f32.mxu0 0.0
  %v2943 = vand.u32 %v2349, 4294901760
  %v2944 = vsub.f32 %v2349, %v2943
  %v2945 = vand.u32 %v2944, 4294901760
  %2946 = vmatmul.mubr.f32.gmra.mrb[0].mxu0 %v2945
  %v2947 = vpop.f32.mrb[0].mxu0
  %v2948 = vadd.f32 %v2811, %v2947
  %v2949 = vpop.f32.mrb[0].mxu0
  %v2950 = vadd.f32 %v2813, %v2949
  %2951 = vmatprep.mubr.f32.mxu0 0.0
  %v2952 = vand.u32 %v2352, 4294901760
  %v2953 = vsub.f32 %v2352, %v2952
  %v2954 = vand.u32 %v2953, 4294901760
  %2955 = vmatmul.mubr.f32.gmra.mrb[0].mxu0 %v2954
  %v2956 = vpop.f32.mrb[0].mxu0
  %v2957 = vadd.f32 %v2819, %v2956
  %v2958 = vpop.f32.mrb[0].mxu0
  %v2959 = vadd.f32 %v2821, %v2958
  %2960 = vmatprep.mubr.f32.mxu0 0.0
  %v2961 = vand.u32 %v2355, 4294901760
  %v2962 = vsub.f32 %v2355, %v2961
  %v2963 = vand.u32 %v2962, 4294901760
  %2964 = vmatmul.mubr.f32.gmra.mrb[0].mxu0 %v2963
  %v2965 = vpop.f32.mrb[0].mxu0
  %v2966 = vadd.f32 %v2827, %v2965
  %v2967 = vpop.f32.mrb[0].mxu0
  %v2968 = vadd.f32 %v2829, %v2967
  %2969 = vmatprep.mubr.f32.mxu0 0.0
  %v2970 = vand.u32 %v2358, 4294901760
  %v2971 = vsub.f32 %v2358, %v2970
  %v2972 = vand.u32 %v2971, 4294901760
  %2973 = vmatmul.mubr.f32.gmra.mrb[0].mxu0 %v2972
  %v2974 = vpop.f32.mrb[0].mxu0
  %v2975 = vadd.f32 %v2835, %v2974
  %v2976 = vpop.f32.mrb[0].mxu0
  %v2977 = vadd.f32 %v2837, %v2976
  %2978 = vmatprep.mubr.f32.mxu0 0.0
  %v2979 = vand.u32 %v2361, 4294901760
  %v2980 = vsub.f32 %v2361, %v2979
  %v2981 = vand.u32 %v2980, 4294901760
  %2982 = vmatmul.mubr.f32.gmra.mrb[0].mxu0 %v2981
  %v2983 = vpop.f32.mrb[0].mxu0
  %v2984 = vadd.f32 %v2843, %v2983
  %v2985 = vpop.f32.mrb[0].mxu0
  %v2986 = vadd.f32 %v2845, %v2985
  %2987 = vmatprep.mubr.f32.mxu0 0.0
  %v2988 = vand.u32 %v2364, 4294901760
  %v2989 = vsub.f32 %v2364, %v2988
  %v2990 = vand.u32 %v2989, 4294901760
  %2991 = vmatmul.mubr.f32.gmra.mrb[0].mxu0 %v2990
  %v2992 = vpop.f32.mrb[0].mxu0
  %v2993 = vadd.f32 %v2851, %v2992
  %v2994 = vpop.f32.mrb[0].mxu0
  %v2995 = vadd.f32 %v2853, %v2994
  %2996 = vdwg.mxu0
  %v2997 = vand.u32 %v2324, 4294901760
  %v2998 = vsub.f32 %v2324, %v2997
  %v2999 = vand.u32 %v2998, 4294901760
  %3000 = vmatprep.subr.mxu0 %v2999
  %v3001 = vand.u32 %v2323, 4294901760
  %v3002 = vsub.f32 %v2323, %v3001
  %v3003 = vand.u32 %v3002, 4294901760
  %3004 = vmatpush1.msra.mxu0 %v3003
  %v3005 = vand.u32 %v2326, 4294901760
  %v3006 = vsub.f32 %v2326, %v3005
  %v3007 = vand.u32 %v3006, 4294901760
  %3008 = vmatprep.subr.mxu0 %v3007
  %v3009 = vand.u32 %v2325, 4294901760
  %v3010 = vsub.f32 %v2325, %v3009
  %v3011 = vand.u32 %v3010, 4294901760
  %3012 = vmatpush1.msra.mxu0 %v3011
  %v3013 = vand.u32 %v2328, 4294901760
  %v3014 = vsub.f32 %v2328, %v3013
  %v3015 = vand.u32 %v3014, 4294901760
  %3016 = vmatprep.subr.mxu0 %v3015
  %v3017 = vand.u32 %v2327, 4294901760
  %v3018 = vsub.f32 %v2327, %v3017
  %v3019 = vand.u32 %v3018, 4294901760
  %3020 = vmatpush1.msra.mxu0 %v3019
  %v3021 = vand.u32 %v2330, 4294901760
  %v3022 = vsub.f32 %v2330, %v3021
  %v3023 = vand.u32 %v3022, 4294901760
  %3024 = vmatprep.subr.mxu0 %v3023
  %v3025 = vand.u32 %v2329, 4294901760
  %v3026 = vsub.f32 %v2329, %v3025
  %v3027 = vand.u32 %v3026, 4294901760
  %3028 = vmatpush1.msra.mxu0 %v3027
  %v3029 = vand.u32 %v2332, 4294901760
  %v3030 = vsub.f32 %v2332, %v3029
  %v3031 = vand.u32 %v3030, 4294901760
  %3032 = vmatprep.subr.mxu0 %v3031
  %v3033 = vand.u32 %v2331, 4294901760
  %v3034 = vsub.f32 %v2331, %v3033
  %v3035 = vand.u32 %v3034, 4294901760
  %3036 = vmatpush1.msra.mxu0 %v3035
  %v3037 = vand.u32 %v2334, 4294901760
  %v3038 = vsub.f32 %v2334, %v3037
  %v3039 = vand.u32 %v3038, 4294901760
  %3040 = vmatprep.subr.mxu0 %v3039
  %v3041 = vand.u32 %v2333, 4294901760
  %v3042 = vsub.f32 %v2333, %v3041
  %v3043 = vand.u32 %v3042, 4294901760
  %3044 = vmatpush1.msra.mxu0 %v3043
  %v3045 = vand.u32 %v2336, 4294901760
  %v3046 = vsub.f32 %v2336, %v3045
  %v3047 = vand.u32 %v3046, 4294901760
  %3048 = vmatprep.subr.mxu0 %v3047
  %v3049 = vand.u32 %v2335, 4294901760
  %v3050 = vsub.f32 %v2335, %v3049
  %v3051 = vand.u32 %v3050, 4294901760
  %3052 = vmatpush1.msra.mxu0 %v3051
  %3053 = vmatprep.subr.mxu0 0.0
  %3054 = vmatpush1.msra.mxu0 0.0
  %3055 = vmatprep.subr.mxu0 0.0
  %3056 = vmatpush1.msra.mxu0 0.0
  %3057 = vmatprep.subr.mxu0 0.0
  %3058 = vmatpush1.msra.mxu0 0.0
  %3059 = vmatprep.subr.mxu0 0.0
  %3060 = vmatpush1.msra.mxu0 0.0
  %3061 = vmatprep.subr.mxu0 0.0
  %3062 = vmatpush1.msra.mxu0 0.0
  %3063 = vmatprep.subr.mxu0 0.0
  %3064 = vmatpush1.msra.mxu0 0.0
  %3065 = vmatprep.subr.mxu0 0.0
  %3066 = vmatpush1.msra.mxu0 0.0
  %3067 = vmatprep.subr.mxu0 0.0
  %3068 = vmatpush1.msra.mxu0 0.0
  %3069 = vmatprep.subr.mxu0 0.0
  %3070 = vmatpush1.msra.mxu0 0.0
  %3071 = vmatprep.subr.mxu0 0.0
  %3072 = vmatpush1.msra.mxu0 0.0
  %3073 = vmatprep.subr.mxu0 0.0
  %3074 = vmatpush1.msra.mxu0 0.0
  %3075 = vmatprep.subr.mxu0 0.0
  %3076 = vmatpush1.msra.mxu0 0.0
  %3077 = vmatprep.subr.mxu0 0.0
  %3078 = vmatpush1.msra.mxu0 0.0
  %3079 = vmatprep.subr.mxu0 0.0
  %3080 = vmatpush1.msra.mxu0 0.0
  %3081 = vmatprep.subr.mxu0 0.0
  %3082 = vmatpush1.msra.mxu0 0.0
  %3083 = vmatprep.subr.mxu0 0.0
  %3084 = vmatpush1.msra.mxu0 0.0
  %3085 = vmatprep.subr.mxu0 0.0
  %3086 = vmatpush1.msra.mxu0 0.0
  %3087 = vmatprep.subr.mxu0 0.0
  %3088 = vmatpush1.msra.mxu0 0.0
  %3089 = vmatprep.subr.mxu0 0.0
  %3090 = vmatpush1.msra.mxu0 0.0
  %3091 = vmatprep.subr.mxu0 0.0
  %3092 = vmatpush1.msra.mxu0 0.0
  %3093 = vmatprep.subr.mxu0 0.0
  %3094 = vmatpush1.msra.mxu0 0.0
  %3095 = vmatprep.subr.mxu0 0.0
  %3096 = vmatpush1.msra.mxu0 0.0
  %3097 = vmatprep.subr.mxu0 0.0
  %3098 = vmatpush1.msra.mxu0 0.0
  %3099 = vmatprep.subr.mxu0 0.0
  %3100 = vmatpush1.msra.mxu0 0.0
  %3101 = vmatprep.subr.mxu0 0.0
  %3102 = vmatpush1.msra.mxu0 0.0
  %3103 = vmatprep.mubr.f32.mxu0 0.0
  %v3104 = vand.u32 %v2346, 4294901760
  %3105 = vmatmul.mubr.f32.gmra.mrb[0].mxu0 %v3104
  %v3106 = vpop.f32.mrb[0].mxu0
  %v3107 = vadd.f32 %v2939, %v3106
  %v3108 = vpop.f32.mrb[0].mxu0
  %v3109 = vadd.f32 %v2941, %v3108
  %3110 = vmatprep.mubr.f32.mxu0 0.0
  %v3111 = vand.u32 %v2349, 4294901760
  %3112 = vmatmul.mubr.f32.gmra.mrb[0].mxu0 %v3111
  %v3113 = vpop.f32.mrb[0].mxu0
  %v3114 = vadd.f32 %v2948, %v3113
  %v3115 = vpop.f32.mrb[0].mxu0
  %v3116 = vadd.f32 %v2950, %v3115
  %3117 = vmatprep.mubr.f32.mxu0 0.0
  %v3118 = vand.u32 %v2352, 4294901760
  %3119 = vmatmul.mubr.f32.gmra.mrb[0].mxu0 %v3118
  %v3120 = vpop.f32.mrb[0].mxu0
  %v3121 = vadd.f32 %v2957, %v3120
  %v3122 = vpop.f32.mrb[0].mxu0
  %v3123 = vadd.f32 %v2959, %v3122
  %3124 = vmatprep.mubr.f32.mxu0 0.0
  %v3125 = vand.u32 %v2355, 4294901760
  %3126 = vmatmul.mubr.f32.gmra.mrb[0].mxu0 %v3125
  %v3127 = vpop.f32.mrb[0].mxu0
  %v3128 = vadd.f32 %v2966, %v3127
  %v3129 = vpop.f32.mrb[0].mxu0
  %v3130 = vadd.f32 %v2968, %v3129
  %3131 = vmatprep.mubr.f32.mxu0 0.0
  %v3132 = vand.u32 %v2358, 4294901760
  %3133 = vmatmul.mubr.f32.gmra.mrb[0].mxu0 %v3132
  %v3134 = vpop.f32.mrb[0].mxu0
  %v3135 = vadd.f32 %v2975, %v3134
  %v3136 = vpop.f32.mrb[0].mxu0
  %v3137 = vadd.f32 %v2977, %v3136
  %3138 = vmatprep.mubr.f32.mxu0 0.0
  %v3139 = vand.u32 %v2361, 4294901760
  %3140 = vmatmul.mubr.f32.gmra.mrb[0].mxu0 %v3139
  %v3141 = vpop.f32.mrb[0].mxu0
  %v3142 = vadd.f32 %v2984, %v3141
  %v3143 = vpop.f32.mrb[0].mxu0
  %v3144 = vadd.f32 %v2986, %v3143
  %3145 = vmatprep.mubr.f32.mxu0 0.0
  %v3146 = vand.u32 %v2364, 4294901760
  %3147 = vmatmul.mubr.f32.gmra.mrb[0].mxu0 %v3146
  %v3148 = vpop.f32.mrb[0].mxu0
  %v3149 = vadd.f32 %v2993, %v3148
  %v3150 = vpop.f32.mrb[0].mxu0
  %v3151 = vadd.f32 %v2995, %v3150
  %3152 = vdwg.mxu0
  %v3153 = vand.u32 %v2324, 4294901760
  %3154 = vmatprep.subr.mxu0 %v3153
  %v3155 = vand.u32 %v2323, 4294901760
  %3156 = vmatpush1.msra.mxu0 %v3155
  %v3157 = vand.u32 %v2326, 4294901760
  %3158 = vmatprep.subr.mxu0 %v3157
  %v3159 = vand.u32 %v2325, 4294901760
  %3160 = vmatpush1.msra.mxu0 %v3159
  %v3161 = vand.u32 %v2328, 4294901760
  %3162 = vmatprep.subr.mxu0 %v3161
  %v3163 = vand.u32 %v2327, 4294901760
  %3164 = vmatpush1.msra.mxu0 %v3163
  %v3165 = vand.u32 %v2330, 4294901760
  %3166 = vmatprep.subr.mxu0 %v3165
  %v3167 = vand.u32 %v2329, 4294901760
  %3168 = vmatpush1.msra.mxu0 %v3167
  %v3169 = vand.u32 %v2332, 4294901760
  %3170 = vmatprep.subr.mxu0 %v3169
  %v3171 = vand.u32 %v2331, 4294901760
  %3172 = vmatpush1.msra.mxu0 %v3171
  %v3173 = vand.u32 %v2334, 4294901760
  %3174 = vmatprep.subr.mxu0 %v3173
  %v3175 = vand.u32 %v2333, 4294901760
  %3176 = vmatpush1.msra.mxu0 %v3175
  %v3177 = vand.u32 %v2336, 4294901760
  %3178 = vmatprep.subr.mxu0 %v3177
  %v3179 = vand.u32 %v2335, 4294901760
  %3180 = vmatpush1.msra.mxu0 %v3179
  %3181 = vmatprep.subr.mxu0 0.0
  %3182 = vmatpush1.msra.mxu0 0.0
  %3183 = vmatprep.subr.mxu0 0.0
  %3184 = vmatpush1.msra.mxu0 0.0
  %3185 = vmatprep.subr.mxu0 0.0
  %3186 = vmatpush1.msra.mxu0 0.0
  %3187 = vmatprep.subr.mxu0 0.0
  %3188 = vmatpush1.msra.mxu0 0.0
  %3189 = vmatprep.subr.mxu0 0.0
  %3190 = vmatpush1.msra.mxu0 0.0
  %3191 = vmatprep.subr.mxu0 0.0
  %3192 = vmatpush1.msra.mxu0 0.0
  %3193 = vmatprep.subr.mxu0 0.0
  %3194 = vmatpush1.msra.mxu0 0.0
  %3195 = vmatprep.subr.mxu0 0.0
  %3196 = vmatpush1.msra.mxu0 0.0
  %3197 = vmatprep.subr.mxu0 0.0
  %3198 = vmatpush1.msra.mxu0 0.0
  %3199 = vmatprep.subr.mxu0 0.0
  %3200 = vmatpush1.msra.mxu0 0.0
  %3201 = vmatprep.subr.mxu0 0.0
  %3202 = vmatpush1.msra.mxu0 0.0
  %3203 = vmatprep.subr.mxu0 0.0
  %3204 = vmatpush1.msra.mxu0 0.0
  %3205 = vmatprep.subr.mxu0 0.0
  %3206 = vmatpush1.msra.mxu0 0.0
  %3207 = vmatprep.subr.mxu0 0.0
  %3208 = vmatpush1.msra.mxu0 0.0
  %3209 = vmatprep.subr.mxu0 0.0
  %3210 = vmatpush1.msra.mxu0 0.0
  %3211 = vmatprep.subr.mxu0 0.0
  %3212 = vmatpush1.msra.mxu0 0.0
  %3213 = vmatprep.subr.mxu0 0.0
  %3214 = vmatpush1.msra.mxu0 0.0
  %3215 = vmatprep.subr.mxu0 0.0
  %3216 = vmatpush1.msra.mxu0 0.0
  %3217 = vmatprep.subr.mxu0 0.0
  %3218 = vmatpush1.msra.mxu0 0.0
  %3219 = vmatprep.subr.mxu0 0.0
  %3220 = vmatpush1.msra.mxu0 0.0
  %3221 = vmatprep.subr.mxu0 0.0
  %3222 = vmatpush1.msra.mxu0 0.0
  %3223 = vmatprep.subr.mxu0 0.0
  %3224 = vmatpush1.msra.mxu0 0.0
  %3225 = vmatprep.subr.mxu0 0.0
  %3226 = vmatpush1.msra.mxu0 0.0
  %3227 = vmatprep.subr.mxu0 0.0
  %3228 = vmatpush1.msra.mxu0 0.0
  %3229 = vmatprep.subr.mxu0 0.0
  %3230 = vmatpush1.msra.mxu0 0.0
  %3231 = vmatprep.mubr.f32.mxu0 0.0
  %v3232 = vand.u32 %v2346, 4294901760
  %3233 = vmatmul.mubr.f32.gmra.mrb[0].mxu0 %v3232
  %v3234 = vpop.f32.mrb[0].mxu0
  %v3235 = vadd.f32 %v3107, %v3234
  %v3236 = vpop.f32.mrb[0].mxu0
  %v3237 = vadd.f32 %v3109, %v3236
  %3238 = vmatprep.mubr.f32.mxu0 0.0
  %v3239 = vand.u32 %v2349, 4294901760
  %3240 = vmatmul.mubr.f32.gmra.mrb[0].mxu0 %v3239
  %v3241 = vpop.f32.mrb[0].mxu0
  %v3242 = vadd.f32 %v3114, %v3241
  %v3243 = vpop.f32.mrb[0].mxu0
  %v3244 = vadd.f32 %v3116, %v3243
  %3245 = vmatprep.mubr.f32.mxu0 0.0
  %v3246 = vand.u32 %v2352, 4294901760
  %3247 = vmatmul.mubr.f32.gmra.mrb[0].mxu0 %v3246
  %v3248 = vpop.f32.mrb[0].mxu0
  %v3249 = vadd.f32 %v3121, %v3248
  %v3250 = vpop.f32.mrb[0].mxu0
  %v3251 = vadd.f32 %v3123, %v3250
  %3252 = vmatprep.mubr.f32.mxu0 0.0
  %v3253 = vand.u32 %v2355, 4294901760
  %3254 = vmatmul.mubr.f32.gmra.mrb[0].mxu0 %v3253
  %v3255 = vpop.f32.mrb[0].mxu0
  %v3256 = vadd.f32 %v3128, %v3255
  %v3257 = vpop.f32.mrb[0].mxu0
  %v3258 = vadd.f32 %v3130, %v3257
  %3259 = vmatprep.mubr.f32.mxu0 0.0
  %v3260 = vand.u32 %v2358, 4294901760
  %3261 = vmatmul.mubr.f32.gmra.mrb[0].mxu0 %v3260
  %v3262 = vpop.f32.mrb[0].mxu0
  %v3263 = vadd.f32 %v3135, %v3262
  %v3264 = vpop.f32.mrb[0].mxu0
  %v3265 = vadd.f32 %v3137, %v3264
  %3266 = vmatprep.mubr.f32.mxu0 0.0
  %v3267 = vand.u32 %v2361, 4294901760
  %3268 = vmatmul.mubr.f32.gmra.mrb[0].mxu0 %v3267
  %v3269 = vpop.f32.mrb[0].mxu0
  %v3270 = vadd.f32 %v3142, %v3269
  %v3271 = vpop.f32.mrb[0].mxu0
  %v3272 = vadd.f32 %v3144, %v3271
  %3273 = vmatprep.mubr.f32.mxu0 0.0
  %v3274 = vand.u32 %v2364, 4294901760
  %3275 = vmatmul.mubr.f32.gmra.mrb[0].mxu0 %v3274
  %v3276 = vpop.f32.mrb[0].mxu0
  %v3277 = vadd.f32 %v3149, %v3276
  %v3278 = vpop.f32.mrb[0].mxu0
  %v3279 = vadd.f32 %v3151, %v3278
  %3280 = vdwg.mxu0
  %v3281 = vmax.f32 %v3235, 0.0
  %v3282 = vmax.f32 %v3237, 0.0
  %v3283 = vmax.f32 %v3242, 0.0
  %v3284 = vmax.f32 %v3244, 0.0
  %v3285 = vmax.f32 %v3249, 0.0
  %v3286 = vmax.f32 %v3251, 0.0
  %v3287 = vmax.f32 %v3256, 0.0
  %v3288 = vmax.f32 %v3258, 0.0
  %v3289 = vmax.f32 %v3263, 0.0
  %v3290 = vmax.f32 %v3265, 0.0
  %v3291 = vmax.f32 %v3270, 0.0
  %v3292 = vmax.f32 %v3272, 0.0
  %v3293 = vmax.f32 %v3277, 0.0
  %v3294 = vmax.f32 %v3279, 0.0
  %s3295 = scalar_lea.vmem %s3, 112
  %v3296 = vld [vmem:[%s3295] sm:$0xff]
  %v3297 = vld [vmem:[%s3295 + $0x8] sm:$0xff]
  %v3298 = vld [vmem:[%s3295 + $0x10] sm:$0xff]
  %v3299 = vld [vmem:[%s3295 + $0x18] sm:$0xff]
  %v3300 = vld [vmem:[%s3295 + $0x20] sm:$0xff]
  %v3301 = vld [vmem:[%s3295 + $0x28] sm:$0xff]
  %v3302 = vld [vmem:[%s3295 + $0x30] sm:$0xff]
  %v3304 = vsel %vm1386, %v3296, 0
  %v3307 = vsel %vm1386, %v3297, 0
  %v3310 = vsel %vm1386, %v3298, 0
  %v3313 = vsel %vm1386, %v3299, 0
  %v3316 = vsel %vm1386, %v3300, 0
  %v3319 = vsel %vm1386, %v3301, 0
  %v3322 = vsel %vm1386, %v3302, 0
  %v3324 = vand.u32 %v3282, 4294901760
  %3325 = vmatprep.subr.mxu0 %v3324
  %v3326 = vand.u32 %v3281, 4294901760
  %3327 = vmatpush1.msra.mxu0 %v3326
  %v3328 = vand.u32 %v3284, 4294901760
  %3329 = vmatprep.subr.mxu0 %v3328
  %v3330 = vand.u32 %v3283, 4294901760
  %3331 = vmatpush1.msra.mxu0 %v3330
  %v3332 = vand.u32 %v3286, 4294901760
  %3333 = vmatprep.subr.mxu0 %v3332
  %v3334 = vand.u32 %v3285, 4294901760
  %3335 = vmatpush1.msra.mxu0 %v3334
  %v3336 = vand.u32 %v3288, 4294901760
  %3337 = vmatprep.subr.mxu0 %v3336
  %v3338 = vand.u32 %v3287, 4294901760
  %3339 = vmatpush1.msra.mxu0 %v3338
  %v3340 = vand.u32 %v3290, 4294901760
  %3341 = vmatprep.subr.mxu0 %v3340
  %v3342 = vand.u32 %v3289, 4294901760
  %3343 = vmatpush1.msra.mxu0 %v3342
  %v3344 = vand.u32 %v3292, 4294901760
  %3345 = vmatprep.subr.mxu0 %v3344
  %v3346 = vand.u32 %v3291, 4294901760
  %3347 = vmatpush1.msra.mxu0 %v3346
  %v3348 = vand.u32 %v3294, 4294901760
  %3349 = vmatprep.subr.mxu0 %v3348
  %v3350 = vand.u32 %v3293, 4294901760
  %3351 = vmatpush1.msra.mxu0 %v3350
  %3352 = vmatprep.subr.mxu0 0.0
  %3353 = vmatpush1.msra.mxu0 0.0
  %3354 = vmatprep.subr.mxu0 0.0
  %3355 = vmatpush1.msra.mxu0 0.0
  %3356 = vmatprep.subr.mxu0 0.0
  %3357 = vmatpush1.msra.mxu0 0.0
  %3358 = vmatprep.subr.mxu0 0.0
  %3359 = vmatpush1.msra.mxu0 0.0
  %3360 = vmatprep.subr.mxu0 0.0
  %3361 = vmatpush1.msra.mxu0 0.0
  %3362 = vmatprep.subr.mxu0 0.0
  %3363 = vmatpush1.msra.mxu0 0.0
  %3364 = vmatprep.subr.mxu0 0.0
  %3365 = vmatpush1.msra.mxu0 0.0
  %3366 = vmatprep.subr.mxu0 0.0
  %3367 = vmatpush1.msra.mxu0 0.0
  %3368 = vmatprep.subr.mxu0 0.0
  %3369 = vmatpush1.msra.mxu0 0.0
  %3370 = vmatprep.subr.mxu0 0.0
  %3371 = vmatpush1.msra.mxu0 0.0
  %3372 = vmatprep.subr.mxu0 0.0
  %3373 = vmatpush1.msra.mxu0 0.0
  %3374 = vmatprep.subr.mxu0 0.0
  %3375 = vmatpush1.msra.mxu0 0.0
  %3376 = vmatprep.subr.mxu0 0.0
  %3377 = vmatpush1.msra.mxu0 0.0
  %3378 = vmatprep.subr.mxu0 0.0
  %3379 = vmatpush1.msra.mxu0 0.0
  %3380 = vmatprep.subr.mxu0 0.0
  %3381 = vmatpush1.msra.mxu0 0.0
  %3382 = vmatprep.subr.mxu0 0.0
  %3383 = vmatpush1.msra.mxu0 0.0
  %3384 = vmatprep.subr.mxu0 0.0
  %3385 = vmatpush1.msra.mxu0 0.0
  %3386 = vmatprep.subr.mxu0 0.0
  %3387 = vmatpush1.msra.mxu0 0.0
  %3388 = vmatprep.subr.mxu0 0.0
  %3389 = vmatpush1.msra.mxu0 0.0
  %3390 = vmatprep.subr.mxu0 0.0
  %3391 = vmatpush1.msra.mxu0 0.0
  %3392 = vmatprep.subr.mxu0 0.0
  %3393 = vmatpush1.msra.mxu0 0.0
  %3394 = vmatprep.subr.mxu0 0.0
  %3395 = vmatpush1.msra.mxu0 0.0
  %3396 = vmatprep.subr.mxu0 0.0
  %3397 = vmatpush1.msra.mxu0 0.0
  %3398 = vmatprep.subr.mxu0 0.0
  %3399 = vmatpush1.msra.mxu0 0.0
  %3400 = vmatprep.subr.mxu0 0.0
  %3401 = vmatpush1.msra.mxu0 0.0
  %3402 = vmatprep.mubr.f32.mxu0 0.0
  %v3403 = vand.u32 %v3304, 4294901760
  %v3404 = vsub.f32 %v3304, %v3403
  %v3405 = vand.u32 %v3404, 4294901760
  %v3406 = vsub.f32 %v3404, %v3405
  %v3407 = vand.u32 %v3406, 4294901760
  %3408 = vmatmul.mubr.f32.gmra.mrb[0].mxu0 %v3407
  %v3409 = vpop.f32.mrb[0].mxu0
  %v3410 = vadd.f32 0.0, %v3409
  %v3411 = vpop.f32.mrb[0].mxu0
  %v3412 = vadd.f32 0.0, %v3411
  %3413 = vmatprep.mubr.f32.mxu0 0.0
  %v3414 = vand.u32 %v3307, 4294901760
  %v3415 = vsub.f32 %v3307, %v3414
  %v3416 = vand.u32 %v3415, 4294901760
  %v3417 = vsub.f32 %v3415, %v3416
  %v3418 = vand.u32 %v3417, 4294901760
  %3419 = vmatmul.mubr.f32.gmra.mrb[0].mxu0 %v3418
  %v3420 = vpop.f32.mrb[0].mxu0
  %v3421 = vadd.f32 0.0, %v3420
  %v3422 = vpop.f32.mrb[0].mxu0
  %v3423 = vadd.f32 0.0, %v3422
  %3424 = vmatprep.mubr.f32.mxu0 0.0
  %v3425 = vand.u32 %v3310, 4294901760
  %v3426 = vsub.f32 %v3310, %v3425
  %v3427 = vand.u32 %v3426, 4294901760
  %v3428 = vsub.f32 %v3426, %v3427
  %v3429 = vand.u32 %v3428, 4294901760
  %3430 = vmatmul.mubr.f32.gmra.mrb[0].mxu0 %v3429
  %v3431 = vpop.f32.mrb[0].mxu0
  %v3432 = vadd.f32 0.0, %v3431
  %v3433 = vpop.f32.mrb[0].mxu0
  %v3434 = vadd.f32 0.0, %v3433
  %3435 = vmatprep.mubr.f32.mxu0 0.0
  %v3436 = vand.u32 %v3313, 4294901760
  %v3437 = vsub.f32 %v3313, %v3436
  %v3438 = vand.u32 %v3437, 4294901760
  %v3439 = vsub.f32 %v3437, %v3438
  %v3440 = vand.u32 %v3439, 4294901760
  %3441 = vmatmul.mubr.f32.gmra.mrb[0].mxu0 %v3440
  %v3442 = vpop.f32.mrb[0].mxu0
  %v3443 = vadd.f32 0.0, %v3442
  %v3444 = vpop.f32.mrb[0].mxu0
  %v3445 = vadd.f32 0.0, %v3444
  %3446 = vmatprep.mubr.f32.mxu0 0.0
  %v3447 = vand.u32 %v3316, 4294901760
  %v3448 = vsub.f32 %v3316, %v3447
  %v3449 = vand.u32 %v3448, 4294901760
  %v3450 = vsub.f32 %v3448, %v3449
  %v3451 = vand.u32 %v3450, 4294901760
  %3452 = vmatmul.mubr.f32.gmra.mrb[0].mxu0 %v3451
  %v3453 = vpop.f32.mrb[0].mxu0
  %v3454 = vadd.f32 0.0, %v3453
  %v3455 = vpop.f32.mrb[0].mxu0
  %v3456 = vadd.f32 0.0, %v3455
  %3457 = vmatprep.mubr.f32.mxu0 0.0
  %v3458 = vand.u32 %v3319, 4294901760
  %v3459 = vsub.f32 %v3319, %v3458
  %v3460 = vand.u32 %v3459, 4294901760
  %v3461 = vsub.f32 %v3459, %v3460
  %v3462 = vand.u32 %v3461, 4294901760
  %3463 = vmatmul.mubr.f32.gmra.mrb[0].mxu0 %v3462
  %v3464 = vpop.f32.mrb[0].mxu0
  %v3465 = vadd.f32 0.0, %v3464
  %v3466 = vpop.f32.mrb[0].mxu0
  %v3467 = vadd.f32 0.0, %v3466
  %3468 = vmatprep.mubr.f32.mxu0 0.0
  %v3469 = vand.u32 %v3322, 4294901760
  %v3470 = vsub.f32 %v3322, %v3469
  %v3471 = vand.u32 %v3470, 4294901760
  %v3472 = vsub.f32 %v3470, %v3471
  %v3473 = vand.u32 %v3472, 4294901760
  %3474 = vmatmul.mubr.f32.gmra.mrb[0].mxu0 %v3473
  %v3475 = vpop.f32.mrb[0].mxu0
  %v3476 = vadd.f32 0.0, %v3475
  %v3477 = vpop.f32.mrb[0].mxu0
  %v3478 = vadd.f32 0.0, %v3477
  %3479 = vdwg.mxu0
  %v3480 = vand.u32 %v3282, 4294901760
  %v3481 = vsub.f32 %v3282, %v3480
  %v3482 = vand.u32 %v3481, 4294901760
  %v3483 = vsub.f32 %v3481, %v3482
  %v3484 = vand.u32 %v3483, 4294901760
  %3485 = vmatprep.subr.mxu0 %v3484
  %v3486 = vand.u32 %v3281, 4294901760
  %v3487 = vsub.f32 %v3281, %v3486
  %v3488 = vand.u32 %v3487, 4294901760
  %v3489 = vsub.f32 %v3487, %v3488
  %v3490 = vand.u32 %v3489, 4294901760
  %3491 = vmatpush1.msra.mxu0 %v3490
  %v3492 = vand.u32 %v3284, 4294901760
  %v3493 = vsub.f32 %v3284, %v3492
  %v3494 = vand.u32 %v3493, 4294901760
  %v3495 = vsub.f32 %v3493, %v3494
  %v3496 = vand.u32 %v3495, 4294901760
  %3497 = vmatprep.subr.mxu0 %v3496
  %v3498 = vand.u32 %v3283, 4294901760
  %v3499 = vsub.f32 %v3283, %v3498
  %v3500 = vand.u32 %v3499, 4294901760
  %v3501 = vsub.f32 %v3499, %v3500
  %v3502 = vand.u32 %v3501, 4294901760
  %3503 = vmatpush1.msra.mxu0 %v3502
  %v3504 = vand.u32 %v3286, 4294901760
  %v3505 = vsub.f32 %v3286, %v3504
  %v3506 = vand.u32 %v3505, 4294901760
  %v3507 = vsub.f32 %v3505, %v3506
  %v3508 = vand.u32 %v3507, 4294901760
  %3509 = vmatprep.subr.mxu0 %v3508
  %v3510 = vand.u32 %v3285, 4294901760
  %v3511 = vsub.f32 %v3285, %v3510
  %v3512 = vand.u32 %v3511, 4294901760
  %v3513 = vsub.f32 %v3511, %v3512
  %v3514 = vand.u32 %v3513, 4294901760
  %3515 = vmatpush1.msra.mxu0 %v3514
  %v3516 = vand.u32 %v3288, 4294901760
  %v3517 = vsub.f32 %v3288, %v3516
  %v3518 = vand.u32 %v3517, 4294901760
  %v3519 = vsub.f32 %v3517, %v3518
  %v3520 = vand.u32 %v3519, 4294901760
  %3521 = vmatprep.subr.mxu0 %v3520
  %v3522 = vand.u32 %v3287, 4294901760
  %v3523 = vsub.f32 %v3287, %v3522
  %v3524 = vand.u32 %v3523, 4294901760
  %v3525 = vsub.f32 %v3523, %v3524
  %v3526 = vand.u32 %v3525, 4294901760
  %3527 = vmatpush1.msra.mxu0 %v3526
  %v3528 = vand.u32 %v3290, 4294901760
  %v3529 = vsub.f32 %v3290, %v3528
  %v3530 = vand.u32 %v3529, 4294901760
  %v3531 = vsub.f32 %v3529, %v3530
  %v3532 = vand.u32 %v3531, 4294901760
  %3533 = vmatprep.subr.mxu0 %v3532
  %v3534 = vand.u32 %v3289, 4294901760
  %v3535 = vsub.f32 %v3289, %v3534
  %v3536 = vand.u32 %v3535, 4294901760
  %v3537 = vsub.f32 %v3535, %v3536
  %v3538 = vand.u32 %v3537, 4294901760
  %3539 = vmatpush1.msra.mxu0 %v3538
  %v3540 = vand.u32 %v3292, 4294901760
  %v3541 = vsub.f32 %v3292, %v3540
  %v3542 = vand.u32 %v3541, 4294901760
  %v3543 = vsub.f32 %v3541, %v3542
  %v3544 = vand.u32 %v3543, 4294901760
  %3545 = vmatprep.subr.mxu0 %v3544
  %v3546 = vand.u32 %v3291, 4294901760
  %v3547 = vsub.f32 %v3291, %v3546
  %v3548 = vand.u32 %v3547, 4294901760
  %v3549 = vsub.f32 %v3547, %v3548
  %v3550 = vand.u32 %v3549, 4294901760
  %3551 = vmatpush1.msra.mxu0 %v3550
  %v3552 = vand.u32 %v3294, 4294901760
  %v3553 = vsub.f32 %v3294, %v3552
  %v3554 = vand.u32 %v3553, 4294901760
  %v3555 = vsub.f32 %v3553, %v3554
  %v3556 = vand.u32 %v3555, 4294901760
  %3557 = vmatprep.subr.mxu0 %v3556
  %v3558 = vand.u32 %v3293, 4294901760
  %v3559 = vsub.f32 %v3293, %v3558
  %v3560 = vand.u32 %v3559, 4294901760
  %v3561 = vsub.f32 %v3559, %v3560
  %v3562 = vand.u32 %v3561, 4294901760
  %3563 = vmatpush1.msra.mxu0 %v3562
  %3564 = vmatprep.subr.mxu0 0.0
  %3565 = vmatpush1.msra.mxu0 0.0
  %3566 = vmatprep.subr.mxu0 0.0
  %3567 = vmatpush1.msra.mxu0 0.0
  %3568 = vmatprep.subr.mxu0 0.0
  %3569 = vmatpush1.msra.mxu0 0.0
  %3570 = vmatprep.subr.mxu0 0.0
  %3571 = vmatpush1.msra.mxu0 0.0
  %3572 = vmatprep.subr.mxu0 0.0
  %3573 = vmatpush1.msra.mxu0 0.0
  %3574 = vmatprep.subr.mxu0 0.0
  %3575 = vmatpush1.msra.mxu0 0.0
  %3576 = vmatprep.subr.mxu0 0.0
  %3577 = vmatpush1.msra.mxu0 0.0
  %3578 = vmatprep.subr.mxu0 0.0
  %3579 = vmatpush1.msra.mxu0 0.0
  %3580 = vmatprep.subr.mxu0 0.0
  %3581 = vmatpush1.msra.mxu0 0.0
  %3582 = vmatprep.subr.mxu0 0.0
  %3583 = vmatpush1.msra.mxu0 0.0
  %3584 = vmatprep.subr.mxu0 0.0
  %3585 = vmatpush1.msra.mxu0 0.0
  %3586 = vmatprep.subr.mxu0 0.0
  %3587 = vmatpush1.msra.mxu0 0.0
  %3588 = vmatprep.subr.mxu0 0.0
  %3589 = vmatpush1.msra.mxu0 0.0
  %3590 = vmatprep.subr.mxu0 0.0
  %3591 = vmatpush1.msra.mxu0 0.0
  %3592 = vmatprep.subr.mxu0 0.0
  %3593 = vmatpush1.msra.mxu0 0.0
  %3594 = vmatprep.subr.mxu0 0.0
  %3595 = vmatpush1.msra.mxu0 0.0
  %3596 = vmatprep.subr.mxu0 0.0
  %3597 = vmatpush1.msra.mxu0 0.0
  %3598 = vmatprep.subr.mxu0 0.0
  %3599 = vmatpush1.msra.mxu0 0.0
  %3600 = vmatprep.subr.mxu0 0.0
  %3601 = vmatpush1.msra.mxu0 0.0
  %3602 = vmatprep.subr.mxu0 0.0
  %3603 = vmatpush1.msra.mxu0 0.0
  %3604 = vmatprep.subr.mxu0 0.0
  %3605 = vmatpush1.msra.mxu0 0.0
  %3606 = vmatprep.subr.mxu0 0.0
  %3607 = vmatpush1.msra.mxu0 0.0
  %3608 = vmatprep.subr.mxu0 0.0
  %3609 = vmatpush1.msra.mxu0 0.0
  %3610 = vmatprep.subr.mxu0 0.0
  %3611 = vmatpush1.msra.mxu0 0.0
  %3612 = vmatprep.subr.mxu0 0.0
  %3613 = vmatpush1.msra.mxu0 0.0
  %3614 = vmatprep.mubr.f32.mxu0 0.0
  %v3615 = vand.u32 %v3304, 4294901760
  %3616 = vmatmul.mubr.f32.gmra.mrb[0].mxu0 %v3615
  %v3617 = vpop.f32.mrb[0].mxu0
  %v3618 = vadd.f32 %v3410, %v3617
  %v3619 = vpop.f32.mrb[0].mxu0
  %v3620 = vadd.f32 %v3412, %v3619
  %3621 = vmatprep.mubr.f32.mxu0 0.0
  %v3622 = vand.u32 %v3307, 4294901760
  %3623 = vmatmul.mubr.f32.gmra.mrb[0].mxu0 %v3622
  %v3624 = vpop.f32.mrb[0].mxu0
  %v3625 = vadd.f32 %v3421, %v3624
  %v3626 = vpop.f32.mrb[0].mxu0
  %v3627 = vadd.f32 %v3423, %v3626
  %3628 = vmatprep.mubr.f32.mxu0 0.0
  %v3629 = vand.u32 %v3310, 4294901760
  %3630 = vmatmul.mubr.f32.gmra.mrb[0].mxu0 %v3629
  %v3631 = vpop.f32.mrb[0].mxu0
  %v3632 = vadd.f32 %v3432, %v3631
  %v3633 = vpop.f32.mrb[0].mxu0
  %v3634 = vadd.f32 %v3434, %v3633
  %3635 = vmatprep.mubr.f32.mxu0 0.0
  %v3636 = vand.u32 %v3313, 4294901760
  %3637 = vmatmul.mubr.f32.gmra.mrb[0].mxu0 %v3636
  %v3638 = vpop.f32.mrb[0].mxu0
  %v3639 = vadd.f32 %v3443, %v3638
  %v3640 = vpop.f32.mrb[0].mxu0
  %v3641 = vadd.f32 %v3445, %v3640
  %3642 = vmatprep.mubr.f32.mxu0 0.0
  %v3643 = vand.u32 %v3316, 4294901760
  %3644 = vmatmul.mubr.f32.gmra.mrb[0].mxu0 %v3643
  %v3645 = vpop.f32.mrb[0].mxu0
  %v3646 = vadd.f32 %v3454, %v3645
  %v3647 = vpop.f32.mrb[0].mxu0
  %v3648 = vadd.f32 %v3456, %v3647
  %3649 = vmatprep.mubr.f32.mxu0 0.0
  %v3650 = vand.u32 %v3319, 4294901760
  %3651 = vmatmul.mubr.f32.gmra.mrb[0].mxu0 %v3650
  %v3652 = vpop.f32.mrb[0].mxu0
  %v3653 = vadd.f32 %v3465, %v3652
  %v3654 = vpop.f32.mrb[0].mxu0
  %v3655 = vadd.f32 %v3467, %v3654
  %3656 = vmatprep.mubr.f32.mxu0 0.0
  %v3657 = vand.u32 %v3322, 4294901760
  %3658 = vmatmul.mubr.f32.gmra.mrb[0].mxu0 %v3657
  %v3659 = vpop.f32.mrb[0].mxu0
  %v3660 = vadd.f32 %v3476, %v3659
  %v3661 = vpop.f32.mrb[0].mxu0
  %v3662 = vadd.f32 %v3478, %v3661
  %3663 = vdwg.mxu0
  %v3664 = vand.u32 %v3282, 4294901760
  %v3665 = vsub.f32 %v3282, %v3664
  %3666 = vmatprep.subr.mxu0 %v3665
  %v3667 = vand.u32 %v3281, 4294901760
  %v3668 = vsub.f32 %v3281, %v3667
  %3669 = vmatpush1.msra.mxu0 %v3668
  %v3670 = vand.u32 %v3284, 4294901760
  %v3671 = vsub.f32 %v3284, %v3670
  %3672 = vmatprep.subr.mxu0 %v3671
  %v3673 = vand.u32 %v3283, 4294901760
  %v3674 = vsub.f32 %v3283, %v3673
  %3675 = vmatpush1.msra.mxu0 %v3674
  %v3676 = vand.u32 %v3286, 4294901760
  %v3677 = vsub.f32 %v3286, %v3676
  %3678 = vmatprep.subr.mxu0 %v3677
  %v3679 = vand.u32 %v3285, 4294901760
  %v3680 = vsub.f32 %v3285, %v3679
  %3681 = vmatpush1.msra.mxu0 %v3680
  %v3682 = vand.u32 %v3288, 4294901760
  %v3683 = vsub.f32 %v3288, %v3682
  %3684 = vmatprep.subr.mxu0 %v3683
  %v3685 = vand.u32 %v3287, 4294901760
  %v3686 = vsub.f32 %v3287, %v3685
  %3687 = vmatpush1.msra.mxu0 %v3686
  %v3688 = vand.u32 %v3290, 4294901760
  %v3689 = vsub.f32 %v3290, %v3688
  %3690 = vmatprep.subr.mxu0 %v3689
  %v3691 = vand.u32 %v3289, 4294901760
  %v3692 = vsub.f32 %v3289, %v3691
  %3693 = vmatpush1.msra.mxu0 %v3692
  %v3694 = vand.u32 %v3292, 4294901760
  %v3695 = vsub.f32 %v3292, %v3694
  %3696 = vmatprep.subr.mxu0 %v3695
  %v3697 = vand.u32 %v3291, 4294901760
  %v3698 = vsub.f32 %v3291, %v3697
  %3699 = vmatpush1.msra.mxu0 %v3698
  %v3700 = vand.u32 %v3294, 4294901760
  %v3701 = vsub.f32 %v3294, %v3700
  %3702 = vmatprep.subr.mxu0 %v3701
  %v3703 = vand.u32 %v3293, 4294901760
  %v3704 = vsub.f32 %v3293, %v3703
  %3705 = vmatpush1.msra.mxu0 %v3704
  %3706 = vmatprep.subr.mxu0 0.0
  %3707 = vmatpush1.msra.mxu0 0.0
  %3708 = vmatprep.subr.mxu0 0.0
  %3709 = vmatpush1.msra.mxu0 0.0
  %3710 = vmatprep.subr.mxu0 0.0
  %3711 = vmatpush1.msra.mxu0 0.0
  %3712 = vmatprep.subr.mxu0 0.0
  %3713 = vmatpush1.msra.mxu0 0.0
  %3714 = vmatprep.subr.mxu0 0.0
  %3715 = vmatpush1.msra.mxu0 0.0
  %3716 = vmatprep.subr.mxu0 0.0
  %3717 = vmatpush1.msra.mxu0 0.0
  %3718 = vmatprep.subr.mxu0 0.0
  %3719 = vmatpush1.msra.mxu0 0.0
  %3720 = vmatprep.subr.mxu0 0.0
  %3721 = vmatpush1.msra.mxu0 0.0
  %3722 = vmatprep.subr.mxu0 0.0
  %3723 = vmatpush1.msra.mxu0 0.0
  %3724 = vmatprep.subr.mxu0 0.0
  %3725 = vmatpush1.msra.mxu0 0.0
  %3726 = vmatprep.subr.mxu0 0.0
  %3727 = vmatpush1.msra.mxu0 0.0
  %3728 = vmatprep.subr.mxu0 0.0
  %3729 = vmatpush1.msra.mxu0 0.0
  %3730 = vmatprep.subr.mxu0 0.0
  %3731 = vmatpush1.msra.mxu0 0.0
  %3732 = vmatprep.subr.mxu0 0.0
  %3733 = vmatpush1.msra.mxu0 0.0
  %3734 = vmatprep.subr.mxu0 0.0
  %3735 = vmatpush1.msra.mxu0 0.0
  %3736 = vmatprep.subr.mxu0 0.0
  %3737 = vmatpush1.msra.mxu0 0.0
  %3738 = vmatprep.subr.mxu0 0.0
  %3739 = vmatpush1.msra.mxu0 0.0
  %3740 = vmatprep.subr.mxu0 0.0
  %3741 = vmatpush1.msra.mxu0 0.0
  %3742 = vmatprep.subr.mxu0 0.0
  %3743 = vmatpush1.msra.mxu0 0.0
  %3744 = vmatprep.subr.mxu0 0.0
  %3745 = vmatpush1.msra.mxu0 0.0
  %3746 = vmatprep.subr.mxu0 0.0
  %3747 = vmatpush1.msra.mxu0 0.0
  %3748 = vmatprep.subr.mxu0 0.0
  %3749 = vmatpush1.msra.mxu0 0.0
  %3750 = vmatprep.subr.mxu0 0.0
  %3751 = vmatpush1.msra.mxu0 0.0
  %3752 = vmatprep.subr.mxu0 0.0
  %3753 = vmatpush1.msra.mxu0 0.0
  %3754 = vmatprep.subr.mxu0 0.0
  %3755 = vmatpush1.msra.mxu0 0.0
  %3756 = vmatprep.mubr.f32.mxu0 0.0
  %v3757 = vand.u32 %v3304, 4294901760
  %v3758 = vsub.f32 %v3304, %v3757
  %3759 = vmatmul.mubr.f32.gmra.mrb[0].mxu0 %v3758
  %v3760 = vpop.f32.mrb[0].mxu0
  %v3761 = vadd.f32 %v3618, %v3760
  %v3762 = vpop.f32.mrb[0].mxu0
  %v3763 = vadd.f32 %v3620, %v3762
  %3764 = vmatprep.mubr.f32.mxu0 0.0
  %v3765 = vand.u32 %v3307, 4294901760
  %v3766 = vsub.f32 %v3307, %v3765
  %3767 = vmatmul.mubr.f32.gmra.mrb[0].mxu0 %v3766
  %v3768 = vpop.f32.mrb[0].mxu0
  %v3769 = vadd.f32 %v3625, %v3768
  %v3770 = vpop.f32.mrb[0].mxu0
  %v3771 = vadd.f32 %v3627, %v3770
  %3772 = vmatprep.mubr.f32.mxu0 0.0
  %v3773 = vand.u32 %v3310, 4294901760
  %v3774 = vsub.f32 %v3310, %v3773
  %3775 = vmatmul.mubr.f32.gmra.mrb[0].mxu0 %v3774
  %v3776 = vpop.f32.mrb[0].mxu0
  %v3777 = vadd.f32 %v3632, %v3776
  %v3778 = vpop.f32.mrb[0].mxu0
  %v3779 = vadd.f32 %v3634, %v3778
  %3780 = vmatprep.mubr.f32.mxu0 0.0
  %v3781 = vand.u32 %v3313, 4294901760
  %v3782 = vsub.f32 %v3313, %v3781
  %3783 = vmatmul.mubr.f32.gmra.mrb[0].mxu0 %v3782
  %v3784 = vpop.f32.mrb[0].mxu0
  %v3785 = vadd.f32 %v3639, %v3784
  %v3786 = vpop.f32.mrb[0].mxu0
  %v3787 = vadd.f32 %v3641, %v3786
  %3788 = vmatprep.mubr.f32.mxu0 0.0
  %v3789 = vand.u32 %v3316, 4294901760
  %v3790 = vsub.f32 %v3316, %v3789
  %3791 = vmatmul.mubr.f32.gmra.mrb[0].mxu0 %v3790
  %v3792 = vpop.f32.mrb[0].mxu0
  %v3793 = vadd.f32 %v3646, %v3792
  %v3794 = vpop.f32.mrb[0].mxu0
  %v3795 = vadd.f32 %v3648, %v3794
  %3796 = vmatprep.mubr.f32.mxu0 0.0
  %v3797 = vand.u32 %v3319, 4294901760
  %v3798 = vsub.f32 %v3319, %v3797
  %3799 = vmatmul.mubr.f32.gmra.mrb[0].mxu0 %v3798
  %v3800 = vpop.f32.mrb[0].mxu0
  %v3801 = vadd.f32 %v3653, %v3800
  %v3802 = vpop.f32.mrb[0].mxu0
  %v3803 = vadd.f32 %v3655, %v3802
  %3804 = vmatprep.mubr.f32.mxu0 0.0
  %v3805 = vand.u32 %v3322, 4294901760
  %v3806 = vsub.f32 %v3322, %v3805
  %3807 = vmatmul.mubr.f32.gmra.mrb[0].mxu0 %v3806
  %v3808 = vpop.f32.mrb[0].mxu0
  %v3809 = vadd.f32 %v3660, %v3808
  %v3810 = vpop.f32.mrb[0].mxu0
  %v3811 = vadd.f32 %v3662, %v3810
  %3812 = vdwg.mxu0
  %v3813 = vand.u32 %v3282, 4294901760
  %3814 = vmatprep.subr.mxu0 %v3813
  %v3815 = vand.u32 %v3281, 4294901760
  %3816 = vmatpush1.msra.mxu0 %v3815
  %v3817 = vand.u32 %v3284, 4294901760
  %3818 = vmatprep.subr.mxu0 %v3817
  %v3819 = vand.u32 %v3283, 4294901760
  %3820 = vmatpush1.msra.mxu0 %v3819
  %v3821 = vand.u32 %v3286, 4294901760
  %3822 = vmatprep.subr.mxu0 %v3821
  %v3823 = vand.u32 %v3285, 4294901760
  %3824 = vmatpush1.msra.mxu0 %v3823
  %v3825 = vand.u32 %v3288, 4294901760
  %3826 = vmatprep.subr.mxu0 %v3825
  %v3827 = vand.u32 %v3287, 4294901760
  %3828 = vmatpush1.msra.mxu0 %v3827
  %v3829 = vand.u32 %v3290, 4294901760
  %3830 = vmatprep.subr.mxu0 %v3829
  %v3831 = vand.u32 %v3289, 4294901760
  %3832 = vmatpush1.msra.mxu0 %v3831
  %v3833 = vand.u32 %v3292, 4294901760
  %3834 = vmatprep.subr.mxu0 %v3833
  %v3835 = vand.u32 %v3291, 4294901760
  %3836 = vmatpush1.msra.mxu0 %v3835
  %v3837 = vand.u32 %v3294, 4294901760
  %3838 = vmatprep.subr.mxu0 %v3837
  %v3839 = vand.u32 %v3293, 4294901760
  %3840 = vmatpush1.msra.mxu0 %v3839
  %3841 = vmatprep.subr.mxu0 0.0
  %3842 = vmatpush1.msra.mxu0 0.0
  %3843 = vmatprep.subr.mxu0 0.0
  %3844 = vmatpush1.msra.mxu0 0.0
  %3845 = vmatprep.subr.mxu0 0.0
  %3846 = vmatpush1.msra.mxu0 0.0
  %3847 = vmatprep.subr.mxu0 0.0
  %3848 = vmatpush1.msra.mxu0 0.0
  %3849 = vmatprep.subr.mxu0 0.0
  %3850 = vmatpush1.msra.mxu0 0.0
  %3851 = vmatprep.subr.mxu0 0.0
  %3852 = vmatpush1.msra.mxu0 0.0
  %3853 = vmatprep.subr.mxu0 0.0
  %3854 = vmatpush1.msra.mxu0 0.0
  %3855 = vmatprep.subr.mxu0 0.0
  %3856 = vmatpush1.msra.mxu0 0.0
  %3857 = vmatprep.subr.mxu0 0.0
  %3858 = vmatpush1.msra.mxu0 0.0
  %3859 = vmatprep.subr.mxu0 0.0
  %3860 = vmatpush1.msra.mxu0 0.0
  %3861 = vmatprep.subr.mxu0 0.0
  %3862 = vmatpush1.msra.mxu0 0.0
  %3863 = vmatprep.subr.mxu0 0.0
  %3864 = vmatpush1.msra.mxu0 0.0
  %3865 = vmatprep.subr.mxu0 0.0
  %3866 = vmatpush1.msra.mxu0 0.0
  %3867 = vmatprep.subr.mxu0 0.0
  %3868 = vmatpush1.msra.mxu0 0.0
  %3869 = vmatprep.subr.mxu0 0.0
  %3870 = vmatpush1.msra.mxu0 0.0
  %3871 = vmatprep.subr.mxu0 0.0
  %3872 = vmatpush1.msra.mxu0 0.0
  %3873 = vmatprep.subr.mxu0 0.0
  %3874 = vmatpush1.msra.mxu0 0.0
  %3875 = vmatprep.subr.mxu0 0.0
  %3876 = vmatpush1.msra.mxu0 0.0
  %3877 = vmatprep.subr.mxu0 0.0
  %3878 = vmatpush1.msra.mxu0 0.0
  %3879 = vmatprep.subr.mxu0 0.0
  %3880 = vmatpush1.msra.mxu0 0.0
  %3881 = vmatprep.subr.mxu0 0.0
  %3882 = vmatpush1.msra.mxu0 0.0
  %3883 = vmatprep.subr.mxu0 0.0
  %3884 = vmatpush1.msra.mxu0 0.0
  %3885 = vmatprep.subr.mxu0 0.0
  %3886 = vmatpush1.msra.mxu0 0.0
  %3887 = vmatprep.subr.mxu0 0.0
  %3888 = vmatpush1.msra.mxu0 0.0
  %3889 = vmatprep.subr.mxu0 0.0
  %3890 = vmatpush1.msra.mxu0 0.0
  %3891 = vmatprep.mubr.f32.mxu0 0.0
  %v3892 = vand.u32 %v3304, 4294901760
  %v3893 = vsub.f32 %v3304, %v3892
  %v3894 = vand.u32 %v3893, 4294901760
  %3895 = vmatmul.mubr.f32.gmra.mrb[0].mxu0 %v3894
  %v3896 = vpop.f32.mrb[0].mxu0
  %v3897 = vadd.f32 %v3761, %v3896
  %v3898 = vpop.f32.mrb[0].mxu0
  %v3899 = vadd.f32 %v3763, %v3898
  %3900 = vmatprep.mubr.f32.mxu0 0.0
  %v3901 = vand.u32 %v3307, 4294901760
  %v3902 = vsub.f32 %v3307, %v3901
  %v3903 = vand.u32 %v3902, 4294901760
  %3904 = vmatmul.mubr.f32.gmra.mrb[0].mxu0 %v3903
  %v3905 = vpop.f32.mrb[0].mxu0
  %v3906 = vadd.f32 %v3769, %v3905
  %v3907 = vpop.f32.mrb[0].mxu0
  %v3908 = vadd.f32 %v3771, %v3907
  %3909 = vmatprep.mubr.f32.mxu0 0.0
  %v3910 = vand.u32 %v3310, 4294901760
  %v3911 = vsub.f32 %v3310, %v3910
  %v3912 = vand.u32 %v3911, 4294901760
  %3913 = vmatmul.mubr.f32.gmra.mrb[0].mxu0 %v3912
  %v3914 = vpop.f32.mrb[0].mxu0
  %v3915 = vadd.f32 %v3777, %v3914
  %v3916 = vpop.f32.mrb[0].mxu0
  %v3917 = vadd.f32 %v3779, %v3916
  %3918 = vmatprep.mubr.f32.mxu0 0.0
  %v3919 = vand.u32 %v3313, 4294901760
  %v3920 = vsub.f32 %v3313, %v3919
  %v3921 = vand.u32 %v3920, 4294901760
  %3922 = vmatmul.mubr.f32.gmra.mrb[0].mxu0 %v3921
  %v3923 = vpop.f32.mrb[0].mxu0
  %v3924 = vadd.f32 %v3785, %v3923
  %v3925 = vpop.f32.mrb[0].mxu0
  %v3926 = vadd.f32 %v3787, %v3925
  %3927 = vmatprep.mubr.f32.mxu0 0.0
  %v3928 = vand.u32 %v3316, 4294901760
  %v3929 = vsub.f32 %v3316, %v3928
  %v3930 = vand.u32 %v3929, 4294901760
  %3931 = vmatmul.mubr.f32.gmra.mrb[0].mxu0 %v3930
  %v3932 = vpop.f32.mrb[0].mxu0
  %v3933 = vadd.f32 %v3793, %v3932
  %v3934 = vpop.f32.mrb[0].mxu0
  %v3935 = vadd.f32 %v3795, %v3934
  %3936 = vmatprep.mubr.f32.mxu0 0.0
  %v3937 = vand.u32 %v3319, 4294901760
  %v3938 = vsub.f32 %v3319, %v3937
  %v3939 = vand.u32 %v3938, 4294901760
  %3940 = vmatmul.mubr.f32.gmra.mrb[0].mxu0 %v3939
  %v3941 = vpop.f32.mrb[0].mxu0
  %v3942 = vadd.f32 %v3801, %v3941
  %v3943 = vpop.f32.mrb[0].mxu0
  %v3944 = vadd.f32 %v3803, %v3943
  %3945 = vmatprep.mubr.f32.mxu0 0.0
  %v3946 = vand.u32 %v3322, 4294901760
  %v3947 = vsub.f32 %v3322, %v3946
  %v3948 = vand.u32 %v3947, 4294901760
  %3949 = vmatmul.mubr.f32.gmra.mrb[0].mxu0 %v3948
  %v3950 = vpop.f32.mrb[0].mxu0
  %v3951 = vadd.f32 %v3809, %v3950
  %v3952 = vpop.f32.mrb[0].mxu0
  %v3953 = vadd.f32 %v3811, %v3952
  %3954 = vdwg.mxu0
  %v3955 = vand.u32 %v3282, 4294901760
  %v3956 = vsub.f32 %v3282, %v3955
  %v3957 = vand.u32 %v3956, 4294901760
  %3958 = vmatprep.subr.mxu0 %v3957
  %v3959 = vand.u32 %v3281, 4294901760
  %v3960 = vsub.f32 %v3281, %v3959
  %v3961 = vand.u32 %v3960, 4294901760
  %3962 = vmatpush1.msra.mxu0 %v3961
  %v3963 = vand.u32 %v3284, 4294901760
  %v3964 = vsub.f32 %v3284, %v3963
  %v3965 = vand.u32 %v3964, 4294901760
  %3966 = vmatprep.subr.mxu0 %v3965
  %v3967 = vand.u32 %v3283, 4294901760
  %v3968 = vsub.f32 %v3283, %v3967
  %v3969 = vand.u32 %v3968, 4294901760
  %3970 = vmatpush1.msra.mxu0 %v3969
  %v3971 = vand.u32 %v3286, 4294901760
  %v3972 = vsub.f32 %v3286, %v3971
  %v3973 = vand.u32 %v3972, 4294901760
  %3974 = vmatprep.subr.mxu0 %v3973
  %v3975 = vand.u32 %v3285, 4294901760
  %v3976 = vsub.f32 %v3285, %v3975
  %v3977 = vand.u32 %v3976, 4294901760
  %3978 = vmatpush1.msra.mxu0 %v3977
  %v3979 = vand.u32 %v3288, 4294901760
  %v3980 = vsub.f32 %v3288, %v3979
  %v3981 = vand.u32 %v3980, 4294901760
  %3982 = vmatprep.subr.mxu0 %v3981
  %v3983 = vand.u32 %v3287, 4294901760
  %v3984 = vsub.f32 %v3287, %v3983
  %v3985 = vand.u32 %v3984, 4294901760
  %3986 = vmatpush1.msra.mxu0 %v3985
  %v3987 = vand.u32 %v3290, 4294901760
  %v3988 = vsub.f32 %v3290, %v3987
  %v3989 = vand.u32 %v3988, 4294901760
  %3990 = vmatprep.subr.mxu0 %v3989
  %v3991 = vand.u32 %v3289, 4294901760
  %v3992 = vsub.f32 %v3289, %v3991
  %v3993 = vand.u32 %v3992, 4294901760
  %3994 = vmatpush1.msra.mxu0 %v3993
  %v3995 = vand.u32 %v3292, 4294901760
  %v3996 = vsub.f32 %v3292, %v3995
  %v3997 = vand.u32 %v3996, 4294901760
  %3998 = vmatprep.subr.mxu0 %v3997
  %v3999 = vand.u32 %v3291, 4294901760
  %v4000 = vsub.f32 %v3291, %v3999
  %v4001 = vand.u32 %v4000, 4294901760
  %4002 = vmatpush1.msra.mxu0 %v4001
  %v4003 = vand.u32 %v3294, 4294901760
  %v4004 = vsub.f32 %v3294, %v4003
  %v4005 = vand.u32 %v4004, 4294901760
  %4006 = vmatprep.subr.mxu0 %v4005
  %v4007 = vand.u32 %v3293, 4294901760
  %v4008 = vsub.f32 %v3293, %v4007
  %v4009 = vand.u32 %v4008, 4294901760
  %4010 = vmatpush1.msra.mxu0 %v4009
  %4011 = vmatprep.subr.mxu0 0.0
  %4012 = vmatpush1.msra.mxu0 0.0
  %4013 = vmatprep.subr.mxu0 0.0
  %4014 = vmatpush1.msra.mxu0 0.0
  %4015 = vmatprep.subr.mxu0 0.0
  %4016 = vmatpush1.msra.mxu0 0.0
  %4017 = vmatprep.subr.mxu0 0.0
  %4018 = vmatpush1.msra.mxu0 0.0
  %4019 = vmatprep.subr.mxu0 0.0
  %4020 = vmatpush1.msra.mxu0 0.0
  %4021 = vmatprep.subr.mxu0 0.0
  %4022 = vmatpush1.msra.mxu0 0.0
  %4023 = vmatprep.subr.mxu0 0.0
  %4024 = vmatpush1.msra.mxu0 0.0
  %4025 = vmatprep.subr.mxu0 0.0
  %4026 = vmatpush1.msra.mxu0 0.0
  %4027 = vmatprep.subr.mxu0 0.0
  %4028 = vmatpush1.msra.mxu0 0.0
  %4029 = vmatprep.subr.mxu0 0.0
  %4030 = vmatpush1.msra.mxu0 0.0
  %4031 = vmatprep.subr.mxu0 0.0
  %4032 = vmatpush1.msra.mxu0 0.0
  %4033 = vmatprep.subr.mxu0 0.0
  %4034 = vmatpush1.msra.mxu0 0.0
  %4035 = vmatprep.subr.mxu0 0.0
  %4036 = vmatpush1.msra.mxu0 0.0
  %4037 = vmatprep.subr.mxu0 0.0
  %4038 = vmatpush1.msra.mxu0 0.0
  %4039 = vmatprep.subr.mxu0 0.0
  %4040 = vmatpush1.msra.mxu0 0.0
  %4041 = vmatprep.subr.mxu0 0.0
  %4042 = vmatpush1.msra.mxu0 0.0
  %4043 = vmatprep.subr.mxu0 0.0
  %4044 = vmatpush1.msra.mxu0 0.0
  %4045 = vmatprep.subr.mxu0 0.0
  %4046 = vmatpush1.msra.mxu0 0.0
  %4047 = vmatprep.subr.mxu0 0.0
  %4048 = vmatpush1.msra.mxu0 0.0
  %4049 = vmatprep.subr.mxu0 0.0
  %4050 = vmatpush1.msra.mxu0 0.0
  %4051 = vmatprep.subr.mxu0 0.0
  %4052 = vmatpush1.msra.mxu0 0.0
  %4053 = vmatprep.subr.mxu0 0.0
  %4054 = vmatpush1.msra.mxu0 0.0
  %4055 = vmatprep.subr.mxu0 0.0
  %4056 = vmatpush1.msra.mxu0 0.0
  %4057 = vmatprep.subr.mxu0 0.0
  %4058 = vmatpush1.msra.mxu0 0.0
  %4059 = vmatprep.subr.mxu0 0.0
  %4060 = vmatpush1.msra.mxu0 0.0
  %4061 = vmatprep.mubr.f32.mxu0 0.0
  %v4062 = vand.u32 %v3304, 4294901760
  %4063 = vmatmul.mubr.f32.gmra.mrb[0].mxu0 %v4062
  %v4064 = vpop.f32.mrb[0].mxu0
  %v4065 = vadd.f32 %v3897, %v4064
  %v4066 = vpop.f32.mrb[0].mxu0
  %v4067 = vadd.f32 %v3899, %v4066
  %4068 = vmatprep.mubr.f32.mxu0 0.0
  %v4069 = vand.u32 %v3307, 4294901760
  %4070 = vmatmul.mubr.f32.gmra.mrb[0].mxu0 %v4069
  %v4071 = vpop.f32.mrb[0].mxu0
  %v4072 = vadd.f32 %v3906, %v4071
  %v4073 = vpop.f32.mrb[0].mxu0
  %v4074 = vadd.f32 %v3908, %v4073
  %4075 = vmatprep.mubr.f32.mxu0 0.0
  %v4076 = vand.u32 %v3310, 4294901760
  %4077 = vmatmul.mubr.f32.gmra.mrb[0].mxu0 %v4076
  %v4078 = vpop.f32.mrb[0].mxu0
  %v4079 = vadd.f32 %v3915, %v4078
  %v4080 = vpop.f32.mrb[0].mxu0
  %v4081 = vadd.f32 %v3917, %v4080
  %4082 = vmatprep.mubr.f32.mxu0 0.0
  %v4083 = vand.u32 %v3313, 4294901760
  %4084 = vmatmul.mubr.f32.gmra.mrb[0].mxu0 %v4083
  %v4085 = vpop.f32.mrb[0].mxu0
  %v4086 = vadd.f32 %v3924, %v4085
  %v4087 = vpop.f32.mrb[0].mxu0
  %v4088 = vadd.f32 %v3926, %v4087
  %4089 = vmatprep.mubr.f32.mxu0 0.0
  %v4090 = vand.u32 %v3316, 4294901760
  %4091 = vmatmul.mubr.f32.gmra.mrb[0].mxu0 %v4090
  %v4092 = vpop.f32.mrb[0].mxu0
  %v4093 = vadd.f32 %v3933, %v4092
  %v4094 = vpop.f32.mrb[0].mxu0
  %v4095 = vadd.f32 %v3935, %v4094
  %4096 = vmatprep.mubr.f32.mxu0 0.0
  %v4097 = vand.u32 %v3319, 4294901760
  %4098 = vmatmul.mubr.f32.gmra.mrb[0].mxu0 %v4097
  %v4099 = vpop.f32.mrb[0].mxu0
  %v4100 = vadd.f32 %v3942, %v4099
  %v4101 = vpop.f32.mrb[0].mxu0
  %v4102 = vadd.f32 %v3944, %v4101
  %4103 = vmatprep.mubr.f32.mxu0 0.0
  %v4104 = vand.u32 %v3322, 4294901760
  %4105 = vmatmul.mubr.f32.gmra.mrb[0].mxu0 %v4104
  %v4106 = vpop.f32.mrb[0].mxu0
  %v4107 = vadd.f32 %v3951, %v4106
  %v4108 = vpop.f32.mrb[0].mxu0
  %v4109 = vadd.f32 %v3953, %v4108
  %4110 = vdwg.mxu0
  %v4111 = vand.u32 %v3282, 4294901760
  %4112 = vmatprep.subr.mxu0 %v4111
  %v4113 = vand.u32 %v3281, 4294901760
  %4114 = vmatpush1.msra.mxu0 %v4113
  %v4115 = vand.u32 %v3284, 4294901760
  %4116 = vmatprep.subr.mxu0 %v4115
  %v4117 = vand.u32 %v3283, 4294901760
  %4118 = vmatpush1.msra.mxu0 %v4117
  %v4119 = vand.u32 %v3286, 4294901760
  %4120 = vmatprep.subr.mxu0 %v4119
  %v4121 = vand.u32 %v3285, 4294901760
  %4122 = vmatpush1.msra.mxu0 %v4121
  %v4123 = vand.u32 %v3288, 4294901760
  %4124 = vmatprep.subr.mxu0 %v4123
  %v4125 = vand.u32 %v3287, 4294901760
  %4126 = vmatpush1.msra.mxu0 %v4125
  %v4127 = vand.u32 %v3290, 4294901760
  %4128 = vmatprep.subr.mxu0 %v4127
  %v4129 = vand.u32 %v3289, 4294901760
  %4130 = vmatpush1.msra.mxu0 %v4129
  %v4131 = vand.u32 %v3292, 4294901760
  %4132 = vmatprep.subr.mxu0 %v4131
  %v4133 = vand.u32 %v3291, 4294901760
  %4134 = vmatpush1.msra.mxu0 %v4133
  %v4135 = vand.u32 %v3294, 4294901760
  %4136 = vmatprep.subr.mxu0 %v4135
  %v4137 = vand.u32 %v3293, 4294901760
  %4138 = vmatpush1.msra.mxu0 %v4137
  %4139 = vmatprep.subr.mxu0 0.0
  %4140 = vmatpush1.msra.mxu0 0.0
  %4141 = vmatprep.subr.mxu0 0.0
  %4142 = vmatpush1.msra.mxu0 0.0
  %4143 = vmatprep.subr.mxu0 0.0
  %4144 = vmatpush1.msra.mxu0 0.0
  %4145 = vmatprep.subr.mxu0 0.0
  %4146 = vmatpush1.msra.mxu0 0.0
  %4147 = vmatprep.subr.mxu0 0.0
  %4148 = vmatpush1.msra.mxu0 0.0
  %4149 = vmatprep.subr.mxu0 0.0
  %4150 = vmatpush1.msra.mxu0 0.0
  %4151 = vmatprep.subr.mxu0 0.0
  %4152 = vmatpush1.msra.mxu0 0.0
  %4153 = vmatprep.subr.mxu0 0.0
  %4154 = vmatpush1.msra.mxu0 0.0
  %4155 = vmatprep.subr.mxu0 0.0
  %4156 = vmatpush1.msra.mxu0 0.0
  %4157 = vmatprep.subr.mxu0 0.0
  %4158 = vmatpush1.msra.mxu0 0.0
  %4159 = vmatprep.subr.mxu0 0.0
  %4160 = vmatpush1.msra.mxu0 0.0
  %4161 = vmatprep.subr.mxu0 0.0
  %4162 = vmatpush1.msra.mxu0 0.0
  %4163 = vmatprep.subr.mxu0 0.0
  %4164 = vmatpush1.msra.mxu0 0.0
  %4165 = vmatprep.subr.mxu0 0.0
  %4166 = vmatpush1.msra.mxu0 0.0
  %4167 = vmatprep.subr.mxu0 0.0
  %4168 = vmatpush1.msra.mxu0 0.0
  %4169 = vmatprep.subr.mxu0 0.0
  %4170 = vmatpush1.msra.mxu0 0.0
  %4171 = vmatprep.subr.mxu0 0.0
  %4172 = vmatpush1.msra.mxu0 0.0
  %4173 = vmatprep.subr.mxu0 0.0
  %4174 = vmatpush1.msra.mxu0 0.0
  %4175 = vmatprep.subr.mxu0 0.0
  %4176 = vmatpush1.msra.mxu0 0.0
  %4177 = vmatprep.subr.mxu0 0.0
  %4178 = vmatpush1.msra.mxu0 0.0
  %4179 = vmatprep.subr.mxu0 0.0
  %4180 = vmatpush1.msra.mxu0 0.0
  %4181 = vmatprep.subr.mxu0 0.0
  %4182 = vmatpush1.msra.mxu0 0.0
  %4183 = vmatprep.subr.mxu0 0.0
  %4184 = vmatpush1.msra.mxu0 0.0
  %4185 = vmatprep.subr.mxu0 0.0
  %4186 = vmatpush1.msra.mxu0 0.0
  %4187 = vmatprep.subr.mxu0 0.0
  %4188 = vmatpush1.msra.mxu0 0.0
  %4189 = vmatprep.mubr.f32.mxu0 0.0
  %v4190 = vand.u32 %v3304, 4294901760
  %4191 = vmatmul.mubr.f32.gmra.mrb[0].mxu0 %v4190
  %v4192 = vpop.f32.mrb[0].mxu0
  %v4193 = vadd.f32 %v4065, %v4192
  %v4194 = vpop.f32.mrb[0].mxu0
  %v4195 = vadd.f32 %v4067, %v4194
  %4196 = vmatprep.mubr.f32.mxu0 0.0
  %v4197 = vand.u32 %v3307, 4294901760
  %4198 = vmatmul.mubr.f32.gmra.mrb[0].mxu0 %v4197
  %v4199 = vpop.f32.mrb[0].mxu0
  %v4200 = vadd.f32 %v4072, %v4199
  %v4201 = vpop.f32.mrb[0].mxu0
  %v4202 = vadd.f32 %v4074, %v4201
  %4203 = vmatprep.mubr.f32.mxu0 0.0
  %v4204 = vand.u32 %v3310, 4294901760
  %4205 = vmatmul.mubr.f32.gmra.mrb[0].mxu0 %v4204
  %v4206 = vpop.f32.mrb[0].mxu0
  %v4207 = vadd.f32 %v4079, %v4206
  %v4208 = vpop.f32.mrb[0].mxu0
  %v4209 = vadd.f32 %v4081, %v4208
  %4210 = vmatprep.mubr.f32.mxu0 0.0
  %v4211 = vand.u32 %v3313, 4294901760
  %4212 = vmatmul.mubr.f32.gmra.mrb[0].mxu0 %v4211
  %v4213 = vpop.f32.mrb[0].mxu0
  %v4214 = vadd.f32 %v4086, %v4213
  %v4215 = vpop.f32.mrb[0].mxu0
  %v4216 = vadd.f32 %v4088, %v4215
  %4217 = vmatprep.mubr.f32.mxu0 0.0
  %v4218 = vand.u32 %v3316, 4294901760
  %4219 = vmatmul.mubr.f32.gmra.mrb[0].mxu0 %v4218
  %v4220 = vpop.f32.mrb[0].mxu0
  %v4221 = vadd.f32 %v4093, %v4220
  %v4222 = vpop.f32.mrb[0].mxu0
  %v4223 = vadd.f32 %v4095, %v4222
  %4224 = vmatprep.mubr.f32.mxu0 0.0
  %v4225 = vand.u32 %v3319, 4294901760
  %4226 = vmatmul.mubr.f32.gmra.mrb[0].mxu0 %v4225
  %v4227 = vpop.f32.mrb[0].mxu0
  %v4228 = vadd.f32 %v4100, %v4227
  %v4229 = vpop.f32.mrb[0].mxu0
  %v4230 = vadd.f32 %v4102, %v4229
  %4231 = vmatprep.mubr.f32.mxu0 0.0
  %v4232 = vand.u32 %v3322, 4294901760
  %4233 = vmatmul.mubr.f32.gmra.mrb[0].mxu0 %v4232
  %v4234 = vpop.f32.mrb[0].mxu0
  %v4235 = vadd.f32 %v4107, %v4234
  %v4236 = vpop.f32.mrb[0].mxu0
  %v4237 = vadd.f32 %v4109, %v4236
  %4238 = vdwg.mxu0
  %v4239 = vmax.f32 %v4193, 0.0
  %v4240 = vmax.f32 %v4195, 0.0
  %v4241 = vmax.f32 %v4200, 0.0
  %v4242 = vmax.f32 %v4202, 0.0
  %v4243 = vmax.f32 %v4207, 0.0
  %v4244 = vmax.f32 %v4209, 0.0
  %v4245 = vmax.f32 %v4214, 0.0
  %v4246 = vmax.f32 %v4216, 0.0
  %v4247 = vmax.f32 %v4221, 0.0
  %v4248 = vmax.f32 %v4223, 0.0
  %v4249 = vmax.f32 %v4228, 0.0
  %v4250 = vmax.f32 %v4230, 0.0
  %v4251 = vmax.f32 %v4235, 0.0
  %v4252 = vmax.f32 %v4237, 0.0
  %s4253 = scalar_lea.vmem %s3, 168
  %v4254 = vld [vmem:[%s4253] sm:$0xff]
  %v4255 = vld [vmem:[%s4253 + $0x8] sm:$0xff]
  %v4256 = vld [vmem:[%s4253 + $0x10] sm:$0xff]
  %v4257 = vld [vmem:[%s4253 + $0x18] sm:$0xff]
  %v4258 = vld [vmem:[%s4253 + $0x20] sm:$0xff]
  %v4259 = vld [vmem:[%s4253 + $0x28] sm:$0xff]
  %v4260 = vld [vmem:[%s4253 + $0x30] sm:$0xff]
  %v4262 = vsel %vm1386, %v4254, 0
  %v4265 = vsel %vm1386, %v4255, 0
  %v4268 = vsel %vm1386, %v4256, 0
  %v4271 = vsel %vm1386, %v4257, 0
  %v4274 = vsel %vm1386, %v4258, 0
  %v4277 = vsel %vm1386, %v4259, 0
  %v4280 = vsel %vm1386, %v4260, 0
  %v4282 = vand.u32 %v4240, 4294901760
  %4283 = vmatprep.subr.mxu0 %v4282
  %v4284 = vand.u32 %v4239, 4294901760
  %4285 = vmatpush1.msra.mxu0 %v4284
  %v4286 = vand.u32 %v4242, 4294901760
  %4287 = vmatprep.subr.mxu0 %v4286
  %v4288 = vand.u32 %v4241, 4294901760
  %4289 = vmatpush1.msra.mxu0 %v4288
  %v4290 = vand.u32 %v4244, 4294901760
  %4291 = vmatprep.subr.mxu0 %v4290
  %v4292 = vand.u32 %v4243, 4294901760
  %4293 = vmatpush1.msra.mxu0 %v4292
  %v4294 = vand.u32 %v4246, 4294901760
  %4295 = vmatprep.subr.mxu0 %v4294
  %v4296 = vand.u32 %v4245, 4294901760
  %4297 = vmatpush1.msra.mxu0 %v4296
  %v4298 = vand.u32 %v4248, 4294901760
  %4299 = vmatprep.subr.mxu0 %v4298
  %v4300 = vand.u32 %v4247, 4294901760
  %4301 = vmatpush1.msra.mxu0 %v4300
  %v4302 = vand.u32 %v4250, 4294901760
  %4303 = vmatprep.subr.mxu0 %v4302
  %v4304 = vand.u32 %v4249, 4294901760
  %4305 = vmatpush1.msra.mxu0 %v4304
  %v4306 = vand.u32 %v4252, 4294901760
  %4307 = vmatprep.subr.mxu0 %v4306
  %v4308 = vand.u32 %v4251, 4294901760
  %4309 = vmatpush1.msra.mxu0 %v4308
  %4310 = vmatprep.subr.mxu0 0.0
  %4311 = vmatpush1.msra.mxu0 0.0
  %4312 = vmatprep.subr.mxu0 0.0
  %4313 = vmatpush1.msra.mxu0 0.0
  %4314 = vmatprep.subr.mxu0 0.0
  %4315 = vmatpush1.msra.mxu0 0.0
  %4316 = vmatprep.subr.mxu0 0.0
  %4317 = vmatpush1.msra.mxu0 0.0
  %4318 = vmatprep.subr.mxu0 0.0
  %4319 = vmatpush1.msra.mxu0 0.0
  %4320 = vmatprep.subr.mxu0 0.0
  %4321 = vmatpush1.msra.mxu0 0.0
  %4322 = vmatprep.subr.mxu0 0.0
  %4323 = vmatpush1.msra.mxu0 0.0
  %4324 = vmatprep.subr.mxu0 0.0
  %4325 = vmatpush1.msra.mxu0 0.0
  %4326 = vmatprep.subr.mxu0 0.0
  %4327 = vmatpush1.msra.mxu0 0.0
  %4328 = vmatprep.subr.mxu0 0.0
  %4329 = vmatpush1.msra.mxu0 0.0
  %4330 = vmatprep.subr.mxu0 0.0
  %4331 = vmatpush1.msra.mxu0 0.0
  %4332 = vmatprep.subr.mxu0 0.0
  %4333 = vmatpush1.msra.mxu0 0.0
  %4334 = vmatprep.subr.mxu0 0.0
  %4335 = vmatpush1.msra.mxu0 0.0
  %4336 = vmatprep.subr.mxu0 0.0
  %4337 = vmatpush1.msra.mxu0 0.0
  %4338 = vmatprep.subr.mxu0 0.0
  %4339 = vmatpush1.msra.mxu0 0.0
  %4340 = vmatprep.subr.mxu0 0.0
  %4341 = vmatpush1.msra.mxu0 0.0
  %4342 = vmatprep.subr.mxu0 0.0
  %4343 = vmatpush1.msra.mxu0 0.0
  %4344 = vmatprep.subr.mxu0 0.0
  %4345 = vmatpush1.msra.mxu0 0.0
  %4346 = vmatprep.subr.mxu0 0.0
  %4347 = vmatpush1.msra.mxu0 0.0
  %4348 = vmatprep.subr.mxu0 0.0
  %4349 = vmatpush1.msra.mxu0 0.0
  %4350 = vmatprep.subr.mxu0 0.0
  %4351 = vmatpush1.msra.mxu0 0.0
  %4352 = vmatprep.subr.mxu0 0.0
  %4353 = vmatpush1.msra.mxu0 0.0
  %4354 = vmatprep.subr.mxu0 0.0
  %4355 = vmatpush1.msra.mxu0 0.0
  %4356 = vmatprep.subr.mxu0 0.0
  %4357 = vmatpush1.msra.mxu0 0.0
  %4358 = vmatprep.subr.mxu0 0.0
  %4359 = vmatpush1.msra.mxu0 0.0
  %4360 = vmatprep.mubr.f32.mxu0 0.0
  %v4361 = vand.u32 %v4262, 4294901760
  %v4362 = vsub.f32 %v4262, %v4361
  %v4363 = vand.u32 %v4362, 4294901760
  %v4364 = vsub.f32 %v4362, %v4363
  %v4365 = vand.u32 %v4364, 4294901760
  %4366 = vmatmul.mubr.f32.gmra.mrb[0].mxu0 %v4365
  %v4367 = vpop.f32.mrb[0].mxu0
  %v4368 = vadd.f32 0.0, %v4367
  %v4369 = vpop.f32.mrb[0].mxu0
  %v4370 = vadd.f32 0.0, %v4369
  %4371 = vmatprep.mubr.f32.mxu0 0.0
  %v4372 = vand.u32 %v4265, 4294901760
  %v4373 = vsub.f32 %v4265, %v4372
  %v4374 = vand.u32 %v4373, 4294901760
  %v4375 = vsub.f32 %v4373, %v4374
  %v4376 = vand.u32 %v4375, 4294901760
  %4377 = vmatmul.mubr.f32.gmra.mrb[0].mxu0 %v4376
  %v4378 = vpop.f32.mrb[0].mxu0
  %v4379 = vadd.f32 0.0, %v4378
  %v4380 = vpop.f32.mrb[0].mxu0
  %v4381 = vadd.f32 0.0, %v4380
  %4382 = vmatprep.mubr.f32.mxu0 0.0
  %v4383 = vand.u32 %v4268, 4294901760
  %v4384 = vsub.f32 %v4268, %v4383
  %v4385 = vand.u32 %v4384, 4294901760
  %v4386 = vsub.f32 %v4384, %v4385
  %v4387 = vand.u32 %v4386, 4294901760
  %4388 = vmatmul.mubr.f32.gmra.mrb[0].mxu0 %v4387
  %v4389 = vpop.f32.mrb[0].mxu0
  %v4390 = vadd.f32 0.0, %v4389
  %v4391 = vpop.f32.mrb[0].mxu0
  %v4392 = vadd.f32 0.0, %v4391
  %4393 = vmatprep.mubr.f32.mxu0 0.0
  %v4394 = vand.u32 %v4271, 4294901760
  %v4395 = vsub.f32 %v4271, %v4394
  %v4396 = vand.u32 %v4395, 4294901760
  %v4397 = vsub.f32 %v4395, %v4396
  %v4398 = vand.u32 %v4397, 4294901760
  %4399 = vmatmul.mubr.f32.gmra.mrb[0].mxu0 %v4398
  %v4400 = vpop.f32.mrb[0].mxu0
  %v4401 = vadd.f32 0.0, %v4400
  %v4402 = vpop.f32.mrb[0].mxu0
  %v4403 = vadd.f32 0.0, %v4402
  %4404 = vmatprep.mubr.f32.mxu0 0.0
  %v4405 = vand.u32 %v4274, 4294901760
  %v4406 = vsub.f32 %v4274, %v4405
  %v4407 = vand.u32 %v4406, 4294901760
  %v4408 = vsub.f32 %v4406, %v4407
  %v4409 = vand.u32 %v4408, 4294901760
  %4410 = vmatmul.mubr.f32.gmra.mrb[0].mxu0 %v4409
  %v4411 = vpop.f32.mrb[0].mxu0
  %v4412 = vadd.f32 0.0, %v4411
  %v4413 = vpop.f32.mrb[0].mxu0
  %v4414 = vadd.f32 0.0, %v4413
  %4415 = vmatprep.mubr.f32.mxu0 0.0
  %v4416 = vand.u32 %v4277, 4294901760
  %v4417 = vsub.f32 %v4277, %v4416
  %v4418 = vand.u32 %v4417, 4294901760
  %v4419 = vsub.f32 %v4417, %v4418
  %v4420 = vand.u32 %v4419, 4294901760
  %4421 = vmatmul.mubr.f32.gmra.mrb[0].mxu0 %v4420
  %v4422 = vpop.f32.mrb[0].mxu0
  %v4423 = vadd.f32 0.0, %v4422
  %v4424 = vpop.f32.mrb[0].mxu0
  %v4425 = vadd.f32 0.0, %v4424
  %4426 = vmatprep.mubr.f32.mxu0 0.0
  %v4427 = vand.u32 %v4280, 4294901760
  %v4428 = vsub.f32 %v4280, %v4427
  %v4429 = vand.u32 %v4428, 4294901760
  %v4430 = vsub.f32 %v4428, %v4429
  %v4431 = vand.u32 %v4430, 4294901760
  %4432 = vmatmul.mubr.f32.gmra.mrb[0].mxu0 %v4431
  %v4433 = vpop.f32.mrb[0].mxu0
  %v4434 = vadd.f32 0.0, %v4433
  %v4435 = vpop.f32.mrb[0].mxu0
  %v4436 = vadd.f32 0.0, %v4435
  %4437 = vdwg.mxu0
  %v4438 = vand.u32 %v4240, 4294901760
  %v4439 = vsub.f32 %v4240, %v4438
  %v4440 = vand.u32 %v4439, 4294901760
  %v4441 = vsub.f32 %v4439, %v4440
  %v4442 = vand.u32 %v4441, 4294901760
  %4443 = vmatprep.subr.mxu0 %v4442
  %v4444 = vand.u32 %v4239, 4294901760
  %v4445 = vsub.f32 %v4239, %v4444
  %v4446 = vand.u32 %v4445, 4294901760
  %v4447 = vsub.f32 %v4445, %v4446
  %v4448 = vand.u32 %v4447, 4294901760
  %4449 = vmatpush1.msra.mxu0 %v4448
  %v4450 = vand.u32 %v4242, 4294901760
  %v4451 = vsub.f32 %v4242, %v4450
  %v4452 = vand.u32 %v4451, 4294901760
  %v4453 = vsub.f32 %v4451, %v4452
  %v4454 = vand.u32 %v4453, 4294901760
  %4455 = vmatprep.subr.mxu0 %v4454
  %v4456 = vand.u32 %v4241, 4294901760
  %v4457 = vsub.f32 %v4241, %v4456
  %v4458 = vand.u32 %v4457, 4294901760
  %v4459 = vsub.f32 %v4457, %v4458
  %v4460 = vand.u32 %v4459, 4294901760
  %4461 = vmatpush1.msra.mxu0 %v4460
  %v4462 = vand.u32 %v4244, 4294901760
  %v4463 = vsub.f32 %v4244, %v4462
  %v4464 = vand.u32 %v4463, 4294901760
  %v4465 = vsub.f32 %v4463, %v4464
  %v4466 = vand.u32 %v4465, 4294901760
  %4467 = vmatprep.subr.mxu0 %v4466
  %v4468 = vand.u32 %v4243, 4294901760
  %v4469 = vsub.f32 %v4243, %v4468
  %v4470 = vand.u32 %v4469, 4294901760
  %v4471 = vsub.f32 %v4469, %v4470
  %v4472 = vand.u32 %v4471, 4294901760
  %4473 = vmatpush1.msra.mxu0 %v4472
  %v4474 = vand.u32 %v4246, 4294901760
  %v4475 = vsub.f32 %v4246, %v4474
  %v4476 = vand.u32 %v4475, 4294901760
  %v4477 = vsub.f32 %v4475, %v4476
  %v4478 = vand.u32 %v4477, 4294901760
  %4479 = vmatprep.subr.mxu0 %v4478
  %v4480 = vand.u32 %v4245, 4294901760
  %v4481 = vsub.f32 %v4245, %v4480
  %v4482 = vand.u32 %v4481, 4294901760
  %v4483 = vsub.f32 %v4481, %v4482
  %v4484 = vand.u32 %v4483, 4294901760
  %4485 = vmatpush1.msra.mxu0 %v4484
  %v4486 = vand.u32 %v4248, 4294901760
  %v4487 = vsub.f32 %v4248, %v4486
  %v4488 = vand.u32 %v4487, 4294901760
  %v4489 = vsub.f32 %v4487, %v4488
  %v4490 = vand.u32 %v4489, 4294901760
  %4491 = vmatprep.subr.mxu0 %v4490
  %v4492 = vand.u32 %v4247, 4294901760
  %v4493 = vsub.f32 %v4247, %v4492
  %v4494 = vand.u32 %v4493, 4294901760
  %v4495 = vsub.f32 %v4493, %v4494
  %v4496 = vand.u32 %v4495, 4294901760
  %4497 = vmatpush1.msra.mxu0 %v4496
  %v4498 = vand.u32 %v4250, 4294901760
  %v4499 = vsub.f32 %v4250, %v4498
  %v4500 = vand.u32 %v4499, 4294901760
  %v4501 = vsub.f32 %v4499, %v4500
  %v4502 = vand.u32 %v4501, 4294901760
  %4503 = vmatprep.subr.mxu0 %v4502
  %v4504 = vand.u32 %v4249, 4294901760
  %v4505 = vsub.f32 %v4249, %v4504
  %v4506 = vand.u32 %v4505, 4294901760
  %v4507 = vsub.f32 %v4505, %v4506
  %v4508 = vand.u32 %v4507, 4294901760
  %4509 = vmatpush1.msra.mxu0 %v4508
  %v4510 = vand.u32 %v4252, 4294901760
  %v4511 = vsub.f32 %v4252, %v4510
  %v4512 = vand.u32 %v4511, 4294901760
  %v4513 = vsub.f32 %v4511, %v4512
  %v4514 = vand.u32 %v4513, 4294901760
  %4515 = vmatprep.subr.mxu0 %v4514
  %v4516 = vand.u32 %v4251, 4294901760
  %v4517 = vsub.f32 %v4251, %v4516
  %v4518 = vand.u32 %v4517, 4294901760
  %v4519 = vsub.f32 %v4517, %v4518
  %v4520 = vand.u32 %v4519, 4294901760
  %4521 = vmatpush1.msra.mxu0 %v4520
  %4522 = vmatprep.subr.mxu0 0.0
  %4523 = vmatpush1.msra.mxu0 0.0
  %4524 = vmatprep.subr.mxu0 0.0
  %4525 = vmatpush1.msra.mxu0 0.0
  %4526 = vmatprep.subr.mxu0 0.0
  %4527 = vmatpush1.msra.mxu0 0.0
  %4528 = vmatprep.subr.mxu0 0.0
  %4529 = vmatpush1.msra.mxu0 0.0
  %4530 = vmatprep.subr.mxu0 0.0
  %4531 = vmatpush1.msra.mxu0 0.0
  %4532 = vmatprep.subr.mxu0 0.0
  %4533 = vmatpush1.msra.mxu0 0.0
  %4534 = vmatprep.subr.mxu0 0.0
  %4535 = vmatpush1.msra.mxu0 0.0
  %4536 = vmatprep.subr.mxu0 0.0
  %4537 = vmatpush1.msra.mxu0 0.0
  %4538 = vmatprep.subr.mxu0 0.0
  %4539 = vmatpush1.msra.mxu0 0.0
  %4540 = vmatprep.subr.mxu0 0.0
  %4541 = vmatpush1.msra.mxu0 0.0
  %4542 = vmatprep.subr.mxu0 0.0
  %4543 = vmatpush1.msra.mxu0 0.0
  %4544 = vmatprep.subr.mxu0 0.0
  %4545 = vmatpush1.msra.mxu0 0.0
  %4546 = vmatprep.subr.mxu0 0.0
  %4547 = vmatpush1.msra.mxu0 0.0
  %4548 = vmatprep.subr.mxu0 0.0
  %4549 = vmatpush1.msra.mxu0 0.0
  %4550 = vmatprep.subr.mxu0 0.0
  %4551 = vmatpush1.msra.mxu0 0.0
  %4552 = vmatprep.subr.mxu0 0.0
  %4553 = vmatpush1.msra.mxu0 0.0
  %4554 = vmatprep.subr.mxu0 0.0
  %4555 = vmatpush1.msra.mxu0 0.0
  %4556 = vmatprep.subr.mxu0 0.0
  %4557 = vmatpush1.msra.mxu0 0.0
  %4558 = vmatprep.subr.mxu0 0.0
  %4559 = vmatpush1.msra.mxu0 0.0
  %4560 = vmatprep.subr.mxu0 0.0
  %4561 = vmatpush1.msra.mxu0 0.0
  %4562 = vmatprep.subr.mxu0 0.0
  %4563 = vmatpush1.msra.mxu0 0.0
  %4564 = vmatprep.subr.mxu0 0.0
  %4565 = vmatpush1.msra.mxu0 0.0
  %4566 = vmatprep.subr.mxu0 0.0
  %4567 = vmatpush1.msra.mxu0 0.0
  %4568 = vmatprep.subr.mxu0 0.0
  %4569 = vmatpush1.msra.mxu0 0.0
  %4570 = vmatprep.subr.mxu0 0.0
  %4571 = vmatpush1.msra.mxu0 0.0
  %4572 = vmatprep.mubr.f32.mxu0 0.0
  %v4573 = vand.u32 %v4262, 4294901760
  %4574 = vmatmul.mubr.f32.gmra.mrb[0].mxu0 %v4573
  %v4575 = vpop.f32.mrb[0].mxu0
  %v4576 = vadd.f32 %v4368, %v4575
  %v4577 = vpop.f32.mrb[0].mxu0
  %v4578 = vadd.f32 %v4370, %v4577
  %4579 = vmatprep.mubr.f32.mxu0 0.0
  %v4580 = vand.u32 %v4265, 4294901760
  %4581 = vmatmul.mubr.f32.gmra.mrb[0].mxu0 %v4580
  %v4582 = vpop.f32.mrb[0].mxu0
  %v4583 = vadd.f32 %v4379, %v4582
  %v4584 = vpop.f32.mrb[0].mxu0
  %v4585 = vadd.f32 %v4381, %v4584
  %4586 = vmatprep.mubr.f32.mxu0 0.0
  %v4587 = vand.u32 %v4268, 4294901760
  %4588 = vmatmul.mubr.f32.gmra.mrb[0].mxu0 %v4587
  %v4589 = vpop.f32.mrb[0].mxu0
  %v4590 = vadd.f32 %v4390, %v4589
  %v4591 = vpop.f32.mrb[0].mxu0
  %v4592 = vadd.f32 %v4392, %v4591
  %4593 = vmatprep.mubr.f32.mxu0 0.0
  %v4594 = vand.u32 %v4271, 4294901760
  %4595 = vmatmul.mubr.f32.gmra.mrb[0].mxu0 %v4594
  %v4596 = vpop.f32.mrb[0].mxu0
  %v4597 = vadd.f32 %v4401, %v4596
  %v4598 = vpop.f32.mrb[0].mxu0
  %v4599 = vadd.f32 %v4403, %v4598
  %4600 = vmatprep.mubr.f32.mxu0 0.0
  %v4601 = vand.u32 %v4274, 4294901760
  %4602 = vmatmul.mubr.f32.gmra.mrb[0].mxu0 %v4601
  %v4603 = vpop.f32.mrb[0].mxu0
  %v4604 = vadd.f32 %v4412, %v4603
  %v4605 = vpop.f32.mrb[0].mxu0
  %v4606 = vadd.f32 %v4414, %v4605
  %4607 = vmatprep.mubr.f32.mxu0 0.0
  %v4608 = vand.u32 %v4277, 4294901760
  %4609 = vmatmul.mubr.f32.gmra.mrb[0].mxu0 %v4608
  %v4610 = vpop.f32.mrb[0].mxu0
  %v4611 = vadd.f32 %v4423, %v4610
  %v4612 = vpop.f32.mrb[0].mxu0
  %v4613 = vadd.f32 %v4425, %v4612
  %4614 = vmatprep.mubr.f32.mxu0 0.0
  %v4615 = vand.u32 %v4280, 4294901760
  %4616 = vmatmul.mubr.f32.gmra.mrb[0].mxu0 %v4615
  %v4617 = vpop.f32.mrb[0].mxu0
  %v4618 = vadd.f32 %v4434, %v4617
  %v4619 = vpop.f32.mrb[0].mxu0
  %v4620 = vadd.f32 %v4436, %v4619
  %4621 = vdwg.mxu0
  %v4622 = vand.u32 %v4240, 4294901760
  %v4623 = vsub.f32 %v4240, %v4622
  %4624 = vmatprep.subr.mxu0 %v4623
  %v4625 = vand.u32 %v4239, 4294901760
  %v4626 = vsub.f32 %v4239, %v4625
  %4627 = vmatpush1.msra.mxu0 %v4626
  %v4628 = vand.u32 %v4242, 4294901760
  %v4629 = vsub.f32 %v4242, %v4628
  %4630 = vmatprep.subr.mxu0 %v4629
  %v4631 = vand.u32 %v4241, 4294901760
  %v4632 = vsub.f32 %v4241, %v4631
  %4633 = vmatpush1.msra.mxu0 %v4632
  %v4634 = vand.u32 %v4244, 4294901760
  %v4635 = vsub.f32 %v4244, %v4634
  %4636 = vmatprep.subr.mxu0 %v4635
  %v4637 = vand.u32 %v4243, 4294901760
  %v4638 = vsub.f32 %v4243, %v4637
  %4639 = vmatpush1.msra.mxu0 %v4638
  %v4640 = vand.u32 %v4246, 4294901760
  %v4641 = vsub.f32 %v4246, %v4640
  %4642 = vmatprep.subr.mxu0 %v4641
  %v4643 = vand.u32 %v4245, 4294901760
  %v4644 = vsub.f32 %v4245, %v4643
  %4645 = vmatpush1.msra.mxu0 %v4644
  %v4646 = vand.u32 %v4248, 4294901760
  %v4647 = vsub.f32 %v4248, %v4646
  %4648 = vmatprep.subr.mxu0 %v4647
  %v4649 = vand.u32 %v4247, 4294901760
  %v4650 = vsub.f32 %v4247, %v4649
  %4651 = vmatpush1.msra.mxu0 %v4650
  %v4652 = vand.u32 %v4250, 4294901760
  %v4653 = vsub.f32 %v4250, %v4652
  %4654 = vmatprep.subr.mxu0 %v4653
  %v4655 = vand.u32 %v4249, 4294901760
  %v4656 = vsub.f32 %v4249, %v4655
  %4657 = vmatpush1.msra.mxu0 %v4656
  %v4658 = vand.u32 %v4252, 4294901760
  %v4659 = vsub.f32 %v4252, %v4658
  %4660 = vmatprep.subr.mxu0 %v4659
  %v4661 = vand.u32 %v4251, 4294901760
  %v4662 = vsub.f32 %v4251, %v4661
  %4663 = vmatpush1.msra.mxu0 %v4662
  %4664 = vmatprep.subr.mxu0 0.0
  %4665 = vmatpush1.msra.mxu0 0.0
  %4666 = vmatprep.subr.mxu0 0.0
  %4667 = vmatpush1.msra.mxu0 0.0
  %4668 = vmatprep.subr.mxu0 0.0
  %4669 = vmatpush1.msra.mxu0 0.0
  %4670 = vmatprep.subr.mxu0 0.0
  %4671 = vmatpush1.msra.mxu0 0.0
  %4672 = vmatprep.subr.mxu0 0.0
  %4673 = vmatpush1.msra.mxu0 0.0
  %4674 = vmatprep.subr.mxu0 0.0
  %4675 = vmatpush1.msra.mxu0 0.0
  %4676 = vmatprep.subr.mxu0 0.0
  %4677 = vmatpush1.msra.mxu0 0.0
  %4678 = vmatprep.subr.mxu0 0.0
  %4679 = vmatpush1.msra.mxu0 0.0
  %4680 = vmatprep.subr.mxu0 0.0
  %4681 = vmatpush1.msra.mxu0 0.0
  %4682 = vmatprep.subr.mxu0 0.0
  %4683 = vmatpush1.msra.mxu0 0.0
  %4684 = vmatprep.subr.mxu0 0.0
  %4685 = vmatpush1.msra.mxu0 0.0
  %4686 = vmatprep.subr.mxu0 0.0
  %4687 = vmatpush1.msra.mxu0 0.0
  %4688 = vmatprep.subr.mxu0 0.0
  %4689 = vmatpush1.msra.mxu0 0.0
  %4690 = vmatprep.subr.mxu0 0.0
  %4691 = vmatpush1.msra.mxu0 0.0
  %4692 = vmatprep.subr.mxu0 0.0
  %4693 = vmatpush1.msra.mxu0 0.0
  %4694 = vmatprep.subr.mxu0 0.0
  %4695 = vmatpush1.msra.mxu0 0.0
  %4696 = vmatprep.subr.mxu0 0.0
  %4697 = vmatpush1.msra.mxu0 0.0
  %4698 = vmatprep.subr.mxu0 0.0
  %4699 = vmatpush1.msra.mxu0 0.0
  %4700 = vmatprep.subr.mxu0 0.0
  %4701 = vmatpush1.msra.mxu0 0.0
  %4702 = vmatprep.subr.mxu0 0.0
  %4703 = vmatpush1.msra.mxu0 0.0
  %4704 = vmatprep.subr.mxu0 0.0
  %4705 = vmatpush1.msra.mxu0 0.0
  %4706 = vmatprep.subr.mxu0 0.0
  %4707 = vmatpush1.msra.mxu0 0.0
  %4708 = vmatprep.subr.mxu0 0.0
  %4709 = vmatpush1.msra.mxu0 0.0
  %4710 = vmatprep.subr.mxu0 0.0
  %4711 = vmatpush1.msra.mxu0 0.0
  %4712 = vmatprep.subr.mxu0 0.0
  %4713 = vmatpush1.msra.mxu0 0.0
  %4714 = vmatprep.mubr.f32.mxu0 0.0
  %v4715 = vand.u32 %v4262, 4294901760
  %v4716 = vsub.f32 %v4262, %v4715
  %4717 = vmatmul.mubr.f32.gmra.mrb[0].mxu0 %v4716
  %v4718 = vpop.f32.mrb[0].mxu0
  %v4719 = vadd.f32 %v4576, %v4718
  %v4720 = vpop.f32.mrb[0].mxu0
  %v4721 = vadd.f32 %v4578, %v4720
  %4722 = vmatprep.mubr.f32.mxu0 0.0
  %v4723 = vand.u32 %v4265, 4294901760
  %v4724 = vsub.f32 %v4265, %v4723
  %4725 = vmatmul.mubr.f32.gmra.mrb[0].mxu0 %v4724
  %v4726 = vpop.f32.mrb[0].mxu0
  %v4727 = vadd.f32 %v4583, %v4726
  %v4728 = vpop.f32.mrb[0].mxu0
  %v4729 = vadd.f32 %v4585, %v4728
  %4730 = vmatprep.mubr.f32.mxu0 0.0
  %v4731 = vand.u32 %v4268, 4294901760
  %v4732 = vsub.f32 %v4268, %v4731
  %4733 = vmatmul.mubr.f32.gmra.mrb[0].mxu0 %v4732
  %v4734 = vpop.f32.mrb[0].mxu0
  %v4735 = vadd.f32 %v4590, %v4734
  %v4736 = vpop.f32.mrb[0].mxu0
  %v4737 = vadd.f32 %v4592, %v4736
  %4738 = vmatprep.mubr.f32.mxu0 0.0
  %v4739 = vand.u32 %v4271, 4294901760
  %v4740 = vsub.f32 %v4271, %v4739
  %4741 = vmatmul.mubr.f32.gmra.mrb[0].mxu0 %v4740
  %v4742 = vpop.f32.mrb[0].mxu0
  %v4743 = vadd.f32 %v4597, %v4742
  %v4744 = vpop.f32.mrb[0].mxu0
  %v4745 = vadd.f32 %v4599, %v4744
  %4746 = vmatprep.mubr.f32.mxu0 0.0
  %v4747 = vand.u32 %v4274, 4294901760
  %v4748 = vsub.f32 %v4274, %v4747
  %4749 = vmatmul.mubr.f32.gmra.mrb[0].mxu0 %v4748
  %v4750 = vpop.f32.mrb[0].mxu0
  %v4751 = vadd.f32 %v4604, %v4750
  %v4752 = vpop.f32.mrb[0].mxu0
  %v4753 = vadd.f32 %v4606, %v4752
  %4754 = vmatprep.mubr.f32.mxu0 0.0
  %v4755 = vand.u32 %v4277, 4294901760
  %v4756 = vsub.f32 %v4277, %v4755
  %4757 = vmatmul.mubr.f32.gmra.mrb[0].mxu0 %v4756
  %v4758 = vpop.f32.mrb[0].mxu0
  %v4759 = vadd.f32 %v4611, %v4758
  %v4760 = vpop.f32.mrb[0].mxu0
  %v4761 = vadd.f32 %v4613, %v4760
  %4762 = vmatprep.mubr.f32.mxu0 0.0
  %v4763 = vand.u32 %v4280, 4294901760
  %v4764 = vsub.f32 %v4280, %v4763
  %4765 = vmatmul.mubr.f32.gmra.mrb[0].mxu0 %v4764
  %v4766 = vpop.f32.mrb[0].mxu0
  %v4767 = vadd.f32 %v4618, %v4766
  %v4768 = vpop.f32.mrb[0].mxu0
  %v4769 = vadd.f32 %v4620, %v4768
  %4770 = vdwg.mxu0
  %v4771 = vand.u32 %v4240, 4294901760
  %4772 = vmatprep.subr.mxu0 %v4771
  %v4773 = vand.u32 %v4239, 4294901760
  %4774 = vmatpush1.msra.mxu0 %v4773
  %v4775 = vand.u32 %v4242, 4294901760
  %4776 = vmatprep.subr.mxu0 %v4775
  %v4777 = vand.u32 %v4241, 4294901760
  %4778 = vmatpush1.msra.mxu0 %v4777
  %v4779 = vand.u32 %v4244, 4294901760
  %4780 = vmatprep.subr.mxu0 %v4779
  %v4781 = vand.u32 %v4243, 4294901760
  %4782 = vmatpush1.msra.mxu0 %v4781
  %v4783 = vand.u32 %v4246, 4294901760
  %4784 = vmatprep.subr.mxu0 %v4783
  %v4785 = vand.u32 %v4245, 4294901760
  %4786 = vmatpush1.msra.mxu0 %v4785
  %v4787 = vand.u32 %v4248, 4294901760
  %4788 = vmatprep.subr.mxu0 %v4787
  %v4789 = vand.u32 %v4247, 4294901760
  %4790 = vmatpush1.msra.mxu0 %v4789
  %v4791 = vand.u32 %v4250, 4294901760
  %4792 = vmatprep.subr.mxu0 %v4791
  %v4793 = vand.u32 %v4249, 4294901760
  %4794 = vmatpush1.msra.mxu0 %v4793
  %v4795 = vand.u32 %v4252, 4294901760
  %4796 = vmatprep.subr.mxu0 %v4795
  %v4797 = vand.u32 %v4251, 4294901760
  %4798 = vmatpush1.msra.mxu0 %v4797
  %4799 = vmatprep.subr.mxu0 0.0
  %4800 = vmatpush1.msra.mxu0 0.0
  %4801 = vmatprep.subr.mxu0 0.0
  %4802 = vmatpush1.msra.mxu0 0.0
  %4803 = vmatprep.subr.mxu0 0.0
  %4804 = vmatpush1.msra.mxu0 0.0
  %4805 = vmatprep.subr.mxu0 0.0
  %4806 = vmatpush1.msra.mxu0 0.0
  %4807 = vmatprep.subr.mxu0 0.0
  %4808 = vmatpush1.msra.mxu0 0.0
  %4809 = vmatprep.subr.mxu0 0.0
  %4810 = vmatpush1.msra.mxu0 0.0
  %4811 = vmatprep.subr.mxu0 0.0
  %4812 = vmatpush1.msra.mxu0 0.0
  %4813 = vmatprep.subr.mxu0 0.0
  %4814 = vmatpush1.msra.mxu0 0.0
  %4815 = vmatprep.subr.mxu0 0.0
  %4816 = vmatpush1.msra.mxu0 0.0
  %4817 = vmatprep.subr.mxu0 0.0
  %4818 = vmatpush1.msra.mxu0 0.0
  %4819 = vmatprep.subr.mxu0 0.0
  %4820 = vmatpush1.msra.mxu0 0.0
  %4821 = vmatprep.subr.mxu0 0.0
  %4822 = vmatpush1.msra.mxu0 0.0
  %4823 = vmatprep.subr.mxu0 0.0
  %4824 = vmatpush1.msra.mxu0 0.0
  %4825 = vmatprep.subr.mxu0 0.0
  %4826 = vmatpush1.msra.mxu0 0.0
  %4827 = vmatprep.subr.mxu0 0.0
  %4828 = vmatpush1.msra.mxu0 0.0
  %4829 = vmatprep.subr.mxu0 0.0
  %4830 = vmatpush1.msra.mxu0 0.0
  %4831 = vmatprep.subr.mxu0 0.0
  %4832 = vmatpush1.msra.mxu0 0.0
  %4833 = vmatprep.subr.mxu0 0.0
  %4834 = vmatpush1.msra.mxu0 0.0
  %4835 = vmatprep.subr.mxu0 0.0
  %4836 = vmatpush1.msra.mxu0 0.0
  %4837 = vmatprep.subr.mxu0 0.0
  %4838 = vmatpush1.msra.mxu0 0.0
  %4839 = vmatprep.subr.mxu0 0.0
  %4840 = vmatpush1.msra.mxu0 0.0
  %4841 = vmatprep.subr.mxu0 0.0
  %4842 = vmatpush1.msra.mxu0 0.0
  %4843 = vmatprep.subr.mxu0 0.0
  %4844 = vmatpush1.msra.mxu0 0.0
  %4845 = vmatprep.subr.mxu0 0.0
  %4846 = vmatpush1.msra.mxu0 0.0
  %4847 = vmatprep.subr.mxu0 0.0
  %4848 = vmatpush1.msra.mxu0 0.0
  %4849 = vmatprep.mubr.f32.mxu0 0.0
  %v4850 = vand.u32 %v4262, 4294901760
  %v4851 = vsub.f32 %v4262, %v4850
  %v4852 = vand.u32 %v4851, 4294901760
  %4853 = vmatmul.mubr.f32.gmra.mrb[0].mxu0 %v4852
  %v4854 = vpop.f32.mrb[0].mxu0
  %v4855 = vadd.f32 %v4719, %v4854
  %v4856 = vpop.f32.mrb[0].mxu0
  %v4857 = vadd.f32 %v4721, %v4856
  %4858 = vmatprep.mubr.f32.mxu0 0.0
  %v4859 = vand.u32 %v4265, 4294901760
  %v4860 = vsub.f32 %v4265, %v4859
  %v4861 = vand.u32 %v4860, 4294901760
  %4862 = vmatmul.mubr.f32.gmra.mrb[0].mxu0 %v4861
  %v4863 = vpop.f32.mrb[0].mxu0
  %v4864 = vadd.f32 %v4727, %v4863
  %v4865 = vpop.f32.mrb[0].mxu0
  %v4866 = vadd.f32 %v4729, %v4865
  %4867 = vmatprep.mubr.f32.mxu0 0.0
  %v4868 = vand.u32 %v4268, 4294901760
  %v4869 = vsub.f32 %v4268, %v4868
  %v4870 = vand.u32 %v4869, 4294901760
  %4871 = vmatmul.mubr.f32.gmra.mrb[0].mxu0 %v4870
  %v4872 = vpop.f32.mrb[0].mxu0
  %v4873 = vadd.f32 %v4735, %v4872
  %v4874 = vpop.f32.mrb[0].mxu0
  %v4875 = vadd.f32 %v4737, %v4874
  %4876 = vmatprep.mubr.f32.mxu0 0.0
  %v4877 = vand.u32 %v4271, 4294901760
  %v4878 = vsub.f32 %v4271, %v4877
  %v4879 = vand.u32 %v4878, 4294901760
  %4880 = vmatmul.mubr.f32.gmra.mrb[0].mxu0 %v4879
  %v4881 = vpop.f32.mrb[0].mxu0
  %v4882 = vadd.f32 %v4743, %v4881
  %v4883 = vpop.f32.mrb[0].mxu0
  %v4884 = vadd.f32 %v4745, %v4883
  %4885 = vmatprep.mubr.f32.mxu0 0.0
  %v4886 = vand.u32 %v4274, 4294901760
  %v4887 = vsub.f32 %v4274, %v4886
  %v4888 = vand.u32 %v4887, 4294901760
  %4889 = vmatmul.mubr.f32.gmra.mrb[0].mxu0 %v4888
  %v4890 = vpop.f32.mrb[0].mxu0
  %v4891 = vadd.f32 %v4751, %v4890
  %v4892 = vpop.f32.mrb[0].mxu0
  %v4893 = vadd.f32 %v4753, %v4892
  %4894 = vmatprep.mubr.f32.mxu0 0.0
  %v4895 = vand.u32 %v4277, 4294901760
  %v4896 = vsub.f32 %v4277, %v4895
  %v4897 = vand.u32 %v4896, 4294901760
  %4898 = vmatmul.mubr.f32.gmra.mrb[0].mxu0 %v4897
  %v4899 = vpop.f32.mrb[0].mxu0
  %v4900 = vadd.f32 %v4759, %v4899
  %v4901 = vpop.f32.mrb[0].mxu0
  %v4902 = vadd.f32 %v4761, %v4901
  %4903 = vmatprep.mubr.f32.mxu0 0.0
  %v4904 = vand.u32 %v4280, 4294901760
  %v4905 = vsub.f32 %v4280, %v4904
  %v4906 = vand.u32 %v4905, 4294901760
  %4907 = vmatmul.mubr.f32.gmra.mrb[0].mxu0 %v4906
  %v4908 = vpop.f32.mrb[0].mxu0
  %v4909 = vadd.f32 %v4767, %v4908
  %v4910 = vpop.f32.mrb[0].mxu0
  %v4911 = vadd.f32 %v4769, %v4910
  %4912 = vdwg.mxu0
  %v4913 = vand.u32 %v4240, 4294901760
  %v4914 = vsub.f32 %v4240, %v4913
  %v4915 = vand.u32 %v4914, 4294901760
  %4916 = vmatprep.subr.mxu0 %v4915
  %v4917 = vand.u32 %v4239, 4294901760
  %v4918 = vsub.f32 %v4239, %v4917
  %v4919 = vand.u32 %v4918, 4294901760
  %4920 = vmatpush1.msra.mxu0 %v4919
  %v4921 = vand.u32 %v4242, 4294901760
  %v4922 = vsub.f32 %v4242, %v4921
  %v4923 = vand.u32 %v4922, 4294901760
  %4924 = vmatprep.subr.mxu0 %v4923
  %v4925 = vand.u32 %v4241, 4294901760
  %v4926 = vsub.f32 %v4241, %v4925
  %v4927 = vand.u32 %v4926, 4294901760
  %4928 = vmatpush1.msra.mxu0 %v4927
  %v4929 = vand.u32 %v4244, 4294901760
  %v4930 = vsub.f32 %v4244, %v4929
  %v4931 = vand.u32 %v4930, 4294901760
  %4932 = vmatprep.subr.mxu0 %v4931
  %v4933 = vand.u32 %v4243, 4294901760
  %v4934 = vsub.f32 %v4243, %v4933
  %v4935 = vand.u32 %v4934, 4294901760
  %4936 = vmatpush1.msra.mxu0 %v4935
  %v4937 = vand.u32 %v4246, 4294901760
  %v4938 = vsub.f32 %v4246, %v4937
  %v4939 = vand.u32 %v4938, 4294901760
  %4940 = vmatprep.subr.mxu0 %v4939
  %v4941 = vand.u32 %v4245, 4294901760
  %v4942 = vsub.f32 %v4245, %v4941
  %v4943 = vand.u32 %v4942, 4294901760
  %4944 = vmatpush1.msra.mxu0 %v4943
  %v4945 = vand.u32 %v4248, 4294901760
  %v4946 = vsub.f32 %v4248, %v4945
  %v4947 = vand.u32 %v4946, 4294901760
  %4948 = vmatprep.subr.mxu0 %v4947
  %v4949 = vand.u32 %v4247, 4294901760
  %v4950 = vsub.f32 %v4247, %v4949
  %v4951 = vand.u32 %v4950, 4294901760
  %4952 = vmatpush1.msra.mxu0 %v4951
  %v4953 = vand.u32 %v4250, 4294901760
  %v4954 = vsub.f32 %v4250, %v4953
  %v4955 = vand.u32 %v4954, 4294901760
  %4956 = vmatprep.subr.mxu0 %v4955
  %v4957 = vand.u32 %v4249, 4294901760
  %v4958 = vsub.f32 %v4249, %v4957
  %v4959 = vand.u32 %v4958, 4294901760
  %4960 = vmatpush1.msra.mxu0 %v4959
  %v4961 = vand.u32 %v4252, 4294901760
  %v4962 = vsub.f32 %v4252, %v4961
  %v4963 = vand.u32 %v4962, 4294901760
  %4964 = vmatprep.subr.mxu0 %v4963
  %v4965 = vand.u32 %v4251, 4294901760
  %v4966 = vsub.f32 %v4251, %v4965
  %v4967 = vand.u32 %v4966, 4294901760
  %4968 = vmatpush1.msra.mxu0 %v4967
  %4969 = vmatprep.subr.mxu0 0.0
  %4970 = vmatpush1.msra.mxu0 0.0
  %4971 = vmatprep.subr.mxu0 0.0
  %4972 = vmatpush1.msra.mxu0 0.0
  %4973 = vmatprep.subr.mxu0 0.0
  %4974 = vmatpush1.msra.mxu0 0.0
  %4975 = vmatprep.subr.mxu0 0.0
  %4976 = vmatpush1.msra.mxu0 0.0
  %4977 = vmatprep.subr.mxu0 0.0
  %4978 = vmatpush1.msra.mxu0 0.0
  %4979 = vmatprep.subr.mxu0 0.0
  %4980 = vmatpush1.msra.mxu0 0.0
  %4981 = vmatprep.subr.mxu0 0.0
  %4982 = vmatpush1.msra.mxu0 0.0
  %4983 = vmatprep.subr.mxu0 0.0
  %4984 = vmatpush1.msra.mxu0 0.0
  %4985 = vmatprep.subr.mxu0 0.0
  %4986 = vmatpush1.msra.mxu0 0.0
  %4987 = vmatprep.subr.mxu0 0.0
  %4988 = vmatpush1.msra.mxu0 0.0
  %4989 = vmatprep.subr.mxu0 0.0
  %4990 = vmatpush1.msra.mxu0 0.0
  %4991 = vmatprep.subr.mxu0 0.0
  %4992 = vmatpush1.msra.mxu0 0.0
  %4993 = vmatprep.subr.mxu0 0.0
  %4994 = vmatpush1.msra.mxu0 0.0
  %4995 = vmatprep.subr.mxu0 0.0
  %4996 = vmatpush1.msra.mxu0 0.0
  %4997 = vmatprep.subr.mxu0 0.0
  %4998 = vmatpush1.msra.mxu0 0.0
  %4999 = vmatprep.subr.mxu0 0.0
  %5000 = vmatpush1.msra.mxu0 0.0
  %5001 = vmatprep.subr.mxu0 0.0
  %5002 = vmatpush1.msra.mxu0 0.0
  %5003 = vmatprep.subr.mxu0 0.0
  %5004 = vmatpush1.msra.mxu0 0.0
  %5005 = vmatprep.subr.mxu0 0.0
  %5006 = vmatpush1.msra.mxu0 0.0
  %5007 = vmatprep.subr.mxu0 0.0
  %5008 = vmatpush1.msra.mxu0 0.0
  %5009 = vmatprep.subr.mxu0 0.0
  %5010 = vmatpush1.msra.mxu0 0.0
  %5011 = vmatprep.subr.mxu0 0.0
  %5012 = vmatpush1.msra.mxu0 0.0
  %5013 = vmatprep.subr.mxu0 0.0
  %5014 = vmatpush1.msra.mxu0 0.0
  %5015 = vmatprep.subr.mxu0 0.0
  %5016 = vmatpush1.msra.mxu0 0.0
  %5017 = vmatprep.subr.mxu0 0.0
  %5018 = vmatpush1.msra.mxu0 0.0
  %5019 = vmatprep.mubr.f32.mxu0 0.0
  %v5020 = vand.u32 %v4262, 4294901760
  %5021 = vmatmul.mubr.f32.gmra.mrb[0].mxu0 %v5020
  %v5022 = vpop.f32.mrb[0].mxu0
  %v5023 = vadd.f32 %v4855, %v5022
  %v5024 = vpop.f32.mrb[0].mxu0
  %v5025 = vadd.f32 %v4857, %v5024
  %5026 = vmatprep.mubr.f32.mxu0 0.0
  %v5027 = vand.u32 %v4265, 4294901760
  %5028 = vmatmul.mubr.f32.gmra.mrb[0].mxu0 %v5027
  %v5029 = vpop.f32.mrb[0].mxu0
  %v5030 = vadd.f32 %v4864, %v5029
  %v5031 = vpop.f32.mrb[0].mxu0
  %v5032 = vadd.f32 %v4866, %v5031
  %5033 = vmatprep.mubr.f32.mxu0 0.0
  %v5034 = vand.u32 %v4268, 4294901760
  %5035 = vmatmul.mubr.f32.gmra.mrb[0].mxu0 %v5034
  %v5036 = vpop.f32.mrb[0].mxu0
  %v5037 = vadd.f32 %v4873, %v5036
  %v5038 = vpop.f32.mrb[0].mxu0
  %v5039 = vadd.f32 %v4875, %v5038
  %5040 = vmatprep.mubr.f32.mxu0 0.0
  %v5041 = vand.u32 %v4271, 4294901760
  %5042 = vmatmul.mubr.f32.gmra.mrb[0].mxu0 %v5041
  %v5043 = vpop.f32.mrb[0].mxu0
  %v5044 = vadd.f32 %v4882, %v5043
  %v5045 = vpop.f32.mrb[0].mxu0
  %v5046 = vadd.f32 %v4884, %v5045
  %5047 = vmatprep.mubr.f32.mxu0 0.0
  %v5048 = vand.u32 %v4274, 4294901760
  %5049 = vmatmul.mubr.f32.gmra.mrb[0].mxu0 %v5048
  %v5050 = vpop.f32.mrb[0].mxu0
  %v5051 = vadd.f32 %v4891, %v5050
  %v5052 = vpop.f32.mrb[0].mxu0
  %v5053 = vadd.f32 %v4893, %v5052
  %5054 = vmatprep.mubr.f32.mxu0 0.0
  %v5055 = vand.u32 %v4277, 4294901760
  %5056 = vmatmul.mubr.f32.gmra.mrb[0].mxu0 %v5055
  %v5057 = vpop.f32.mrb[0].mxu0
  %v5058 = vadd.f32 %v4900, %v5057
  %v5059 = vpop.f32.mrb[0].mxu0
  %v5060 = vadd.f32 %v4902, %v5059
  %5061 = vmatprep.mubr.f32.mxu0 0.0
  %v5062 = vand.u32 %v4280, 4294901760
  %5063 = vmatmul.mubr.f32.gmra.mrb[0].mxu0 %v5062
  %v5064 = vpop.f32.mrb[0].mxu0
  %v5065 = vadd.f32 %v4909, %v5064
  %v5066 = vpop.f32.mrb[0].mxu0
  %v5067 = vadd.f32 %v4911, %v5066
  %5068 = vdwg.mxu0
  %v5069 = vand.u32 %v4240, 4294901760
  %5070 = vmatprep.subr.mxu0 %v5069
  %v5071 = vand.u32 %v4239, 4294901760
  %5072 = vmatpush1.msra.mxu0 %v5071
  %v5073 = vand.u32 %v4242, 4294901760
  %5074 = vmatprep.subr.mxu0 %v5073
  %v5075 = vand.u32 %v4241, 4294901760
  %5076 = vmatpush1.msra.mxu0 %v5075
  %v5077 = vand.u32 %v4244, 4294901760
  %5078 = vmatprep.subr.mxu0 %v5077
  %v5079 = vand.u32 %v4243, 4294901760
  %5080 = vmatpush1.msra.mxu0 %v5079
  %v5081 = vand.u32 %v4246, 4294901760
  %5082 = vmatprep.subr.mxu0 %v5081
  %v5083 = vand.u32 %v4245, 4294901760
  %5084 = vmatpush1.msra.mxu0 %v5083
  %v5085 = vand.u32 %v4248, 4294901760
  %5086 = vmatprep.subr.mxu0 %v5085
  %v5087 = vand.u32 %v4247, 4294901760
  %5088 = vmatpush1.msra.mxu0 %v5087
  %v5089 = vand.u32 %v4250, 4294901760
  %5090 = vmatprep.subr.mxu0 %v5089
  %v5091 = vand.u32 %v4249, 4294901760
  %5092 = vmatpush1.msra.mxu0 %v5091
  %v5093 = vand.u32 %v4252, 4294901760
  %5094 = vmatprep.subr.mxu0 %v5093
  %v5095 = vand.u32 %v4251, 4294901760
  %5096 = vmatpush1.msra.mxu0 %v5095
  %5097 = vmatprep.subr.mxu0 0.0
  %5098 = vmatpush1.msra.mxu0 0.0
  %5099 = vmatprep.subr.mxu0 0.0
  %5100 = vmatpush1.msra.mxu0 0.0
  %5101 = vmatprep.subr.mxu0 0.0
  %5102 = vmatpush1.msra.mxu0 0.0
  %5103 = vmatprep.subr.mxu0 0.0
  %5104 = vmatpush1.msra.mxu0 0.0
  %5105 = vmatprep.subr.mxu0 0.0
  %5106 = vmatpush1.msra.mxu0 0.0
  %5107 = vmatprep.subr.mxu0 0.0
  %5108 = vmatpush1.msra.mxu0 0.0
  %5109 = vmatprep.subr.mxu0 0.0
  %5110 = vmatpush1.msra.mxu0 0.0
  %5111 = vmatprep.subr.mxu0 0.0
  %5112 = vmatpush1.msra.mxu0 0.0
  %5113 = vmatprep.subr.mxu0 0.0
  %5114 = vmatpush1.msra.mxu0 0.0
  %5115 = vmatprep.subr.mxu0 0.0
  %5116 = vmatpush1.msra.mxu0 0.0
  %5117 = vmatprep.subr.mxu0 0.0
  %5118 = vmatpush1.msra.mxu0 0.0
  %5119 = vmatprep.subr.mxu0 0.0
  %5120 = vmatpush1.msra.mxu0 0.0
  %5121 = vmatprep.subr.mxu0 0.0
  %5122 = vmatpush1.msra.mxu0 0.0
  %5123 = vmatprep.subr.mxu0 0.0
  %5124 = vmatpush1.msra.mxu0 0.0
  %5125 = vmatprep.subr.mxu0 0.0
  %5126 = vmatpush1.msra.mxu0 0.0
  %5127 = vmatprep.subr.mxu0 0.0
  %5128 = vmatpush1.msra.mxu0 0.0
  %5129 = vmatprep.subr.mxu0 0.0
  %5130 = vmatpush1.msra.mxu0 0.0
  %5131 = vmatprep.subr.mxu0 0.0
  %5132 = vmatpush1.msra.mxu0 0.0
  %5133 = vmatprep.subr.mxu0 0.0
  %5134 = vmatpush1.msra.mxu0 0.0
  %5135 = vmatprep.subr.mxu0 0.0
  %5136 = vmatpush1.msra.mxu0 0.0
  %5137 = vmatprep.subr.mxu0 0.0
  %5138 = vmatpush1.msra.mxu0 0.0
  %5139 = vmatprep.subr.mxu0 0.0
  %5140 = vmatpush1.msra.mxu0 0.0
  %5141 = vmatprep.subr.mxu0 0.0
  %5142 = vmatpush1.msra.mxu0 0.0
  %5143 = vmatprep.subr.mxu0 0.0
  %5144 = vmatpush1.msra.mxu0 0.0
  %5145 = vmatprep.subr.mxu0 0.0
  %5146 = vmatpush1.msra.mxu0 0.0
  %5147 = vmatprep.mubr.f32.mxu0 0.0
  %v5148 = vand.u32 %v4262, 4294901760
  %5149 = vmatmul.mubr.f32.gmra.mrb[0].mxu0 %v5148
  %v5150 = vpop.f32.mrb[0].mxu0
  %v5151 = vadd.f32 %v5023, %v5150
  %v5152 = vpop.f32.mrb[0].mxu0
  %v5153 = vadd.f32 %v5025, %v5152
  %5154 = vmatprep.mubr.f32.mxu0 0.0
  %v5155 = vand.u32 %v4265, 4294901760
  %5156 = vmatmul.mubr.f32.gmra.mrb[0].mxu0 %v5155
  %v5157 = vpop.f32.mrb[0].mxu0
  %v5158 = vadd.f32 %v5030, %v5157
  %v5159 = vpop.f32.mrb[0].mxu0
  %v5160 = vadd.f32 %v5032, %v5159
  %5161 = vmatprep.mubr.f32.mxu0 0.0
  %v5162 = vand.u32 %v4268, 4294901760
  %5163 = vmatmul.mubr.f32.gmra.mrb[0].mxu0 %v5162
  %v5164 = vpop.f32.mrb[0].mxu0
  %v5165 = vadd.f32 %v5037, %v5164
  %v5166 = vpop.f32.mrb[0].mxu0
  %v5167 = vadd.f32 %v5039, %v5166
  %5168 = vmatprep.mubr.f32.mxu0 0.0
  %v5169 = vand.u32 %v4271, 4294901760
  %5170 = vmatmul.mubr.f32.gmra.mrb[0].mxu0 %v5169
  %v5171 = vpop.f32.mrb[0].mxu0
  %v5172 = vadd.f32 %v5044, %v5171
  %v5173 = vpop.f32.mrb[0].mxu0
  %v5174 = vadd.f32 %v5046, %v5173
  %5175 = vmatprep.mubr.f32.mxu0 0.0
  %v5176 = vand.u32 %v4274, 4294901760
  %5177 = vmatmul.mubr.f32.gmra.mrb[0].mxu0 %v5176
  %v5178 = vpop.f32.mrb[0].mxu0
  %v5179 = vadd.f32 %v5051, %v5178
  %v5180 = vpop.f32.mrb[0].mxu0
  %v5181 = vadd.f32 %v5053, %v5180
  %5182 = vmatprep.mubr.f32.mxu0 0.0
  %v5183 = vand.u32 %v4277, 4294901760
  %5184 = vmatmul.mubr.f32.gmra.mrb[0].mxu0 %v5183
  %v5185 = vpop.f32.mrb[0].mxu0
  %v5186 = vadd.f32 %v5058, %v5185
  %v5187 = vpop.f32.mrb[0].mxu0
  %v5188 = vadd.f32 %v5060, %v5187
  %5189 = vmatprep.mubr.f32.mxu0 0.0
  %v5190 = vand.u32 %v4280, 4294901760
  %5191 = vmatmul.mubr.f32.gmra.mrb[0].mxu0 %v5190
  %v5192 = vpop.f32.mrb[0].mxu0
  %v5193 = vadd.f32 %v5065, %v5192
  %v5194 = vpop.f32.mrb[0].mxu0
  %v5195 = vadd.f32 %v5067, %v5194
  %5196 = vdwg.mxu0
  %v5197 = vmax.f32 %v5151, 0.0
  %v5198 = vmax.f32 %v5153, 0.0
  %v5199 = vmax.f32 %v5158, 0.0
  %v5200 = vmax.f32 %v5160, 0.0
  %v5201 = vmax.f32 %v5165, 0.0
  %v5202 = vmax.f32 %v5167, 0.0
  %v5203 = vmax.f32 %v5172, 0.0
  %v5204 = vmax.f32 %v5174, 0.0
  %v5205 = vmax.f32 %v5179, 0.0
  %v5206 = vmax.f32 %v5181, 0.0
  %v5207 = vmax.f32 %v5186, 0.0
  %v5208 = vmax.f32 %v5188, 0.0
  %v5209 = vmax.f32 %v5193, 0.0
  %v5210 = vmax.f32 %v5195, 0.0
  %s5211 = scalar_lea.vmem %s3, 224
  %v5212 = vld [vmem:[%s5211] sm:$0xff]
  %v5213 = vld [vmem:[%s5211 + $0x8] sm:$0xff]
  %v5214 = vld [vmem:[%s5211 + $0x10] sm:$0xff]
  %v5215 = vld [vmem:[%s5211 + $0x18] sm:$0xff]
  %v5216 = vld [vmem:[%s5211 + $0x20] sm:$0xff]
  %v5217 = vld [vmem:[%s5211 + $0x28] sm:$0xff]
  %v5218 = vld [vmem:[%s5211 + $0x30] sm:$0xff]
  %v5220 = vsel %vm1386, %v5212, 0
  %v5223 = vsel %vm1386, %v5213, 0
  %v5226 = vsel %vm1386, %v5214, 0
  %v5229 = vsel %vm1386, %v5215, 0
  %v5232 = vsel %vm1386, %v5216, 0
  %v5235 = vsel %vm1386, %v5217, 0
  %v5238 = vsel %vm1386, %v5218, 0
  %v5240 = vand.u32 %v5198, 4294901760
  %5241 = vmatprep.subr.mxu0 %v5240
  %v5242 = vand.u32 %v5197, 4294901760
  %5243 = vmatpush1.msra.mxu0 %v5242
  %v5244 = vand.u32 %v5200, 4294901760
  %5245 = vmatprep.subr.mxu0 %v5244
  %v5246 = vand.u32 %v5199, 4294901760
  %5247 = vmatpush1.msra.mxu0 %v5246
  %v5248 = vand.u32 %v5202, 4294901760
  %5249 = vmatprep.subr.mxu0 %v5248
  %v5250 = vand.u32 %v5201, 4294901760
  %5251 = vmatpush1.msra.mxu0 %v5250
  %v5252 = vand.u32 %v5204, 4294901760
  %5253 = vmatprep.subr.mxu0 %v5252
  %v5254 = vand.u32 %v5203, 4294901760
  %5255 = vmatpush1.msra.mxu0 %v5254
  %v5256 = vand.u32 %v5206, 4294901760
  %5257 = vmatprep.subr.mxu0 %v5256
  %v5258 = vand.u32 %v5205, 4294901760
  %5259 = vmatpush1.msra.mxu0 %v5258
  %v5260 = vand.u32 %v5208, 4294901760
  %5261 = vmatprep.subr.mxu0 %v5260
  %v5262 = vand.u32 %v5207, 4294901760
  %5263 = vmatpush1.msra.mxu0 %v5262
  %v5264 = vand.u32 %v5210, 4294901760
  %5265 = vmatprep.subr.mxu0 %v5264
  %v5266 = vand.u32 %v5209, 4294901760
  %5267 = vmatpush1.msra.mxu0 %v5266
  %5268 = vmatprep.subr.mxu0 0.0
  %5269 = vmatpush1.msra.mxu0 0.0
  %5270 = vmatprep.subr.mxu0 0.0
  %5271 = vmatpush1.msra.mxu0 0.0
  %5272 = vmatprep.subr.mxu0 0.0
  %5273 = vmatpush1.msra.mxu0 0.0
  %5274 = vmatprep.subr.mxu0 0.0
  %5275 = vmatpush1.msra.mxu0 0.0
  %5276 = vmatprep.subr.mxu0 0.0
  %5277 = vmatpush1.msra.mxu0 0.0
  %5278 = vmatprep.subr.mxu0 0.0
  %5279 = vmatpush1.msra.mxu0 0.0
  %5280 = vmatprep.subr.mxu0 0.0
  %5281 = vmatpush1.msra.mxu0 0.0
  %5282 = vmatprep.subr.mxu0 0.0
  %5283 = vmatpush1.msra.mxu0 0.0
  %5284 = vmatprep.subr.mxu0 0.0
  %5285 = vmatpush1.msra.mxu0 0.0
  %5286 = vmatprep.subr.mxu0 0.0
  %5287 = vmatpush1.msra.mxu0 0.0
  %5288 = vmatprep.subr.mxu0 0.0
  %5289 = vmatpush1.msra.mxu0 0.0
  %5290 = vmatprep.subr.mxu0 0.0
  %5291 = vmatpush1.msra.mxu0 0.0
  %5292 = vmatprep.subr.mxu0 0.0
  %5293 = vmatpush1.msra.mxu0 0.0
  %5294 = vmatprep.subr.mxu0 0.0
  %5295 = vmatpush1.msra.mxu0 0.0
  %5296 = vmatprep.subr.mxu0 0.0
  %5297 = vmatpush1.msra.mxu0 0.0
  %5298 = vmatprep.subr.mxu0 0.0
  %5299 = vmatpush1.msra.mxu0 0.0
  %5300 = vmatprep.subr.mxu0 0.0
  %5301 = vmatpush1.msra.mxu0 0.0
  %5302 = vmatprep.subr.mxu0 0.0
  %5303 = vmatpush1.msra.mxu0 0.0
  %5304 = vmatprep.subr.mxu0 0.0
  %5305 = vmatpush1.msra.mxu0 0.0
  %5306 = vmatprep.subr.mxu0 0.0
  %5307 = vmatpush1.msra.mxu0 0.0
  %5308 = vmatprep.subr.mxu0 0.0
  %5309 = vmatpush1.msra.mxu0 0.0
  %5310 = vmatprep.subr.mxu0 0.0
  %5311 = vmatpush1.msra.mxu0 0.0
  %5312 = vmatprep.subr.mxu0 0.0
  %5313 = vmatpush1.msra.mxu0 0.0
  %5314 = vmatprep.subr.mxu0 0.0
  %5315 = vmatpush1.msra.mxu0 0.0
  %5316 = vmatprep.subr.mxu0 0.0
  %5317 = vmatpush1.msra.mxu0 0.0
  %5318 = vmatprep.mubr.f32.mxu0 0.0
  %v5319 = vand.u32 %v5220, 4294901760
  %v5320 = vsub.f32 %v5220, %v5319
  %v5321 = vand.u32 %v5320, 4294901760
  %v5322 = vsub.f32 %v5320, %v5321
  %v5323 = vand.u32 %v5322, 4294901760
  %5324 = vmatmul.mubr.f32.gmra.mrb[0].mxu0 %v5323
  %v5325 = vpop.f32.mrb[0].mxu0
  %v5326 = vadd.f32 0.0, %v5325
  %v5327 = vpop.f32.mrb[0].mxu0
  %v5328 = vadd.f32 0.0, %v5327
  %5329 = vmatprep.mubr.f32.mxu0 0.0
  %v5330 = vand.u32 %v5223, 4294901760
  %v5331 = vsub.f32 %v5223, %v5330
  %v5332 = vand.u32 %v5331, 4294901760
  %v5333 = vsub.f32 %v5331, %v5332
  %v5334 = vand.u32 %v5333, 4294901760
  %5335 = vmatmul.mubr.f32.gmra.mrb[0].mxu0 %v5334
  %v5336 = vpop.f32.mrb[0].mxu0
  %v5337 = vadd.f32 0.0, %v5336
  %v5338 = vpop.f32.mrb[0].mxu0
  %v5339 = vadd.f32 0.0, %v5338
  %5340 = vmatprep.mubr.f32.mxu0 0.0
  %v5341 = vand.u32 %v5226, 4294901760
  %v5342 = vsub.f32 %v5226, %v5341
  %v5343 = vand.u32 %v5342, 4294901760
  %v5344 = vsub.f32 %v5342, %v5343
  %v5345 = vand.u32 %v5344, 4294901760
  %5346 = vmatmul.mubr.f32.gmra.mrb[0].mxu0 %v5345
  %v5347 = vpop.f32.mrb[0].mxu0
  %v5348 = vadd.f32 0.0, %v5347
  %v5349 = vpop.f32.mrb[0].mxu0
  %v5350 = vadd.f32 0.0, %v5349
  %5351 = vmatprep.mubr.f32.mxu0 0.0
  %v5352 = vand.u32 %v5229, 4294901760
  %v5353 = vsub.f32 %v5229, %v5352
  %v5354 = vand.u32 %v5353, 4294901760
  %v5355 = vsub.f32 %v5353, %v5354
  %v5356 = vand.u32 %v5355, 4294901760
  %5357 = vmatmul.mubr.f32.gmra.mrb[0].mxu0 %v5356
  %v5358 = vpop.f32.mrb[0].mxu0
  %v5359 = vadd.f32 0.0, %v5358
  %v5360 = vpop.f32.mrb[0].mxu0
  %v5361 = vadd.f32 0.0, %v5360
  %5362 = vmatprep.mubr.f32.mxu0 0.0
  %v5363 = vand.u32 %v5232, 4294901760
  %v5364 = vsub.f32 %v5232, %v5363
  %v5365 = vand.u32 %v5364, 4294901760
  %v5366 = vsub.f32 %v5364, %v5365
  %v5367 = vand.u32 %v5366, 4294901760
  %5368 = vmatmul.mubr.f32.gmra.mrb[0].mxu0 %v5367
  %v5369 = vpop.f32.mrb[0].mxu0
  %v5370 = vadd.f32 0.0, %v5369
  %v5371 = vpop.f32.mrb[0].mxu0
  %v5372 = vadd.f32 0.0, %v5371
  %5373 = vmatprep.mubr.f32.mxu0 0.0
  %v5374 = vand.u32 %v5235, 4294901760
  %v5375 = vsub.f32 %v5235, %v5374
  %v5376 = vand.u32 %v5375, 4294901760
  %v5377 = vsub.f32 %v5375, %v5376
  %v5378 = vand.u32 %v5377, 4294901760
  %5379 = vmatmul.mubr.f32.gmra.mrb[0].mxu0 %v5378
  %v5380 = vpop.f32.mrb[0].mxu0
  %v5381 = vadd.f32 0.0, %v5380
  %v5382 = vpop.f32.mrb[0].mxu0
  %v5383 = vadd.f32 0.0, %v5382
  %5384 = vmatprep.mubr.f32.mxu0 0.0
  %v5385 = vand.u32 %v5238, 4294901760
  %v5386 = vsub.f32 %v5238, %v5385
  %v5387 = vand.u32 %v5386, 4294901760
  %v5388 = vsub.f32 %v5386, %v5387
  %v5389 = vand.u32 %v5388, 4294901760
  %5390 = vmatmul.mubr.f32.gmra.mrb[0].mxu0 %v5389
  %v5391 = vpop.f32.mrb[0].mxu0
  %v5392 = vadd.f32 0.0, %v5391
  %v5393 = vpop.f32.mrb[0].mxu0
  %v5394 = vadd.f32 0.0, %v5393
  %5395 = vdwg.mxu0
  %v5396 = vand.u32 %v5198, 4294901760
  %v5397 = vsub.f32 %v5198, %v5396
  %v5398 = vand.u32 %v5397, 4294901760
  %v5399 = vsub.f32 %v5397, %v5398
  %v5400 = vand.u32 %v5399, 4294901760
  %5401 = vmatprep.subr.mxu0 %v5400
  %v5402 = vand.u32 %v5197, 4294901760
  %v5403 = vsub.f32 %v5197, %v5402
  %v5404 = vand.u32 %v5403, 4294901760
  %v5405 = vsub.f32 %v5403, %v5404
  %v5406 = vand.u32 %v5405, 4294901760
  %5407 = vmatpush1.msra.mxu0 %v5406
  %v5408 = vand.u32 %v5200, 4294901760
  %v5409 = vsub.f32 %v5200, %v5408
  %v5410 = vand.u32 %v5409, 4294901760
  %v5411 = vsub.f32 %v5409, %v5410
  %v5412 = vand.u32 %v5411, 4294901760
  %5413 = vmatprep.subr.mxu0 %v5412
  %v5414 = vand.u32 %v5199, 4294901760
  %v5415 = vsub.f32 %v5199, %v5414
  %v5416 = vand.u32 %v5415, 4294901760
  %v5417 = vsub.f32 %v5415, %v5416
  %v5418 = vand.u32 %v5417, 4294901760
  %5419 = vmatpush1.msra.mxu0 %v5418
  %v5420 = vand.u32 %v5202, 4294901760
  %v5421 = vsub.f32 %v5202, %v5420
  %v5422 = vand.u32 %v5421, 4294901760
  %v5423 = vsub.f32 %v5421, %v5422
  %v5424 = vand.u32 %v5423, 4294901760
  %5425 = vmatprep.subr.mxu0 %v5424
  %v5426 = vand.u32 %v5201, 4294901760
  %v5427 = vsub.f32 %v5201, %v5426
  %v5428 = vand.u32 %v5427, 4294901760
  %v5429 = vsub.f32 %v5427, %v5428
  %v5430 = vand.u32 %v5429, 4294901760
  %5431 = vmatpush1.msra.mxu0 %v5430
  %v5432 = vand.u32 %v5204, 4294901760
  %v5433 = vsub.f32 %v5204, %v5432
  %v5434 = vand.u32 %v5433, 4294901760
  %v5435 = vsub.f32 %v5433, %v5434
  %v5436 = vand.u32 %v5435, 4294901760
  %5437 = vmatprep.subr.mxu0 %v5436
  %v5438 = vand.u32 %v5203, 4294901760
  %v5439 = vsub.f32 %v5203, %v5438
  %v5440 = vand.u32 %v5439, 4294901760
  %v5441 = vsub.f32 %v5439, %v5440
  %v5442 = vand.u32 %v5441, 4294901760
  %5443 = vmatpush1.msra.mxu0 %v5442
  %v5444 = vand.u32 %v5206, 4294901760
  %v5445 = vsub.f32 %v5206, %v5444
  %v5446 = vand.u32 %v5445, 4294901760
  %v5447 = vsub.f32 %v5445, %v5446
  %v5448 = vand.u32 %v5447, 4294901760
  %5449 = vmatprep.subr.mxu0 %v5448
  %v5450 = vand.u32 %v5205, 4294901760
  %v5451 = vsub.f32 %v5205, %v5450
  %v5452 = vand.u32 %v5451, 4294901760
  %v5453 = vsub.f32 %v5451, %v5452
  %v5454 = vand.u32 %v5453, 4294901760
  %5455 = vmatpush1.msra.mxu0 %v5454
  %v5456 = vand.u32 %v5208, 4294901760
  %v5457 = vsub.f32 %v5208, %v5456
  %v5458 = vand.u32 %v5457, 4294901760
  %v5459 = vsub.f32 %v5457, %v5458
  %v5460 = vand.u32 %v5459, 4294901760
  %5461 = vmatprep.subr.mxu0 %v5460
  %v5462 = vand.u32 %v5207, 4294901760
  %v5463 = vsub.f32 %v5207, %v5462
  %v5464 = vand.u32 %v5463, 4294901760
  %v5465 = vsub.f32 %v5463, %v5464
  %v5466 = vand.u32 %v5465, 4294901760
  %5467 = vmatpush1.msra.mxu0 %v5466
  %v5468 = vand.u32 %v5210, 4294901760
  %v5469 = vsub.f32 %v5210, %v5468
  %v5470 = vand.u32 %v5469, 4294901760
  %v5471 = vsub.f32 %v5469, %v5470
  %v5472 = vand.u32 %v5471, 4294901760
  %5473 = vmatprep.subr.mxu0 %v5472
  %v5474 = vand.u32 %v5209, 4294901760
  %v5475 = vsub.f32 %v5209, %v5474
  %v5476 = vand.u32 %v5475, 4294901760
  %v5477 = vsub.f32 %v5475, %v5476
  %v5478 = vand.u32 %v5477, 4294901760
  %5479 = vmatpush1.msra.mxu0 %v5478
  %5480 = vmatprep.subr.mxu0 0.0
  %5481 = vmatpush1.msra.mxu0 0.0
  %5482 = vmatprep.subr.mxu0 0.0
  %5483 = vmatpush1.msra.mxu0 0.0
  %5484 = vmatprep.subr.mxu0 0.0
  %5485 = vmatpush1.msra.mxu0 0.0
  %5486 = vmatprep.subr.mxu0 0.0
  %5487 = vmatpush1.msra.mxu0 0.0
  %5488 = vmatprep.subr.mxu0 0.0
  %5489 = vmatpush1.msra.mxu0 0.0
  %5490 = vmatprep.subr.mxu0 0.0
  %5491 = vmatpush1.msra.mxu0 0.0
  %5492 = vmatprep.subr.mxu0 0.0
  %5493 = vmatpush1.msra.mxu0 0.0
  %5494 = vmatprep.subr.mxu0 0.0
  %5495 = vmatpush1.msra.mxu0 0.0
  %5496 = vmatprep.subr.mxu0 0.0
  %5497 = vmatpush1.msra.mxu0 0.0
  %5498 = vmatprep.subr.mxu0 0.0
  %5499 = vmatpush1.msra.mxu0 0.0
  %5500 = vmatprep.subr.mxu0 0.0
  %5501 = vmatpush1.msra.mxu0 0.0
  %5502 = vmatprep.subr.mxu0 0.0
  %5503 = vmatpush1.msra.mxu0 0.0
  %5504 = vmatprep.subr.mxu0 0.0
  %5505 = vmatpush1.msra.mxu0 0.0
  %5506 = vmatprep.subr.mxu0 0.0
  %5507 = vmatpush1.msra.mxu0 0.0
  %5508 = vmatprep.subr.mxu0 0.0
  %5509 = vmatpush1.msra.mxu0 0.0
  %5510 = vmatprep.subr.mxu0 0.0
  %5511 = vmatpush1.msra.mxu0 0.0
  %5512 = vmatprep.subr.mxu0 0.0
  %5513 = vmatpush1.msra.mxu0 0.0
  %5514 = vmatprep.subr.mxu0 0.0
  %5515 = vmatpush1.msra.mxu0 0.0
  %5516 = vmatprep.subr.mxu0 0.0
  %5517 = vmatpush1.msra.mxu0 0.0
  %5518 = vmatprep.subr.mxu0 0.0
  %5519 = vmatpush1.msra.mxu0 0.0
  %5520 = vmatprep.subr.mxu0 0.0
  %5521 = vmatpush1.msra.mxu0 0.0
  %5522 = vmatprep.subr.mxu0 0.0
  %5523 = vmatpush1.msra.mxu0 0.0
  %5524 = vmatprep.subr.mxu0 0.0
  %5525 = vmatpush1.msra.mxu0 0.0
  %5526 = vmatprep.subr.mxu0 0.0
  %5527 = vmatpush1.msra.mxu0 0.0
  %5528 = vmatprep.subr.mxu0 0.0
  %5529 = vmatpush1.msra.mxu0 0.0
  %5530 = vmatprep.mubr.f32.mxu0 0.0
  %v5531 = vand.u32 %v5220, 4294901760
  %5532 = vmatmul.mubr.f32.gmra.mrb[0].mxu0 %v5531
  %v5533 = vpop.f32.mrb[0].mxu0
  %v5534 = vadd.f32 %v5326, %v5533
  %v5535 = vpop.f32.mrb[0].mxu0
  %v5536 = vadd.f32 %v5328, %v5535
  %5537 = vmatprep.mubr.f32.mxu0 0.0
  %v5538 = vand.u32 %v5223, 4294901760
  %5539 = vmatmul.mubr.f32.gmra.mrb[0].mxu0 %v5538
  %v5540 = vpop.f32.mrb[0].mxu0
  %v5541 = vadd.f32 %v5337, %v5540
  %v5542 = vpop.f32.mrb[0].mxu0
  %v5543 = vadd.f32 %v5339, %v5542
  %5544 = vmatprep.mubr.f32.mxu0 0.0
  %v5545 = vand.u32 %v5226, 4294901760
  %5546 = vmatmul.mubr.f32.gmra.mrb[0].mxu0 %v5545
  %v5547 = vpop.f32.mrb[0].mxu0
  %v5548 = vadd.f32 %v5348, %v5547
  %v5549 = vpop.f32.mrb[0].mxu0
  %v5550 = vadd.f32 %v5350, %v5549
  %5551 = vmatprep.mubr.f32.mxu0 0.0
  %v5552 = vand.u32 %v5229, 4294901760
  %5553 = vmatmul.mubr.f32.gmra.mrb[0].mxu0 %v5552
  %v5554 = vpop.f32.mrb[0].mxu0
  %v5555 = vadd.f32 %v5359, %v5554
  %v5556 = vpop.f32.mrb[0].mxu0
  %v5557 = vadd.f32 %v5361, %v5556
  %5558 = vmatprep.mubr.f32.mxu0 0.0
  %v5559 = vand.u32 %v5232, 4294901760
  %5560 = vmatmul.mubr.f32.gmra.mrb[0].mxu0 %v5559
  %v5561 = vpop.f32.mrb[0].mxu0
  %v5562 = vadd.f32 %v5370, %v5561
  %v5563 = vpop.f32.mrb[0].mxu0
  %v5564 = vadd.f32 %v5372, %v5563
  %5565 = vmatprep.mubr.f32.mxu0 0.0
  %v5566 = vand.u32 %v5235, 4294901760
  %5567 = vmatmul.mubr.f32.gmra.mrb[0].mxu0 %v5566
  %v5568 = vpop.f32.mrb[0].mxu0
  %v5569 = vadd.f32 %v5381, %v5568
  %v5570 = vpop.f32.mrb[0].mxu0
  %v5571 = vadd.f32 %v5383, %v5570
  %5572 = vmatprep.mubr.f32.mxu0 0.0
  %v5573 = vand.u32 %v5238, 4294901760
  %5574 = vmatmul.mubr.f32.gmra.mrb[0].mxu0 %v5573
  %v5575 = vpop.f32.mrb[0].mxu0
  %v5576 = vadd.f32 %v5392, %v5575
  %v5577 = vpop.f32.mrb[0].mxu0
  %v5578 = vadd.f32 %v5394, %v5577
  %5579 = vdwg.mxu0
  %v5580 = vand.u32 %v5198, 4294901760
  %v5581 = vsub.f32 %v5198, %v5580
  %5582 = vmatprep.subr.mxu0 %v5581
  %v5583 = vand.u32 %v5197, 4294901760
  %v5584 = vsub.f32 %v5197, %v5583
  %5585 = vmatpush1.msra.mxu0 %v5584
  %v5586 = vand.u32 %v5200, 4294901760
  %v5587 = vsub.f32 %v5200, %v5586
  %5588 = vmatprep.subr.mxu0 %v5587
  %v5589 = vand.u32 %v5199, 4294901760
  %v5590 = vsub.f32 %v5199, %v5589
  %5591 = vmatpush1.msra.mxu0 %v5590
  %v5592 = vand.u32 %v5202, 4294901760
  %v5593 = vsub.f32 %v5202, %v5592
  %5594 = vmatprep.subr.mxu0 %v5593
  %v5595 = vand.u32 %v5201, 4294901760
  %v5596 = vsub.f32 %v5201, %v5595
  %5597 = vmatpush1.msra.mxu0 %v5596
  %v5598 = vand.u32 %v5204, 4294901760
  %v5599 = vsub.f32 %v5204, %v5598
  %5600 = vmatprep.subr.mxu0 %v5599
  %v5601 = vand.u32 %v5203, 4294901760
  %v5602 = vsub.f32 %v5203, %v5601
  %5603 = vmatpush1.msra.mxu0 %v5602
  %v5604 = vand.u32 %v5206, 4294901760
  %v5605 = vsub.f32 %v5206, %v5604
  %5606 = vmatprep.subr.mxu0 %v5605
  %v5607 = vand.u32 %v5205, 4294901760
  %v5608 = vsub.f32 %v5205, %v5607
  %5609 = vmatpush1.msra.mxu0 %v5608
  %v5610 = vand.u32 %v5208, 4294901760
  %v5611 = vsub.f32 %v5208, %v5610
  %5612 = vmatprep.subr.mxu0 %v5611
  %v5613 = vand.u32 %v5207, 4294901760
  %v5614 = vsub.f32 %v5207, %v5613
  %5615 = vmatpush1.msra.mxu0 %v5614
  %v5616 = vand.u32 %v5210, 4294901760
  %v5617 = vsub.f32 %v5210, %v5616
  %5618 = vmatprep.subr.mxu0 %v5617
  %v5619 = vand.u32 %v5209, 4294901760
  %v5620 = vsub.f32 %v5209, %v5619
  %5621 = vmatpush1.msra.mxu0 %v5620
  %5622 = vmatprep.subr.mxu0 0.0
  %5623 = vmatpush1.msra.mxu0 0.0
  %5624 = vmatprep.subr.mxu0 0.0
  %5625 = vmatpush1.msra.mxu0 0.0
  %5626 = vmatprep.subr.mxu0 0.0
  %5627 = vmatpush1.msra.mxu0 0.0
  %5628 = vmatprep.subr.mxu0 0.0
  %5629 = vmatpush1.msra.mxu0 0.0
  %5630 = vmatprep.subr.mxu0 0.0
  %5631 = vmatpush1.msra.mxu0 0.0
  %5632 = vmatprep.subr.mxu0 0.0
  %5633 = vmatpush1.msra.mxu0 0.0
  %5634 = vmatprep.subr.mxu0 0.0
  %5635 = vmatpush1.msra.mxu0 0.0
  %5636 = vmatprep.subr.mxu0 0.0
  %5637 = vmatpush1.msra.mxu0 0.0
  %5638 = vmatprep.subr.mxu0 0.0
  %5639 = vmatpush1.msra.mxu0 0.0
  %5640 = vmatprep.subr.mxu0 0.0
  %5641 = vmatpush1.msra.mxu0 0.0
  %5642 = vmatprep.subr.mxu0 0.0
  %5643 = vmatpush1.msra.mxu0 0.0
  %5644 = vmatprep.subr.mxu0 0.0
  %5645 = vmatpush1.msra.mxu0 0.0
  %5646 = vmatprep.subr.mxu0 0.0
  %5647 = vmatpush1.msra.mxu0 0.0
  %5648 = vmatprep.subr.mxu0 0.0
  %5649 = vmatpush1.msra.mxu0 0.0
  %5650 = vmatprep.subr.mxu0 0.0
  %5651 = vmatpush1.msra.mxu0 0.0
  %5652 = vmatprep.subr.mxu0 0.0
  %5653 = vmatpush1.msra.mxu0 0.0
  %5654 = vmatprep.subr.mxu0 0.0
  %5655 = vmatpush1.msra.mxu0 0.0
  %5656 = vmatprep.subr.mxu0 0.0
  %5657 = vmatpush1.msra.mxu0 0.0
  %5658 = vmatprep.subr.mxu0 0.0
  %5659 = vmatpush1.msra.mxu0 0.0
  %5660 = vmatprep.subr.mxu0 0.0
  %5661 = vmatpush1.msra.mxu0 0.0
  %5662 = vmatprep.subr.mxu0 0.0
  %5663 = vmatpush1.msra.mxu0 0.0
  %5664 = vmatprep.subr.mxu0 0.0
  %5665 = vmatpush1.msra.mxu0 0.0
  %5666 = vmatprep.subr.mxu0 0.0
  %5667 = vmatpush1.msra.mxu0 0.0
  %5668 = vmatprep.subr.mxu0 0.0
  %5669 = vmatpush1.msra.mxu0 0.0
  %5670 = vmatprep.subr.mxu0 0.0
  %5671 = vmatpush1.msra.mxu0 0.0
  %5672 = vmatprep.mubr.f32.mxu0 0.0
  %v5673 = vand.u32 %v5220, 4294901760
  %v5674 = vsub.f32 %v5220, %v5673
  %5675 = vmatmul.mubr.f32.gmra.mrb[0].mxu0 %v5674
  %v5676 = vpop.f32.mrb[0].mxu0
  %v5677 = vadd.f32 %v5534, %v5676
  %v5678 = vpop.f32.mrb[0].mxu0
  %v5679 = vadd.f32 %v5536, %v5678
  %5680 = vmatprep.mubr.f32.mxu0 0.0
  %v5681 = vand.u32 %v5223, 4294901760
  %v5682 = vsub.f32 %v5223, %v5681
  %5683 = vmatmul.mubr.f32.gmra.mrb[0].mxu0 %v5682
  %v5684 = vpop.f32.mrb[0].mxu0
  %v5685 = vadd.f32 %v5541, %v5684
  %v5686 = vpop.f32.mrb[0].mxu0
  %v5687 = vadd.f32 %v5543, %v5686
  %5688 = vmatprep.mubr.f32.mxu0 0.0
  %v5689 = vand.u32 %v5226, 4294901760
  %v5690 = vsub.f32 %v5226, %v5689
  %5691 = vmatmul.mubr.f32.gmra.mrb[0].mxu0 %v5690
  %v5692 = vpop.f32.mrb[0].mxu0
  %v5693 = vadd.f32 %v5548, %v5692
  %v5694 = vpop.f32.mrb[0].mxu0
  %v5695 = vadd.f32 %v5550, %v5694
  %5696 = vmatprep.mubr.f32.mxu0 0.0
  %v5697 = vand.u32 %v5229, 4294901760
  %v5698 = vsub.f32 %v5229, %v5697
  %5699 = vmatmul.mubr.f32.gmra.mrb[0].mxu0 %v5698
  %v5700 = vpop.f32.mrb[0].mxu0
  %v5701 = vadd.f32 %v5555, %v5700
  %v5702 = vpop.f32.mrb[0].mxu0
  %v5703 = vadd.f32 %v5557, %v5702
  %5704 = vmatprep.mubr.f32.mxu0 0.0
  %v5705 = vand.u32 %v5232, 4294901760
  %v5706 = vsub.f32 %v5232, %v5705
  %5707 = vmatmul.mubr.f32.gmra.mrb[0].mxu0 %v5706
  %v5708 = vpop.f32.mrb[0].mxu0
  %v5709 = vadd.f32 %v5562, %v5708
  %v5710 = vpop.f32.mrb[0].mxu0
  %v5711 = vadd.f32 %v5564, %v5710
  %5712 = vmatprep.mubr.f32.mxu0 0.0
  %v5713 = vand.u32 %v5235, 4294901760
  %v5714 = vsub.f32 %v5235, %v5713
  %5715 = vmatmul.mubr.f32.gmra.mrb[0].mxu0 %v5714
  %v5716 = vpop.f32.mrb[0].mxu0
  %v5717 = vadd.f32 %v5569, %v5716
  %v5718 = vpop.f32.mrb[0].mxu0
  %v5719 = vadd.f32 %v5571, %v5718
  %5720 = vmatprep.mubr.f32.mxu0 0.0
  %v5721 = vand.u32 %v5238, 4294901760
  %v5722 = vsub.f32 %v5238, %v5721
  %5723 = vmatmul.mubr.f32.gmra.mrb[0].mxu0 %v5722
  %v5724 = vpop.f32.mrb[0].mxu0
  %v5725 = vadd.f32 %v5576, %v5724
  %v5726 = vpop.f32.mrb[0].mxu0
  %v5727 = vadd.f32 %v5578, %v5726
  %5728 = vdwg.mxu0
  %v5729 = vand.u32 %v5198, 4294901760
  %5730 = vmatprep.subr.mxu0 %v5729
  %v5731 = vand.u32 %v5197, 4294901760
  %5732 = vmatpush1.msra.mxu0 %v5731
  %v5733 = vand.u32 %v5200, 4294901760
  %5734 = vmatprep.subr.mxu0 %v5733
  %v5735 = vand.u32 %v5199, 4294901760
  %5736 = vmatpush1.msra.mxu0 %v5735
  %v5737 = vand.u32 %v5202, 4294901760
  %5738 = vmatprep.subr.mxu0 %v5737
  %v5739 = vand.u32 %v5201, 4294901760
  %5740 = vmatpush1.msra.mxu0 %v5739
  %v5741 = vand.u32 %v5204, 4294901760
  %5742 = vmatprep.subr.mxu0 %v5741
  %v5743 = vand.u32 %v5203, 4294901760
  %5744 = vmatpush1.msra.mxu0 %v5743
  %v5745 = vand.u32 %v5206, 4294901760
  %5746 = vmatprep.subr.mxu0 %v5745
  %v5747 = vand.u32 %v5205, 4294901760
  %5748 = vmatpush1.msra.mxu0 %v5747
  %v5749 = vand.u32 %v5208, 4294901760
  %5750 = vmatprep.subr.mxu0 %v5749
  %v5751 = vand.u32 %v5207, 4294901760
  %5752 = vmatpush1.msra.mxu0 %v5751
  %v5753 = vand.u32 %v5210, 4294901760
  %5754 = vmatprep.subr.mxu0 %v5753
  %v5755 = vand.u32 %v5209, 4294901760
  %5756 = vmatpush1.msra.mxu0 %v5755
  %5757 = vmatprep.subr.mxu0 0.0
  %5758 = vmatpush1.msra.mxu0 0.0
  %5759 = vmatprep.subr.mxu0 0.0
  %5760 = vmatpush1.msra.mxu0 0.0
  %5761 = vmatprep.subr.mxu0 0.0
  %5762 = vmatpush1.msra.mxu0 0.0
  %5763 = vmatprep.subr.mxu0 0.0
  %5764 = vmatpush1.msra.mxu0 0.0
  %5765 = vmatprep.subr.mxu0 0.0
  %5766 = vmatpush1.msra.mxu0 0.0
  %5767 = vmatprep.subr.mxu0 0.0
  %5768 = vmatpush1.msra.mxu0 0.0
  %5769 = vmatprep.subr.mxu0 0.0
  %5770 = vmatpush1.msra.mxu0 0.0
  %5771 = vmatprep.subr.mxu0 0.0
  %5772 = vmatpush1.msra.mxu0 0.0
  %5773 = vmatprep.subr.mxu0 0.0
  %5774 = vmatpush1.msra.mxu0 0.0
  %5775 = vmatprep.subr.mxu0 0.0
  %5776 = vmatpush1.msra.mxu0 0.0
  %5777 = vmatprep.subr.mxu0 0.0
  %5778 = vmatpush1.msra.mxu0 0.0
  %5779 = vmatprep.subr.mxu0 0.0
  %5780 = vmatpush1.msra.mxu0 0.0
  %5781 = vmatprep.subr.mxu0 0.0
  %5782 = vmatpush1.msra.mxu0 0.0
  %5783 = vmatprep.subr.mxu0 0.0
  %5784 = vmatpush1.msra.mxu0 0.0
  %5785 = vmatprep.subr.mxu0 0.0
  %5786 = vmatpush1.msra.mxu0 0.0
  %5787 = vmatprep.subr.mxu0 0.0
  %5788 = vmatpush1.msra.mxu0 0.0
  %5789 = vmatprep.subr.mxu0 0.0
  %5790 = vmatpush1.msra.mxu0 0.0
  %5791 = vmatprep.subr.mxu0 0.0
  %5792 = vmatpush1.msra.mxu0 0.0
  %5793 = vmatprep.subr.mxu0 0.0
  %5794 = vmatpush1.msra.mxu0 0.0
  %5795 = vmatprep.subr.mxu0 0.0
  %5796 = vmatpush1.msra.mxu0 0.0
  %5797 = vmatprep.subr.mxu0 0.0
  %5798 = vmatpush1.msra.mxu0 0.0
  %5799 = vmatprep.subr.mxu0 0.0
  %5800 = vmatpush1.msra.mxu0 0.0
  %5801 = vmatprep.subr.mxu0 0.0
  %5802 = vmatpush1.msra.mxu0 0.0
  %5803 = vmatprep.subr.mxu0 0.0
  %5804 = vmatpush1.msra.mxu0 0.0
  %5805 = vmatprep.subr.mxu0 0.0
  %5806 = vmatpush1.msra.mxu0 0.0
  %5807 = vmatprep.mubr.f32.mxu0 0.0
  %v5808 = vand.u32 %v5220, 4294901760
  %v5809 = vsub.f32 %v5220, %v5808
  %v5810 = vand.u32 %v5809, 4294901760
  %5811 = vmatmul.mubr.f32.gmra.mrb[0].mxu0 %v5810
  %v5812 = vpop.f32.mrb[0].mxu0
  %v5813 = vadd.f32 %v5677, %v5812
  %v5814 = vpop.f32.mrb[0].mxu0
  %v5815 = vadd.f32 %v5679, %v5814
  %5816 = vmatprep.mubr.f32.mxu0 0.0
  %v5817 = vand.u32 %v5223, 4294901760
  %v5818 = vsub.f32 %v5223, %v5817
  %v5819 = vand.u32 %v5818, 4294901760
  %5820 = vmatmul.mubr.f32.gmra.mrb[0].mxu0 %v5819
  %v5821 = vpop.f32.mrb[0].mxu0
  %v5822 = vadd.f32 %v5685, %v5821
  %v5823 = vpop.f32.mrb[0].mxu0
  %v5824 = vadd.f32 %v5687, %v5823
  %5825 = vmatprep.mubr.f32.mxu0 0.0
  %v5826 = vand.u32 %v5226, 4294901760
  %v5827 = vsub.f32 %v5226, %v5826
  %v5828 = vand.u32 %v5827, 4294901760
  %5829 = vmatmul.mubr.f32.gmra.mrb[0].mxu0 %v5828
  %v5830 = vpop.f32.mrb[0].mxu0
  %v5831 = vadd.f32 %v5693, %v5830
  %v5832 = vpop.f32.mrb[0].mxu0
  %v5833 = vadd.f32 %v5695, %v5832
  %5834 = vmatprep.mubr.f32.mxu0 0.0
  %v5835 = vand.u32 %v5229, 4294901760
  %v5836 = vsub.f32 %v5229, %v5835
  %v5837 = vand.u32 %v5836, 4294901760
  %5838 = vmatmul.mubr.f32.gmra.mrb[0].mxu0 %v5837
  %v5839 = vpop.f32.mrb[0].mxu0
  %v5840 = vadd.f32 %v5701, %v5839
  %v5841 = vpop.f32.mrb[0].mxu0
  %v5842 = vadd.f32 %v5703, %v5841
  %5843 = vmatprep.mubr.f32.mxu0 0.0
  %v5844 = vand.u32 %v5232, 4294901760
  %v5845 = vsub.f32 %v5232, %v5844
  %v5846 = vand.u32 %v5845, 4294901760
  %5847 = vmatmul.mubr.f32.gmra.mrb[0].mxu0 %v5846
  %v5848 = vpop.f32.mrb[0].mxu0
  %v5849 = vadd.f32 %v5709, %v5848
  %v5850 = vpop.f32.mrb[0].mxu0
  %v5851 = vadd.f32 %v5711, %v5850
  %5852 = vmatprep.mubr.f32.mxu0 0.0
  %v5853 = vand.u32 %v5235, 4294901760
  %v5854 = vsub.f32 %v5235, %v5853
  %v5855 = vand.u32 %v5854, 4294901760
  %5856 = vmatmul.mubr.f32.gmra.mrb[0].mxu0 %v5855
  %v5857 = vpop.f32.mrb[0].mxu0
  %v5858 = vadd.f32 %v5717, %v5857
  %v5859 = vpop.f32.mrb[0].mxu0
  %v5860 = vadd.f32 %v5719, %v5859
  %5861 = vmatprep.mubr.f32.mxu0 0.0
  %v5862 = vand.u32 %v5238, 4294901760
  %v5863 = vsub.f32 %v5238, %v5862
  %v5864 = vand.u32 %v5863, 4294901760
  %5865 = vmatmul.mubr.f32.gmra.mrb[0].mxu0 %v5864
  %v5866 = vpop.f32.mrb[0].mxu0
  %v5867 = vadd.f32 %v5725, %v5866
  %v5868 = vpop.f32.mrb[0].mxu0
  %v5869 = vadd.f32 %v5727, %v5868
  %5870 = vdwg.mxu0
  %v5871 = vand.u32 %v5198, 4294901760
  %v5872 = vsub.f32 %v5198, %v5871
  %v5873 = vand.u32 %v5872, 4294901760
  %5874 = vmatprep.subr.mxu0 %v5873
  %v5875 = vand.u32 %v5197, 4294901760
  %v5876 = vsub.f32 %v5197, %v5875
  %v5877 = vand.u32 %v5876, 4294901760
  %5878 = vmatpush1.msra.mxu0 %v5877
  %v5879 = vand.u32 %v5200, 4294901760
  %v5880 = vsub.f32 %v5200, %v5879
  %v5881 = vand.u32 %v5880, 4294901760
  %5882 = vmatprep.subr.mxu0 %v5881
  %v5883 = vand.u32 %v5199, 4294901760
  %v5884 = vsub.f32 %v5199, %v5883
  %v5885 = vand.u32 %v5884, 4294901760
  %5886 = vmatpush1.msra.mxu0 %v5885
  %v5887 = vand.u32 %v5202, 4294901760
  %v5888 = vsub.f32 %v5202, %v5887
  %v5889 = vand.u32 %v5888, 4294901760
  %5890 = vmatprep.subr.mxu0 %v5889
  %v5891 = vand.u32 %v5201, 4294901760
  %v5892 = vsub.f32 %v5201, %v5891
  %v5893 = vand.u32 %v5892, 4294901760
  %5894 = vmatpush1.msra.mxu0 %v5893
  %v5895 = vand.u32 %v5204, 4294901760
  %v5896 = vsub.f32 %v5204, %v5895
  %v5897 = vand.u32 %v5896, 4294901760
  %5898 = vmatprep.subr.mxu0 %v5897
  %v5899 = vand.u32 %v5203, 4294901760
  %v5900 = vsub.f32 %v5203, %v5899
  %v5901 = vand.u32 %v5900, 4294901760
  %5902 = vmatpush1.msra.mxu0 %v5901
  %v5903 = vand.u32 %v5206, 4294901760
  %v5904 = vsub.f32 %v5206, %v5903
  %v5905 = vand.u32 %v5904, 4294901760
  %5906 = vmatprep.subr.mxu0 %v5905
  %v5907 = vand.u32 %v5205, 4294901760
  %v5908 = vsub.f32 %v5205, %v5907
  %v5909 = vand.u32 %v5908, 4294901760
  %5910 = vmatpush1.msra.mxu0 %v5909
  %v5911 = vand.u32 %v5208, 4294901760
  %v5912 = vsub.f32 %v5208, %v5911
  %v5913 = vand.u32 %v5912, 4294901760
  %5914 = vmatprep.subr.mxu0 %v5913
  %v5915 = vand.u32 %v5207, 4294901760
  %v5916 = vsub.f32 %v5207, %v5915
  %v5917 = vand.u32 %v5916, 4294901760
  %5918 = vmatpush1.msra.mxu0 %v5917
  %v5919 = vand.u32 %v5210, 4294901760
  %v5920 = vsub.f32 %v5210, %v5919
  %v5921 = vand.u32 %v5920, 4294901760
  %5922 = vmatprep.subr.mxu0 %v5921
  %v5923 = vand.u32 %v5209, 4294901760
  %v5924 = vsub.f32 %v5209, %v5923
  %v5925 = vand.u32 %v5924, 4294901760
  %5926 = vmatpush1.msra.mxu0 %v5925
  %5927 = vmatprep.subr.mxu0 0.0
  %5928 = vmatpush1.msra.mxu0 0.0
  %5929 = vmatprep.subr.mxu0 0.0
  %5930 = vmatpush1.msra.mxu0 0.0
  %5931 = vmatprep.subr.mxu0 0.0
  %5932 = vmatpush1.msra.mxu0 0.0
  %5933 = vmatprep.subr.mxu0 0.0
  %5934 = vmatpush1.msra.mxu0 0.0
  %5935 = vmatprep.subr.mxu0 0.0
  %5936 = vmatpush1.msra.mxu0 0.0
  %5937 = vmatprep.subr.mxu0 0.0
  %5938 = vmatpush1.msra.mxu0 0.0
  %5939 = vmatprep.subr.mxu0 0.0
  %5940 = vmatpush1.msra.mxu0 0.0
  %5941 = vmatprep.subr.mxu0 0.0
  %5942 = vmatpush1.msra.mxu0 0.0
  %5943 = vmatprep.subr.mxu0 0.0
  %5944 = vmatpush1.msra.mxu0 0.0
  %5945 = vmatprep.subr.mxu0 0.0
  %5946 = vmatpush1.msra.mxu0 0.0
  %5947 = vmatprep.subr.mxu0 0.0
  %5948 = vmatpush1.msra.mxu0 0.0
  %5949 = vmatprep.subr.mxu0 0.0
  %5950 = vmatpush1.msra.mxu0 0.0
  %5951 = vmatprep.subr.mxu0 0.0
  %5952 = vmatpush1.msra.mxu0 0.0
  %5953 = vmatprep.subr.mxu0 0.0
  %5954 = vmatpush1.msra.mxu0 0.0
  %5955 = vmatprep.subr.mxu0 0.0
  %5956 = vmatpush1.msra.mxu0 0.0
  %5957 = vmatprep.subr.mxu0 0.0
  %5958 = vmatpush1.msra.mxu0 0.0
  %5959 = vmatprep.subr.mxu0 0.0
  %5960 = vmatpush1.msra.mxu0 0.0
  %5961 = vmatprep.subr.mxu0 0.0
  %5962 = vmatpush1.msra.mxu0 0.0
  %5963 = vmatprep.subr.mxu0 0.0
  %5964 = vmatpush1.msra.mxu0 0.0
  %5965 = vmatprep.subr.mxu0 0.0
  %5966 = vmatpush1.msra.mxu0 0.0
  %5967 = vmatprep.subr.mxu0 0.0
  %5968 = vmatpush1.msra.mxu0 0.0
  %5969 = vmatprep.subr.mxu0 0.0
  %5970 = vmatpush1.msra.mxu0 0.0
  %5971 = vmatprep.subr.mxu0 0.0
  %5972 = vmatpush1.msra.mxu0 0.0
  %5973 = vmatprep.subr.mxu0 0.0
  %5974 = vmatpush1.msra.mxu0 0.0
  %5975 = vmatprep.subr.mxu0 0.0
  %5976 = vmatpush1.msra.mxu0 0.0
  %5977 = vmatprep.mubr.f32.mxu0 0.0
  %v5978 = vand.u32 %v5220, 4294901760
  %5979 = vmatmul.mubr.f32.gmra.mrb[0].mxu0 %v5978
  %v5980 = vpop.f32.mrb[0].mxu0
  %v5981 = vadd.f32 %v5813, %v5980
  %v5982 = vpop.f32.mrb[0].mxu0
  %v5983 = vadd.f32 %v5815, %v5982
  %5984 = vmatprep.mubr.f32.mxu0 0.0
  %v5985 = vand.u32 %v5223, 4294901760
  %5986 = vmatmul.mubr.f32.gmra.mrb[0].mxu0 %v5985
  %v5987 = vpop.f32.mrb[0].mxu0
  %v5988 = vadd.f32 %v5822, %v5987
  %v5989 = vpop.f32.mrb[0].mxu0
  %v5990 = vadd.f32 %v5824, %v5989
  %5991 = vmatprep.mubr.f32.mxu0 0.0
  %v5992 = vand.u32 %v5226, 4294901760
  %5993 = vmatmul.mubr.f32.gmra.mrb[0].mxu0 %v5992
  %v5994 = vpop.f32.mrb[0].mxu0
  %v5995 = vadd.f32 %v5831, %v5994
  %v5996 = vpop.f32.mrb[0].mxu0
  %v5997 = vadd.f32 %v5833, %v5996
  %5998 = vmatprep.mubr.f32.mxu0 0.0
  %v5999 = vand.u32 %v5229, 4294901760
  %6000 = vmatmul.mubr.f32.gmra.mrb[0].mxu0 %v5999
  %v6001 = vpop.f32.mrb[0].mxu0
  %v6002 = vadd.f32 %v5840, %v6001
  %v6003 = vpop.f32.mrb[0].mxu0
  %v6004 = vadd.f32 %v5842, %v6003
  %6005 = vmatprep.mubr.f32.mxu0 0.0
  %v6006 = vand.u32 %v5232, 4294901760
  %6007 = vmatmul.mubr.f32.gmra.mrb[0].mxu0 %v6006
  %v6008 = vpop.f32.mrb[0].mxu0
  %v6009 = vadd.f32 %v5849, %v6008
  %v6010 = vpop.f32.mrb[0].mxu0
  %v6011 = vadd.f32 %v5851, %v6010
  %6012 = vmatprep.mubr.f32.mxu0 0.0
  %v6013 = vand.u32 %v5235, 4294901760
  %6014 = vmatmul.mubr.f32.gmra.mrb[0].mxu0 %v6013
  %v6015 = vpop.f32.mrb[0].mxu0
  %v6016 = vadd.f32 %v5858, %v6015
  %v6017 = vpop.f32.mrb[0].mxu0
  %v6018 = vadd.f32 %v5860, %v6017
  %6019 = vmatprep.mubr.f32.mxu0 0.0
  %v6020 = vand.u32 %v5238, 4294901760
  %6021 = vmatmul.mubr.f32.gmra.mrb[0].mxu0 %v6020
  %v6022 = vpop.f32.mrb[0].mxu0
  %v6023 = vadd.f32 %v5867, %v6022
  %v6024 = vpop.f32.mrb[0].mxu0
  %v6025 = vadd.f32 %v5869, %v6024
  %6026 = vdwg.mxu0
  %v6027 = vand.u32 %v5198, 4294901760
  %6028 = vmatprep.subr.mxu0 %v6027
  %v6029 = vand.u32 %v5197, 4294901760
  %6030 = vmatpush1.msra.mxu0 %v6029
  %v6031 = vand.u32 %v5200, 4294901760
  %6032 = vmatprep.subr.mxu0 %v6031
  %v6033 = vand.u32 %v5199, 4294901760
  %6034 = vmatpush1.msra.mxu0 %v6033
  %v6035 = vand.u32 %v5202, 4294901760
  %6036 = vmatprep.subr.mxu0 %v6035
  %v6037 = vand.u32 %v5201, 4294901760
  %6038 = vmatpush1.msra.mxu0 %v6037
  %v6039 = vand.u32 %v5204, 4294901760
  %6040 = vmatprep.subr.mxu0 %v6039
  %v6041 = vand.u32 %v5203, 4294901760
  %6042 = vmatpush1.msra.mxu0 %v6041
  %v6043 = vand.u32 %v5206, 4294901760
  %6044 = vmatprep.subr.mxu0 %v6043
  %v6045 = vand.u32 %v5205, 4294901760
  %6046 = vmatpush1.msra.mxu0 %v6045
  %v6047 = vand.u32 %v5208, 4294901760
  %6048 = vmatprep.subr.mxu0 %v6047
  %v6049 = vand.u32 %v5207, 4294901760
  %6050 = vmatpush1.msra.mxu0 %v6049
  %v6051 = vand.u32 %v5210, 4294901760
  %6052 = vmatprep.subr.mxu0 %v6051
  %v6053 = vand.u32 %v5209, 4294901760
  %6054 = vmatpush1.msra.mxu0 %v6053
  %6055 = vmatprep.subr.mxu0 0.0
  %6056 = vmatpush1.msra.mxu0 0.0
  %6057 = vmatprep.subr.mxu0 0.0
  %6058 = vmatpush1.msra.mxu0 0.0
  %6059 = vmatprep.subr.mxu0 0.0
  %6060 = vmatpush1.msra.mxu0 0.0
  %6061 = vmatprep.subr.mxu0 0.0
  %6062 = vmatpush1.msra.mxu0 0.0
  %6063 = vmatprep.subr.mxu0 0.0
  %6064 = vmatpush1.msra.mxu0 0.0
  %6065 = vmatprep.subr.mxu0 0.0
  %6066 = vmatpush1.msra.mxu0 0.0
  %6067 = vmatprep.subr.mxu0 0.0
  %6068 = vmatpush1.msra.mxu0 0.0
  %6069 = vmatprep.subr.mxu0 0.0
  %6070 = vmatpush1.msra.mxu0 0.0
  %6071 = vmatprep.subr.mxu0 0.0
  %6072 = vmatpush1.msra.mxu0 0.0
  %6073 = vmatprep.subr.mxu0 0.0
  %6074 = vmatpush1.msra.mxu0 0.0
  %6075 = vmatprep.subr.mxu0 0.0
  %6076 = vmatpush1.msra.mxu0 0.0
  %6077 = vmatprep.subr.mxu0 0.0
  %6078 = vmatpush1.msra.mxu0 0.0
  %6079 = vmatprep.subr.mxu0 0.0
  %6080 = vmatpush1.msra.mxu0 0.0
  %6081 = vmatprep.subr.mxu0 0.0
  %6082 = vmatpush1.msra.mxu0 0.0
  %6083 = vmatprep.subr.mxu0 0.0
  %6084 = vmatpush1.msra.mxu0 0.0
  %6085 = vmatprep.subr.mxu0 0.0
  %6086 = vmatpush1.msra.mxu0 0.0
  %6087 = vmatprep.subr.mxu0 0.0
  %6088 = vmatpush1.msra.mxu0 0.0
  %6089 = vmatprep.subr.mxu0 0.0
  %6090 = vmatpush1.msra.mxu0 0.0
  %6091 = vmatprep.subr.mxu0 0.0
  %6092 = vmatpush1.msra.mxu0 0.0
  %6093 = vmatprep.subr.mxu0 0.0
  %6094 = vmatpush1.msra.mxu0 0.0
  %6095 = vmatprep.subr.mxu0 0.0
  %6096 = vmatpush1.msra.mxu0 0.0
  %6097 = vmatprep.subr.mxu0 0.0
  %6098 = vmatpush1.msra.mxu0 0.0
  %6099 = vmatprep.subr.mxu0 0.0
  %6100 = vmatpush1.msra.mxu0 0.0
  %6101 = vmatprep.subr.mxu0 0.0
  %6102 = vmatpush1.msra.mxu0 0.0
  %6103 = vmatprep.subr.mxu0 0.0
  %6104 = vmatpush1.msra.mxu0 0.0
  %6105 = vmatprep.mubr.f32.mxu0 0.0
  %v6106 = vand.u32 %v5220, 4294901760
  %6107 = vmatmul.mubr.f32.gmra.mrb[0].mxu0 %v6106
  %v6108 = vpop.f32.mrb[0].mxu0
  %v6109 = vadd.f32 %v5981, %v6108
  %v6110 = vpop.f32.mrb[0].mxu0
  %v6111 = vadd.f32 %v5983, %v6110
  %6112 = vmatprep.mubr.f32.mxu0 0.0
  %v6113 = vand.u32 %v5223, 4294901760
  %6114 = vmatmul.mubr.f32.gmra.mrb[0].mxu0 %v6113
  %v6115 = vpop.f32.mrb[0].mxu0
  %v6116 = vadd.f32 %v5988, %v6115
  %v6117 = vpop.f32.mrb[0].mxu0
  %v6118 = vadd.f32 %v5990, %v6117
  %6119 = vmatprep.mubr.f32.mxu0 0.0
  %v6120 = vand.u32 %v5226, 4294901760
  %6121 = vmatmul.mubr.f32.gmra.mrb[0].mxu0 %v6120
  %v6122 = vpop.f32.mrb[0].mxu0
  %v6123 = vadd.f32 %v5995, %v6122
  %v6124 = vpop.f32.mrb[0].mxu0
  %v6125 = vadd.f32 %v5997, %v6124
  %6126 = vmatprep.mubr.f32.mxu0 0.0
  %v6127 = vand.u32 %v5229, 4294901760
  %6128 = vmatmul.mubr.f32.gmra.mrb[0].mxu0 %v6127
  %v6129 = vpop.f32.mrb[0].mxu0
  %v6130 = vadd.f32 %v6002, %v6129
  %v6131 = vpop.f32.mrb[0].mxu0
  %v6132 = vadd.f32 %v6004, %v6131
  %6133 = vmatprep.mubr.f32.mxu0 0.0
  %v6134 = vand.u32 %v5232, 4294901760
  %6135 = vmatmul.mubr.f32.gmra.mrb[0].mxu0 %v6134
  %v6136 = vpop.f32.mrb[0].mxu0
  %v6137 = vadd.f32 %v6009, %v6136
  %v6138 = vpop.f32.mrb[0].mxu0
  %v6139 = vadd.f32 %v6011, %v6138
  %6140 = vmatprep.mubr.f32.mxu0 0.0
  %v6141 = vand.u32 %v5235, 4294901760
  %6142 = vmatmul.mubr.f32.gmra.mrb[0].mxu0 %v6141
  %v6143 = vpop.f32.mrb[0].mxu0
  %v6144 = vadd.f32 %v6016, %v6143
  %v6145 = vpop.f32.mrb[0].mxu0
  %v6146 = vadd.f32 %v6018, %v6145
  %6147 = vmatprep.mubr.f32.mxu0 0.0
  %v6148 = vand.u32 %v5238, 4294901760
  %6149 = vmatmul.mubr.f32.gmra.mrb[0].mxu0 %v6148
  %v6150 = vpop.f32.mrb[0].mxu0
  %v6151 = vadd.f32 %v6023, %v6150
  %v6152 = vpop.f32.mrb[0].mxu0
  %v6153 = vadd.f32 %v6025, %v6152
  %6154 = vdwg.mxu0
  %v6155 = vmax.f32 %v6109, 0.0
  %v6156 = vmax.f32 %v6111, 0.0
  %v6157 = vmax.f32 %v6116, 0.0
  %v6158 = vmax.f32 %v6118, 0.0
  %v6159 = vmax.f32 %v6123, 0.0
  %v6160 = vmax.f32 %v6125, 0.0
  %v6161 = vmax.f32 %v6130, 0.0
  %v6162 = vmax.f32 %v6132, 0.0
  %v6163 = vmax.f32 %v6137, 0.0
  %v6164 = vmax.f32 %v6139, 0.0
  %v6165 = vmax.f32 %v6144, 0.0
  %v6166 = vmax.f32 %v6146, 0.0
  %v6167 = vmax.f32 %v6151, 0.0
  %v6168 = vmax.f32 %v6153, 0.0
  %s6169 = scalar_lea.vmem %s3, 280
  %v6170 = vld [vmem:[%s6169] sm:$0xff]
  %v6171 = vld [vmem:[%s6169 + $0x8] sm:$0xff]
  %v6172 = vld [vmem:[%s6169 + $0x10] sm:$0xff]
  %v6173 = vld [vmem:[%s6169 + $0x18] sm:$0xff]
  %v6174 = vld [vmem:[%s6169 + $0x20] sm:$0xff]
  %v6175 = vld [vmem:[%s6169 + $0x28] sm:$0xff]
  %v6176 = vld [vmem:[%s6169 + $0x30] sm:$0xff]
  %v6178 = vsel %vm1386, %v6170, 0
  %v6181 = vsel %vm1386, %v6171, 0
  %v6184 = vsel %vm1386, %v6172, 0
  %v6187 = vsel %vm1386, %v6173, 0
  %v6190 = vsel %vm1386, %v6174, 0
  %v6193 = vsel %vm1386, %v6175, 0
  %v6196 = vsel %vm1386, %v6176, 0
  %v6198 = vand.u32 %v6156, 4294901760
  %6199 = vmatprep.subr.mxu0 %v6198
  %v6200 = vand.u32 %v6155, 4294901760
  %6201 = vmatpush1.msra.mxu0 %v6200
  %v6202 = vand.u32 %v6158, 4294901760
  %6203 = vmatprep.subr.mxu0 %v6202
  %v6204 = vand.u32 %v6157, 4294901760
  %6205 = vmatpush1.msra.mxu0 %v6204
  %v6206 = vand.u32 %v6160, 4294901760
  %6207 = vmatprep.subr.mxu0 %v6206
  %v6208 = vand.u32 %v6159, 4294901760
  %6209 = vmatpush1.msra.mxu0 %v6208
  %v6210 = vand.u32 %v6162, 4294901760
  %6211 = vmatprep.subr.mxu0 %v6210
  %v6212 = vand.u32 %v6161, 4294901760
  %6213 = vmatpush1.msra.mxu0 %v6212
  %v6214 = vand.u32 %v6164, 4294901760
  %6215 = vmatprep.subr.mxu0 %v6214
  %v6216 = vand.u32 %v6163, 4294901760
  %6217 = vmatpush1.msra.mxu0 %v6216
  %v6218 = vand.u32 %v6166, 4294901760
  %6219 = vmatprep.subr.mxu0 %v6218
  %v6220 = vand.u32 %v6165, 4294901760
  %6221 = vmatpush1.msra.mxu0 %v6220
  %v6222 = vand.u32 %v6168, 4294901760
  %6223 = vmatprep.subr.mxu0 %v6222
  %v6224 = vand.u32 %v6167, 4294901760
  %6225 = vmatpush1.msra.mxu0 %v6224
  %6226 = vmatprep.subr.mxu0 0.0
  %6227 = vmatpush1.msra.mxu0 0.0
  %6228 = vmatprep.subr.mxu0 0.0
  %6229 = vmatpush1.msra.mxu0 0.0
  %6230 = vmatprep.subr.mxu0 0.0
  %6231 = vmatpush1.msra.mxu0 0.0
  %6232 = vmatprep.subr.mxu0 0.0
  %6233 = vmatpush1.msra.mxu0 0.0
  %6234 = vmatprep.subr.mxu0 0.0
  %6235 = vmatpush1.msra.mxu0 0.0
  %6236 = vmatprep.subr.mxu0 0.0
  %6237 = vmatpush1.msra.mxu0 0.0
  %6238 = vmatprep.subr.mxu0 0.0
  %6239 = vmatpush1.msra.mxu0 0.0
  %6240 = vmatprep.subr.mxu0 0.0
  %6241 = vmatpush1.msra.mxu0 0.0
  %6242 = vmatprep.subr.mxu0 0.0
  %6243 = vmatpush1.msra.mxu0 0.0
  %6244 = vmatprep.subr.mxu0 0.0
  %6245 = vmatpush1.msra.mxu0 0.0
  %6246 = vmatprep.subr.mxu0 0.0
  %6247 = vmatpush1.msra.mxu0 0.0
  %6248 = vmatprep.subr.mxu0 0.0
  %6249 = vmatpush1.msra.mxu0 0.0
  %6250 = vmatprep.subr.mxu0 0.0
  %6251 = vmatpush1.msra.mxu0 0.0
  %6252 = vmatprep.subr.mxu0 0.0
  %6253 = vmatpush1.msra.mxu0 0.0
  %6254 = vmatprep.subr.mxu0 0.0
  %6255 = vmatpush1.msra.mxu0 0.0
  %6256 = vmatprep.subr.mxu0 0.0
  %6257 = vmatpush1.msra.mxu0 0.0
  %6258 = vmatprep.subr.mxu0 0.0
  %6259 = vmatpush1.msra.mxu0 0.0
  %6260 = vmatprep.subr.mxu0 0.0
  %6261 = vmatpush1.msra.mxu0 0.0
  %6262 = vmatprep.subr.mxu0 0.0
  %6263 = vmatpush1.msra.mxu0 0.0
  %6264 = vmatprep.subr.mxu0 0.0
  %6265 = vmatpush1.msra.mxu0 0.0
  %6266 = vmatprep.subr.mxu0 0.0
  %6267 = vmatpush1.msra.mxu0 0.0
  %6268 = vmatprep.subr.mxu0 0.0
  %6269 = vmatpush1.msra.mxu0 0.0
  %6270 = vmatprep.subr.mxu0 0.0
  %6271 = vmatpush1.msra.mxu0 0.0
  %6272 = vmatprep.subr.mxu0 0.0
  %6273 = vmatpush1.msra.mxu0 0.0
  %6274 = vmatprep.subr.mxu0 0.0
  %6275 = vmatpush1.msra.mxu0 0.0
  %6276 = vmatprep.mubr.f32.mxu0 0.0
  %v6277 = vand.u32 %v6178, 4294901760
  %v6278 = vsub.f32 %v6178, %v6277
  %v6279 = vand.u32 %v6278, 4294901760
  %v6280 = vsub.f32 %v6278, %v6279
  %v6281 = vand.u32 %v6280, 4294901760
  %6282 = vmatmul.mubr.f32.gmra.mrb[0].mxu0 %v6281
  %v6283 = vpop.f32.mrb[0].mxu0
  %v6284 = vadd.f32 0.0, %v6283
  %v6285 = vpop.f32.mrb[0].mxu0
  %v6286 = vadd.f32 0.0, %v6285
  %6287 = vmatprep.mubr.f32.mxu0 0.0
  %v6288 = vand.u32 %v6181, 4294901760
  %v6289 = vsub.f32 %v6181, %v6288
  %v6290 = vand.u32 %v6289, 4294901760
  %v6291 = vsub.f32 %v6289, %v6290
  %v6292 = vand.u32 %v6291, 4294901760
  %6293 = vmatmul.mubr.f32.gmra.mrb[0].mxu0 %v6292
  %v6294 = vpop.f32.mrb[0].mxu0
  %v6295 = vadd.f32 0.0, %v6294
  %v6296 = vpop.f32.mrb[0].mxu0
  %v6297 = vadd.f32 0.0, %v6296
  %6298 = vmatprep.mubr.f32.mxu0 0.0
  %v6299 = vand.u32 %v6184, 4294901760
  %v6300 = vsub.f32 %v6184, %v6299
  %v6301 = vand.u32 %v6300, 4294901760
  %v6302 = vsub.f32 %v6300, %v6301
  %v6303 = vand.u32 %v6302, 4294901760
  %6304 = vmatmul.mubr.f32.gmra.mrb[0].mxu0 %v6303
  %v6305 = vpop.f32.mrb[0].mxu0
  %v6306 = vadd.f32 0.0, %v6305
  %v6307 = vpop.f32.mrb[0].mxu0
  %v6308 = vadd.f32 0.0, %v6307
  %6309 = vmatprep.mubr.f32.mxu0 0.0
  %v6310 = vand.u32 %v6187, 4294901760
  %v6311 = vsub.f32 %v6187, %v6310
  %v6312 = vand.u32 %v6311, 4294901760
  %v6313 = vsub.f32 %v6311, %v6312
  %v6314 = vand.u32 %v6313, 4294901760
  %6315 = vmatmul.mubr.f32.gmra.mrb[0].mxu0 %v6314
  %v6316 = vpop.f32.mrb[0].mxu0
  %v6317 = vadd.f32 0.0, %v6316
  %v6318 = vpop.f32.mrb[0].mxu0
  %v6319 = vadd.f32 0.0, %v6318
  %6320 = vmatprep.mubr.f32.mxu0 0.0
  %v6321 = vand.u32 %v6190, 4294901760
  %v6322 = vsub.f32 %v6190, %v6321
  %v6323 = vand.u32 %v6322, 4294901760
  %v6324 = vsub.f32 %v6322, %v6323
  %v6325 = vand.u32 %v6324, 4294901760
  %6326 = vmatmul.mubr.f32.gmra.mrb[0].mxu0 %v6325
  %v6327 = vpop.f32.mrb[0].mxu0
  %v6328 = vadd.f32 0.0, %v6327
  %v6329 = vpop.f32.mrb[0].mxu0
  %v6330 = vadd.f32 0.0, %v6329
  %6331 = vmatprep.mubr.f32.mxu0 0.0
  %v6332 = vand.u32 %v6193, 4294901760
  %v6333 = vsub.f32 %v6193, %v6332
  %v6334 = vand.u32 %v6333, 4294901760
  %v6335 = vsub.f32 %v6333, %v6334
  %v6336 = vand.u32 %v6335, 4294901760
  %6337 = vmatmul.mubr.f32.gmra.mrb[0].mxu0 %v6336
  %v6338 = vpop.f32.mrb[0].mxu0
  %v6339 = vadd.f32 0.0, %v6338
  %v6340 = vpop.f32.mrb[0].mxu0
  %v6341 = vadd.f32 0.0, %v6340
  %6342 = vmatprep.mubr.f32.mxu0 0.0
  %v6343 = vand.u32 %v6196, 4294901760
  %v6344 = vsub.f32 %v6196, %v6343
  %v6345 = vand.u32 %v6344, 4294901760
  %v6346 = vsub.f32 %v6344, %v6345
  %v6347 = vand.u32 %v6346, 4294901760
  %6348 = vmatmul.mubr.f32.gmra.mrb[0].mxu0 %v6347
  %v6349 = vpop.f32.mrb[0].mxu0
  %v6350 = vadd.f32 0.0, %v6349
  %v6351 = vpop.f32.mrb[0].mxu0
  %v6352 = vadd.f32 0.0, %v6351
  %6353 = vdwg.mxu0
  %v6354 = vand.u32 %v6156, 4294901760
  %v6355 = vsub.f32 %v6156, %v6354
  %v6356 = vand.u32 %v6355, 4294901760
  %v6357 = vsub.f32 %v6355, %v6356
  %v6358 = vand.u32 %v6357, 4294901760
  %6359 = vmatprep.subr.mxu0 %v6358
  %v6360 = vand.u32 %v6155, 4294901760
  %v6361 = vsub.f32 %v6155, %v6360
  %v6362 = vand.u32 %v6361, 4294901760
  %v6363 = vsub.f32 %v6361, %v6362
  %v6364 = vand.u32 %v6363, 4294901760
  %6365 = vmatpush1.msra.mxu0 %v6364
  %v6366 = vand.u32 %v6158, 4294901760
  %v6367 = vsub.f32 %v6158, %v6366
  %v6368 = vand.u32 %v6367, 4294901760
  %v6369 = vsub.f32 %v6367, %v6368
  %v6370 = vand.u32 %v6369, 4294901760
  %6371 = vmatprep.subr.mxu0 %v6370
  %v6372 = vand.u32 %v6157, 4294901760
  %v6373 = vsub.f32 %v6157, %v6372
  %v6374 = vand.u32 %v6373, 4294901760
  %v6375 = vsub.f32 %v6373, %v6374
  %v6376 = vand.u32 %v6375, 4294901760
  %6377 = vmatpush1.msra.mxu0 %v6376
  %v6378 = vand.u32 %v6160, 4294901760
  %v6379 = vsub.f32 %v6160, %v6378
  %v6380 = vand.u32 %v6379, 4294901760
  %v6381 = vsub.f32 %v6379, %v6380
  %v6382 = vand.u32 %v6381, 4294901760
  %6383 = vmatprep.subr.mxu0 %v6382
  %v6384 = vand.u32 %v6159, 4294901760
  %v6385 = vsub.f32 %v6159, %v6384
  %v6386 = vand.u32 %v6385, 4294901760
  %v6387 = vsub.f32 %v6385, %v6386
  %v6388 = vand.u32 %v6387, 4294901760
  %6389 = vmatpush1.msra.mxu0 %v6388
  %v6390 = vand.u32 %v6162, 4294901760
  %v6391 = vsub.f32 %v6162, %v6390
  %v6392 = vand.u32 %v6391, 4294901760
  %v6393 = vsub.f32 %v6391, %v6392
  %v6394 = vand.u32 %v6393, 4294901760
  %6395 = vmatprep.subr.mxu0 %v6394
  %v6396 = vand.u32 %v6161, 4294901760
  %v6397 = vsub.f32 %v6161, %v6396
  %v6398 = vand.u32 %v6397, 4294901760
  %v6399 = vsub.f32 %v6397, %v6398
  %v6400 = vand.u32 %v6399, 4294901760
  %6401 = vmatpush1.msra.mxu0 %v6400
  %v6402 = vand.u32 %v6164, 4294901760
  %v6403 = vsub.f32 %v6164, %v6402
  %v6404 = vand.u32 %v6403, 4294901760
  %v6405 = vsub.f32 %v6403, %v6404
  %v6406 = vand.u32 %v6405, 4294901760
  %6407 = vmatprep.subr.mxu0 %v6406
  %v6408 = vand.u32 %v6163, 4294901760
  %v6409 = vsub.f32 %v6163, %v6408
  %v6410 = vand.u32 %v6409, 4294901760
  %v6411 = vsub.f32 %v6409, %v6410
  %v6412 = vand.u32 %v6411, 4294901760
  %6413 = vmatpush1.msra.mxu0 %v6412
  %v6414 = vand.u32 %v6166, 4294901760
  %v6415 = vsub.f32 %v6166, %v6414
  %v6416 = vand.u32 %v6415, 4294901760
  %v6417 = vsub.f32 %v6415, %v6416
  %v6418 = vand.u32 %v6417, 4294901760
  %6419 = vmatprep.subr.mxu0 %v6418
  %v6420 = vand.u32 %v6165, 4294901760
  %v6421 = vsub.f32 %v6165, %v6420
  %v6422 = vand.u32 %v6421, 4294901760
  %v6423 = vsub.f32 %v6421, %v6422
  %v6424 = vand.u32 %v6423, 4294901760
  %6425 = vmatpush1.msra.mxu0 %v6424
  %v6426 = vand.u32 %v6168, 4294901760
  %v6427 = vsub.f32 %v6168, %v6426
  %v6428 = vand.u32 %v6427, 4294901760
  %v6429 = vsub.f32 %v6427, %v6428
  %v6430 = vand.u32 %v6429, 4294901760
  %6431 = vmatprep.subr.mxu0 %v6430
  %v6432 = vand.u32 %v6167, 4294901760
  %v6433 = vsub.f32 %v6167, %v6432
  %v6434 = vand.u32 %v6433, 4294901760
  %v6435 = vsub.f32 %v6433, %v6434
  %v6436 = vand.u32 %v6435, 4294901760
  %6437 = vmatpush1.msra.mxu0 %v6436
  %6438 = vmatprep.subr.mxu0 0.0
  %6439 = vmatpush1.msra.mxu0 0.0
  %6440 = vmatprep.subr.mxu0 0.0
  %6441 = vmatpush1.msra.mxu0 0.0
  %6442 = vmatprep.subr.mxu0 0.0
  %6443 = vmatpush1.msra.mxu0 0.0
  %6444 = vmatprep.subr.mxu0 0.0
  %6445 = vmatpush1.msra.mxu0 0.0
  %6446 = vmatprep.subr.mxu0 0.0
  %6447 = vmatpush1.msra.mxu0 0.0
  %6448 = vmatprep.subr.mxu0 0.0
  %6449 = vmatpush1.msra.mxu0 0.0
  %6450 = vmatprep.subr.mxu0 0.0
  %6451 = vmatpush1.msra.mxu0 0.0
  %6452 = vmatprep.subr.mxu0 0.0
  %6453 = vmatpush1.msra.mxu0 0.0
  %6454 = vmatprep.subr.mxu0 0.0
  %6455 = vmatpush1.msra.mxu0 0.0
  %6456 = vmatprep.subr.mxu0 0.0
  %6457 = vmatpush1.msra.mxu0 0.0
  %6458 = vmatprep.subr.mxu0 0.0
  %6459 = vmatpush1.msra.mxu0 0.0
  %6460 = vmatprep.subr.mxu0 0.0
  %6461 = vmatpush1.msra.mxu0 0.0
  %6462 = vmatprep.subr.mxu0 0.0
  %6463 = vmatpush1.msra.mxu0 0.0
  %6464 = vmatprep.subr.mxu0 0.0
  %6465 = vmatpush1.msra.mxu0 0.0
  %6466 = vmatprep.subr.mxu0 0.0
  %6467 = vmatpush1.msra.mxu0 0.0
  %6468 = vmatprep.subr.mxu0 0.0
  %6469 = vmatpush1.msra.mxu0 0.0
  %6470 = vmatprep.subr.mxu0 0.0
  %6471 = vmatpush1.msra.mxu0 0.0
  %6472 = vmatprep.subr.mxu0 0.0
  %6473 = vmatpush1.msra.mxu0 0.0
  %6474 = vmatprep.subr.mxu0 0.0
  %6475 = vmatpush1.msra.mxu0 0.0
  %6476 = vmatprep.subr.mxu0 0.0
  %6477 = vmatpush1.msra.mxu0 0.0
  %6478 = vmatprep.subr.mxu0 0.0
  %6479 = vmatpush1.msra.mxu0 0.0
  %6480 = vmatprep.subr.mxu0 0.0
  %6481 = vmatpush1.msra.mxu0 0.0
  %6482 = vmatprep.subr.mxu0 0.0
  %6483 = vmatpush1.msra.mxu0 0.0
  %6484 = vmatprep.subr.mxu0 0.0
  %6485 = vmatpush1.msra.mxu0 0.0
  %6486 = vmatprep.subr.mxu0 0.0
  %6487 = vmatpush1.msra.mxu0 0.0
  %6488 = vmatprep.mubr.f32.mxu0 0.0
  %v6489 = vand.u32 %v6178, 4294901760
  %6490 = vmatmul.mubr.f32.gmra.mrb[0].mxu0 %v6489
  %v6491 = vpop.f32.mrb[0].mxu0
  %v6492 = vadd.f32 %v6284, %v6491
  %v6493 = vpop.f32.mrb[0].mxu0
  %v6494 = vadd.f32 %v6286, %v6493
  %6495 = vmatprep.mubr.f32.mxu0 0.0
  %v6496 = vand.u32 %v6181, 4294901760
  %6497 = vmatmul.mubr.f32.gmra.mrb[0].mxu0 %v6496
  %v6498 = vpop.f32.mrb[0].mxu0
  %v6499 = vadd.f32 %v6295, %v6498
  %v6500 = vpop.f32.mrb[0].mxu0
  %v6501 = vadd.f32 %v6297, %v6500
  %6502 = vmatprep.mubr.f32.mxu0 0.0
  %v6503 = vand.u32 %v6184, 4294901760
  %6504 = vmatmul.mubr.f32.gmra.mrb[0].mxu0 %v6503
  %v6505 = vpop.f32.mrb[0].mxu0
  %v6506 = vadd.f32 %v6306, %v6505
  %v6507 = vpop.f32.mrb[0].mxu0
  %v6508 = vadd.f32 %v6308, %v6507
  %6509 = vmatprep.mubr.f32.mxu0 0.0
  %v6510 = vand.u32 %v6187, 4294901760
  %6511 = vmatmul.mubr.f32.gmra.mrb[0].mxu0 %v6510
  %v6512 = vpop.f32.mrb[0].mxu0
  %v6513 = vadd.f32 %v6317, %v6512
  %v6514 = vpop.f32.mrb[0].mxu0
  %v6515 = vadd.f32 %v6319, %v6514
  %6516 = vmatprep.mubr.f32.mxu0 0.0
  %v6517 = vand.u32 %v6190, 4294901760
  %6518 = vmatmul.mubr.f32.gmra.mrb[0].mxu0 %v6517
  %v6519 = vpop.f32.mrb[0].mxu0
  %v6520 = vadd.f32 %v6328, %v6519
  %v6521 = vpop.f32.mrb[0].mxu0
  %v6522 = vadd.f32 %v6330, %v6521
  %6523 = vmatprep.mubr.f32.mxu0 0.0
  %v6524 = vand.u32 %v6193, 4294901760
  %6525 = vmatmul.mubr.f32.gmra.mrb[0].mxu0 %v6524
  %v6526 = vpop.f32.mrb[0].mxu0
  %v6527 = vadd.f32 %v6339, %v6526
  %v6528 = vpop.f32.mrb[0].mxu0
  %v6529 = vadd.f32 %v6341, %v6528
  %6530 = vmatprep.mubr.f32.mxu0 0.0
  %v6531 = vand.u32 %v6196, 4294901760
  %6532 = vmatmul.mubr.f32.gmra.mrb[0].mxu0 %v6531
  %v6533 = vpop.f32.mrb[0].mxu0
  %v6534 = vadd.f32 %v6350, %v6533
  %v6535 = vpop.f32.mrb[0].mxu0
  %v6536 = vadd.f32 %v6352, %v6535
  %6537 = vdwg.mxu0
  %v6538 = vand.u32 %v6156, 4294901760
  %v6539 = vsub.f32 %v6156, %v6538
  %6540 = vmatprep.subr.mxu0 %v6539
  %v6541 = vand.u32 %v6155, 4294901760
  %v6542 = vsub.f32 %v6155, %v6541
  %6543 = vmatpush1.msra.mxu0 %v6542
  %v6544 = vand.u32 %v6158, 4294901760
  %v6545 = vsub.f32 %v6158, %v6544
  %6546 = vmatprep.subr.mxu0 %v6545
  %v6547 = vand.u32 %v6157, 4294901760
  %v6548 = vsub.f32 %v6157, %v6547
  %6549 = vmatpush1.msra.mxu0 %v6548
  %v6550 = vand.u32 %v6160, 4294901760
  %v6551 = vsub.f32 %v6160, %v6550
  %6552 = vmatprep.subr.mxu0 %v6551
  %v6553 = vand.u32 %v6159, 4294901760
  %v6554 = vsub.f32 %v6159, %v6553
  %6555 = vmatpush1.msra.mxu0 %v6554
  %v6556 = vand.u32 %v6162, 4294901760
  %v6557 = vsub.f32 %v6162, %v6556
  %6558 = vmatprep.subr.mxu0 %v6557
  %v6559 = vand.u32 %v6161, 4294901760
  %v6560 = vsub.f32 %v6161, %v6559
  %6561 = vmatpush1.msra.mxu0 %v6560
  %v6562 = vand.u32 %v6164, 4294901760
  %v6563 = vsub.f32 %v6164, %v6562
  %6564 = vmatprep.subr.mxu0 %v6563
  %v6565 = vand.u32 %v6163, 4294901760
  %v6566 = vsub.f32 %v6163, %v6565
  %6567 = vmatpush1.msra.mxu0 %v6566
  %v6568 = vand.u32 %v6166, 4294901760
  %v6569 = vsub.f32 %v6166, %v6568
  %6570 = vmatprep.subr.mxu0 %v6569
  %v6571 = vand.u32 %v6165, 4294901760
  %v6572 = vsub.f32 %v6165, %v6571
  %6573 = vmatpush1.msra.mxu0 %v6572
  %v6574 = vand.u32 %v6168, 4294901760
  %v6575 = vsub.f32 %v6168, %v6574
  %6576 = vmatprep.subr.mxu0 %v6575
  %v6577 = vand.u32 %v6167, 4294901760
  %v6578 = vsub.f32 %v6167, %v6577
  %6579 = vmatpush1.msra.mxu0 %v6578
  %6580 = vmatprep.subr.mxu0 0.0
  %6581 = vmatpush1.msra.mxu0 0.0
  %6582 = vmatprep.subr.mxu0 0.0
  %6583 = vmatpush1.msra.mxu0 0.0
  %6584 = vmatprep.subr.mxu0 0.0
  %6585 = vmatpush1.msra.mxu0 0.0
  %6586 = vmatprep.subr.mxu0 0.0
  %6587 = vmatpush1.msra.mxu0 0.0
  %6588 = vmatprep.subr.mxu0 0.0
  %6589 = vmatpush1.msra.mxu0 0.0
  %6590 = vmatprep.subr.mxu0 0.0
  %6591 = vmatpush1.msra.mxu0 0.0
  %6592 = vmatprep.subr.mxu0 0.0
  %6593 = vmatpush1.msra.mxu0 0.0
  %6594 = vmatprep.subr.mxu0 0.0
  %6595 = vmatpush1.msra.mxu0 0.0
  %6596 = vmatprep.subr.mxu0 0.0
  %6597 = vmatpush1.msra.mxu0 0.0
  %6598 = vmatprep.subr.mxu0 0.0
  %6599 = vmatpush1.msra.mxu0 0.0
  %6600 = vmatprep.subr.mxu0 0.0
  %6601 = vmatpush1.msra.mxu0 0.0
  %6602 = vmatprep.subr.mxu0 0.0
  %6603 = vmatpush1.msra.mxu0 0.0
  %6604 = vmatprep.subr.mxu0 0.0
  %6605 = vmatpush1.msra.mxu0 0.0
  %6606 = vmatprep.subr.mxu0 0.0
  %6607 = vmatpush1.msra.mxu0 0.0
  %6608 = vmatprep.subr.mxu0 0.0
  %6609 = vmatpush1.msra.mxu0 0.0
  %6610 = vmatprep.subr.mxu0 0.0
  %6611 = vmatpush1.msra.mxu0 0.0
  %6612 = vmatprep.subr.mxu0 0.0
  %6613 = vmatpush1.msra.mxu0 0.0
  %6614 = vmatprep.subr.mxu0 0.0
  %6615 = vmatpush1.msra.mxu0 0.0
  %6616 = vmatprep.subr.mxu0 0.0
  %6617 = vmatpush1.msra.mxu0 0.0
  %6618 = vmatprep.subr.mxu0 0.0
  %6619 = vmatpush1.msra.mxu0 0.0
  %6620 = vmatprep.subr.mxu0 0.0
  %6621 = vmatpush1.msra.mxu0 0.0
  %6622 = vmatprep.subr.mxu0 0.0
  %6623 = vmatpush1.msra.mxu0 0.0
  %6624 = vmatprep.subr.mxu0 0.0
  %6625 = vmatpush1.msra.mxu0 0.0
  %6626 = vmatprep.subr.mxu0 0.0
  %6627 = vmatpush1.msra.mxu0 0.0
  %6628 = vmatprep.subr.mxu0 0.0
  %6629 = vmatpush1.msra.mxu0 0.0
  %6630 = vmatprep.mubr.f32.mxu0 0.0
  %v6631 = vand.u32 %v6178, 4294901760
  %v6632 = vsub.f32 %v6178, %v6631
  %6633 = vmatmul.mubr.f32.gmra.mrb[0].mxu0 %v6632
  %v6634 = vpop.f32.mrb[0].mxu0
  %v6635 = vadd.f32 %v6492, %v6634
  %v6636 = vpop.f32.mrb[0].mxu0
  %v6637 = vadd.f32 %v6494, %v6636
  %6638 = vmatprep.mubr.f32.mxu0 0.0
  %v6639 = vand.u32 %v6181, 4294901760
  %v6640 = vsub.f32 %v6181, %v6639
  %6641 = vmatmul.mubr.f32.gmra.mrb[0].mxu0 %v6640
  %v6642 = vpop.f32.mrb[0].mxu0
  %v6643 = vadd.f32 %v6499, %v6642
  %v6644 = vpop.f32.mrb[0].mxu0
  %v6645 = vadd.f32 %v6501, %v6644
  %6646 = vmatprep.mubr.f32.mxu0 0.0
  %v6647 = vand.u32 %v6184, 4294901760
  %v6648 = vsub.f32 %v6184, %v6647
  %6649 = vmatmul.mubr.f32.gmra.mrb[0].mxu0 %v6648
  %v6650 = vpop.f32.mrb[0].mxu0
  %v6651 = vadd.f32 %v6506, %v6650
  %v6652 = vpop.f32.mrb[0].mxu0
  %v6653 = vadd.f32 %v6508, %v6652
  %6654 = vmatprep.mubr.f32.mxu0 0.0
  %v6655 = vand.u32 %v6187, 4294901760
  %v6656 = vsub.f32 %v6187, %v6655
  %6657 = vmatmul.mubr.f32.gmra.mrb[0].mxu0 %v6656
  %v6658 = vpop.f32.mrb[0].mxu0
  %v6659 = vadd.f32 %v6513, %v6658
  %v6660 = vpop.f32.mrb[0].mxu0
  %v6661 = vadd.f32 %v6515, %v6660
  %6662 = vmatprep.mubr.f32.mxu0 0.0
  %v6663 = vand.u32 %v6190, 4294901760
  %v6664 = vsub.f32 %v6190, %v6663
  %6665 = vmatmul.mubr.f32.gmra.mrb[0].mxu0 %v6664
  %v6666 = vpop.f32.mrb[0].mxu0
  %v6667 = vadd.f32 %v6520, %v6666
  %v6668 = vpop.f32.mrb[0].mxu0
  %v6669 = vadd.f32 %v6522, %v6668
  %6670 = vmatprep.mubr.f32.mxu0 0.0
  %v6671 = vand.u32 %v6193, 4294901760
  %v6672 = vsub.f32 %v6193, %v6671
  %6673 = vmatmul.mubr.f32.gmra.mrb[0].mxu0 %v6672
  %v6674 = vpop.f32.mrb[0].mxu0
  %v6675 = vadd.f32 %v6527, %v6674
  %v6676 = vpop.f32.mrb[0].mxu0
  %v6677 = vadd.f32 %v6529, %v6676
  %6678 = vmatprep.mubr.f32.mxu0 0.0
  %v6679 = vand.u32 %v6196, 4294901760
  %v6680 = vsub.f32 %v6196, %v6679
  %6681 = vmatmul.mubr.f32.gmra.mrb[0].mxu0 %v6680
  %v6682 = vpop.f32.mrb[0].mxu0
  %v6683 = vadd.f32 %v6534, %v6682
  %v6684 = vpop.f32.mrb[0].mxu0
  %v6685 = vadd.f32 %v6536, %v6684
  %6686 = vdwg.mxu0
  %v6687 = vand.u32 %v6156, 4294901760
  %6688 = vmatprep.subr.mxu0 %v6687
  %v6689 = vand.u32 %v6155, 4294901760
  %6690 = vmatpush1.msra.mxu0 %v6689
  %v6691 = vand.u32 %v6158, 4294901760
  %6692 = vmatprep.subr.mxu0 %v6691
  %v6693 = vand.u32 %v6157, 4294901760
  %6694 = vmatpush1.msra.mxu0 %v6693
  %v6695 = vand.u32 %v6160, 4294901760
  %6696 = vmatprep.subr.mxu0 %v6695
  %v6697 = vand.u32 %v6159, 4294901760
  %6698 = vmatpush1.msra.mxu0 %v6697
  %v6699 = vand.u32 %v6162, 4294901760
  %6700 = vmatprep.subr.mxu0 %v6699
  %v6701 = vand.u32 %v6161, 4294901760
  %6702 = vmatpush1.msra.mxu0 %v6701
  %v6703 = vand.u32 %v6164, 4294901760
  %6704 = vmatprep.subr.mxu0 %v6703
  %v6705 = vand.u32 %v6163, 4294901760
  %6706 = vmatpush1.msra.mxu0 %v6705
  %v6707 = vand.u32 %v6166, 4294901760
  %6708 = vmatprep.subr.mxu0 %v6707
  %v6709 = vand.u32 %v6165, 4294901760
  %6710 = vmatpush1.msra.mxu0 %v6709
  %v6711 = vand.u32 %v6168, 4294901760
  %6712 = vmatprep.subr.mxu0 %v6711
  %v6713 = vand.u32 %v6167, 4294901760
  %6714 = vmatpush1.msra.mxu0 %v6713
  %6715 = vmatprep.subr.mxu0 0.0
  %6716 = vmatpush1.msra.mxu0 0.0
  %6717 = vmatprep.subr.mxu0 0.0
  %6718 = vmatpush1.msra.mxu0 0.0
  %6719 = vmatprep.subr.mxu0 0.0
  %6720 = vmatpush1.msra.mxu0 0.0
  %6721 = vmatprep.subr.mxu0 0.0
  %6722 = vmatpush1.msra.mxu0 0.0
  %6723 = vmatprep.subr.mxu0 0.0
  %6724 = vmatpush1.msra.mxu0 0.0
  %6725 = vmatprep.subr.mxu0 0.0
  %6726 = vmatpush1.msra.mxu0 0.0
  %6727 = vmatprep.subr.mxu0 0.0
  %6728 = vmatpush1.msra.mxu0 0.0
  %6729 = vmatprep.subr.mxu0 0.0
  %6730 = vmatpush1.msra.mxu0 0.0
  %6731 = vmatprep.subr.mxu0 0.0
  %6732 = vmatpush1.msra.mxu0 0.0
  %6733 = vmatprep.subr.mxu0 0.0
  %6734 = vmatpush1.msra.mxu0 0.0
  %6735 = vmatprep.subr.mxu0 0.0
  %6736 = vmatpush1.msra.mxu0 0.0
  %6737 = vmatprep.subr.mxu0 0.0
  %6738 = vmatpush1.msra.mxu0 0.0
  %6739 = vmatprep.subr.mxu0 0.0
  %6740 = vmatpush1.msra.mxu0 0.0
  %6741 = vmatprep.subr.mxu0 0.0
  %6742 = vmatpush1.msra.mxu0 0.0
  %6743 = vmatprep.subr.mxu0 0.0
  %6744 = vmatpush1.msra.mxu0 0.0
  %6745 = vmatprep.subr.mxu0 0.0
  %6746 = vmatpush1.msra.mxu0 0.0
  %6747 = vmatprep.subr.mxu0 0.0
  %6748 = vmatpush1.msra.mxu0 0.0
  %6749 = vmatprep.subr.mxu0 0.0
  %6750 = vmatpush1.msra.mxu0 0.0
  %6751 = vmatprep.subr.mxu0 0.0
  %6752 = vmatpush1.msra.mxu0 0.0
  %6753 = vmatprep.subr.mxu0 0.0
  %6754 = vmatpush1.msra.mxu0 0.0
  %6755 = vmatprep.subr.mxu0 0.0
  %6756 = vmatpush1.msra.mxu0 0.0
  %6757 = vmatprep.subr.mxu0 0.0
  %6758 = vmatpush1.msra.mxu0 0.0
  %6759 = vmatprep.subr.mxu0 0.0
  %6760 = vmatpush1.msra.mxu0 0.0
  %6761 = vmatprep.subr.mxu0 0.0
  %6762 = vmatpush1.msra.mxu0 0.0
  %6763 = vmatprep.subr.mxu0 0.0
  %6764 = vmatpush1.msra.mxu0 0.0
  %6765 = vmatprep.mubr.f32.mxu0 0.0
  %v6766 = vand.u32 %v6178, 4294901760
  %v6767 = vsub.f32 %v6178, %v6766
  %v6768 = vand.u32 %v6767, 4294901760
  %6769 = vmatmul.mubr.f32.gmra.mrb[0].mxu0 %v6768
  %v6770 = vpop.f32.mrb[0].mxu0
  %v6771 = vadd.f32 %v6635, %v6770
  %v6772 = vpop.f32.mrb[0].mxu0
  %v6773 = vadd.f32 %v6637, %v6772
  %6774 = vmatprep.mubr.f32.mxu0 0.0
  %v6775 = vand.u32 %v6181, 4294901760
  %v6776 = vsub.f32 %v6181, %v6775
  %v6777 = vand.u32 %v6776, 4294901760
  %6778 = vmatmul.mubr.f32.gmra.mrb[0].mxu0 %v6777
  %v6779 = vpop.f32.mrb[0].mxu0
  %v6780 = vadd.f32 %v6643, %v6779
  %v6781 = vpop.f32.mrb[0].mxu0
  %v6782 = vadd.f32 %v6645, %v6781
  %6783 = vmatprep.mubr.f32.mxu0 0.0
  %v6784 = vand.u32 %v6184, 4294901760
  %v6785 = vsub.f32 %v6184, %v6784
  %v6786 = vand.u32 %v6785, 4294901760
  %6787 = vmatmul.mubr.f32.gmra.mrb[0].mxu0 %v6786
  %v6788 = vpop.f32.mrb[0].mxu0
  %v6789 = vadd.f32 %v6651, %v6788
  %v6790 = vpop.f32.mrb[0].mxu0
  %v6791 = vadd.f32 %v6653, %v6790
  %6792 = vmatprep.mubr.f32.mxu0 0.0
  %v6793 = vand.u32 %v6187, 4294901760
  %v6794 = vsub.f32 %v6187, %v6793
  %v6795 = vand.u32 %v6794, 4294901760
  %6796 = vmatmul.mubr.f32.gmra.mrb[0].mxu0 %v6795
  %v6797 = vpop.f32.mrb[0].mxu0
  %v6798 = vadd.f32 %v6659, %v6797
  %v6799 = vpop.f32.mrb[0].mxu0
  %v6800 = vadd.f32 %v6661, %v6799
  %6801 = vmatprep.mubr.f32.mxu0 0.0
  %v6802 = vand.u32 %v6190, 4294901760
  %v6803 = vsub.f32 %v6190, %v6802
  %v6804 = vand.u32 %v6803, 4294901760
  %6805 = vmatmul.mubr.f32.gmra.mrb[0].mxu0 %v6804
  %v6806 = vpop.f32.mrb[0].mxu0
  %v6807 = vadd.f32 %v6667, %v6806
  %v6808 = vpop.f32.mrb[0].mxu0
  %v6809 = vadd.f32 %v6669, %v6808
  %6810 = vmatprep.mubr.f32.mxu0 0.0
  %v6811 = vand.u32 %v6193, 4294901760
  %v6812 = vsub.f32 %v6193, %v6811
  %v6813 = vand.u32 %v6812, 4294901760
  %6814 = vmatmul.mubr.f32.gmra.mrb[0].mxu0 %v6813
  %v6815 = vpop.f32.mrb[0].mxu0
  %v6816 = vadd.f32 %v6675, %v6815
  %v6817 = vpop.f32.mrb[0].mxu0
  %v6818 = vadd.f32 %v6677, %v6817
  %6819 = vmatprep.mubr.f32.mxu0 0.0
  %v6820 = vand.u32 %v6196, 4294901760
  %v6821 = vsub.f32 %v6196, %v6820
  %v6822 = vand.u32 %v6821, 4294901760
  %6823 = vmatmul.mubr.f32.gmra.mrb[0].mxu0 %v6822
  %v6824 = vpop.f32.mrb[0].mxu0
  %v6825 = vadd.f32 %v6683, %v6824
  %v6826 = vpop.f32.mrb[0].mxu0
  %v6827 = vadd.f32 %v6685, %v6826
  %6828 = vdwg.mxu0
  %v6829 = vand.u32 %v6156, 4294901760
  %v6830 = vsub.f32 %v6156, %v6829
  %v6831 = vand.u32 %v6830, 4294901760
  %6832 = vmatprep.subr.mxu0 %v6831
  %v6833 = vand.u32 %v6155, 4294901760
  %v6834 = vsub.f32 %v6155, %v6833
  %v6835 = vand.u32 %v6834, 4294901760
  %6836 = vmatpush1.msra.mxu0 %v6835
  %v6837 = vand.u32 %v6158, 4294901760
  %v6838 = vsub.f32 %v6158, %v6837
  %v6839 = vand.u32 %v6838, 4294901760
  %6840 = vmatprep.subr.mxu0 %v6839
  %v6841 = vand.u32 %v6157, 4294901760
  %v6842 = vsub.f32 %v6157, %v6841
  %v6843 = vand.u32 %v6842, 4294901760
  %6844 = vmatpush1.msra.mxu0 %v6843
  %v6845 = vand.u32 %v6160, 4294901760
  %v6846 = vsub.f32 %v6160, %v6845
  %v6847 = vand.u32 %v6846, 4294901760
  %6848 = vmatprep.subr.mxu0 %v6847
  %v6849 = vand.u32 %v6159, 4294901760
  %v6850 = vsub.f32 %v6159, %v6849
  %v6851 = vand.u32 %v6850, 4294901760
  %6852 = vmatpush1.msra.mxu0 %v6851
  %v6853 = vand.u32 %v6162, 4294901760
  %v6854 = vsub.f32 %v6162, %v6853
  %v6855 = vand.u32 %v6854, 4294901760
  %6856 = vmatprep.subr.mxu0 %v6855
  %v6857 = vand.u32 %v6161, 4294901760
  %v6858 = vsub.f32 %v6161, %v6857
  %v6859 = vand.u32 %v6858, 4294901760
  %6860 = vmatpush1.msra.mxu0 %v6859
  %v6861 = vand.u32 %v6164, 4294901760
  %v6862 = vsub.f32 %v6164, %v6861
  %v6863 = vand.u32 %v6862, 4294901760
  %6864 = vmatprep.subr.mxu0 %v6863
  %v6865 = vand.u32 %v6163, 4294901760
  %v6866 = vsub.f32 %v6163, %v6865
  %v6867 = vand.u32 %v6866, 4294901760
  %6868 = vmatpush1.msra.mxu0 %v6867
  %v6869 = vand.u32 %v6166, 4294901760
  %v6870 = vsub.f32 %v6166, %v6869
  %v6871 = vand.u32 %v6870, 4294901760
  %6872 = vmatprep.subr.mxu0 %v6871
  %v6873 = vand.u32 %v6165, 4294901760
  %v6874 = vsub.f32 %v6165, %v6873
  %v6875 = vand.u32 %v6874, 4294901760
  %6876 = vmatpush1.msra.mxu0 %v6875
  %v6877 = vand.u32 %v6168, 4294901760
  %v6878 = vsub.f32 %v6168, %v6877
  %v6879 = vand.u32 %v6878, 4294901760
  %6880 = vmatprep.subr.mxu0 %v6879
  %v6881 = vand.u32 %v6167, 4294901760
  %v6882 = vsub.f32 %v6167, %v6881
  %v6883 = vand.u32 %v6882, 4294901760
  %6884 = vmatpush1.msra.mxu0 %v6883
  %6885 = vmatprep.subr.mxu0 0.0
  %6886 = vmatpush1.msra.mxu0 0.0
  %6887 = vmatprep.subr.mxu0 0.0
  %6888 = vmatpush1.msra.mxu0 0.0
  %6889 = vmatprep.subr.mxu0 0.0
  %6890 = vmatpush1.msra.mxu0 0.0
  %6891 = vmatprep.subr.mxu0 0.0
  %6892 = vmatpush1.msra.mxu0 0.0
  %6893 = vmatprep.subr.mxu0 0.0
  %6894 = vmatpush1.msra.mxu0 0.0
  %6895 = vmatprep.subr.mxu0 0.0
  %6896 = vmatpush1.msra.mxu0 0.0
  %6897 = vmatprep.subr.mxu0 0.0
  %6898 = vmatpush1.msra.mxu0 0.0
  %6899 = vmatprep.subr.mxu0 0.0
  %6900 = vmatpush1.msra.mxu0 0.0
  %6901 = vmatprep.subr.mxu0 0.0
  %6902 = vmatpush1.msra.mxu0 0.0
  %6903 = vmatprep.subr.mxu0 0.0
  %6904 = vmatpush1.msra.mxu0 0.0
  %6905 = vmatprep.subr.mxu0 0.0
  %6906 = vmatpush1.msra.mxu0 0.0
  %6907 = vmatprep.subr.mxu0 0.0
  %6908 = vmatpush1.msra.mxu0 0.0
  %6909 = vmatprep.subr.mxu0 0.0
  %6910 = vmatpush1.msra.mxu0 0.0
  %6911 = vmatprep.subr.mxu0 0.0
  %6912 = vmatpush1.msra.mxu0 0.0
  %6913 = vmatprep.subr.mxu0 0.0
  %6914 = vmatpush1.msra.mxu0 0.0
  %6915 = vmatprep.subr.mxu0 0.0
  %6916 = vmatpush1.msra.mxu0 0.0
  %6917 = vmatprep.subr.mxu0 0.0
  %6918 = vmatpush1.msra.mxu0 0.0
  %6919 = vmatprep.subr.mxu0 0.0
  %6920 = vmatpush1.msra.mxu0 0.0
  %6921 = vmatprep.subr.mxu0 0.0
  %6922 = vmatpush1.msra.mxu0 0.0
  %6923 = vmatprep.subr.mxu0 0.0
  %6924 = vmatpush1.msra.mxu0 0.0
  %6925 = vmatprep.subr.mxu0 0.0
  %6926 = vmatpush1.msra.mxu0 0.0
  %6927 = vmatprep.subr.mxu0 0.0
  %6928 = vmatpush1.msra.mxu0 0.0
  %6929 = vmatprep.subr.mxu0 0.0
  %6930 = vmatpush1.msra.mxu0 0.0
  %6931 = vmatprep.subr.mxu0 0.0
  %6932 = vmatpush1.msra.mxu0 0.0
  %6933 = vmatprep.subr.mxu0 0.0
  %6934 = vmatpush1.msra.mxu0 0.0
  %6935 = vmatprep.mubr.f32.mxu0 0.0
  %v6936 = vand.u32 %v6178, 4294901760
  %6937 = vmatmul.mubr.f32.gmra.mrb[0].mxu0 %v6936
  %v6938 = vpop.f32.mrb[0].mxu0
  %v6939 = vadd.f32 %v6771, %v6938
  %v6940 = vpop.f32.mrb[0].mxu0
  %v6941 = vadd.f32 %v6773, %v6940
  %6942 = vmatprep.mubr.f32.mxu0 0.0
  %v6943 = vand.u32 %v6181, 4294901760
  %6944 = vmatmul.mubr.f32.gmra.mrb[0].mxu0 %v6943
  %v6945 = vpop.f32.mrb[0].mxu0
  %v6946 = vadd.f32 %v6780, %v6945
  %v6947 = vpop.f32.mrb[0].mxu0
  %v6948 = vadd.f32 %v6782, %v6947
  %6949 = vmatprep.mubr.f32.mxu0 0.0
  %v6950 = vand.u32 %v6184, 4294901760
  %6951 = vmatmul.mubr.f32.gmra.mrb[0].mxu0 %v6950
  %v6952 = vpop.f32.mrb[0].mxu0
  %v6953 = vadd.f32 %v6789, %v6952
  %v6954 = vpop.f32.mrb[0].mxu0
  %v6955 = vadd.f32 %v6791, %v6954
  %6956 = vmatprep.mubr.f32.mxu0 0.0
  %v6957 = vand.u32 %v6187, 4294901760
  %6958 = vmatmul.mubr.f32.gmra.mrb[0].mxu0 %v6957
  %v6959 = vpop.f32.mrb[0].mxu0
  %v6960 = vadd.f32 %v6798, %v6959
  %v6961 = vpop.f32.mrb[0].mxu0
  %v6962 = vadd.f32 %v6800, %v6961
  %6963 = vmatprep.mubr.f32.mxu0 0.0
  %v6964 = vand.u32 %v6190, 4294901760
  %6965 = vmatmul.mubr.f32.gmra.mrb[0].mxu0 %v6964
  %v6966 = vpop.f32.mrb[0].mxu0
  %v6967 = vadd.f32 %v6807, %v6966
  %v6968 = vpop.f32.mrb[0].mxu0
  %v6969 = vadd.f32 %v6809, %v6968
  %6970 = vmatprep.mubr.f32.mxu0 0.0
  %v6971 = vand.u32 %v6193, 4294901760
  %6972 = vmatmul.mubr.f32.gmra.mrb[0].mxu0 %v6971
  %v6973 = vpop.f32.mrb[0].mxu0
  %v6974 = vadd.f32 %v6816, %v6973
  %v6975 = vpop.f32.mrb[0].mxu0
  %v6976 = vadd.f32 %v6818, %v6975
  %6977 = vmatprep.mubr.f32.mxu0 0.0
  %v6978 = vand.u32 %v6196, 4294901760
  %6979 = vmatmul.mubr.f32.gmra.mrb[0].mxu0 %v6978
  %v6980 = vpop.f32.mrb[0].mxu0
  %v6981 = vadd.f32 %v6825, %v6980
  %v6982 = vpop.f32.mrb[0].mxu0
  %v6983 = vadd.f32 %v6827, %v6982
  %6984 = vdwg.mxu0
  %v6985 = vand.u32 %v6156, 4294901760
  %6986 = vmatprep.subr.mxu0 %v6985
  %v6987 = vand.u32 %v6155, 4294901760
  %6988 = vmatpush1.msra.mxu0 %v6987
  %v6989 = vand.u32 %v6158, 4294901760
  %6990 = vmatprep.subr.mxu0 %v6989
  %v6991 = vand.u32 %v6157, 4294901760
  %6992 = vmatpush1.msra.mxu0 %v6991
  %v6993 = vand.u32 %v6160, 4294901760
  %6994 = vmatprep.subr.mxu0 %v6993
  %v6995 = vand.u32 %v6159, 4294901760
  %6996 = vmatpush1.msra.mxu0 %v6995
  %v6997 = vand.u32 %v6162, 4294901760
  %6998 = vmatprep.subr.mxu0 %v6997
  %v6999 = vand.u32 %v6161, 4294901760
  %7000 = vmatpush1.msra.mxu0 %v6999
  %v7001 = vand.u32 %v6164, 4294901760
  %7002 = vmatprep.subr.mxu0 %v7001
  %v7003 = vand.u32 %v6163, 4294901760
  %7004 = vmatpush1.msra.mxu0 %v7003
  %v7005 = vand.u32 %v6166, 4294901760
  %7006 = vmatprep.subr.mxu0 %v7005
  %v7007 = vand.u32 %v6165, 4294901760
  %7008 = vmatpush1.msra.mxu0 %v7007
  %v7009 = vand.u32 %v6168, 4294901760
  %7010 = vmatprep.subr.mxu0 %v7009
  %v7011 = vand.u32 %v6167, 4294901760
  %7012 = vmatpush1.msra.mxu0 %v7011
  %7013 = vmatprep.subr.mxu0 0.0
  %7014 = vmatpush1.msra.mxu0 0.0
  %7015 = vmatprep.subr.mxu0 0.0
  %7016 = vmatpush1.msra.mxu0 0.0
  %7017 = vmatprep.subr.mxu0 0.0
  %7018 = vmatpush1.msra.mxu0 0.0
  %7019 = vmatprep.subr.mxu0 0.0
  %7020 = vmatpush1.msra.mxu0 0.0
  %7021 = vmatprep.subr.mxu0 0.0
  %7022 = vmatpush1.msra.mxu0 0.0
  %7023 = vmatprep.subr.mxu0 0.0
  %7024 = vmatpush1.msra.mxu0 0.0
  %7025 = vmatprep.subr.mxu0 0.0
  %7026 = vmatpush1.msra.mxu0 0.0
  %7027 = vmatprep.subr.mxu0 0.0
  %7028 = vmatpush1.msra.mxu0 0.0
  %7029 = vmatprep.subr.mxu0 0.0
  %7030 = vmatpush1.msra.mxu0 0.0
  %7031 = vmatprep.subr.mxu0 0.0
  %7032 = vmatpush1.msra.mxu0 0.0
  %7033 = vmatprep.subr.mxu0 0.0
  %7034 = vmatpush1.msra.mxu0 0.0
  %7035 = vmatprep.subr.mxu0 0.0
  %7036 = vmatpush1.msra.mxu0 0.0
  %7037 = vmatprep.subr.mxu0 0.0
  %7038 = vmatpush1.msra.mxu0 0.0
  %7039 = vmatprep.subr.mxu0 0.0
  %7040 = vmatpush1.msra.mxu0 0.0
  %7041 = vmatprep.subr.mxu0 0.0
  %7042 = vmatpush1.msra.mxu0 0.0
  %7043 = vmatprep.subr.mxu0 0.0
  %7044 = vmatpush1.msra.mxu0 0.0
  %7045 = vmatprep.subr.mxu0 0.0
  %7046 = vmatpush1.msra.mxu0 0.0
  %7047 = vmatprep.subr.mxu0 0.0
  %7048 = vmatpush1.msra.mxu0 0.0
  %7049 = vmatprep.subr.mxu0 0.0
  %7050 = vmatpush1.msra.mxu0 0.0
  %7051 = vmatprep.subr.mxu0 0.0
  %7052 = vmatpush1.msra.mxu0 0.0
  %7053 = vmatprep.subr.mxu0 0.0
  %7054 = vmatpush1.msra.mxu0 0.0
  %7055 = vmatprep.subr.mxu0 0.0
  %7056 = vmatpush1.msra.mxu0 0.0
  %7057 = vmatprep.subr.mxu0 0.0
  %7058 = vmatpush1.msra.mxu0 0.0
  %7059 = vmatprep.subr.mxu0 0.0
  %7060 = vmatpush1.msra.mxu0 0.0
  %7061 = vmatprep.subr.mxu0 0.0
  %7062 = vmatpush1.msra.mxu0 0.0
  %7063 = vmatprep.mubr.f32.mxu0 0.0
  %v7064 = vand.u32 %v6178, 4294901760
  %7065 = vmatmul.mubr.f32.gmra.mrb[0].mxu0 %v7064
  %v7066 = vpop.f32.mrb[0].mxu0
  %v7067 = vadd.f32 %v6939, %v7066
  %v7068 = vpop.f32.mrb[0].mxu0
  %v7069 = vadd.f32 %v6941, %v7068
  %7070 = vmatprep.mubr.f32.mxu0 0.0
  %v7071 = vand.u32 %v6181, 4294901760
  %7072 = vmatmul.mubr.f32.gmra.mrb[0].mxu0 %v7071
  %v7073 = vpop.f32.mrb[0].mxu0
  %v7074 = vadd.f32 %v6946, %v7073
  %v7075 = vpop.f32.mrb[0].mxu0
  %v7076 = vadd.f32 %v6948, %v7075
  %7077 = vmatprep.mubr.f32.mxu0 0.0
  %v7078 = vand.u32 %v6184, 4294901760
  %7079 = vmatmul.mubr.f32.gmra.mrb[0].mxu0 %v7078
  %v7080 = vpop.f32.mrb[0].mxu0
  %v7081 = vadd.f32 %v6953, %v7080
  %v7082 = vpop.f32.mrb[0].mxu0
  %v7083 = vadd.f32 %v6955, %v7082
  %7084 = vmatprep.mubr.f32.mxu0 0.0
  %v7085 = vand.u32 %v6187, 4294901760
  %7086 = vmatmul.mubr.f32.gmra.mrb[0].mxu0 %v7085
  %v7087 = vpop.f32.mrb[0].mxu0
  %v7088 = vadd.f32 %v6960, %v7087
  %v7089 = vpop.f32.mrb[0].mxu0
  %v7090 = vadd.f32 %v6962, %v7089
  %7091 = vmatprep.mubr.f32.mxu0 0.0
  %v7092 = vand.u32 %v6190, 4294901760
  %7093 = vmatmul.mubr.f32.gmra.mrb[0].mxu0 %v7092
  %v7094 = vpop.f32.mrb[0].mxu0
  %v7095 = vadd.f32 %v6967, %v7094
  %v7096 = vpop.f32.mrb[0].mxu0
  %v7097 = vadd.f32 %v6969, %v7096
  %7098 = vmatprep.mubr.f32.mxu0 0.0
  %v7099 = vand.u32 %v6193, 4294901760
  %7100 = vmatmul.mubr.f32.gmra.mrb[0].mxu0 %v7099
  %v7101 = vpop.f32.mrb[0].mxu0
  %v7102 = vadd.f32 %v6974, %v7101
  %v7103 = vpop.f32.mrb[0].mxu0
  %v7104 = vadd.f32 %v6976, %v7103
  %7105 = vmatprep.mubr.f32.mxu0 0.0
  %v7106 = vand.u32 %v6196, 4294901760
  %7107 = vmatmul.mubr.f32.gmra.mrb[0].mxu0 %v7106
  %v7108 = vpop.f32.mrb[0].mxu0
  %v7109 = vadd.f32 %v6981, %v7108
  %v7110 = vpop.f32.mrb[0].mxu0
  %v7111 = vadd.f32 %v6983, %v7110
  %7112 = vdwg.mxu0
  %v7113 = vmax.f32 %v7067, 0.0
  %v7114 = vmax.f32 %v7069, 0.0
  %v7115 = vmax.f32 %v7074, 0.0
  %v7116 = vmax.f32 %v7076, 0.0
  %v7117 = vmax.f32 %v7081, 0.0
  %v7118 = vmax.f32 %v7083, 0.0
  %v7119 = vmax.f32 %v7088, 0.0
  %v7120 = vmax.f32 %v7090, 0.0
  %v7121 = vmax.f32 %v7095, 0.0
  %v7122 = vmax.f32 %v7097, 0.0
  %v7123 = vmax.f32 %v7102, 0.0
  %v7124 = vmax.f32 %v7104, 0.0
  %v7125 = vmax.f32 %v7109, 0.0
  %v7126 = vmax.f32 %v7111, 0.0
  %s7127 = scalar_lea.vmem %s3, 336
  %v7128 = vld [vmem:[%s7127] sm:$0xff]
  %v7129 = vld [vmem:[%s7127 + $0x8] sm:$0xff]
  %v7130 = vld [vmem:[%s7127 + $0x10] sm:$0xff]
  %v7131 = vld [vmem:[%s7127 + $0x18] sm:$0xff]
  %v7132 = vld [vmem:[%s7127 + $0x20] sm:$0xff]
  %v7133 = vld [vmem:[%s7127 + $0x28] sm:$0xff]
  %v7134 = vld [vmem:[%s7127 + $0x30] sm:$0xff]
  %v7136 = vsel %vm1386, %v7128, 0
  %v7139 = vsel %vm1386, %v7129, 0
  %v7142 = vsel %vm1386, %v7130, 0
  %v7145 = vsel %vm1386, %v7131, 0
  %v7148 = vsel %vm1386, %v7132, 0
  %v7151 = vsel %vm1386, %v7133, 0
  %v7154 = vsel %vm1386, %v7134, 0
  %v7156 = vand.u32 %v7114, 4294901760
  %7157 = vmatprep.subr.mxu0 %v7156
  %v7158 = vand.u32 %v7113, 4294901760
  %7159 = vmatpush1.msra.mxu0 %v7158
  %v7160 = vand.u32 %v7116, 4294901760
  %7161 = vmatprep.subr.mxu0 %v7160
  %v7162 = vand.u32 %v7115, 4294901760
  %7163 = vmatpush1.msra.mxu0 %v7162
  %v7164 = vand.u32 %v7118, 4294901760
  %7165 = vmatprep.subr.mxu0 %v7164
  %v7166 = vand.u32 %v7117, 4294901760
  %7167 = vmatpush1.msra.mxu0 %v7166
  %v7168 = vand.u32 %v7120, 4294901760
  %7169 = vmatprep.subr.mxu0 %v7168
  %v7170 = vand.u32 %v7119, 4294901760
  %7171 = vmatpush1.msra.mxu0 %v7170
  %v7172 = vand.u32 %v7122, 4294901760
  %7173 = vmatprep.subr.mxu0 %v7172
  %v7174 = vand.u32 %v7121, 4294901760
  %7175 = vmatpush1.msra.mxu0 %v7174
  %v7176 = vand.u32 %v7124, 4294901760
  %7177 = vmatprep.subr.mxu0 %v7176
  %v7178 = vand.u32 %v7123, 4294901760
  %7179 = vmatpush1.msra.mxu0 %v7178
  %v7180 = vand.u32 %v7126, 4294901760
  %7181 = vmatprep.subr.mxu0 %v7180
  %v7182 = vand.u32 %v7125, 4294901760
  %7183 = vmatpush1.msra.mxu0 %v7182
  %7184 = vmatprep.subr.mxu0 0.0
  %7185 = vmatpush1.msra.mxu0 0.0
  %7186 = vmatprep.subr.mxu0 0.0
  %7187 = vmatpush1.msra.mxu0 0.0
  %7188 = vmatprep.subr.mxu0 0.0
  %7189 = vmatpush1.msra.mxu0 0.0
  %7190 = vmatprep.subr.mxu0 0.0
  %7191 = vmatpush1.msra.mxu0 0.0
  %7192 = vmatprep.subr.mxu0 0.0
  %7193 = vmatpush1.msra.mxu0 0.0
  %7194 = vmatprep.subr.mxu0 0.0
  %7195 = vmatpush1.msra.mxu0 0.0
  %7196 = vmatprep.subr.mxu0 0.0
  %7197 = vmatpush1.msra.mxu0 0.0
  %7198 = vmatprep.subr.mxu0 0.0
  %7199 = vmatpush1.msra.mxu0 0.0
  %7200 = vmatprep.subr.mxu0 0.0
  %7201 = vmatpush1.msra.mxu0 0.0
  %7202 = vmatprep.subr.mxu0 0.0
  %7203 = vmatpush1.msra.mxu0 0.0
  %7204 = vmatprep.subr.mxu0 0.0
  %7205 = vmatpush1.msra.mxu0 0.0
  %7206 = vmatprep.subr.mxu0 0.0
  %7207 = vmatpush1.msra.mxu0 0.0
  %7208 = vmatprep.subr.mxu0 0.0
  %7209 = vmatpush1.msra.mxu0 0.0
  %7210 = vmatprep.subr.mxu0 0.0
  %7211 = vmatpush1.msra.mxu0 0.0
  %7212 = vmatprep.subr.mxu0 0.0
  %7213 = vmatpush1.msra.mxu0 0.0
  %7214 = vmatprep.subr.mxu0 0.0
  %7215 = vmatpush1.msra.mxu0 0.0
  %7216 = vmatprep.subr.mxu0 0.0
  %7217 = vmatpush1.msra.mxu0 0.0
  %7218 = vmatprep.subr.mxu0 0.0
  %7219 = vmatpush1.msra.mxu0 0.0
  %7220 = vmatprep.subr.mxu0 0.0
  %7221 = vmatpush1.msra.mxu0 0.0
  %7222 = vmatprep.subr.mxu0 0.0
  %7223 = vmatpush1.msra.mxu0 0.0
  %7224 = vmatprep.subr.mxu0 0.0
  %7225 = vmatpush1.msra.mxu0 0.0
  %7226 = vmatprep.subr.mxu0 0.0
  %7227 = vmatpush1.msra.mxu0 0.0
  %7228 = vmatprep.subr.mxu0 0.0
  %7229 = vmatpush1.msra.mxu0 0.0
  %7230 = vmatprep.subr.mxu0 0.0
  %7231 = vmatpush1.msra.mxu0 0.0
  %7232 = vmatprep.subr.mxu0 0.0
  %7233 = vmatpush1.msra.mxu0 0.0
  %7234 = vmatprep.mubr.f32.mxu0 0.0
  %v7235 = vand.u32 %v7136, 4294901760
  %v7236 = vsub.f32 %v7136, %v7235
  %v7237 = vand.u32 %v7236, 4294901760
  %v7238 = vsub.f32 %v7236, %v7237
  %v7239 = vand.u32 %v7238, 4294901760
  %7240 = vmatmul.mubr.f32.gmra.mrb[0].mxu0 %v7239
  %v7241 = vpop.f32.mrb[0].mxu0
  %v7242 = vadd.f32 0.0, %v7241
  %v7243 = vpop.f32.mrb[0].mxu0
  %v7244 = vadd.f32 0.0, %v7243
  %7245 = vmatprep.mubr.f32.mxu0 0.0
  %v7246 = vand.u32 %v7139, 4294901760
  %v7247 = vsub.f32 %v7139, %v7246
  %v7248 = vand.u32 %v7247, 4294901760
  %v7249 = vsub.f32 %v7247, %v7248
  %v7250 = vand.u32 %v7249, 4294901760
  %7251 = vmatmul.mubr.f32.gmra.mrb[0].mxu0 %v7250
  %v7252 = vpop.f32.mrb[0].mxu0
  %v7253 = vadd.f32 0.0, %v7252
  %v7254 = vpop.f32.mrb[0].mxu0
  %v7255 = vadd.f32 0.0, %v7254
  %7256 = vmatprep.mubr.f32.mxu0 0.0
  %v7257 = vand.u32 %v7142, 4294901760
  %v7258 = vsub.f32 %v7142, %v7257
  %v7259 = vand.u32 %v7258, 4294901760
  %v7260 = vsub.f32 %v7258, %v7259
  %v7261 = vand.u32 %v7260, 4294901760
  %7262 = vmatmul.mubr.f32.gmra.mrb[0].mxu0 %v7261
  %v7263 = vpop.f32.mrb[0].mxu0
  %v7264 = vadd.f32 0.0, %v7263
  %v7265 = vpop.f32.mrb[0].mxu0
  %v7266 = vadd.f32 0.0, %v7265
  %7267 = vmatprep.mubr.f32.mxu0 0.0
  %v7268 = vand.u32 %v7145, 4294901760
  %v7269 = vsub.f32 %v7145, %v7268
  %v7270 = vand.u32 %v7269, 4294901760
  %v7271 = vsub.f32 %v7269, %v7270
  %v7272 = vand.u32 %v7271, 4294901760
  %7273 = vmatmul.mubr.f32.gmra.mrb[0].mxu0 %v7272
  %v7274 = vpop.f32.mrb[0].mxu0
  %v7275 = vadd.f32 0.0, %v7274
  %v7276 = vpop.f32.mrb[0].mxu0
  %v7277 = vadd.f32 0.0, %v7276
  %7278 = vmatprep.mubr.f32.mxu0 0.0
  %v7279 = vand.u32 %v7148, 4294901760
  %v7280 = vsub.f32 %v7148, %v7279
  %v7281 = vand.u32 %v7280, 4294901760
  %v7282 = vsub.f32 %v7280, %v7281
  %v7283 = vand.u32 %v7282, 4294901760
  %7284 = vmatmul.mubr.f32.gmra.mrb[0].mxu0 %v7283
  %v7285 = vpop.f32.mrb[0].mxu0
  %v7286 = vadd.f32 0.0, %v7285
  %v7287 = vpop.f32.mrb[0].mxu0
  %v7288 = vadd.f32 0.0, %v7287
  %7289 = vmatprep.mubr.f32.mxu0 0.0
  %v7290 = vand.u32 %v7151, 4294901760
  %v7291 = vsub.f32 %v7151, %v7290
  %v7292 = vand.u32 %v7291, 4294901760
  %v7293 = vsub.f32 %v7291, %v7292
  %v7294 = vand.u32 %v7293, 4294901760
  %7295 = vmatmul.mubr.f32.gmra.mrb[0].mxu0 %v7294
  %v7296 = vpop.f32.mrb[0].mxu0
  %v7297 = vadd.f32 0.0, %v7296
  %v7298 = vpop.f32.mrb[0].mxu0
  %v7299 = vadd.f32 0.0, %v7298
  %7300 = vmatprep.mubr.f32.mxu0 0.0
  %v7301 = vand.u32 %v7154, 4294901760
  %v7302 = vsub.f32 %v7154, %v7301
  %v7303 = vand.u32 %v7302, 4294901760
  %v7304 = vsub.f32 %v7302, %v7303
  %v7305 = vand.u32 %v7304, 4294901760
  %7306 = vmatmul.mubr.f32.gmra.mrb[0].mxu0 %v7305
  %v7307 = vpop.f32.mrb[0].mxu0
  %v7308 = vadd.f32 0.0, %v7307
  %v7309 = vpop.f32.mrb[0].mxu0
  %v7310 = vadd.f32 0.0, %v7309
  %7311 = vdwg.mxu0
  %v7312 = vand.u32 %v7114, 4294901760
  %v7313 = vsub.f32 %v7114, %v7312
  %v7314 = vand.u32 %v7313, 4294901760
  %v7315 = vsub.f32 %v7313, %v7314
  %v7316 = vand.u32 %v7315, 4294901760
  %7317 = vmatprep.subr.mxu0 %v7316
  %v7318 = vand.u32 %v7113, 4294901760
  %v7319 = vsub.f32 %v7113, %v7318
  %v7320 = vand.u32 %v7319, 4294901760
  %v7321 = vsub.f32 %v7319, %v7320
  %v7322 = vand.u32 %v7321, 4294901760
  %7323 = vmatpush1.msra.mxu0 %v7322
  %v7324 = vand.u32 %v7116, 4294901760
  %v7325 = vsub.f32 %v7116, %v7324
  %v7326 = vand.u32 %v7325, 4294901760
  %v7327 = vsub.f32 %v7325, %v7326
  %v7328 = vand.u32 %v7327, 4294901760
  %7329 = vmatprep.subr.mxu0 %v7328
  %v7330 = vand.u32 %v7115, 4294901760
  %v7331 = vsub.f32 %v7115, %v7330
  %v7332 = vand.u32 %v7331, 4294901760
  %v7333 = vsub.f32 %v7331, %v7332
  %v7334 = vand.u32 %v7333, 4294901760
  %7335 = vmatpush1.msra.mxu0 %v7334
  %v7336 = vand.u32 %v7118, 4294901760
  %v7337 = vsub.f32 %v7118, %v7336
  %v7338 = vand.u32 %v7337, 4294901760
  %v7339 = vsub.f32 %v7337, %v7338
  %v7340 = vand.u32 %v7339, 4294901760
  %7341 = vmatprep.subr.mxu0 %v7340
  %v7342 = vand.u32 %v7117, 4294901760
  %v7343 = vsub.f32 %v7117, %v7342
  %v7344 = vand.u32 %v7343, 4294901760
  %v7345 = vsub.f32 %v7343, %v7344
  %v7346 = vand.u32 %v7345, 4294901760
  %7347 = vmatpush1.msra.mxu0 %v7346
  %v7348 = vand.u32 %v7120, 4294901760
  %v7349 = vsub.f32 %v7120, %v7348
  %v7350 = vand.u32 %v7349, 4294901760
  %v7351 = vsub.f32 %v7349, %v7350
  %v7352 = vand.u32 %v7351, 4294901760
  %7353 = vmatprep.subr.mxu0 %v7352
  %v7354 = vand.u32 %v7119, 4294901760
  %v7355 = vsub.f32 %v7119, %v7354
  %v7356 = vand.u32 %v7355, 4294901760
  %v7357 = vsub.f32 %v7355, %v7356
  %v7358 = vand.u32 %v7357, 4294901760
  %7359 = vmatpush1.msra.mxu0 %v7358
  %v7360 = vand.u32 %v7122, 4294901760
  %v7361 = vsub.f32 %v7122, %v7360
  %v7362 = vand.u32 %v7361, 4294901760
  %v7363 = vsub.f32 %v7361, %v7362
  %v7364 = vand.u32 %v7363, 4294901760
  %7365 = vmatprep.subr.mxu0 %v7364
  %v7366 = vand.u32 %v7121, 4294901760
  %v7367 = vsub.f32 %v7121, %v7366
  %v7368 = vand.u32 %v7367, 4294901760
  %v7369 = vsub.f32 %v7367, %v7368
  %v7370 = vand.u32 %v7369, 4294901760
  %7371 = vmatpush1.msra.mxu0 %v7370
  %v7372 = vand.u32 %v7124, 4294901760
  %v7373 = vsub.f32 %v7124, %v7372
  %v7374 = vand.u32 %v7373, 4294901760
  %v7375 = vsub.f32 %v7373, %v7374
  %v7376 = vand.u32 %v7375, 4294901760
  %7377 = vmatprep.subr.mxu0 %v7376
  %v7378 = vand.u32 %v7123, 4294901760
  %v7379 = vsub.f32 %v7123, %v7378
  %v7380 = vand.u32 %v7379, 4294901760
  %v7381 = vsub.f32 %v7379, %v7380
  %v7382 = vand.u32 %v7381, 4294901760
  %7383 = vmatpush1.msra.mxu0 %v7382
  %v7384 = vand.u32 %v7126, 4294901760
  %v7385 = vsub.f32 %v7126, %v7384
  %v7386 = vand.u32 %v7385, 4294901760
  %v7387 = vsub.f32 %v7385, %v7386
  %v7388 = vand.u32 %v7387, 4294901760
  %7389 = vmatprep.subr.mxu0 %v7388
  %v7390 = vand.u32 %v7125, 4294901760
  %v7391 = vsub.f32 %v7125, %v7390
  %v7392 = vand.u32 %v7391, 4294901760
  %v7393 = vsub.f32 %v7391, %v7392
  %v7394 = vand.u32 %v7393, 4294901760
  %7395 = vmatpush1.msra.mxu0 %v7394
  %7396 = vmatprep.subr.mxu0 0.0
  %7397 = vmatpush1.msra.mxu0 0.0
  %7398 = vmatprep.subr.mxu0 0.0
  %7399 = vmatpush1.msra.mxu0 0.0
  %7400 = vmatprep.subr.mxu0 0.0
  %7401 = vmatpush1.msra.mxu0 0.0
  %7402 = vmatprep.subr.mxu0 0.0
  %7403 = vmatpush1.msra.mxu0 0.0
  %7404 = vmatprep.subr.mxu0 0.0
  %7405 = vmatpush1.msra.mxu0 0.0
  %7406 = vmatprep.subr.mxu0 0.0
  %7407 = vmatpush1.msra.mxu0 0.0
  %7408 = vmatprep.subr.mxu0 0.0
  %7409 = vmatpush1.msra.mxu0 0.0
  %7410 = vmatprep.subr.mxu0 0.0
  %7411 = vmatpush1.msra.mxu0 0.0
  %7412 = vmatprep.subr.mxu0 0.0
  %7413 = vmatpush1.msra.mxu0 0.0
  %7414 = vmatprep.subr.mxu0 0.0
  %7415 = vmatpush1.msra.mxu0 0.0
  %7416 = vmatprep.subr.mxu0 0.0
  %7417 = vmatpush1.msra.mxu0 0.0
  %7418 = vmatprep.subr.mxu0 0.0
  %7419 = vmatpush1.msra.mxu0 0.0
  %7420 = vmatprep.subr.mxu0 0.0
  %7421 = vmatpush1.msra.mxu0 0.0
  %7422 = vmatprep.subr.mxu0 0.0
  %7423 = vmatpush1.msra.mxu0 0.0
  %7424 = vmatprep.subr.mxu0 0.0
  %7425 = vmatpush1.msra.mxu0 0.0
  %7426 = vmatprep.subr.mxu0 0.0
  %7427 = vmatpush1.msra.mxu0 0.0
  %7428 = vmatprep.subr.mxu0 0.0
  %7429 = vmatpush1.msra.mxu0 0.0
  %7430 = vmatprep.subr.mxu0 0.0
  %7431 = vmatpush1.msra.mxu0 0.0
  %7432 = vmatprep.subr.mxu0 0.0
  %7433 = vmatpush1.msra.mxu0 0.0
  %7434 = vmatprep.subr.mxu0 0.0
  %7435 = vmatpush1.msra.mxu0 0.0
  %7436 = vmatprep.subr.mxu0 0.0
  %7437 = vmatpush1.msra.mxu0 0.0
  %7438 = vmatprep.subr.mxu0 0.0
  %7439 = vmatpush1.msra.mxu0 0.0
  %7440 = vmatprep.subr.mxu0 0.0
  %7441 = vmatpush1.msra.mxu0 0.0
  %7442 = vmatprep.subr.mxu0 0.0
  %7443 = vmatpush1.msra.mxu0 0.0
  %7444 = vmatprep.subr.mxu0 0.0
  %7445 = vmatpush1.msra.mxu0 0.0
  %7446 = vmatprep.mubr.f32.mxu0 0.0
  %v7447 = vand.u32 %v7136, 4294901760
  %7448 = vmatmul.mubr.f32.gmra.mrb[0].mxu0 %v7447
  %v7449 = vpop.f32.mrb[0].mxu0
  %v7450 = vadd.f32 %v7242, %v7449
  %v7451 = vpop.f32.mrb[0].mxu0
  %v7452 = vadd.f32 %v7244, %v7451
  %7453 = vmatprep.mubr.f32.mxu0 0.0
  %v7454 = vand.u32 %v7139, 4294901760
  %7455 = vmatmul.mubr.f32.gmra.mrb[0].mxu0 %v7454
  %v7456 = vpop.f32.mrb[0].mxu0
  %v7457 = vadd.f32 %v7253, %v7456
  %v7458 = vpop.f32.mrb[0].mxu0
  %v7459 = vadd.f32 %v7255, %v7458
  %7460 = vmatprep.mubr.f32.mxu0 0.0
  %v7461 = vand.u32 %v7142, 4294901760
  %7462 = vmatmul.mubr.f32.gmra.mrb[0].mxu0 %v7461
  %v7463 = vpop.f32.mrb[0].mxu0
  %v7464 = vadd.f32 %v7264, %v7463
  %v7465 = vpop.f32.mrb[0].mxu0
  %v7466 = vadd.f32 %v7266, %v7465
  %7467 = vmatprep.mubr.f32.mxu0 0.0
  %v7468 = vand.u32 %v7145, 4294901760
  %7469 = vmatmul.mubr.f32.gmra.mrb[0].mxu0 %v7468
  %v7470 = vpop.f32.mrb[0].mxu0
  %v7471 = vadd.f32 %v7275, %v7470
  %v7472 = vpop.f32.mrb[0].mxu0
  %v7473 = vadd.f32 %v7277, %v7472
  %7474 = vmatprep.mubr.f32.mxu0 0.0
  %v7475 = vand.u32 %v7148, 4294901760
  %7476 = vmatmul.mubr.f32.gmra.mrb[0].mxu0 %v7475
  %v7477 = vpop.f32.mrb[0].mxu0
  %v7478 = vadd.f32 %v7286, %v7477
  %v7479 = vpop.f32.mrb[0].mxu0
  %v7480 = vadd.f32 %v7288, %v7479
  %7481 = vmatprep.mubr.f32.mxu0 0.0
  %v7482 = vand.u32 %v7151, 4294901760
  %7483 = vmatmul.mubr.f32.gmra.mrb[0].mxu0 %v7482
  %v7484 = vpop.f32.mrb[0].mxu0
  %v7485 = vadd.f32 %v7297, %v7484
  %v7486 = vpop.f32.mrb[0].mxu0
  %v7487 = vadd.f32 %v7299, %v7486
  %7488 = vmatprep.mubr.f32.mxu0 0.0
  %v7489 = vand.u32 %v7154, 4294901760
  %7490 = vmatmul.mubr.f32.gmra.mrb[0].mxu0 %v7489
  %v7491 = vpop.f32.mrb[0].mxu0
  %v7492 = vadd.f32 %v7308, %v7491
  %v7493 = vpop.f32.mrb[0].mxu0
  %v7494 = vadd.f32 %v7310, %v7493
  %7495 = vdwg.mxu0
  %v7496 = vand.u32 %v7114, 4294901760
  %v7497 = vsub.f32 %v7114, %v7496
  %7498 = vmatprep.subr.mxu0 %v7497
  %v7499 = vand.u32 %v7113, 4294901760
  %v7500 = vsub.f32 %v7113, %v7499
  %7501 = vmatpush1.msra.mxu0 %v7500
  %v7502 = vand.u32 %v7116, 4294901760
  %v7503 = vsub.f32 %v7116, %v7502
  %7504 = vmatprep.subr.mxu0 %v7503
  %v7505 = vand.u32 %v7115, 4294901760
  %v7506 = vsub.f32 %v7115, %v7505
  %7507 = vmatpush1.msra.mxu0 %v7506
  %v7508 = vand.u32 %v7118, 4294901760
  %v7509 = vsub.f32 %v7118, %v7508
  %7510 = vmatprep.subr.mxu0 %v7509
  %v7511 = vand.u32 %v7117, 4294901760
  %v7512 = vsub.f32 %v7117, %v7511
  %7513 = vmatpush1.msra.mxu0 %v7512
  %v7514 = vand.u32 %v7120, 4294901760
  %v7515 = vsub.f32 %v7120, %v7514
  %7516 = vmatprep.subr.mxu0 %v7515
  %v7517 = vand.u32 %v7119, 4294901760
  %v7518 = vsub.f32 %v7119, %v7517
  %7519 = vmatpush1.msra.mxu0 %v7518
  %v7520 = vand.u32 %v7122, 4294901760
  %v7521 = vsub.f32 %v7122, %v7520
  %7522 = vmatprep.subr.mxu0 %v7521
  %v7523 = vand.u32 %v7121, 4294901760
  %v7524 = vsub.f32 %v7121, %v7523
  %7525 = vmatpush1.msra.mxu0 %v7524
  %v7526 = vand.u32 %v7124, 4294901760
  %v7527 = vsub.f32 %v7124, %v7526
  %7528 = vmatprep.subr.mxu0 %v7527
  %v7529 = vand.u32 %v7123, 4294901760
  %v7530 = vsub.f32 %v7123, %v7529
  %7531 = vmatpush1.msra.mxu0 %v7530
  %v7532 = vand.u32 %v7126, 4294901760
  %v7533 = vsub.f32 %v7126, %v7532
  %7534 = vmatprep.subr.mxu0 %v7533
  %v7535 = vand.u32 %v7125, 4294901760
  %v7536 = vsub.f32 %v7125, %v7535
  %7537 = vmatpush1.msra.mxu0 %v7536
  %7538 = vmatprep.subr.mxu0 0.0
  %7539 = vmatpush1.msra.mxu0 0.0
  %7540 = vmatprep.subr.mxu0 0.0
  %7541 = vmatpush1.msra.mxu0 0.0
  %7542 = vmatprep.subr.mxu0 0.0
  %7543 = vmatpush1.msra.mxu0 0.0
  %7544 = vmatprep.subr.mxu0 0.0
  %7545 = vmatpush1.msra.mxu0 0.0
  %7546 = vmatprep.subr.mxu0 0.0
  %7547 = vmatpush1.msra.mxu0 0.0
  %7548 = vmatprep.subr.mxu0 0.0
  %7549 = vmatpush1.msra.mxu0 0.0
  %7550 = vmatprep.subr.mxu0 0.0
  %7551 = vmatpush1.msra.mxu0 0.0
  %7552 = vmatprep.subr.mxu0 0.0
  %7553 = vmatpush1.msra.mxu0 0.0
  %7554 = vmatprep.subr.mxu0 0.0
  %7555 = vmatpush1.msra.mxu0 0.0
  %7556 = vmatprep.subr.mxu0 0.0
  %7557 = vmatpush1.msra.mxu0 0.0
  %7558 = vmatprep.subr.mxu0 0.0
  %7559 = vmatpush1.msra.mxu0 0.0
  %7560 = vmatprep.subr.mxu0 0.0
  %7561 = vmatpush1.msra.mxu0 0.0
  %7562 = vmatprep.subr.mxu0 0.0
  %7563 = vmatpush1.msra.mxu0 0.0
  %7564 = vmatprep.subr.mxu0 0.0
  %7565 = vmatpush1.msra.mxu0 0.0
  %7566 = vmatprep.subr.mxu0 0.0
  %7567 = vmatpush1.msra.mxu0 0.0
  %7568 = vmatprep.subr.mxu0 0.0
  %7569 = vmatpush1.msra.mxu0 0.0
  %7570 = vmatprep.subr.mxu0 0.0
  %7571 = vmatpush1.msra.mxu0 0.0
  %7572 = vmatprep.subr.mxu0 0.0
  %7573 = vmatpush1.msra.mxu0 0.0
  %7574 = vmatprep.subr.mxu0 0.0
  %7575 = vmatpush1.msra.mxu0 0.0
  %7576 = vmatprep.subr.mxu0 0.0
  %7577 = vmatpush1.msra.mxu0 0.0
  %7578 = vmatprep.subr.mxu0 0.0
  %7579 = vmatpush1.msra.mxu0 0.0
  %7580 = vmatprep.subr.mxu0 0.0
  %7581 = vmatpush1.msra.mxu0 0.0
  %7582 = vmatprep.subr.mxu0 0.0
  %7583 = vmatpush1.msra.mxu0 0.0
  %7584 = vmatprep.subr.mxu0 0.0
  %7585 = vmatpush1.msra.mxu0 0.0
  %7586 = vmatprep.subr.mxu0 0.0
  %7587 = vmatpush1.msra.mxu0 0.0
  %7588 = vmatprep.mubr.f32.mxu0 0.0
  %v7589 = vand.u32 %v7136, 4294901760
  %v7590 = vsub.f32 %v7136, %v7589
  %7591 = vmatmul.mubr.f32.gmra.mrb[0].mxu0 %v7590
  %v7592 = vpop.f32.mrb[0].mxu0
  %v7593 = vadd.f32 %v7450, %v7592
  %v7594 = vpop.f32.mrb[0].mxu0
  %v7595 = vadd.f32 %v7452, %v7594
  %7596 = vmatprep.mubr.f32.mxu0 0.0
  %v7597 = vand.u32 %v7139, 4294901760
  %v7598 = vsub.f32 %v7139, %v7597
  %7599 = vmatmul.mubr.f32.gmra.mrb[0].mxu0 %v7598
  %v7600 = vpop.f32.mrb[0].mxu0
  %v7601 = vadd.f32 %v7457, %v7600
  %v7602 = vpop.f32.mrb[0].mxu0
  %v7603 = vadd.f32 %v7459, %v7602
  %7604 = vmatprep.mubr.f32.mxu0 0.0
  %v7605 = vand.u32 %v7142, 4294901760
  %v7606 = vsub.f32 %v7142, %v7605
  %7607 = vmatmul.mubr.f32.gmra.mrb[0].mxu0 %v7606
  %v7608 = vpop.f32.mrb[0].mxu0
  %v7609 = vadd.f32 %v7464, %v7608
  %v7610 = vpop.f32.mrb[0].mxu0
  %v7611 = vadd.f32 %v7466, %v7610
  %7612 = vmatprep.mubr.f32.mxu0 0.0
  %v7613 = vand.u32 %v7145, 4294901760
  %v7614 = vsub.f32 %v7145, %v7613
  %7615 = vmatmul.mubr.f32.gmra.mrb[0].mxu0 %v7614
  %v7616 = vpop.f32.mrb[0].mxu0
  %v7617 = vadd.f32 %v7471, %v7616
  %v7618 = vpop.f32.mrb[0].mxu0
  %v7619 = vadd.f32 %v7473, %v7618
  %7620 = vmatprep.mubr.f32.mxu0 0.0
  %v7621 = vand.u32 %v7148, 4294901760
  %v7622 = vsub.f32 %v7148, %v7621
  %7623 = vmatmul.mubr.f32.gmra.mrb[0].mxu0 %v7622
  %v7624 = vpop.f32.mrb[0].mxu0
  %v7625 = vadd.f32 %v7478, %v7624
  %v7626 = vpop.f32.mrb[0].mxu0
  %v7627 = vadd.f32 %v7480, %v7626
  %7628 = vmatprep.mubr.f32.mxu0 0.0
  %v7629 = vand.u32 %v7151, 4294901760
  %v7630 = vsub.f32 %v7151, %v7629
  %7631 = vmatmul.mubr.f32.gmra.mrb[0].mxu0 %v7630
  %v7632 = vpop.f32.mrb[0].mxu0
  %v7633 = vadd.f32 %v7485, %v7632
  %v7634 = vpop.f32.mrb[0].mxu0
  %v7635 = vadd.f32 %v7487, %v7634
  %7636 = vmatprep.mubr.f32.mxu0 0.0
  %v7637 = vand.u32 %v7154, 4294901760
  %v7638 = vsub.f32 %v7154, %v7637
  %7639 = vmatmul.mubr.f32.gmra.mrb[0].mxu0 %v7638
  %v7640 = vpop.f32.mrb[0].mxu0
  %v7641 = vadd.f32 %v7492, %v7640
  %v7642 = vpop.f32.mrb[0].mxu0
  %v7643 = vadd.f32 %v7494, %v7642
  %7644 = vdwg.mxu0
  %v7645 = vand.u32 %v7114, 4294901760
  %7646 = vmatprep.subr.mxu0 %v7645
  %v7647 = vand.u32 %v7113, 4294901760
  %7648 = vmatpush1.msra.mxu0 %v7647
  %v7649 = vand.u32 %v7116, 4294901760
  %7650 = vmatprep.subr.mxu0 %v7649
  %v7651 = vand.u32 %v7115, 4294901760
  %7652 = vmatpush1.msra.mxu0 %v7651
  %v7653 = vand.u32 %v7118, 4294901760
  %7654 = vmatprep.subr.mxu0 %v7653
  %v7655 = vand.u32 %v7117, 4294901760
  %7656 = vmatpush1.msra.mxu0 %v7655
  %v7657 = vand.u32 %v7120, 4294901760
  %7658 = vmatprep.subr.mxu0 %v7657
  %v7659 = vand.u32 %v7119, 4294901760
  %7660 = vmatpush1.msra.mxu0 %v7659
  %v7661 = vand.u32 %v7122, 4294901760
  %7662 = vmatprep.subr.mxu0 %v7661
  %v7663 = vand.u32 %v7121, 4294901760
  %7664 = vmatpush1.msra.mxu0 %v7663
  %v7665 = vand.u32 %v7124, 4294901760
  %7666 = vmatprep.subr.mxu0 %v7665
  %v7667 = vand.u32 %v7123, 4294901760
  %7668 = vmatpush1.msra.mxu0 %v7667
  %v7669 = vand.u32 %v7126, 4294901760
  %7670 = vmatprep.subr.mxu0 %v7669
  %v7671 = vand.u32 %v7125, 4294901760
  %7672 = vmatpush1.msra.mxu0 %v7671
  %7673 = vmatprep.subr.mxu0 0.0
  %7674 = vmatpush1.msra.mxu0 0.0
  %7675 = vmatprep.subr.mxu0 0.0
  %7676 = vmatpush1.msra.mxu0 0.0
  %7677 = vmatprep.subr.mxu0 0.0
  %7678 = vmatpush1.msra.mxu0 0.0
  %7679 = vmatprep.subr.mxu0 0.0
  %7680 = vmatpush1.msra.mxu0 0.0
  %7681 = vmatprep.subr.mxu0 0.0
  %7682 = vmatpush1.msra.mxu0 0.0
  %7683 = vmatprep.subr.mxu0 0.0
  %7684 = vmatpush1.msra.mxu0 0.0
  %7685 = vmatprep.subr.mxu0 0.0
  %7686 = vmatpush1.msra.mxu0 0.0
  %7687 = vmatprep.subr.mxu0 0.0
  %7688 = vmatpush1.msra.mxu0 0.0
  %7689 = vmatprep.subr.mxu0 0.0
  %7690 = vmatpush1.msra.mxu0 0.0
  %7691 = vmatprep.subr.mxu0 0.0
  %7692 = vmatpush1.msra.mxu0 0.0
  %7693 = vmatprep.subr.mxu0 0.0
  %7694 = vmatpush1.msra.mxu0 0.0
  %7695 = vmatprep.subr.mxu0 0.0
  %7696 = vmatpush1.msra.mxu0 0.0
  %7697 = vmatprep.subr.mxu0 0.0
  %7698 = vmatpush1.msra.mxu0 0.0
  %7699 = vmatprep.subr.mxu0 0.0
  %7700 = vmatpush1.msra.mxu0 0.0
  %7701 = vmatprep.subr.mxu0 0.0
  %7702 = vmatpush1.msra.mxu0 0.0
  %7703 = vmatprep.subr.mxu0 0.0
  %7704 = vmatpush1.msra.mxu0 0.0
  %7705 = vmatprep.subr.mxu0 0.0
  %7706 = vmatpush1.msra.mxu0 0.0
  %7707 = vmatprep.subr.mxu0 0.0
  %7708 = vmatpush1.msra.mxu0 0.0
  %7709 = vmatprep.subr.mxu0 0.0
  %7710 = vmatpush1.msra.mxu0 0.0
  %7711 = vmatprep.subr.mxu0 0.0
  %7712 = vmatpush1.msra.mxu0 0.0
  %7713 = vmatprep.subr.mxu0 0.0
  %7714 = vmatpush1.msra.mxu0 0.0
  %7715 = vmatprep.subr.mxu0 0.0
  %7716 = vmatpush1.msra.mxu0 0.0
  %7717 = vmatprep.subr.mxu0 0.0
  %7718 = vmatpush1.msra.mxu0 0.0
  %7719 = vmatprep.subr.mxu0 0.0
  %7720 = vmatpush1.msra.mxu0 0.0
  %7721 = vmatprep.subr.mxu0 0.0
  %7722 = vmatpush1.msra.mxu0 0.0
  %7723 = vmatprep.mubr.f32.mxu0 0.0
  %v7724 = vand.u32 %v7136, 4294901760
  %v7725 = vsub.f32 %v7136, %v7724
  %v7726 = vand.u32 %v7725, 4294901760
  %7727 = vmatmul.mubr.f32.gmra.mrb[0].mxu0 %v7726
  %v7728 = vpop.f32.mrb[0].mxu0
  %v7729 = vadd.f32 %v7593, %v7728
  %v7730 = vpop.f32.mrb[0].mxu0
  %v7731 = vadd.f32 %v7595, %v7730
  %7732 = vmatprep.mubr.f32.mxu0 0.0
  %v7733 = vand.u32 %v7139, 4294901760
  %v7734 = vsub.f32 %v7139, %v7733
  %v7735 = vand.u32 %v7734, 4294901760
  %7736 = vmatmul.mubr.f32.gmra.mrb[0].mxu0 %v7735
  %v7737 = vpop.f32.mrb[0].mxu0
  %v7738 = vadd.f32 %v7601, %v7737
  %v7739 = vpop.f32.mrb[0].mxu0
  %v7740 = vadd.f32 %v7603, %v7739
  %7741 = vmatprep.mubr.f32.mxu0 0.0
  %v7742 = vand.u32 %v7142, 4294901760
  %v7743 = vsub.f32 %v7142, %v7742
  %v7744 = vand.u32 %v7743, 4294901760
  %7745 = vmatmul.mubr.f32.gmra.mrb[0].mxu0 %v7744
  %v7746 = vpop.f32.mrb[0].mxu0
  %v7747 = vadd.f32 %v7609, %v7746
  %v7748 = vpop.f32.mrb[0].mxu0
  %v7749 = vadd.f32 %v7611, %v7748
  %7750 = vmatprep.mubr.f32.mxu0 0.0
  %v7751 = vand.u32 %v7145, 4294901760
  %v7752 = vsub.f32 %v7145, %v7751
  %v7753 = vand.u32 %v7752, 4294901760
  %7754 = vmatmul.mubr.f32.gmra.mrb[0].mxu0 %v7753
  %v7755 = vpop.f32.mrb[0].mxu0
  %v7756 = vadd.f32 %v7617, %v7755
  %v7757 = vpop.f32.mrb[0].mxu0
  %v7758 = vadd.f32 %v7619, %v7757
  %7759 = vmatprep.mubr.f32.mxu0 0.0
  %v7760 = vand.u32 %v7148, 4294901760
  %v7761 = vsub.f32 %v7148, %v7760
  %v7762 = vand.u32 %v7761, 4294901760
  %7763 = vmatmul.mubr.f32.gmra.mrb[0].mxu0 %v7762
  %v7764 = vpop.f32.mrb[0].mxu0
  %v7765 = vadd.f32 %v7625, %v7764
  %v7766 = vpop.f32.mrb[0].mxu0
  %v7767 = vadd.f32 %v7627, %v7766
  %7768 = vmatprep.mubr.f32.mxu0 0.0
  %v7769 = vand.u32 %v7151, 4294901760
  %v7770 = vsub.f32 %v7151, %v7769
  %v7771 = vand.u32 %v7770, 4294901760
  %7772 = vmatmul.mubr.f32.gmra.mrb[0].mxu0 %v7771
  %v7773 = vpop.f32.mrb[0].mxu0
  %v7774 = vadd.f32 %v7633, %v7773
  %v7775 = vpop.f32.mrb[0].mxu0
  %v7776 = vadd.f32 %v7635, %v7775
  %7777 = vmatprep.mubr.f32.mxu0 0.0
  %v7778 = vand.u32 %v7154, 4294901760
  %v7779 = vsub.f32 %v7154, %v7778
  %v7780 = vand.u32 %v7779, 4294901760
  %7781 = vmatmul.mubr.f32.gmra.mrb[0].mxu0 %v7780
  %v7782 = vpop.f32.mrb[0].mxu0
  %v7783 = vadd.f32 %v7641, %v7782
  %v7784 = vpop.f32.mrb[0].mxu0
  %v7785 = vadd.f32 %v7643, %v7784
  %7786 = vdwg.mxu0
  %v7787 = vand.u32 %v7114, 4294901760
  %v7788 = vsub.f32 %v7114, %v7787
  %v7789 = vand.u32 %v7788, 4294901760
  %7790 = vmatprep.subr.mxu0 %v7789
  %v7791 = vand.u32 %v7113, 4294901760
  %v7792 = vsub.f32 %v7113, %v7791
  %v7793 = vand.u32 %v7792, 4294901760
  %7794 = vmatpush1.msra.mxu0 %v7793
  %v7795 = vand.u32 %v7116, 4294901760
  %v7796 = vsub.f32 %v7116, %v7795
  %v7797 = vand.u32 %v7796, 4294901760
  %7798 = vmatprep.subr.mxu0 %v7797
  %v7799 = vand.u32 %v7115, 4294901760
  %v7800 = vsub.f32 %v7115, %v7799
  %v7801 = vand.u32 %v7800, 4294901760
  %7802 = vmatpush1.msra.mxu0 %v7801
  %v7803 = vand.u32 %v7118, 4294901760
  %v7804 = vsub.f32 %v7118, %v7803
  %v7805 = vand.u32 %v7804, 4294901760
  %7806 = vmatprep.subr.mxu0 %v7805
  %v7807 = vand.u32 %v7117, 4294901760
  %v7808 = vsub.f32 %v7117, %v7807
  %v7809 = vand.u32 %v7808, 4294901760
  %7810 = vmatpush1.msra.mxu0 %v7809
  %v7811 = vand.u32 %v7120, 4294901760
  %v7812 = vsub.f32 %v7120, %v7811
  %v7813 = vand.u32 %v7812, 4294901760
  %7814 = vmatprep.subr.mxu0 %v7813
  %v7815 = vand.u32 %v7119, 4294901760
  %v7816 = vsub.f32 %v7119, %v7815
  %v7817 = vand.u32 %v7816, 4294901760
  %7818 = vmatpush1.msra.mxu0 %v7817
  %v7819 = vand.u32 %v7122, 4294901760
  %v7820 = vsub.f32 %v7122, %v7819
  %v7821 = vand.u32 %v7820, 4294901760
  %7822 = vmatprep.subr.mxu0 %v7821
  %v7823 = vand.u32 %v7121, 4294901760
  %v7824 = vsub.f32 %v7121, %v7823
  %v7825 = vand.u32 %v7824, 4294901760
  %7826 = vmatpush1.msra.mxu0 %v7825
  %v7827 = vand.u32 %v7124, 4294901760
  %v7828 = vsub.f32 %v7124, %v7827
  %v7829 = vand.u32 %v7828, 4294901760
  %7830 = vmatprep.subr.mxu0 %v7829
  %v7831 = vand.u32 %v7123, 4294901760
  %v7832 = vsub.f32 %v7123, %v7831
  %v7833 = vand.u32 %v7832, 4294901760
  %7834 = vmatpush1.msra.mxu0 %v7833
  %v7835 = vand.u32 %v7126, 4294901760
  %v7836 = vsub.f32 %v7126, %v7835
  %v7837 = vand.u32 %v7836, 4294901760
  %7838 = vmatprep.subr.mxu0 %v7837
  %v7839 = vand.u32 %v7125, 4294901760
  %v7840 = vsub.f32 %v7125, %v7839
  %v7841 = vand.u32 %v7840, 4294901760
  %7842 = vmatpush1.msra.mxu0 %v7841
  %7843 = vmatprep.subr.mxu0 0.0
  %7844 = vmatpush1.msra.mxu0 0.0
  %7845 = vmatprep.subr.mxu0 0.0
  %7846 = vmatpush1.msra.mxu0 0.0
  %7847 = vmatprep.subr.mxu0 0.0
  %7848 = vmatpush1.msra.mxu0 0.0
  %7849 = vmatprep.subr.mxu0 0.0
  %7850 = vmatpush1.msra.mxu0 0.0
  %7851 = vmatprep.subr.mxu0 0.0
  %7852 = vmatpush1.msra.mxu0 0.0
  %7853 = vmatprep.subr.mxu0 0.0
  %7854 = vmatpush1.msra.mxu0 0.0
  %7855 = vmatprep.subr.mxu0 0.0
  %7856 = vmatpush1.msra.mxu0 0.0
  %7857 = vmatprep.subr.mxu0 0.0
  %7858 = vmatpush1.msra.mxu0 0.0
  %7859 = vmatprep.subr.mxu0 0.0
  %7860 = vmatpush1.msra.mxu0 0.0
  %7861 = vmatprep.subr.mxu0 0.0
  %7862 = vmatpush1.msra.mxu0 0.0
  %7863 = vmatprep.subr.mxu0 0.0
  %7864 = vmatpush1.msra.mxu0 0.0
  %7865 = vmatprep.subr.mxu0 0.0
  %7866 = vmatpush1.msra.mxu0 0.0
  %7867 = vmatprep.subr.mxu0 0.0
  %7868 = vmatpush1.msra.mxu0 0.0
  %7869 = vmatprep.subr.mxu0 0.0
  %7870 = vmatpush1.msra.mxu0 0.0
  %7871 = vmatprep.subr.mxu0 0.0
  %7872 = vmatpush1.msra.mxu0 0.0
  %7873 = vmatprep.subr.mxu0 0.0
  %7874 = vmatpush1.msra.mxu0 0.0
  %7875 = vmatprep.subr.mxu0 0.0
  %7876 = vmatpush1.msra.mxu0 0.0
  %7877 = vmatprep.subr.mxu0 0.0
  %7878 = vmatpush1.msra.mxu0 0.0
  %7879 = vmatprep.subr.mxu0 0.0
  %7880 = vmatpush1.msra.mxu0 0.0
  %7881 = vmatprep.subr.mxu0 0.0
  %7882 = vmatpush1.msra.mxu0 0.0
  %7883 = vmatprep.subr.mxu0 0.0
  %7884 = vmatpush1.msra.mxu0 0.0
  %7885 = vmatprep.subr.mxu0 0.0
  %7886 = vmatpush1.msra.mxu0 0.0
  %7887 = vmatprep.subr.mxu0 0.0
  %7888 = vmatpush1.msra.mxu0 0.0
  %7889 = vmatprep.subr.mxu0 0.0
  %7890 = vmatpush1.msra.mxu0 0.0
  %7891 = vmatprep.subr.mxu0 0.0
  %7892 = vmatpush1.msra.mxu0 0.0
  %7893 = vmatprep.mubr.f32.mxu0 0.0
  %v7894 = vand.u32 %v7136, 4294901760
  %7895 = vmatmul.mubr.f32.gmra.mrb[0].mxu0 %v7894
  %v7896 = vpop.f32.mrb[0].mxu0
  %v7897 = vadd.f32 %v7729, %v7896
  %v7898 = vpop.f32.mrb[0].mxu0
  %v7899 = vadd.f32 %v7731, %v7898
  %7900 = vmatprep.mubr.f32.mxu0 0.0
  %v7901 = vand.u32 %v7139, 4294901760
  %7902 = vmatmul.mubr.f32.gmra.mrb[0].mxu0 %v7901
  %v7903 = vpop.f32.mrb[0].mxu0
  %v7904 = vadd.f32 %v7738, %v7903
  %v7905 = vpop.f32.mrb[0].mxu0
  %v7906 = vadd.f32 %v7740, %v7905
  %7907 = vmatprep.mubr.f32.mxu0 0.0
  %v7908 = vand.u32 %v7142, 4294901760
  %7909 = vmatmul.mubr.f32.gmra.mrb[0].mxu0 %v7908
  %v7910 = vpop.f32.mrb[0].mxu0
  %v7911 = vadd.f32 %v7747, %v7910
  %v7912 = vpop.f32.mrb[0].mxu0
  %v7913 = vadd.f32 %v7749, %v7912
  %7914 = vmatprep.mubr.f32.mxu0 0.0
  %v7915 = vand.u32 %v7145, 4294901760
  %7916 = vmatmul.mubr.f32.gmra.mrb[0].mxu0 %v7915
  %v7917 = vpop.f32.mrb[0].mxu0
  %v7918 = vadd.f32 %v7756, %v7917
  %v7919 = vpop.f32.mrb[0].mxu0
  %v7920 = vadd.f32 %v7758, %v7919
  %7921 = vmatprep.mubr.f32.mxu0 0.0
  %v7922 = vand.u32 %v7148, 4294901760
  %7923 = vmatmul.mubr.f32.gmra.mrb[0].mxu0 %v7922
  %v7924 = vpop.f32.mrb[0].mxu0
  %v7925 = vadd.f32 %v7765, %v7924
  %v7926 = vpop.f32.mrb[0].mxu0
  %v7927 = vadd.f32 %v7767, %v7926
  %7928 = vmatprep.mubr.f32.mxu0 0.0
  %v7929 = vand.u32 %v7151, 4294901760
  %7930 = vmatmul.mubr.f32.gmra.mrb[0].mxu0 %v7929
  %v7931 = vpop.f32.mrb[0].mxu0
  %v7932 = vadd.f32 %v7774, %v7931
  %v7933 = vpop.f32.mrb[0].mxu0
  %v7934 = vadd.f32 %v7776, %v7933
  %7935 = vmatprep.mubr.f32.mxu0 0.0
  %v7936 = vand.u32 %v7154, 4294901760
  %7937 = vmatmul.mubr.f32.gmra.mrb[0].mxu0 %v7936
  %v7938 = vpop.f32.mrb[0].mxu0
  %v7939 = vadd.f32 %v7783, %v7938
  %v7940 = vpop.f32.mrb[0].mxu0
  %v7941 = vadd.f32 %v7785, %v7940
  %7942 = vdwg.mxu0
  %v7943 = vand.u32 %v7114, 4294901760
  %7944 = vmatprep.subr.mxu0 %v7943
  %v7945 = vand.u32 %v7113, 4294901760
  %7946 = vmatpush1.msra.mxu0 %v7945
  %v7947 = vand.u32 %v7116, 4294901760
  %7948 = vmatprep.subr.mxu0 %v7947
  %v7949 = vand.u32 %v7115, 4294901760
  %7950 = vmatpush1.msra.mxu0 %v7949
  %v7951 = vand.u32 %v7118, 4294901760
  %7952 = vmatprep.subr.mxu0 %v7951
  %v7953 = vand.u32 %v7117, 4294901760
  %7954 = vmatpush1.msra.mxu0 %v7953
  %v7955 = vand.u32 %v7120, 4294901760
  %7956 = vmatprep.subr.mxu0 %v7955
  %v7957 = vand.u32 %v7119, 4294901760
  %7958 = vmatpush1.msra.mxu0 %v7957
  %v7959 = vand.u32 %v7122, 4294901760
  %7960 = vmatprep.subr.mxu0 %v7959
  %v7961 = vand.u32 %v7121, 4294901760
  %7962 = vmatpush1.msra.mxu0 %v7961
  %v7963 = vand.u32 %v7124, 4294901760
  %7964 = vmatprep.subr.mxu0 %v7963
  %v7965 = vand.u32 %v7123, 4294901760
  %7966 = vmatpush1.msra.mxu0 %v7965
  %v7967 = vand.u32 %v7126, 4294901760
  %7968 = vmatprep.subr.mxu0 %v7967
  %v7969 = vand.u32 %v7125, 4294901760
  %7970 = vmatpush1.msra.mxu0 %v7969
  %7971 = vmatprep.subr.mxu0 0.0
  %7972 = vmatpush1.msra.mxu0 0.0
  %7973 = vmatprep.subr.mxu0 0.0
  %7974 = vmatpush1.msra.mxu0 0.0
  %7975 = vmatprep.subr.mxu0 0.0
  %7976 = vmatpush1.msra.mxu0 0.0
  %7977 = vmatprep.subr.mxu0 0.0
  %7978 = vmatpush1.msra.mxu0 0.0
  %7979 = vmatprep.subr.mxu0 0.0
  %7980 = vmatpush1.msra.mxu0 0.0
  %7981 = vmatprep.subr.mxu0 0.0
  %7982 = vmatpush1.msra.mxu0 0.0
  %7983 = vmatprep.subr.mxu0 0.0
  %7984 = vmatpush1.msra.mxu0 0.0
  %7985 = vmatprep.subr.mxu0 0.0
  %7986 = vmatpush1.msra.mxu0 0.0
  %7987 = vmatprep.subr.mxu0 0.0
  %7988 = vmatpush1.msra.mxu0 0.0
  %7989 = vmatprep.subr.mxu0 0.0
  %7990 = vmatpush1.msra.mxu0 0.0
  %7991 = vmatprep.subr.mxu0 0.0
  %7992 = vmatpush1.msra.mxu0 0.0
  %7993 = vmatprep.subr.mxu0 0.0
  %7994 = vmatpush1.msra.mxu0 0.0
  %7995 = vmatprep.subr.mxu0 0.0
  %7996 = vmatpush1.msra.mxu0 0.0
  %7997 = vmatprep.subr.mxu0 0.0
  %7998 = vmatpush1.msra.mxu0 0.0
  %7999 = vmatprep.subr.mxu0 0.0
  %8000 = vmatpush1.msra.mxu0 0.0
  %8001 = vmatprep.subr.mxu0 0.0
  %8002 = vmatpush1.msra.mxu0 0.0
  %8003 = vmatprep.subr.mxu0 0.0
  %8004 = vmatpush1.msra.mxu0 0.0
  %8005 = vmatprep.subr.mxu0 0.0
  %8006 = vmatpush1.msra.mxu0 0.0
  %8007 = vmatprep.subr.mxu0 0.0
  %8008 = vmatpush1.msra.mxu0 0.0
  %8009 = vmatprep.subr.mxu0 0.0
  %8010 = vmatpush1.msra.mxu0 0.0
  %8011 = vmatprep.subr.mxu0 0.0
  %8012 = vmatpush1.msra.mxu0 0.0
  %8013 = vmatprep.subr.mxu0 0.0
  %8014 = vmatpush1.msra.mxu0 0.0
  %8015 = vmatprep.subr.mxu0 0.0
  %8016 = vmatpush1.msra.mxu0 0.0
  %8017 = vmatprep.subr.mxu0 0.0
  %8018 = vmatpush1.msra.mxu0 0.0
  %8019 = vmatprep.subr.mxu0 0.0
  %8020 = vmatpush1.msra.mxu0 0.0
  %8021 = vmatprep.mubr.f32.mxu0 0.0
  %v8022 = vand.u32 %v7136, 4294901760
  %8023 = vmatmul.mubr.f32.gmra.mrb[0].mxu0 %v8022
  %v8024 = vpop.f32.mrb[0].mxu0
  %v8025 = vadd.f32 %v7897, %v8024
  %v8026 = vpop.f32.mrb[0].mxu0
  %v8027 = vadd.f32 %v7899, %v8026
  %8028 = vmatprep.mubr.f32.mxu0 0.0
  %v8029 = vand.u32 %v7139, 4294901760
  %8030 = vmatmul.mubr.f32.gmra.mrb[0].mxu0 %v8029
  %v8031 = vpop.f32.mrb[0].mxu0
  %v8032 = vadd.f32 %v7904, %v8031
  %v8033 = vpop.f32.mrb[0].mxu0
  %v8034 = vadd.f32 %v7906, %v8033
  %8035 = vmatprep.mubr.f32.mxu0 0.0
  %v8036 = vand.u32 %v7142, 4294901760
  %8037 = vmatmul.mubr.f32.gmra.mrb[0].mxu0 %v8036
  %v8038 = vpop.f32.mrb[0].mxu0
  %v8039 = vadd.f32 %v7911, %v8038
  %v8040 = vpop.f32.mrb[0].mxu0
  %v8041 = vadd.f32 %v7913, %v8040
  %8042 = vmatprep.mubr.f32.mxu0 0.0
  %v8043 = vand.u32 %v7145, 4294901760
  %8044 = vmatmul.mubr.f32.gmra.mrb[0].mxu0 %v8043
  %v8045 = vpop.f32.mrb[0].mxu0
  %v8046 = vadd.f32 %v7918, %v8045
  %v8047 = vpop.f32.mrb[0].mxu0
  %v8048 = vadd.f32 %v7920, %v8047
  %8049 = vmatprep.mubr.f32.mxu0 0.0
  %v8050 = vand.u32 %v7148, 4294901760
  %8051 = vmatmul.mubr.f32.gmra.mrb[0].mxu0 %v8050
  %v8052 = vpop.f32.mrb[0].mxu0
  %v8053 = vadd.f32 %v7925, %v8052
  %v8054 = vpop.f32.mrb[0].mxu0
  %v8055 = vadd.f32 %v7927, %v8054
  %8056 = vmatprep.mubr.f32.mxu0 0.0
  %v8057 = vand.u32 %v7151, 4294901760
  %8058 = vmatmul.mubr.f32.gmra.mrb[0].mxu0 %v8057
  %v8059 = vpop.f32.mrb[0].mxu0
  %v8060 = vadd.f32 %v7932, %v8059
  %v8061 = vpop.f32.mrb[0].mxu0
  %v8062 = vadd.f32 %v7934, %v8061
  %8063 = vmatprep.mubr.f32.mxu0 0.0
  %v8064 = vand.u32 %v7154, 4294901760
  %8065 = vmatmul.mubr.f32.gmra.mrb[0].mxu0 %v8064
  %v8066 = vpop.f32.mrb[0].mxu0
  %v8067 = vadd.f32 %v7939, %v8066
  %v8068 = vpop.f32.mrb[0].mxu0
  %v8069 = vadd.f32 %v7941, %v8068
  %8070 = vdwg.mxu0
  %v8071 = vmax.f32 %v8025, 0.0
  %v8072 = vmax.f32 %v8027, 0.0
  %v8073 = vmax.f32 %v8032, 0.0
  %v8074 = vmax.f32 %v8034, 0.0
  %v8075 = vmax.f32 %v8039, 0.0
  %v8076 = vmax.f32 %v8041, 0.0
  %v8077 = vmax.f32 %v8046, 0.0
  %v8078 = vmax.f32 %v8048, 0.0
  %v8079 = vmax.f32 %v8053, 0.0
  %v8080 = vmax.f32 %v8055, 0.0
  %v8081 = vmax.f32 %v8060, 0.0
  %v8082 = vmax.f32 %v8062, 0.0
  %v8083 = vmax.f32 %v8067, 0.0
  %v8084 = vmax.f32 %v8069, 0.0
  %s8085 = scalar_lea.vmem %s3, 392
  %v8086 = vld [vmem:[%s8085] sm:$0xff]
  %v8088 = vsel %vm1386, %v8086, 0
  %v8090 = vand.u32 %v8072, 4294901760
  %8091 = vmatprep.subr.mxu0 %v8090
  %v8092 = vand.u32 %v8071, 4294901760
  %8093 = vmatpush1.msra.mxu0 %v8092
  %v8094 = vand.u32 %v8074, 4294901760
  %8095 = vmatprep.subr.mxu0 %v8094
  %v8096 = vand.u32 %v8073, 4294901760
  %8097 = vmatpush1.msra.mxu0 %v8096
  %v8098 = vand.u32 %v8076, 4294901760
  %8099 = vmatprep.subr.mxu0 %v8098
  %v8100 = vand.u32 %v8075, 4294901760
  %8101 = vmatpush1.msra.mxu0 %v8100
  %v8102 = vand.u32 %v8078, 4294901760
  %8103 = vmatprep.subr.mxu0 %v8102
  %v8104 = vand.u32 %v8077, 4294901760
  %8105 = vmatpush1.msra.mxu0 %v8104
  %v8106 = vand.u32 %v8080, 4294901760
  %8107 = vmatprep.subr.mxu0 %v8106
  %v8108 = vand.u32 %v8079, 4294901760
  %8109 = vmatpush1.msra.mxu0 %v8108
  %v8110 = vand.u32 %v8082, 4294901760
  %8111 = vmatprep.subr.mxu0 %v8110
  %v8112 = vand.u32 %v8081, 4294901760
  %8113 = vmatpush1.msra.mxu0 %v8112
  %v8114 = vand.u32 %v8084, 4294901760
  %8115 = vmatprep.subr.mxu0 %v8114
  %v8116 = vand.u32 %v8083, 4294901760
  %8117 = vmatpush1.msra.mxu0 %v8116
  %8118 = vmatprep.subr.mxu0 0.0
  %8119 = vmatpush1.msra.mxu0 0.0
  %8120 = vmatprep.subr.mxu0 0.0
  %8121 = vmatpush1.msra.mxu0 0.0
  %8122 = vmatprep.subr.mxu0 0.0
  %8123 = vmatpush1.msra.mxu0 0.0
  %8124 = vmatprep.subr.mxu0 0.0
  %8125 = vmatpush1.msra.mxu0 0.0
  %8126 = vmatprep.subr.mxu0 0.0
  %8127 = vmatpush1.msra.mxu0 0.0
  %8128 = vmatprep.subr.mxu0 0.0
  %8129 = vmatpush1.msra.mxu0 0.0
  %8130 = vmatprep.subr.mxu0 0.0
  %8131 = vmatpush1.msra.mxu0 0.0
  %8132 = vmatprep.subr.mxu0 0.0
  %8133 = vmatpush1.msra.mxu0 0.0
  %8134 = vmatprep.subr.mxu0 0.0
  %8135 = vmatpush1.msra.mxu0 0.0
  %8136 = vmatprep.subr.mxu0 0.0
  %8137 = vmatpush1.msra.mxu0 0.0
  %8138 = vmatprep.subr.mxu0 0.0
  %8139 = vmatpush1.msra.mxu0 0.0
  %8140 = vmatprep.subr.mxu0 0.0
  %8141 = vmatpush1.msra.mxu0 0.0
  %8142 = vmatprep.subr.mxu0 0.0
  %8143 = vmatpush1.msra.mxu0 0.0
  %8144 = vmatprep.subr.mxu0 0.0
  %8145 = vmatpush1.msra.mxu0 0.0
  %8146 = vmatprep.subr.mxu0 0.0
  %8147 = vmatpush1.msra.mxu0 0.0
  %8148 = vmatprep.subr.mxu0 0.0
  %8149 = vmatpush1.msra.mxu0 0.0
  %8150 = vmatprep.subr.mxu0 0.0
  %8151 = vmatpush1.msra.mxu0 0.0
  %8152 = vmatprep.subr.mxu0 0.0
  %8153 = vmatpush1.msra.mxu0 0.0
  %8154 = vmatprep.subr.mxu0 0.0
  %8155 = vmatpush1.msra.mxu0 0.0
  %8156 = vmatprep.subr.mxu0 0.0
  %8157 = vmatpush1.msra.mxu0 0.0
  %8158 = vmatprep.subr.mxu0 0.0
  %8159 = vmatpush1.msra.mxu0 0.0
  %8160 = vmatprep.subr.mxu0 0.0
  %8161 = vmatpush1.msra.mxu0 0.0
  %8162 = vmatprep.subr.mxu0 0.0
  %8163 = vmatpush1.msra.mxu0 0.0
  %8164 = vmatprep.subr.mxu0 0.0
  %8165 = vmatpush1.msra.mxu0 0.0
  %8166 = vmatprep.subr.mxu0 0.0
  %8167 = vmatpush1.msra.mxu0 0.0
  %8168 = vmatprep.mubr.f32.mxu0 0.0
  %v8169 = vand.u32 %v8088, 4294901760
  %v8170 = vsub.f32 %v8088, %v8169
  %v8171 = vand.u32 %v8170, 4294901760
  %v8172 = vsub.f32 %v8170, %v8171
  %v8173 = vand.u32 %v8172, 4294901760
  %8174 = vmatmul.mubr.f32.gmra.mrb[0].mxu0 %v8173
  %v8175 = vpop.f32.mrb[0].mxu0
  %v8176 = vadd.f32 0.0, %v8175
  %v8177 = vpop.f32.mrb[0].mxu0
  %v8178 = vadd.f32 0.0, %v8177
  %8179 = vdwg.mxu0
  %v8180 = vand.u32 %v8072, 4294901760
  %v8181 = vsub.f32 %v8072, %v8180
  %v8182 = vand.u32 %v8181, 4294901760
  %v8183 = vsub.f32 %v8181, %v8182
  %v8184 = vand.u32 %v8183, 4294901760
  %8185 = vmatprep.subr.mxu0 %v8184
  %v8186 = vand.u32 %v8071, 4294901760
  %v8187 = vsub.f32 %v8071, %v8186
  %v8188 = vand.u32 %v8187, 4294901760
  %v8189 = vsub.f32 %v8187, %v8188
  %v8190 = vand.u32 %v8189, 4294901760
  %8191 = vmatpush1.msra.mxu0 %v8190
  %v8192 = vand.u32 %v8074, 4294901760
  %v8193 = vsub.f32 %v8074, %v8192
  %v8194 = vand.u32 %v8193, 4294901760
  %v8195 = vsub.f32 %v8193, %v8194
  %v8196 = vand.u32 %v8195, 4294901760
  %8197 = vmatprep.subr.mxu0 %v8196
  %v8198 = vand.u32 %v8073, 4294901760
  %v8199 = vsub.f32 %v8073, %v8198
  %v8200 = vand.u32 %v8199, 4294901760
  %v8201 = vsub.f32 %v8199, %v8200
  %v8202 = vand.u32 %v8201, 4294901760
  %8203 = vmatpush1.msra.mxu0 %v8202
  %v8204 = vand.u32 %v8076, 4294901760
  %v8205 = vsub.f32 %v8076, %v8204
  %v8206 = vand.u32 %v8205, 4294901760
  %v8207 = vsub.f32 %v8205, %v8206
  %v8208 = vand.u32 %v8207, 4294901760
  %8209 = vmatprep.subr.mxu0 %v8208
  %v8210 = vand.u32 %v8075, 4294901760
  %v8211 = vsub.f32 %v8075, %v8210
  %v8212 = vand.u32 %v8211, 4294901760
  %v8213 = vsub.f32 %v8211, %v8212
  %v8214 = vand.u32 %v8213, 4294901760
  %8215 = vmatpush1.msra.mxu0 %v8214
  %v8216 = vand.u32 %v8078, 4294901760
  %v8217 = vsub.f32 %v8078, %v8216
  %v8218 = vand.u32 %v8217, 4294901760
  %v8219 = vsub.f32 %v8217, %v8218
  %v8220 = vand.u32 %v8219, 4294901760
  %8221 = vmatprep.subr.mxu0 %v8220
  %v8222 = vand.u32 %v8077, 4294901760
  %v8223 = vsub.f32 %v8077, %v8222
  %v8224 = vand.u32 %v8223, 4294901760
  %v8225 = vsub.f32 %v8223, %v8224
  %v8226 = vand.u32 %v8225, 4294901760
  %8227 = vmatpush1.msra.mxu0 %v8226
  %v8228 = vand.u32 %v8080, 4294901760
  %v8229 = vsub.f32 %v8080, %v8228
  %v8230 = vand.u32 %v8229, 4294901760
  %v8231 = vsub.f32 %v8229, %v8230
  %v8232 = vand.u32 %v8231, 4294901760
  %8233 = vmatprep.subr.mxu0 %v8232
  %v8234 = vand.u32 %v8079, 4294901760
  %v8235 = vsub.f32 %v8079, %v8234
  %v8236 = vand.u32 %v8235, 4294901760
  %v8237 = vsub.f32 %v8235, %v8236
  %v8238 = vand.u32 %v8237, 4294901760
  %8239 = vmatpush1.msra.mxu0 %v8238
  %v8240 = vand.u32 %v8082, 4294901760
  %v8241 = vsub.f32 %v8082, %v8240
  %v8242 = vand.u32 %v8241, 4294901760
  %v8243 = vsub.f32 %v8241, %v8242
  %v8244 = vand.u32 %v8243, 4294901760
  %8245 = vmatprep.subr.mxu0 %v8244
  %v8246 = vand.u32 %v8081, 4294901760
  %v8247 = vsub.f32 %v8081, %v8246
  %v8248 = vand.u32 %v8247, 4294901760
  %v8249 = vsub.f32 %v8247, %v8248
  %v8250 = vand.u32 %v8249, 4294901760
  %8251 = vmatpush1.msra.mxu0 %v8250
  %v8252 = vand.u32 %v8084, 4294901760
  %v8253 = vsub.f32 %v8084, %v8252
  %v8254 = vand.u32 %v8253, 4294901760
  %v8255 = vsub.f32 %v8253, %v8254
  %v8256 = vand.u32 %v8255, 4294901760
  %8257 = vmatprep.subr.mxu0 %v8256
  %v8258 = vand.u32 %v8083, 4294901760
  %v8259 = vsub.f32 %v8083, %v8258
  %v8260 = vand.u32 %v8259, 4294901760
  %v8261 = vsub.f32 %v8259, %v8260
  %v8262 = vand.u32 %v8261, 4294901760
  %8263 = vmatpush1.msra.mxu0 %v8262
  %8264 = vmatprep.subr.mxu0 0.0
  %8265 = vmatpush1.msra.mxu0 0.0
  %8266 = vmatprep.subr.mxu0 0.0
  %8267 = vmatpush1.msra.mxu0 0.0
  %8268 = vmatprep.subr.mxu0 0.0
  %8269 = vmatpush1.msra.mxu0 0.0
  %8270 = vmatprep.subr.mxu0 0.0
  %8271 = vmatpush1.msra.mxu0 0.0
  %8272 = vmatprep.subr.mxu0 0.0
  %8273 = vmatpush1.msra.mxu0 0.0
  %8274 = vmatprep.subr.mxu0 0.0
  %8275 = vmatpush1.msra.mxu0 0.0
  %8276 = vmatprep.subr.mxu0 0.0
  %8277 = vmatpush1.msra.mxu0 0.0
  %8278 = vmatprep.subr.mxu0 0.0
  %8279 = vmatpush1.msra.mxu0 0.0
  %8280 = vmatprep.subr.mxu0 0.0
  %8281 = vmatpush1.msra.mxu0 0.0
  %8282 = vmatprep.subr.mxu0 0.0
  %8283 = vmatpush1.msra.mxu0 0.0
  %8284 = vmatprep.subr.mxu0 0.0
  %8285 = vmatpush1.msra.mxu0 0.0
  %8286 = vmatprep.subr.mxu0 0.0
  %8287 = vmatpush1.msra.mxu0 0.0
  %8288 = vmatprep.subr.mxu0 0.0
  %8289 = vmatpush1.msra.mxu0 0.0
  %8290 = vmatprep.subr.mxu0 0.0
  %8291 = vmatpush1.msra.mxu0 0.0
  %8292 = vmatprep.subr.mxu0 0.0
  %8293 = vmatpush1.msra.mxu0 0.0
  %8294 = vmatprep.subr.mxu0 0.0
  %8295 = vmatpush1.msra.mxu0 0.0
  %8296 = vmatprep.subr.mxu0 0.0
  %8297 = vmatpush1.msra.mxu0 0.0
  %8298 = vmatprep.subr.mxu0 0.0
  %8299 = vmatpush1.msra.mxu0 0.0
  %8300 = vmatprep.subr.mxu0 0.0
  %8301 = vmatpush1.msra.mxu0 0.0
  %8302 = vmatprep.subr.mxu0 0.0
  %8303 = vmatpush1.msra.mxu0 0.0
  %8304 = vmatprep.subr.mxu0 0.0
  %8305 = vmatpush1.msra.mxu0 0.0
  %8306 = vmatprep.subr.mxu0 0.0
  %8307 = vmatpush1.msra.mxu0 0.0
  %8308 = vmatprep.subr.mxu0 0.0
  %8309 = vmatpush1.msra.mxu0 0.0
  %8310 = vmatprep.subr.mxu0 0.0
  %8311 = vmatpush1.msra.mxu0 0.0
  %8312 = vmatprep.subr.mxu0 0.0
  %8313 = vmatpush1.msra.mxu0 0.0
  %8314 = vmatprep.mubr.f32.mxu0 0.0
  %v8315 = vand.u32 %v8088, 4294901760
  %8316 = vmatmul.mubr.f32.gmra.mrb[0].mxu0 %v8315
  %v8317 = vpop.f32.mrb[0].mxu0
  %v8318 = vadd.f32 %v8176, %v8317
  %v8319 = vpop.f32.mrb[0].mxu0
  %v8320 = vadd.f32 %v8178, %v8319
  %8321 = vdwg.mxu0
  %v8322 = vand.u32 %v8072, 4294901760
  %v8323 = vsub.f32 %v8072, %v8322
  %8324 = vmatprep.subr.mxu0 %v8323
  %v8325 = vand.u32 %v8071, 4294901760
  %v8326 = vsub.f32 %v8071, %v8325
  %8327 = vmatpush1.msra.mxu0 %v8326
  %v8328 = vand.u32 %v8074, 4294901760
  %v8329 = vsub.f32 %v8074, %v8328
  %8330 = vmatprep.subr.mxu0 %v8329
  %v8331 = vand.u32 %v8073, 4294901760
  %v8332 = vsub.f32 %v8073, %v8331
  %8333 = vmatpush1.msra.mxu0 %v8332
  %v8334 = vand.u32 %v8076, 4294901760
  %v8335 = vsub.f32 %v8076, %v8334
  %8336 = vmatprep.subr.mxu0 %v8335
  %v8337 = vand.u32 %v8075, 4294901760
  %v8338 = vsub.f32 %v8075, %v8337
  %8339 = vmatpush1.msra.mxu0 %v8338
  %v8340 = vand.u32 %v8078, 4294901760
  %v8341 = vsub.f32 %v8078, %v8340
  %8342 = vmatprep.subr.mxu0 %v8341
  %v8343 = vand.u32 %v8077, 4294901760
  %v8344 = vsub.f32 %v8077, %v8343
  %8345 = vmatpush1.msra.mxu0 %v8344
  %v8346 = vand.u32 %v8080, 4294901760
  %v8347 = vsub.f32 %v8080, %v8346
  %8348 = vmatprep.subr.mxu0 %v8347
  %v8349 = vand.u32 %v8079, 4294901760
  %v8350 = vsub.f32 %v8079, %v8349
  %8351 = vmatpush1.msra.mxu0 %v8350
  %v8352 = vand.u32 %v8082, 4294901760
  %v8353 = vsub.f32 %v8082, %v8352
  %8354 = vmatprep.subr.mxu0 %v8353
  %v8355 = vand.u32 %v8081, 4294901760
  %v8356 = vsub.f32 %v8081, %v8355
  %8357 = vmatpush1.msra.mxu0 %v8356
  %v8358 = vand.u32 %v8084, 4294901760
  %v8359 = vsub.f32 %v8084, %v8358
  %8360 = vmatprep.subr.mxu0 %v8359
  %v8361 = vand.u32 %v8083, 4294901760
  %v8362 = vsub.f32 %v8083, %v8361
  %8363 = vmatpush1.msra.mxu0 %v8362
  %8364 = vmatprep.subr.mxu0 0.0
  %8365 = vmatpush1.msra.mxu0 0.0
  %8366 = vmatprep.subr.mxu0 0.0
  %8367 = vmatpush1.msra.mxu0 0.0
  %8368 = vmatprep.subr.mxu0 0.0
  %8369 = vmatpush1.msra.mxu0 0.0
  %8370 = vmatprep.subr.mxu0 0.0
  %8371 = vmatpush1.msra.mxu0 0.0
  %8372 = vmatprep.subr.mxu0 0.0
  %8373 = vmatpush1.msra.mxu0 0.0
  %8374 = vmatprep.subr.mxu0 0.0
  %8375 = vmatpush1.msra.mxu0 0.0
  %8376 = vmatprep.subr.mxu0 0.0
  %8377 = vmatpush1.msra.mxu0 0.0
  %8378 = vmatprep.subr.mxu0 0.0
  %8379 = vmatpush1.msra.mxu0 0.0
  %8380 = vmatprep.subr.mxu0 0.0
  %8381 = vmatpush1.msra.mxu0 0.0
  %8382 = vmatprep.subr.mxu0 0.0
  %8383 = vmatpush1.msra.mxu0 0.0
  %8384 = vmatprep.subr.mxu0 0.0
  %8385 = vmatpush1.msra.mxu0 0.0
  %8386 = vmatprep.subr.mxu0 0.0
  %8387 = vmatpush1.msra.mxu0 0.0
  %8388 = vmatprep.subr.mxu0 0.0
  %8389 = vmatpush1.msra.mxu0 0.0
  %8390 = vmatprep.subr.mxu0 0.0
  %8391 = vmatpush1.msra.mxu0 0.0
  %8392 = vmatprep.subr.mxu0 0.0
  %8393 = vmatpush1.msra.mxu0 0.0
  %8394 = vmatprep.subr.mxu0 0.0
  %8395 = vmatpush1.msra.mxu0 0.0
  %8396 = vmatprep.subr.mxu0 0.0
  %8397 = vmatpush1.msra.mxu0 0.0
  %8398 = vmatprep.subr.mxu0 0.0
  %8399 = vmatpush1.msra.mxu0 0.0
  %8400 = vmatprep.subr.mxu0 0.0
  %8401 = vmatpush1.msra.mxu0 0.0
  %8402 = vmatprep.subr.mxu0 0.0
  %8403 = vmatpush1.msra.mxu0 0.0
  %8404 = vmatprep.subr.mxu0 0.0
  %8405 = vmatpush1.msra.mxu0 0.0
  %8406 = vmatprep.subr.mxu0 0.0
  %8407 = vmatpush1.msra.mxu0 0.0
  %8408 = vmatprep.subr.mxu0 0.0
  %8409 = vmatpush1.msra.mxu0 0.0
  %8410 = vmatprep.subr.mxu0 0.0
  %8411 = vmatpush1.msra.mxu0 0.0
  %8412 = vmatprep.subr.mxu0 0.0
  %8413 = vmatpush1.msra.mxu0 0.0
  %8414 = vmatprep.mubr.f32.mxu0 0.0
  %v8415 = vand.u32 %v8088, 4294901760
  %v8416 = vsub.f32 %v8088, %v8415
  %8417 = vmatmul.mubr.f32.gmra.mrb[0].mxu0 %v8416
  %v8418 = vpop.f32.mrb[0].mxu0
  %v8419 = vadd.f32 %v8318, %v8418
  %v8420 = vpop.f32.mrb[0].mxu0
  %v8421 = vadd.f32 %v8320, %v8420
  %8422 = vdwg.mxu0
  %v8423 = vand.u32 %v8072, 4294901760
  %8424 = vmatprep.subr.mxu0 %v8423
  %v8425 = vand.u32 %v8071, 4294901760
  %8426 = vmatpush1.msra.mxu0 %v8425
  %v8427 = vand.u32 %v8074, 4294901760
  %8428 = vmatprep.subr.mxu0 %v8427
  %v8429 = vand.u32 %v8073, 4294901760
  %8430 = vmatpush1.msra.mxu0 %v8429
  %v8431 = vand.u32 %v8076, 4294901760
  %8432 = vmatprep.subr.mxu0 %v8431
  %v8433 = vand.u32 %v8075, 4294901760
  %8434 = vmatpush1.msra.mxu0 %v8433
  %v8435 = vand.u32 %v8078, 4294901760
  %8436 = vmatprep.subr.mxu0 %v8435
  %v8437 = vand.u32 %v8077, 4294901760
  %8438 = vmatpush1.msra.mxu0 %v8437
  %v8439 = vand.u32 %v8080, 4294901760
  %8440 = vmatprep.subr.mxu0 %v8439
  %v8441 = vand.u32 %v8079, 4294901760
  %8442 = vmatpush1.msra.mxu0 %v8441
  %v8443 = vand.u32 %v8082, 4294901760
  %8444 = vmatprep.subr.mxu0 %v8443
  %v8445 = vand.u32 %v8081, 4294901760
  %8446 = vmatpush1.msra.mxu0 %v8445
  %v8447 = vand.u32 %v8084, 4294901760
  %8448 = vmatprep.subr.mxu0 %v8447
  %v8449 = vand.u32 %v8083, 4294901760
  %8450 = vmatpush1.msra.mxu0 %v8449
  %8451 = vmatprep.subr.mxu0 0.0
  %8452 = vmatpush1.msra.mxu0 0.0
  %8453 = vmatprep.subr.mxu0 0.0
  %8454 = vmatpush1.msra.mxu0 0.0
  %8455 = vmatprep.subr.mxu0 0.0
  %8456 = vmatpush1.msra.mxu0 0.0
  %8457 = vmatprep.subr.mxu0 0.0
  %8458 = vmatpush1.msra.mxu0 0.0
  %8459 = vmatprep.subr.mxu0 0.0
  %8460 = vmatpush1.msra.mxu0 0.0
  %8461 = vmatprep.subr.mxu0 0.0
  %8462 = vmatpush1.msra.mxu0 0.0
  %8463 = vmatprep.subr.mxu0 0.0
  %8464 = vmatpush1.msra.mxu0 0.0
  %8465 = vmatprep.subr.mxu0 0.0
  %8466 = vmatpush1.msra.mxu0 0.0
  %8467 = vmatprep.subr.mxu0 0.0
  %8468 = vmatpush1.msra.mxu0 0.0
  %8469 = vmatprep.subr.mxu0 0.0
  %8470 = vmatpush1.msra.mxu0 0.0
  %8471 = vmatprep.subr.mxu0 0.0
  %8472 = vmatpush1.msra.mxu0 0.0
  %8473 = vmatprep.subr.mxu0 0.0
  %8474 = vmatpush1.msra.mxu0 0.0
  %8475 = vmatprep.subr.mxu0 0.0
  %8476 = vmatpush1.msra.mxu0 0.0
  %8477 = vmatprep.subr.mxu0 0.0
  %8478 = vmatpush1.msra.mxu0 0.0
  %8479 = vmatprep.subr.mxu0 0.0
  %8480 = vmatpush1.msra.mxu0 0.0
  %8481 = vmatprep.subr.mxu0 0.0
  %8482 = vmatpush1.msra.mxu0 0.0
  %8483 = vmatprep.subr.mxu0 0.0
  %8484 = vmatpush1.msra.mxu0 0.0
  %8485 = vmatprep.subr.mxu0 0.0
  %8486 = vmatpush1.msra.mxu0 0.0
  %8487 = vmatprep.subr.mxu0 0.0
  %8488 = vmatpush1.msra.mxu0 0.0
  %8489 = vmatprep.subr.mxu0 0.0
  %8490 = vmatpush1.msra.mxu0 0.0
  %8491 = vmatprep.subr.mxu0 0.0
  %8492 = vmatpush1.msra.mxu0 0.0
  %8493 = vmatprep.subr.mxu0 0.0
  %8494 = vmatpush1.msra.mxu0 0.0
  %8495 = vmatprep.subr.mxu0 0.0
  %8496 = vmatpush1.msra.mxu0 0.0
  %8497 = vmatprep.subr.mxu0 0.0
  %8498 = vmatpush1.msra.mxu0 0.0
  %8499 = vmatprep.subr.mxu0 0.0
  %8500 = vmatpush1.msra.mxu0 0.0
  %8501 = vmatprep.mubr.f32.mxu0 0.0
  %v8502 = vand.u32 %v8088, 4294901760
  %v8503 = vsub.f32 %v8088, %v8502
  %v8504 = vand.u32 %v8503, 4294901760
  %8505 = vmatmul.mubr.f32.gmra.mrb[0].mxu0 %v8504
  %v8506 = vpop.f32.mrb[0].mxu0
  %v8507 = vadd.f32 %v8419, %v8506
  %v8508 = vpop.f32.mrb[0].mxu0
  %v8509 = vadd.f32 %v8421, %v8508
  %8510 = vdwg.mxu0
  %v8511 = vand.u32 %v8072, 4294901760
  %v8512 = vsub.f32 %v8072, %v8511
  %v8513 = vand.u32 %v8512, 4294901760
  %8514 = vmatprep.subr.mxu0 %v8513
  %v8515 = vand.u32 %v8071, 4294901760
  %v8516 = vsub.f32 %v8071, %v8515
  %v8517 = vand.u32 %v8516, 4294901760
  %8518 = vmatpush1.msra.mxu0 %v8517
  %v8519 = vand.u32 %v8074, 4294901760
  %v8520 = vsub.f32 %v8074, %v8519
  %v8521 = vand.u32 %v8520, 4294901760
  %8522 = vmatprep.subr.mxu0 %v8521
  %v8523 = vand.u32 %v8073, 4294901760
  %v8524 = vsub.f32 %v8073, %v8523
  %v8525 = vand.u32 %v8524, 4294901760
  %8526 = vmatpush1.msra.mxu0 %v8525
  %v8527 = vand.u32 %v8076, 4294901760
  %v8528 = vsub.f32 %v8076, %v8527
  %v8529 = vand.u32 %v8528, 4294901760
  %8530 = vmatprep.subr.mxu0 %v8529
  %v8531 = vand.u32 %v8075, 4294901760
  %v8532 = vsub.f32 %v8075, %v8531
  %v8533 = vand.u32 %v8532, 4294901760
  %8534 = vmatpush1.msra.mxu0 %v8533
  %v8535 = vand.u32 %v8078, 4294901760
  %v8536 = vsub.f32 %v8078, %v8535
  %v8537 = vand.u32 %v8536, 4294901760
  %8538 = vmatprep.subr.mxu0 %v8537
  %v8539 = vand.u32 %v8077, 4294901760
  %v8540 = vsub.f32 %v8077, %v8539
  %v8541 = vand.u32 %v8540, 4294901760
  %8542 = vmatpush1.msra.mxu0 %v8541
  %v8543 = vand.u32 %v8080, 4294901760
  %v8544 = vsub.f32 %v8080, %v8543
  %v8545 = vand.u32 %v8544, 4294901760
  %8546 = vmatprep.subr.mxu0 %v8545
  %v8547 = vand.u32 %v8079, 4294901760
  %v8548 = vsub.f32 %v8079, %v8547
  %v8549 = vand.u32 %v8548, 4294901760
  %8550 = vmatpush1.msra.mxu0 %v8549
  %v8551 = vand.u32 %v8082, 4294901760
  %v8552 = vsub.f32 %v8082, %v8551
  %v8553 = vand.u32 %v8552, 4294901760
  %8554 = vmatprep.subr.mxu0 %v8553
  %v8555 = vand.u32 %v8081, 4294901760
  %v8556 = vsub.f32 %v8081, %v8555
  %v8557 = vand.u32 %v8556, 4294901760
  %8558 = vmatpush1.msra.mxu0 %v8557
  %v8559 = vand.u32 %v8084, 4294901760
  %v8560 = vsub.f32 %v8084, %v8559
  %v8561 = vand.u32 %v8560, 4294901760
  %8562 = vmatprep.subr.mxu0 %v8561
  %v8563 = vand.u32 %v8083, 4294901760
  %v8564 = vsub.f32 %v8083, %v8563
  %v8565 = vand.u32 %v8564, 4294901760
  %8566 = vmatpush1.msra.mxu0 %v8565
  %8567 = vmatprep.subr.mxu0 0.0
  %8568 = vmatpush1.msra.mxu0 0.0
  %8569 = vmatprep.subr.mxu0 0.0
  %8570 = vmatpush1.msra.mxu0 0.0
  %8571 = vmatprep.subr.mxu0 0.0
  %8572 = vmatpush1.msra.mxu0 0.0
  %8573 = vmatprep.subr.mxu0 0.0
  %8574 = vmatpush1.msra.mxu0 0.0
  %8575 = vmatprep.subr.mxu0 0.0
  %8576 = vmatpush1.msra.mxu0 0.0
  %8577 = vmatprep.subr.mxu0 0.0
  %8578 = vmatpush1.msra.mxu0 0.0
  %8579 = vmatprep.subr.mxu0 0.0
  %8580 = vmatpush1.msra.mxu0 0.0
  %8581 = vmatprep.subr.mxu0 0.0
  %8582 = vmatpush1.msra.mxu0 0.0
  %8583 = vmatprep.subr.mxu0 0.0
  %8584 = vmatpush1.msra.mxu0 0.0
  %8585 = vmatprep.subr.mxu0 0.0
  %8586 = vmatpush1.msra.mxu0 0.0
  %8587 = vmatprep.subr.mxu0 0.0
  %8588 = vmatpush1.msra.mxu0 0.0
  %8589 = vmatprep.subr.mxu0 0.0
  %8590 = vmatpush1.msra.mxu0 0.0
  %8591 = vmatprep.subr.mxu0 0.0
  %8592 = vmatpush1.msra.mxu0 0.0
  %8593 = vmatprep.subr.mxu0 0.0
  %8594 = vmatpush1.msra.mxu0 0.0
  %8595 = vmatprep.subr.mxu0 0.0
  %8596 = vmatpush1.msra.mxu0 0.0
  %8597 = vmatprep.subr.mxu0 0.0
  %8598 = vmatpush1.msra.mxu0 0.0
  %8599 = vmatprep.subr.mxu0 0.0
  %8600 = vmatpush1.msra.mxu0 0.0
  %8601 = vmatprep.subr.mxu0 0.0
  %8602 = vmatpush1.msra.mxu0 0.0
  %8603 = vmatprep.subr.mxu0 0.0
  %8604 = vmatpush1.msra.mxu0 0.0
  %8605 = vmatprep.subr.mxu0 0.0
  %8606 = vmatpush1.msra.mxu0 0.0
  %8607 = vmatprep.subr.mxu0 0.0
  %8608 = vmatpush1.msra.mxu0 0.0
  %8609 = vmatprep.subr.mxu0 0.0
  %8610 = vmatpush1.msra.mxu0 0.0
  %8611 = vmatprep.subr.mxu0 0.0
  %8612 = vmatpush1.msra.mxu0 0.0
  %8613 = vmatprep.subr.mxu0 0.0
  %8614 = vmatpush1.msra.mxu0 0.0
  %8615 = vmatprep.subr.mxu0 0.0
  %8616 = vmatpush1.msra.mxu0 0.0
  %8617 = vmatprep.mubr.f32.mxu0 0.0
  %v8618 = vand.u32 %v8088, 4294901760
  %8619 = vmatmul.mubr.f32.gmra.mrb[0].mxu0 %v8618
  %v8620 = vpop.f32.mrb[0].mxu0
  %v8621 = vadd.f32 %v8507, %v8620
  %v8622 = vpop.f32.mrb[0].mxu0
  %v8623 = vadd.f32 %v8509, %v8622
  %8624 = vdwg.mxu0
  %v8625 = vand.u32 %v8072, 4294901760
  %8626 = vmatprep.subr.mxu0 %v8625
  %v8627 = vand.u32 %v8071, 4294901760
  %8628 = vmatpush1.msra.mxu0 %v8627
  %v8629 = vand.u32 %v8074, 4294901760
  %8630 = vmatprep.subr.mxu0 %v8629
  %v8631 = vand.u32 %v8073, 4294901760
  %8632 = vmatpush1.msra.mxu0 %v8631
  %v8633 = vand.u32 %v8076, 4294901760
  %8634 = vmatprep.subr.mxu0 %v8633
  %v8635 = vand.u32 %v8075, 4294901760
  %8636 = vmatpush1.msra.mxu0 %v8635
  %v8637 = vand.u32 %v8078, 4294901760
  %8638 = vmatprep.subr.mxu0 %v8637
  %v8639 = vand.u32 %v8077, 4294901760
  %8640 = vmatpush1.msra.mxu0 %v8639
  %v8641 = vand.u32 %v8080, 4294901760
  %8642 = vmatprep.subr.mxu0 %v8641
  %v8643 = vand.u32 %v8079, 4294901760
  %8644 = vmatpush1.msra.mxu0 %v8643
  %v8645 = vand.u32 %v8082, 4294901760
  %8646 = vmatprep.subr.mxu0 %v8645
  %v8647 = vand.u32 %v8081, 4294901760
  %8648 = vmatpush1.msra.mxu0 %v8647
  %v8649 = vand.u32 %v8084, 4294901760
  %8650 = vmatprep.subr.mxu0 %v8649
  %v8651 = vand.u32 %v8083, 4294901760
  %8652 = vmatpush1.msra.mxu0 %v8651
  %8653 = vmatprep.subr.mxu0 0.0
  %8654 = vmatpush1.msra.mxu0 0.0
  %8655 = vmatprep.subr.mxu0 0.0
  %8656 = vmatpush1.msra.mxu0 0.0
  %8657 = vmatprep.subr.mxu0 0.0
  %8658 = vmatpush1.msra.mxu0 0.0
  %8659 = vmatprep.subr.mxu0 0.0
  %8660 = vmatpush1.msra.mxu0 0.0
  %8661 = vmatprep.subr.mxu0 0.0
  %8662 = vmatpush1.msra.mxu0 0.0
  %8663 = vmatprep.subr.mxu0 0.0
  %8664 = vmatpush1.msra.mxu0 0.0
  %8665 = vmatprep.subr.mxu0 0.0
  %8666 = vmatpush1.msra.mxu0 0.0
  %8667 = vmatprep.subr.mxu0 0.0
  %8668 = vmatpush1.msra.mxu0 0.0
  %8669 = vmatprep.subr.mxu0 0.0
  %8670 = vmatpush1.msra.mxu0 0.0
  %8671 = vmatprep.subr.mxu0 0.0
  %8672 = vmatpush1.msra.mxu0 0.0
  %8673 = vmatprep.subr.mxu0 0.0
  %8674 = vmatpush1.msra.mxu0 0.0
  %8675 = vmatprep.subr.mxu0 0.0
  %8676 = vmatpush1.msra.mxu0 0.0
  %8677 = vmatprep.subr.mxu0 0.0
  %8678 = vmatpush1.msra.mxu0 0.0
  %8679 = vmatprep.subr.mxu0 0.0
  %8680 = vmatpush1.msra.mxu0 0.0
  %8681 = vmatprep.subr.mxu0 0.0
  %8682 = vmatpush1.msra.mxu0 0.0
  %8683 = vmatprep.subr.mxu0 0.0
  %8684 = vmatpush1.msra.mxu0 0.0
  %8685 = vmatprep.subr.mxu0 0.0
  %8686 = vmatpush1.msra.mxu0 0.0
  %8687 = vmatprep.subr.mxu0 0.0
  %8688 = vmatpush1.msra.mxu0 0.0
  %8689 = vmatprep.subr.mxu0 0.0
  %8690 = vmatpush1.msra.mxu0 0.0
  %8691 = vmatprep.subr.mxu0 0.0
  %8692 = vmatpush1.msra.mxu0 0.0
  %8693 = vmatprep.subr.mxu0 0.0
  %8694 = vmatpush1.msra.mxu0 0.0
  %8695 = vmatprep.subr.mxu0 0.0
  %8696 = vmatpush1.msra.mxu0 0.0
  %8697 = vmatprep.subr.mxu0 0.0
  %8698 = vmatpush1.msra.mxu0 0.0
  %8699 = vmatprep.subr.mxu0 0.0
  %8700 = vmatpush1.msra.mxu0 0.0
  %8701 = vmatprep.subr.mxu0 0.0
  %8702 = vmatpush1.msra.mxu0 0.0
  %8703 = vmatprep.mubr.f32.mxu0 0.0
  %v8704 = vand.u32 %v8088, 4294901760
  %8705 = vmatmul.mubr.f32.gmra.mrb[0].mxu0 %v8704
  %v8706 = vpop.f32.mrb[0].mxu0
  %v8707 = vadd.f32 %v8621, %v8706
  %v8708 = vpop.f32.mrb[0].mxu0
  %v8709 = vadd.f32 %v8623, %v8708
  %8710 = vdwg.mxu0
  %v8711 = vxor.u32 %v8707, 2147483648
  %v8712 = vxor.u32 %v8709, 2147483648
  %v8713 = vmul.f32 %v8711, 1.442695
  %v8714 = vpow.pop %v8713
  %v8715 = vmul.f32 %v8712, 1.442695
  %v8716 = vpow.pop %v8715
  %v8717 = vadd.f32 %v8714, 1.0
  %v8718 = vadd.f32 %v8716, 1.0
  %v8719 = vrcp.pop %v8717
  %v8720 = vmul.f32 1.0, %v8719
  %v8721 = vrcp.pop %v8718
  %v8722 = vmul.f32 1.0, %v8721
  %v8725 = vcombine.low %v8720, %v8722
  %v8727 = vunpack.c.l.s4 1966171168
  %v8728 = vunpack.c.0.s8 %v8727
  %v8729 = vlaneseq
  %v8730 = vshrl.u32 %v8729, 7
  %v8731 = vsub.s32 %v8728, %v8730
  %v8732 = vrot.slane %v8725, %v8731
  %v8734 = vunpack.c.l.s4 1966171168
  %v8735 = vunpack.c.0.s8 %v8734
  %v8736 = vlaneseq
  %v8737 = vshrl.u32 %v8736, 7
  %v8738 = vsub.s32 %v8735, %v8737
  %v8739 = vrot.slane %v8732, %v8738
  %v8741 = vlaneseq
  %vm8742 = vcmp.ge.s32.totalorder %v8741, 0
  %vm8743 = vcmp.lt.s32.totalorder %v8741, 256
  %vm8744 = vmand %vm8742, %vm8743
  %8745 = vst.msk [vmem:[%s4] sm:$0x3] %vm8744, %v8739
  // Predicated region
  $region18: #{net3_apply.1} parent=0 // pred_check
    _
  $region19: #{net3_apply.1} parent=0 // pred_check_branch
    %8747 = sbr.rel (0) target = $region21
  $region20: #{net3_apply.1} parent=0 // pred_region
    _
  $region21: #{net3_apply.1} parent=0 // pred_fallthru
    _
  // Predicated region
  $region22: #{net3_apply.1} parent=0 // pred_check
    _
  $region23: #{net3_apply.1} parent=0 // pred_check_branch
    %8749 = sbr.rel (0) target = $region25
  $region24: #{net3_apply.1} parent=0 // pred_region
    _
  $region25: #{net3_apply.1} parent=0 // pred_fallthru
    _

</llo_original>
